<compile_context>
chip_gen: v6e
topology: v6e:2x2x1
jax: 0.10.0
libtpu: 0.0.40
codegen_flags: <defaults>
</compile_context>

<pallas_src>
import functools

import jax
import jax.numpy as jnp
from jax.experimental import pallas as pl
from jax.experimental.pallas import tpu as pltpu

C0 = 128  # channel count produced by the Linear / consumed by conv1


# --------------------------- in-kernel helpers ------------------------------

def _flatten_rows(x):
    """(B, H, W, C) -> (B*H*W, C). W is a multiple of 8, so both reshapes are
    pure tile reinterpretations (no data movement)."""
    B, H, W, C = x.shape
    return x.reshape(B * H, W, C).reshape(B * H * W, C)


def _unflatten_rows(x2, B, H, W):
    """(B*H*W, C) -> (B, H, W, C); inverse of _flatten_rows."""
    C = x2.shape[-1]
    return x2.reshape(B * H, W, C).reshape(B, H, W, C)


def _upsample2x_pad_into(pad_ref, x):
    """Nearest-neighbour 2x upsample + 1-px zero halo written into a VMEM
    scratch ref pad_ref of shape (B, 2H+2, 2W+2, C).

    H duplication: outer-dim concat + leading-dim reshapes (whole-tile copies).
    W duplication + halo: one 2-wide interior store per source column into the
    pre-zeroed scratch (W masked stores total).
    """
    B, H, W, C = x.shape
    pad_ref[...] = jnp.zeros_like(pad_ref)
    # ---- H duplication (rows 0,0,1,1,...) using leading-dim ops only -------
    x2 = x.reshape(B * H, W, C)
    xh = jnp.concatenate([x2[:, None], x2[:, None]], axis=1)      # (B*H, 2, W, C)
    xh = xh.reshape(B * H * 2, W, C).reshape(B, 2 * H, W, C)
    # ---- W duplication + zero halo: interior stores into the scratch -------
    for w in range(W):
        col = xh[:, :, w:w + 1]                                   # (B, 2H, 1, C)
        pad_ref[:, 1:2 * H + 1, 1 + 2 * w:3 + 2 * w, :] = jnp.broadcast_to(
            col, (B, 2 * H, 2, C))


def _conv3x3_im2col(xp, w_ref, b_ref):
    """3x3 SAME conv as ONE wide-K MXU matmul (K = 9*Cin), bf16 MXU inputs.

    xp   : (B, H+2, W+2, Cin) zero-padded NHWC activation (f32 value)
    w_ref: (9*Cin, Cout) bf16, rows ordered (ky, kx, Cin)  [HWIO flatten]
    b_ref: (1, Cout) f32
    returns (B*H*W, Cout) f32
    """
    B, Hp, Wp, Cin = xp.shape
    H, W = Hp - 2, Wp - 2
    # dx (W-axis, sublane-misaligned) shifts hoisted: built once per conv.
    xw = jnp.concatenate(
        [xp[:, :, 0:W], xp[:, :, 1:1 + W], xp[:, :, 2:2 + W]], axis=-1)
    # dy shifts are outer-dim slices (free); lane-concat -> full im2col patch.
    patch = jnp.concatenate(
        [xw[:, 0:H], xw[:, 1:1 + H], xw[:, 2:2 + H]], axis=-1)    # (B,H,W,9Cin)
    p2 = _flatten_rows(patch).astype(jnp.bfloat16)                # (B*H*W, 9Cin)
    y = jnp.dot(p2, w_ref[...], preferred_element_type=jnp.float32)
    return y + b_ref[...]


def _batchnorm2d(x2, g_ref, b_ref, eps, relu):
    """Training-mode BatchNorm over the rows of an (N, C) slab (N = B*H*W),
    two-pass centered variance (biased, as PyTorch), optional fused ReLU."""
    n = x2.shape[0]
    mean = jnp.sum(x2, axis=0, keepdims=True) / n                 # (1, C)
    d = x2 - mean
    var = jnp.sum(d * d, axis=0, keepdims=True) / n
    scale = g_ref[...] * jax.lax.rsqrt(var + eps)
    shift = b_ref[...] - mean * scale
    y = x2 * scale + shift
    if relu:
        y = jnp.maximum(y, 0.0)
    return y


def _conv3x3_c1_tanh(xp, w_ref, b_ref):
    """Final 3x3 conv (Cout=1) + fused tanh on the VPU.

    Per-tap products accumulate in channel space (3*Cin lanes wide); a single
    cross-lane reduction finishes the conv (1 XLU reduce instead of 9).
    xp: (B, H+2, W+2, Cin); w_ref: (3, 3*Cin) rows indexed by dy; b_ref: (1, 1).
    """
    B, Hp, Wp, Cin = xp.shape
    H, W = Hp - 2, Wp - 2
    xw = jnp.concatenate(
        [xp[:, :, 0:W], xp[:, :, 1:1 + W], xp[:, :, 2:2 + W]], axis=-1)
    acc = xw[:, 0:H] * w_ref[0:1][None, None]                     # (B,H,W,3Cin)
    for dy in range(1, 3):
        acc = acc + xw[:, dy:dy + H] * w_ref[dy:dy + 1][None, None]
    s = jnp.sum(acc, axis=-1, keepdims=True) + b_ref[...]
    return jnp.tanh(s)                                            # (B, H, W, 1)


# ------------------------------ fused kernel --------------------------------

def generator_kernel(z_ref, l1w_ref, l1b_ref,
                     bn1g_ref, bn1b_ref,
                     w1_ref, b1_ref, bn2g_ref, bn2b_ref,
                     w2_ref, b2_ref, bn3g_ref, bn3b_ref,
                     w3_ref, b3_ref,
                     img_ref, pad1_ref, pad2_ref, pad3_ref, *, init_size):
    B = z_ref.shape[0]
    P2 = init_size * init_size
    n1 = B * P2

    # ---- l1: Linear (weights pre-permuted so columns are NHWC-ordered) -----
    lin = (jnp.dot(z_ref[...], l1w_ref[...],
                   preferred_element_type=jnp.float32)
           + l1b_ref[...])                                        # (B, P2*128)

    # ---- BN1 statistics off the lane-blocked linear output -----------------
    # Channel c of spatial site p lives in lane p*128 + c: fold the P2 aligned
    # 128-lane blocks.  Variance is centered per block (no tiled-mean temp).
    col_sum = jnp.sum(lin, axis=0, keepdims=True)                 # (1, P2*128)
    mean1 = col_sum[:, 0:C0]
    for p in range(1, P2):
        mean1 = mean1 + col_sum[:, p * C0:(p + 1) * C0]
    mean1 = mean1 / n1                                            # (1, 128)
    vacc = jnp.zeros((1, C0), jnp.float32)
    for p in range(P2):
        d = lin[:, p * C0:(p + 1) * C0] - mean1
        vacc = vacc + jnp.sum(d * d, axis=0, keepdims=True)
    var1 = vacc / n1
    scale1 = bn1g_ref[...] * jax.lax.rsqrt(var1 + 1e-5)           # BN1 eps = 1e-5
    shift1 = bn1b_ref[...] - mean1 * scale1

    # ---- fused BN1-normalize + 2x upsample + zero halo into pad1 scratch ---
    # Each 128-lane block is one spatial site; normalize it and store it
    # straight to its 2x2 upsampled footprint inside the padded buffer.
    pad1_ref[...] = jnp.zeros_like(pad1_ref)
    for h in range(init_size):
        for w in range(init_size):
            p = h * init_size + w
            blk = lin[:, p * C0:(p + 1) * C0] * scale1 + shift1   # (B, 128)
            pad1_ref[:, 1 + 2 * h:3 + 2 * h, 1 + 2 * w:3 + 2 * w, :] = (
                jnp.broadcast_to(blk[:, None, None, :], (B, 2, 2, C0)))

    # ---- block 1: conv(128->128) -> BN2(eps=0.8) + ReLU ---------------------
    H1 = 2 * init_size
    y = _conv3x3_im2col(pad1_ref[...], w1_ref, b1_ref)            # (B*H1*H1, 128)
    y = _batchnorm2d(y, bn2g_ref, bn2b_ref, eps=0.8, relu=True)
    x = _unflatten_rows(y, B, H1, H1)

    # ---- block 2: up2x + pad -> conv(128->64) -> BN3(eps=0.8) + ReLU --------
    _upsample2x_pad_into(pad2_ref, x)
    H2 = 2 * H1
    y = _conv3x3_im2col(pad2_ref[...], w2_ref, b2_ref)            # (B*H2*H2, 64)
    y = _batchnorm2d(y, bn3g_ref, bn3b_ref, eps=0.8, relu=True)
    x = _unflatten_rows(y, B, H2, H2)

    # ---- final: pad -> conv(64->1) + tanh -----------------------------------
    pad3_ref[...] = jnp.zeros_like(pad3_ref)
    pad3_ref[:, 1:H2 + 1, 1:H2 + 1, :] = x
    img_ref[...] = _conv3x3_c1_tanh(pad3_ref[...], w3_ref, b3_ref)


# --------------------------- host-side wrappers -----------------------------

def prepare_params(p, init_size):
    """One-time re-layout of the PyTorch-style parameters for the kernel."""
    P2 = init_size * init_size
    # l1 columns: PyTorch order is (c, h, w)-major; permute to NHWC (h, w, c).
    hw = jnp.arange(P2)
    cc = jnp.arange(C0)
    perm = (cc[None, :] * P2 + hw[:, None]).reshape(-1)           # new col -> old col
    k1, k2, k3 = p["conv1_w"], p["conv2_w"], p["conv3_w"]         # HWIO
    return {
        "l1_w": p["l1_w"][:, perm],
        "l1_b": p["l1_b"][perm][None, :],
        "bn1_g": p["bn1_g"][None, :], "bn1_b": p["bn1_b"][None, :],
        # conv1/conv2: flattened (9*Cin, Cout), bf16 for the native MXU rate.
        "w1": k1.reshape(9 * k1.shape[2], k1.shape[3]).astype(jnp.bfloat16),
        "b1": p["conv1_b"][None, :],
        "bn2_g": p["bn2_g"][None, :], "bn2_b": p["bn2_b"][None, :],
        "w2": k2.reshape(9 * k2.shape[2], k2.shape[3]).astype(jnp.bfloat16),
        "b2": p["conv2_b"][None, :],
        "bn3_g": p["bn3_g"][None, :], "bn3_b": p["bn3_b"][None, :],
        # conv3 (Cout=1): (3, 3*Cin) f32; row dy = [dx=0 | dx=1 | dx=2] x Cin.
        "w3": k3[..., 0].reshape(3, 3 * k3.shape[2]),
        "b3": p["conv3_b"].reshape(1, 1),
    }


def generator_forward(z, kp, init_size):
    B = z.shape[0]
    img_size = 4 * init_size
    c2 = kp["w2"].shape[1]                                        # conv2 Cout (64)
    out = pl.pallas_call(
        functools.partial(generator_kernel, init_size=init_size),
        out_shape=jax.ShapeDtypeStruct((B, img_size, img_size, 1), jnp.float32),
        scratch_shapes=[
            # padded conv inputs (zero halo lives in these scratch buffers)
            pltpu.VMEM((B, 2 * init_size + 2, 2 * init_size + 2, C0), jnp.float32),
            pltpu.VMEM((B, img_size + 2, img_size + 2, C0), jnp.float32),
            pltpu.VMEM((B, img_size + 2, img_size + 2, c2), jnp.float32),
        ],
        compiler_params=pltpu.CompilerParams(
            vmem_limit_bytes=32 * 1024 * 1024),
    )(z, kp["l1_w"], kp["l1_b"], kp["bn1_g"], kp["bn1_b"],
      kp["w1"], kp["b1"], kp["bn2_g"], kp["bn2_b"],
      kp["w2"], kp["b2"], kp["bn3_g"], kp["bn3_b"],
      kp["w3"], kp["b3"])
    # NHWC (Cout=1) -> NCHW; tiny (2 KiB) boundary transpose, cheaper than the
    # in-kernel relayout a lane-dense store would require.
    return jnp.transpose(out, (0, 3, 1, 2))


# ---------------------------- pure-JAX reference ----------------------------

def _upsample2x_ref(x):  # nearest-neighbor, NHWC
    return jnp.repeat(jnp.repeat(x, 2, axis=1), 2, axis=2)


def _bn_ref(x, g, b, eps):
    mean = x.mean(axis=(0, 1, 2))
    var = x.var(axis=(0, 1, 2))
    return (x - mean) / jnp.sqrt(var + eps) * g + b


def _conv_ref(x, w, b):
    y = jax.lax.conv_general_dilated(
        x, w, (1, 1), "SAME",
        dimension_numbers=("NHWC", "HWIO", "NHWC"),
        precision=jax.lax.Precision.HIGHEST)
    return y + b


def generator_reference(z, p, init_size):
    B = z.shape[0]
    out = jnp.dot(z, p["l1_w"], precision=jax.lax.Precision.HIGHEST) + p["l1_b"]
    x = out.reshape(B, 128, init_size, init_size).transpose(0, 2, 3, 1)
    x = _bn_ref(x, p["bn1_g"], p["bn1_b"], 1e-5)
    x = _upsample2x_ref(x)
    x = _conv_ref(x, p["conv1_w"], p["conv1_b"])
    x = jnp.maximum(_bn_ref(x, p["bn2_g"], p["bn2_b"], 0.8), 0.0)
    x = _upsample2x_ref(x)
    x = _conv_ref(x, p["conv2_w"], p["conv2_b"])
    x = jnp.maximum(_bn_ref(x, p["bn3_g"], p["bn3_b"], 0.8), 0.0)
    x = jnp.tanh(_conv_ref(x, p["conv3_w"], p["conv3_b"]))
    return x.transpose(0, 3, 1, 2)


# ----------------------------------- main ------------------------------------

if __name__ == "__main__":
    # Small, forward-consistent shapes.
    B, latent_dim, num_channels, image_size = 2, 32, 1, 16
    init_size = image_size // 4                       # 4
    hidden = 128 * init_size * init_size              # 2048

    key = jax.random.PRNGKey(0)
    ks = jax.random.split(key, 16)

    def normal(k, shape, scale):
        return (scale * jax.random.normal(k, shape)).astype(jnp.float32)

    params = {
        "l1_w": normal(ks[0], (latent_dim, hidden), 0.05),
        "l1_b": normal(ks[1], (hidden,), 0.01),
        "bn1_g": 1.0 + normal(ks[2], (128,), 0.1),
        "bn1_b": normal(ks[3], (128,), 0.1),
        "conv1_w": normal(ks[4], (3, 3, 128, 128), 0.05),
        "conv1_b": normal(ks[5], (128,), 0.01),
        "bn2_g": 1.0 + normal(ks[6], (128,), 0.1),
        "bn2_b": normal(ks[7], (128,), 0.1),
        "conv2_w": normal(ks[8], (3, 3, 128, 64), 0.05),
        "conv2_b": normal(ks[9], (64,), 0.01),
        "bn3_g": 1.0 + normal(ks[10], (64,), 0.1),
        "bn3_b": normal(ks[11], (64,), 0.1),
        "conv3_w": normal(ks[12], (3, 3, 64, num_channels), 0.05),
        "conv3_b": normal(ks[13], (num_channels,), 0.01),
    }

    z = jax.random.normal(ks[14], (B, latent_dim), dtype=jnp.float32)

    kparams = prepare_params(params, init_size)       # one-time weight re-layout
    fwd = jax.jit(functools.partial(generator_forward, init_size=init_size))
    img = jax.block_until_ready(fwd(z, kparams))
    assert img.shape == (B, num_channels, image_size, image_size), img.shape

    ref = generator_reference(z, params, init_size)
    max_err = float(jnp.max(jnp.abs(img - ref)))
    assert jnp.isfinite(img).all()
    # Tightened from 5e-2; the remaining slack covers the bf16 MXU inputs
    # (all-f32 path would be ~1e-3).
    assert max_err < 3e-2, f"mismatch vs reference: {max_err}"

    print("KERNEL_OK")
</pallas_src>

<mosaic_0001>
module attributes {stable_mosaic.version = 11 : i64} {
  func.func @generator_kernel(%arg0: memref<2x32xf32, #tpu.memory_space<vmem>>, %arg1: memref<32x2048xf32, #tpu.memory_space<vmem>>, %arg2: memref<1x2048xf32, #tpu.memory_space<vmem>>, %arg3: memref<1x128xf32, #tpu.memory_space<vmem>>, %arg4: memref<1x128xf32, #tpu.memory_space<vmem>>, %arg5: memref<1152x128xbf16, #tpu.memory_space<vmem>>, %arg6: memref<1x128xf32, #tpu.memory_space<vmem>>, %arg7: memref<1x128xf32, #tpu.memory_space<vmem>>, %arg8: memref<1x128xf32, #tpu.memory_space<vmem>>, %arg9: memref<1152x64xbf16, #tpu.memory_space<vmem>>, %arg10: memref<1x64xf32, #tpu.memory_space<vmem>>, %arg11: memref<1x64xf32, #tpu.memory_space<vmem>>, %arg12: memref<1x64xf32, #tpu.memory_space<vmem>>, %arg13: memref<3x192xf32, #tpu.memory_space<vmem>>, %arg14: memref<1x1xf32, #tpu.memory_space<vmem>>, %arg15: memref<2x16x16x1xf32, #tpu.memory_space<vmem>>, %arg16: memref<2x10x10x128xf32, #tpu.memory_space<vmem>>, %arg17: memref<2x18x18x128xf32, #tpu.memory_space<vmem>>, %arg18: memref<2x18x18x64xf32, #tpu.memory_space<vmem>>) attributes {dimension_semantics = [], scalar_prefetch = 0 : i64, scratch_operands = 3 : i64, tpu.core_type = #tpu.core_type<tc>} {
    %c0 = arith.constant 0 : index
    %c0_0 = arith.constant 0 : index
    %0 = vector.load %arg0[%c0, %c0_0] : memref<2x32xf32, #tpu.memory_space<vmem>>, vector<2x32xf32>
    %c0_1 = arith.constant 0 : index
    %c0_2 = arith.constant 0 : index
    %1 = vector.load %arg1[%c0_1, %c0_2] : memref<32x2048xf32, #tpu.memory_space<vmem>>, vector<32x2048xf32>
    %cst = arith.constant dense<0.000000e+00> : vector<2x2048xf32>
    %2 = tpu.matmul %0, %1, %cst {dimension_numbers = #tpu.dot_dimension_numbers<[1], [0], [0], [1], [0, 0, 1, 1], [], []>} : vector<2x32xf32>, vector<32x2048xf32>, vector<2x2048xf32> -> vector<2x2048xf32>
    %c0_3 = arith.constant 0 : index
    %c0_4 = arith.constant 0 : index
    %3 = vector.load %arg2[%c0_3, %c0_4] : memref<1x2048xf32, #tpu.memory_space<vmem>>, vector<1x2048xf32>
    %4 = vector.broadcast %3 : vector<1x2048xf32> to vector<2x2048xf32>
    %5 = arith.addf %2, %4 : vector<2x2048xf32>
    %cst_5 = arith.constant dense<0.000000e+00> : vector<2048xf32>
    %6 = vector.multi_reduction <add>, %5, %cst_5 [0] : vector<2x2048xf32> to vector<2048xf32>
    %7 = vector.shape_cast %6 : vector<2048xf32> to vector<1x2048xf32>
    %8 = vector.extract_strided_slice %7 {offsets = [0, 0], sizes = [1, 128], strides = [1, 1]} : vector<1x2048xf32> to vector<1x128xf32>
    %9 = vector.extract_strided_slice %7 {offsets = [0, 128], sizes = [1, 128], strides = [1, 1]} : vector<1x2048xf32> to vector<1x128xf32>
    %10 = arith.addf %8, %9 : vector<1x128xf32>
    %11 = vector.extract_strided_slice %7 {offsets = [0, 256], sizes = [1, 128], strides = [1, 1]} : vector<1x2048xf32> to vector<1x128xf32>
    %12 = arith.addf %10, %11 : vector<1x128xf32>
    %13 = vector.extract_strided_slice %7 {offsets = [0, 384], sizes = [1, 128], strides = [1, 1]} : vector<1x2048xf32> to vector<1x128xf32>
    %14 = arith.addf %12, %13 : vector<1x128xf32>
    %15 = vector.extract_strided_slice %7 {offsets = [0, 512], sizes = [1, 128], strides = [1, 1]} : vector<1x2048xf32> to vector<1x128xf32>
    %16 = arith.addf %14, %15 : vector<1x128xf32>
    %17 = vector.extract_strided_slice %7 {offsets = [0, 640], sizes = [1, 128], strides = [1, 1]} : vector<1x2048xf32> to vector<1x128xf32>
    %18 = arith.addf %16, %17 : vector<1x128xf32>
    %19 = vector.extract_strided_slice %7 {offsets = [0, 768], sizes = [1, 128], strides = [1, 1]} : vector<1x2048xf32> to vector<1x128xf32>
    %20 = arith.addf %18, %19 : vector<1x128xf32>
    %21 = vector.extract_strided_slice %7 {offsets = [0, 896], sizes = [1, 128], strides = [1, 1]} : vector<1x2048xf32> to vector<1x128xf32>
    %22 = arith.addf %20, %21 : vector<1x128xf32>
    %23 = vector.extract_strided_slice %7 {offsets = [0, 1024], sizes = [1, 128], strides = [1, 1]} : vector<1x2048xf32> to vector<1x128xf32>
    %24 = arith.addf %22, %23 : vector<1x128xf32>
    %25 = vector.extract_strided_slice %7 {offsets = [0, 1152], sizes = [1, 128], strides = [1, 1]} : vector<1x2048xf32> to vector<1x128xf32>
    %26 = arith.addf %24, %25 : vector<1x128xf32>
    %27 = vector.extract_strided_slice %7 {offsets = [0, 1280], sizes = [1, 128], strides = [1, 1]} : vector<1x2048xf32> to vector<1x128xf32>
    %28 = arith.addf %26, %27 : vector<1x128xf32>
    %29 = vector.extract_strided_slice %7 {offsets = [0, 1408], sizes = [1, 128], strides = [1, 1]} : vector<1x2048xf32> to vector<1x128xf32>
    %30 = arith.addf %28, %29 : vector<1x128xf32>
    %31 = vector.extract_strided_slice %7 {offsets = [0, 1536], sizes = [1, 128], strides = [1, 1]} : vector<1x2048xf32> to vector<1x128xf32>
    %32 = arith.addf %30, %31 : vector<1x128xf32>
    %33 = vector.extract_strided_slice %7 {offsets = [0, 1664], sizes = [1, 128], strides = [1, 1]} : vector<1x2048xf32> to vector<1x128xf32>
    %34 = arith.addf %32, %33 : vector<1x128xf32>
    %35 = vector.extract_strided_slice %7 {offsets = [0, 1792], sizes = [1, 128], strides = [1, 1]} : vector<1x2048xf32> to vector<1x128xf32>
    %36 = arith.addf %34, %35 : vector<1x128xf32>
    %37 = vector.extract_strided_slice %7 {offsets = [0, 1920], sizes = [1, 128], strides = [1, 1]} : vector<1x2048xf32> to vector<1x128xf32>
    %38 = arith.addf %36, %37 : vector<1x128xf32>
    %cst_6 = arith.constant 3.200000e+01 : f32
    %39 = vector.broadcast %cst_6 : f32 to vector<1x128xf32>
    %40 = arith.divf %38, %39 : vector<1x128xf32>
    %cst_7 = arith.constant 0.000000e+00 : f32
    %41 = vector.broadcast %cst_7 : f32 to vector<1x128xf32>
    %42 = vector.extract_strided_slice %5 {offsets = [0, 0], sizes = [2, 128], strides = [1, 1]} : vector<2x2048xf32> to vector<2x128xf32>
    %43 = vector.broadcast %40 : vector<1x128xf32> to vector<2x128xf32>
    %44 = arith.subf %42, %43 : vector<2x128xf32>
    %45 = arith.mulf %44, %44 : vector<2x128xf32>
    %cst_8 = arith.constant dense<0.000000e+00> : vector<128xf32>
    %46 = vector.multi_reduction <add>, %45, %cst_8 [0] : vector<2x128xf32> to vector<128xf32>
    %47 = vector.shape_cast %46 : vector<128xf32> to vector<1x128xf32>
    %48 = arith.addf %41, %47 : vector<1x128xf32>
    %49 = vector.extract_strided_slice %5 {offsets = [0, 128], sizes = [2, 128], strides = [1, 1]} : vector<2x2048xf32> to vector<2x128xf32>
    %50 = vector.broadcast %40 : vector<1x128xf32> to vector<2x128xf32>
    %51 = arith.subf %49, %50 : vector<2x128xf32>
    %52 = arith.mulf %51, %51 : vector<2x128xf32>
    %cst_9 = arith.constant dense<0.000000e+00> : vector<128xf32>
    %53 = vector.multi_reduction <add>, %52, %cst_9 [0] : vector<2x128xf32> to vector<128xf32>
    %54 = vector.shape_cast %53 : vector<128xf32> to vector<1x128xf32>
    %55 = arith.addf %48, %54 : vector<1x128xf32>
    %56 = vector.extract_strided_slice %5 {offsets = [0, 256], sizes = [2, 128], strides = [1, 1]} : vector<2x2048xf32> to vector<2x128xf32>
    %57 = vector.broadcast %40 : vector<1x128xf32> to vector<2x128xf32>
    %58 = arith.subf %56, %57 : vector<2x128xf32>
    %59 = arith.mulf %58, %58 : vector<2x128xf32>
    %cst_10 = arith.constant dense<0.000000e+00> : vector<128xf32>
    %60 = vector.multi_reduction <add>, %59, %cst_10 [0] : vector<2x128xf32> to vector<128xf32>
    %61 = vector.shape_cast %60 : vector<128xf32> to vector<1x128xf32>
    %62 = arith.addf %55, %61 : vector<1x128xf32>
    %63 = vector.extract_strided_slice %5 {offsets = [0, 384], sizes = [2, 128], strides = [1, 1]} : vector<2x2048xf32> to vector<2x128xf32>
    %64 = vector.broadcast %40 : vector<1x128xf32> to vector<2x128xf32>
    %65 = arith.subf %63, %64 : vector<2x128xf32>
    %66 = arith.mulf %65, %65 : vector<2x128xf32>
    %cst_11 = arith.constant dense<0.000000e+00> : vector<128xf32>
    %67 = vector.multi_reduction <add>, %66, %cst_11 [0] : vector<2x128xf32> to vector<128xf32>
    %68 = vector.shape_cast %67 : vector<128xf32> to vector<1x128xf32>
    %69 = arith.addf %62, %68 : vector<1x128xf32>
    %70 = vector.extract_strided_slice %5 {offsets = [0, 512], sizes = [2, 128], strides = [1, 1]} : vector<2x2048xf32> to vector<2x128xf32>
    %71 = vector.broadcast %40 : vector<1x128xf32> to vector<2x128xf32>
    %72 = arith.subf %70, %71 : vector<2x128xf32>
    %73 = arith.mulf %72, %72 : vector<2x128xf32>
    %cst_12 = arith.constant dense<0.000000e+00> : vector<128xf32>
    %74 = vector.multi_reduction <add>, %73, %cst_12 [0] : vector<2x128xf32> to vector<128xf32>
    %75 = vector.shape_cast %74 : vector<128xf32> to vector<1x128xf32>
    %76 = arith.addf %69, %75 : vector<1x128xf32>
    %77 = vector.extract_strided_slice %5 {offsets = [0, 640], sizes = [2, 128], strides = [1, 1]} : vector<2x2048xf32> to vector<2x128xf32>
    %78 = vector.broadcast %40 : vector<1x128xf32> to vector<2x128xf32>
    %79 = arith.subf %77, %78 : vector<2x128xf32>
    %80 = arith.mulf %79, %79 : vector<2x128xf32>
    %cst_13 = arith.constant dense<0.000000e+00> : vector<128xf32>
    %81 = vector.multi_reduction <add>, %80, %cst_13 [0] : vector<2x128xf32> to vector<128xf32>
    %82 = vector.shape_cast %81 : vector<128xf32> to vector<1x128xf32>
    %83 = arith.addf %76, %82 : vector<1x128xf32>
    %84 = vector.extract_strided_slice %5 {offsets = [0, 768], sizes = [2, 128], strides = [1, 1]} : vector<2x2048xf32> to vector<2x128xf32>
    %85 = vector.broadcast %40 : vector<1x128xf32> to vector<2x128xf32>
    %86 = arith.subf %84, %85 : vector<2x128xf32>
    %87 = arith.mulf %86, %86 : vector<2x128xf32>
    %cst_14 = arith.constant dense<0.000000e+00> : vector<128xf32>
    %88 = vector.multi_reduction <add>, %87, %cst_14 [0] : vector<2x128xf32> to vector<128xf32>
    %89 = vector.shape_cast %88 : vector<128xf32> to vector<1x128xf32>
    %90 = arith.addf %83, %89 : vector<1x128xf32>
    %91 = vector.extract_strided_slice %5 {offsets = [0, 896], sizes = [2, 128], strides = [1, 1]} : vector<2x2048xf32> to vector<2x128xf32>
    %92 = vector.broadcast %40 : vector<1x128xf32> to vector<2x128xf32>
    %93 = arith.subf %91, %92 : vector<2x128xf32>
    %94 = arith.mulf %93, %93 : vector<2x128xf32>
    %cst_15 = arith.constant dense<0.000000e+00> : vector<128xf32>
    %95 = vector.multi_reduction <add>, %94, %cst_15 [0] : vector<2x128xf32> to vector<128xf32>
    %96 = vector.shape_cast %95 : vector<128xf32> to vector<1x128xf32>
    %97 = arith.addf %90, %96 : vector<1x128xf32>
    %98 = vector.extract_strided_slice %5 {offsets = [0, 1024], sizes = [2, 128], strides = [1, 1]} : vector<2x2048xf32> to vector<2x128xf32>
    %99 = vector.broadcast %40 : vector<1x128xf32> to vector<2x128xf32>
    %100 = arith.subf %98, %99 : vector<2x128xf32>
    %101 = arith.mulf %100, %100 : vector<2x128xf32>
    %cst_16 = arith.constant dense<0.000000e+00> : vector<128xf32>
    %102 = vector.multi_reduction <add>, %101, %cst_16 [0] : vector<2x128xf32> to vector<128xf32>
    %103 = vector.shape_cast %102 : vector<128xf32> to vector<1x128xf32>
    %104 = arith.addf %97, %103 : vector<1x128xf32>
    %105 = vector.extract_strided_slice %5 {offsets = [0, 1152], sizes = [2, 128], strides = [1, 1]} : vector<2x2048xf32> to vector<2x128xf32>
    %106 = vector.broadcast %40 : vector<1x128xf32> to vector<2x128xf32>
    %107 = arith.subf %105, %106 : vector<2x128xf32>
    %108 = arith.mulf %107, %107 : vector<2x128xf32>
    %cst_17 = arith.constant dense<0.000000e+00> : vector<128xf32>
    %109 = vector.multi_reduction <add>, %108, %cst_17 [0] : vector<2x128xf32> to vector<128xf32>
    %110 = vector.shape_cast %109 : vector<128xf32> to vector<1x128xf32>
    %111 = arith.addf %104, %110 : vector<1x128xf32>
    %112 = vector.extract_strided_slice %5 {offsets = [0, 1280], sizes = [2, 128], strides = [1, 1]} : vector<2x2048xf32> to vector<2x128xf32>
    %113 = vector.broadcast %40 : vector<1x128xf32> to vector<2x128xf32>
    %114 = arith.subf %112, %113 : vector<2x128xf32>
    %115 = arith.mulf %114, %114 : vector<2x128xf32>
    %cst_18 = arith.constant dense<0.000000e+00> : vector<128xf32>
    %116 = vector.multi_reduction <add>, %115, %cst_18 [0] : vector<2x128xf32> to vector<128xf32>
    %117 = vector.shape_cast %116 : vector<128xf32> to vector<1x128xf32>
    %118 = arith.addf %111, %117 : vector<1x128xf32>
    %119 = vector.extract_strided_slice %5 {offsets = [0, 1408], sizes = [2, 128], strides = [1, 1]} : vector<2x2048xf32> to vector<2x128xf32>
    %120 = vector.broadcast %40 : vector<1x128xf32> to vector<2x128xf32>
    %121 = arith.subf %119, %120 : vector<2x128xf32>
    %122 = arith.mulf %121, %121 : vector<2x128xf32>
    %cst_19 = arith.constant dense<0.000000e+00> : vector<128xf32>
    %123 = vector.multi_reduction <add>, %122, %cst_19 [0] : vector<2x128xf32> to vector<128xf32>
    %124 = vector.shape_cast %123 : vector<128xf32> to vector<1x128xf32>
    %125 = arith.addf %118, %124 : vector<1x128xf32>
    %126 = vector.extract_strided_slice %5 {offsets = [0, 1536], sizes = [2, 128], strides = [1, 1]} : vector<2x2048xf32> to vector<2x128xf32>
    %127 = vector.broadcast %40 : vector<1x128xf32> to vector<2x128xf32>
    %128 = arith.subf %126, %127 : vector<2x128xf32>
    %129 = arith.mulf %128, %128 : vector<2x128xf32>
    %cst_20 = arith.constant dense<0.000000e+00> : vector<128xf32>
    %130 = vector.multi_reduction <add>, %129, %cst_20 [0] : vector<2x128xf32> to vector<128xf32>
    %131 = vector.shape_cast %130 : vector<128xf32> to vector<1x128xf32>
    %132 = arith.addf %125, %131 : vector<1x128xf32>
    %133 = vector.extract_strided_slice %5 {offsets = [0, 1664], sizes = [2, 128], strides = [1, 1]} : vector<2x2048xf32> to vector<2x128xf32>
    %134 = vector.broadcast %40 : vector<1x128xf32> to vector<2x128xf32>
    %135 = arith.subf %133, %134 : vector<2x128xf32>
    %136 = arith.mulf %135, %135 : vector<2x128xf32>
    %cst_21 = arith.constant dense<0.000000e+00> : vector<128xf32>
    %137 = vector.multi_reduction <add>, %136, %cst_21 [0] : vector<2x128xf32> to vector<128xf32>
    %138 = vector.shape_cast %137 : vector<128xf32> to vector<1x128xf32>
    %139 = arith.addf %132, %138 : vector<1x128xf32>
    %140 = vector.extract_strided_slice %5 {offsets = [0, 1792], sizes = [2, 128], strides = [1, 1]} : vector<2x2048xf32> to vector<2x128xf32>
    %141 = vector.broadcast %40 : vector<1x128xf32> to vector<2x128xf32>
    %142 = arith.subf %140, %141 : vector<2x128xf32>
    %143 = arith.mulf %142, %142 : vector<2x128xf32>
    %cst_22 = arith.constant dense<0.000000e+00> : vector<128xf32>
    %144 = vector.multi_reduction <add>, %143, %cst_22 [0] : vector<2x128xf32> to vector<128xf32>
    %145 = vector.shape_cast %144 : vector<128xf32> to vector<1x128xf32>
    %146 = arith.addf %139, %145 : vector<1x128xf32>
    %147 = vector.extract_strided_slice %5 {offsets = [0, 1920], sizes = [2, 128], strides = [1, 1]} : vector<2x2048xf32> to vector<2x128xf32>
    %148 = vector.broadcast %40 : vector<1x128xf32> to vector<2x128xf32>
    %149 = arith.subf %147, %148 : vector<2x128xf32>
    %150 = arith.mulf %149, %149 : vector<2x128xf32>
    %cst_23 = arith.constant dense<0.000000e+00> : vector<128xf32>
    %151 = vector.multi_reduction <add>, %150, %cst_23 [0] : vector<2x128xf32> to vector<128xf32>
    %152 = vector.shape_cast %151 : vector<128xf32> to vector<1x128xf32>
    %153 = arith.addf %146, %152 : vector<1x128xf32>
    %cst_24 = arith.constant 3.200000e+01 : f32
    %154 = vector.broadcast %cst_24 : f32 to vector<1x128xf32>
    %155 = arith.divf %153, %154 : vector<1x128xf32>
    %c0_25 = arith.constant 0 : index
    %c0_26 = arith.constant 0 : index
    %156 = vector.load %arg3[%c0_25, %c0_26] : memref<1x128xf32, #tpu.memory_space<vmem>>, vector<1x128xf32>
    %cst_27 = arith.constant 9.99999974E-6 : f32
    %157 = vector.broadcast %cst_27 : f32 to vector<1x128xf32>
    %158 = arith.addf %155, %157 : vector<1x128xf32>
    %159 = math.rsqrt %158 : vector<1x128xf32>
    %160 = arith.mulf %156, %159 : vector<1x128xf32>
    %c0_28 = arith.constant 0 : index
    %c0_29 = arith.constant 0 : index
    %161 = vector.load %arg4[%c0_28, %c0_29] : memref<1x128xf32, #tpu.memory_space<vmem>>, vector<1x128xf32>
    %162 = arith.mulf %40, %160 : vector<1x128xf32>
    %163 = arith.subf %161, %162 : vector<1x128xf32>
    %cst_30 = arith.constant 0.000000e+00 : f32
    %164 = vector.broadcast %cst_30 : f32 to vector<2x10x10x128xf32>
    %c0_31 = arith.constant 0 : index
    %c0_32 = arith.constant 0 : index
    %c0_33 = arith.constant 0 : index
    %c0_34 = arith.constant 0 : index
    %165 = vector.load %arg16[%c0_31, %c0_32, %c0_33, %c0_34] : memref<2x10x10x128xf32, #tpu.memory_space<vmem>>, vector<2x10x10x128xf32>
    tpu.vector_store %arg16[%c0_31, %c0_32, %c0_33, %c0_34], %164 {strides = array<i32>} : memref<2x10x10x128xf32, #tpu.memory_space<vmem>>, vector<2x10x10x128xf32>,
    %166 = vector.extract_strided_slice %5 {offsets = [0, 0], sizes = [2, 128], strides = [1, 1]} : vector<2x2048xf32> to vector<2x128xf32>
    %167 = vector.broadcast %160 : vector<1x128xf32> to vector<2x128xf32>
    %168 = arith.mulf %166, %167 : vector<2x128xf32>
    %169 = vector.broadcast %163 : vector<1x128xf32> to vector<2x128xf32>
    %170 = arith.addf %168, %169 : vector<2x128xf32>
    %171 = vector.shape_cast %170 : vector<2x128xf32> to vector<2x1x1x128xf32>
    %172 = vector.shape_cast %171 : vector<2x1x1x128xf32> to vector<2x1x1x128xf32>
    %173 = vector.broadcast %172 : vector<2x1x1x128xf32> to vector<2x2x2x128xf32>
    %c0_35 = arith.constant 0 : index
    %c1 = arith.constant 1 : index
    %c1_36 = arith.constant 1 : index
    %c0_37 = arith.constant 0 : index
    %174 = vector.load %arg16[%c0_35, %c1, %c1_36, %c0_37] : memref<2x10x10x128xf32, #tpu.memory_space<vmem>>, vector<2x2x2x128xf32>
    tpu.vector_store %arg16[%c0_35, %c1, %c1_36, %c0_37], %173 {strides = array<i32>} : memref<2x10x10x128xf32, #tpu.memory_space<vmem>>, vector<2x2x2x128xf32>,
    %175 = vector.extract_strided_slice %5 {offsets = [0, 128], sizes = [2, 128], strides = [1, 1]} : vector<2x2048xf32> to vector<2x128xf32>
    %176 = vector.broadcast %160 : vector<1x128xf32> to vector<2x128xf32>
    %177 = arith.mulf %175, %176 : vector<2x128xf32>
    %178 = vector.broadcast %163 : vector<1x128xf32> to vector<2x128xf32>
    %179 = arith.addf %177, %178 : vector<2x128xf32>
    %180 = vector.shape_cast %179 : vector<2x128xf32> to vector<2x1x1x128xf32>
    %181 = vector.shape_cast %180 : vector<2x1x1x128xf32> to vector<2x1x1x128xf32>
    %182 = vector.broadcast %181 : vector<2x1x1x128xf32> to vector<2x2x2x128xf32>
    %c0_38 = arith.constant 0 : index
    %c1_39 = arith.constant 1 : index
    %c3 = arith.constant 3 : index
    %c0_40 = arith.constant 0 : index
    %183 = vector.load %arg16[%c0_38, %c1_39, %c3, %c0_40] : memref<2x10x10x128xf32, #tpu.memory_space<vmem>>, vector<2x2x2x128xf32>
    tpu.vector_store %arg16[%c0_38, %c1_39, %c3, %c0_40], %182 {strides = array<i32>} : memref<2x10x10x128xf32, #tpu.memory_space<vmem>>, vector<2x2x2x128xf32>,
    %184 = vector.extract_strided_slice %5 {offsets = [0, 256], sizes = [2, 128], strides = [1, 1]} : vector<2x2048xf32> to vector<2x128xf32>
    %185 = vector.broadcast %160 : vector<1x128xf32> to vector<2x128xf32>
    %186 = arith.mulf %184, %185 : vector<2x128xf32>
    %187 = vector.broadcast %163 : vector<1x128xf32> to vector<2x128xf32>
    %188 = arith.addf %186, %187 : vector<2x128xf32>
    %189 = vector.shape_cast %188 : vector<2x128xf32> to vector<2x1x1x128xf32>
    %190 = vector.shape_cast %189 : vector<2x1x1x128xf32> to vector<2x1x1x128xf32>
    %191 = vector.broadcast %190 : vector<2x1x1x128xf32> to vector<2x2x2x128xf32>
    %c0_41 = arith.constant 0 : index
    %c1_42 = arith.constant 1 : index
    %c5 = arith.constant 5 : index
    %c0_43 = arith.constant 0 : index
    %192 = vector.load %arg16[%c0_41, %c1_42, %c5, %c0_43] : memref<2x10x10x128xf32, #tpu.memory_space<vmem>>, vector<2x2x2x128xf32>
    tpu.vector_store %arg16[%c0_41, %c1_42, %c5, %c0_43], %191 {strides = array<i32>} : memref<2x10x10x128xf32, #tpu.memory_space<vmem>>, vector<2x2x2x128xf32>,
    %193 = vector.extract_strided_slice %5 {offsets = [0, 384], sizes = [2, 128], strides = [1, 1]} : vector<2x2048xf32> to vector<2x128xf32>
    %194 = vector.broadcast %160 : vector<1x128xf32> to vector<2x128xf32>
    %195 = arith.mulf %193, %194 : vector<2x128xf32>
    %196 = vector.broadcast %163 : vector<1x128xf32> to vector<2x128xf32>
    %197 = arith.addf %195, %196 : vector<2x128xf32>
    %198 = vector.shape_cast %197 : vector<2x128xf32> to vector<2x1x1x128xf32>
    %199 = vector.shape_cast %198 : vector<2x1x1x128xf32> to vector<2x1x1x128xf32>
    %200 = vector.broadcast %199 : vector<2x1x1x128xf32> to vector<2x2x2x128xf32>
    %c0_44 = arith.constant 0 : index
    %c1_45 = arith.constant 1 : index
    %c7 = arith.constant 7 : index
    %c0_46 = arith.constant 0 : index
    %201 = vector.load %arg16[%c0_44, %c1_45, %c7, %c0_46] : memref<2x10x10x128xf32, #tpu.memory_space<vmem>>, vector<2x2x2x128xf32>
    tpu.vector_store %arg16[%c0_44, %c1_45, %c7, %c0_46], %200 {strides = array<i32>} : memref<2x10x10x128xf32, #tpu.memory_space<vmem>>, vector<2x2x2x128xf32>,
    %202 = vector.extract_strided_slice %5 {offsets = [0, 512], sizes = [2, 128], strides = [1, 1]} : vector<2x2048xf32> to vector<2x128xf32>
    %203 = vector.broadcast %160 : vector<1x128xf32> to vector<2x128xf32>
    %204 = arith.mulf %202, %203 : vector<2x128xf32>
    %205 = vector.broadcast %163 : vector<1x128xf32> to vector<2x128xf32>
    %206 = arith.addf %204, %205 : vector<2x128xf32>
    %207 = vector.shape_cast %206 : vector<2x128xf32> to vector<2x1x1x128xf32>
    %208 = vector.shape_cast %207 : vector<2x1x1x128xf32> to vector<2x1x1x128xf32>
    %209 = vector.broadcast %208 : vector<2x1x1x128xf32> to vector<2x2x2x128xf32>
    %c0_47 = arith.constant 0 : index
    %c3_48 = arith.constant 3 : index
    %c1_49 = arith.constant 1 : index
    %c0_50 = arith.constant 0 : index
    %210 = vector.load %arg16[%c0_47, %c3_48, %c1_49, %c0_50] : memref<2x10x10x128xf32, #tpu.memory_space<vmem>>, vector<2x2x2x128xf32>
    tpu.vector_store %arg16[%c0_47, %c3_48, %c1_49, %c0_50], %209 {strides = array<i32>} : memref<2x10x10x128xf32, #tpu.memory_space<vmem>>, vector<2x2x2x128xf32>,
    %211 = vector.extract_strided_slice %5 {offsets = [0, 640], sizes = [2, 128], strides = [1, 1]} : vector<2x2048xf32> to vector<2x128xf32>
    %212 = vector.broadcast %160 : vector<1x128xf32> to vector<2x128xf32>
    %213 = arith.mulf %211, %212 : vector<2x128xf32>
    %214 = vector.broadcast %163 : vector<1x128xf32> to vector<2x128xf32>
    %215 = arith.addf %213, %214 : vector<2x128xf32>
    %216 = vector.shape_cast %215 : vector<2x128xf32> to vector<2x1x1x128xf32>
    %217 = vector.shape_cast %216 : vector<2x1x1x128xf32> to vector<2x1x1x128xf32>
    %218 = vector.broadcast %217 : vector<2x1x1x128xf32> to vector<2x2x2x128xf32>
    %c0_51 = arith.constant 0 : index
    %c3_52 = arith.constant 3 : index
    %c3_53 = arith.constant 3 : index
    %c0_54 = arith.constant 0 : index
    %219 = vector.load %arg16[%c0_51, %c3_52, %c3_53, %c0_54] : memref<2x10x10x128xf32, #tpu.memory_space<vmem>>, vector<2x2x2x128xf32>
    tpu.vector_store %arg16[%c0_51, %c3_52, %c3_53, %c0_54], %218 {strides = array<i32>} : memref<2x10x10x128xf32, #tpu.memory_space<vmem>>, vector<2x2x2x128xf32>,
    %220 = vector.extract_strided_slice %5 {offsets = [0, 768], sizes = [2, 128], strides = [1, 1]} : vector<2x2048xf32> to vector<2x128xf32>
    %221 = vector.broadcast %160 : vector<1x128xf32> to vector<2x128xf32>
    %222 = arith.mulf %220, %221 : vector<2x128xf32>
    %223 = vector.broadcast %163 : vector<1x128xf32> to vector<2x128xf32>
    %224 = arith.addf %222, %223 : vector<2x128xf32>
    %225 = vector.shape_cast %224 : vector<2x128xf32> to vector<2x1x1x128xf32>
    %226 = vector.shape_cast %225 : vector<2x1x1x128xf32> to vector<2x1x1x128xf32>
    %227 = vector.broadcast %226 : vector<2x1x1x128xf32> to vector<2x2x2x128xf32>
    %c0_55 = arith.constant 0 : index
    %c3_56 = arith.constant 3 : index
    %c5_57 = arith.constant 5 : index
    %c0_58 = arith.constant 0 : index
    %228 = vector.load %arg16[%c0_55, %c3_56, %c5_57, %c0_58] : memref<2x10x10x128xf32, #tpu.memory_space<vmem>>, vector<2x2x2x128xf32>
    tpu.vector_store %arg16[%c0_55, %c3_56, %c5_57, %c0_58], %227 {strides = array<i32>} : memref<2x10x10x128xf32, #tpu.memory_space<vmem>>, vector<2x2x2x128xf32>,
    %229 = vector.extract_strided_slice %5 {offsets = [0, 896], sizes = [2, 128], strides = [1, 1]} : vector<2x2048xf32> to vector<2x128xf32>
    %230 = vector.broadcast %160 : vector<1x128xf32> to vector<2x128xf32>
    %231 = arith.mulf %229, %230 : vector<2x128xf32>
    %232 = vector.broadcast %163 : vector<1x128xf32> to vector<2x128xf32>
    %233 = arith.addf %231, %232 : vector<2x128xf32>
    %234 = vector.shape_cast %233 : vector<2x128xf32> to vector<2x1x1x128xf32>
    %235 = vector.shape_cast %234 : vector<2x1x1x128xf32> to vector<2x1x1x128xf32>
    %236 = vector.broadcast %235 : vector<2x1x1x128xf32> to vector<2x2x2x128xf32>
    %c0_59 = arith.constant 0 : index
    %c3_60 = arith.constant 3 : index
    %c7_61 = arith.constant 7 : index
    %c0_62 = arith.constant 0 : index
    %237 = vector.load %arg16[%c0_59, %c3_60, %c7_61, %c0_62] : memref<2x10x10x128xf32, #tpu.memory_space<vmem>>, vector<2x2x2x128xf32>
    tpu.vector_store %arg16[%c0_59, %c3_60, %c7_61, %c0_62], %236 {strides = array<i32>} : memref<2x10x10x128xf32, #tpu.memory_space<vmem>>, vector<2x2x2x128xf32>,
    %238 = vector.extract_strided_slice %5 {offsets = [0, 1024], sizes = [2, 128], strides = [1, 1]} : vector<2x2048xf32> to vector<2x128xf32>
    %239 = vector.broadcast %160 : vector<1x128xf32> to vector<2x128xf32>
    %240 = arith.mulf %238, %239 : vector<2x128xf32>
    %241 = vector.broadcast %163 : vector<1x128xf32> to vector<2x128xf32>
    %242 = arith.addf %240, %241 : vector<2x128xf32>
    %243 = vector.shape_cast %242 : vector<2x128xf32> to vector<2x1x1x128xf32>
    %244 = vector.shape_cast %243 : vector<2x1x1x128xf32> to vector<2x1x1x128xf32>
    %245 = vector.broadcast %244 : vector<2x1x1x128xf32> to vector<2x2x2x128xf32>
    %c0_63 = arith.constant 0 : index
    %c5_64 = arith.constant 5 : index
    %c1_65 = arith.constant 1 : index
    %c0_66 = arith.constant 0 : index
    %246 = vector.load %arg16[%c0_63, %c5_64, %c1_65, %c0_66] : memref<2x10x10x128xf32, #tpu.memory_space<vmem>>, vector<2x2x2x128xf32>
    tpu.vector_store %arg16[%c0_63, %c5_64, %c1_65, %c0_66], %245 {strides = array<i32>} : memref<2x10x10x128xf32, #tpu.memory_space<vmem>>, vector<2x2x2x128xf32>,
    %247 = vector.extract_strided_slice %5 {offsets = [0, 1152], sizes = [2, 128], strides = [1, 1]} : vector<2x2048xf32> to vector<2x128xf32>
    %248 = vector.broadcast %160 : vector<1x128xf32> to vector<2x128xf32>
    %249 = arith.mulf %247, %248 : vector<2x128xf32>
    %250 = vector.broadcast %163 : vector<1x128xf32> to vector<2x128xf32>
    %251 = arith.addf %249, %250 : vector<2x128xf32>
    %252 = vector.shape_cast %251 : vector<2x128xf32> to vector<2x1x1x128xf32>
    %253 = vector.shape_cast %252 : vector<2x1x1x128xf32> to vector<2x1x1x128xf32>
    %254 = vector.broadcast %253 : vector<2x1x1x128xf32> to vector<2x2x2x128xf32>
    %c0_67 = arith.constant 0 : index
    %c5_68 = arith.constant 5 : index
    %c3_69 = arith.constant 3 : index
    %c0_70 = arith.constant 0 : index
    %255 = vector.load %arg16[%c0_67, %c5_68, %c3_69, %c0_70] : memref<2x10x10x128xf32, #tpu.memory_space<vmem>>, vector<2x2x2x128xf32>
    tpu.vector_store %arg16[%c0_67, %c5_68, %c3_69, %c0_70], %254 {strides = array<i32>} : memref<2x10x10x128xf32, #tpu.memory_space<vmem>>, vector<2x2x2x128xf32>,
    %256 = vector.extract_strided_slice %5 {offsets = [0, 1280], sizes = [2, 128], strides = [1, 1]} : vector<2x2048xf32> to vector<2x128xf32>
    %257 = vector.broadcast %160 : vector<1x128xf32> to vector<2x128xf32>
    %258 = arith.mulf %256, %257 : vector<2x128xf32>
    %259 = vector.broadcast %163 : vector<1x128xf32> to vector<2x128xf32>
    %260 = arith.addf %258, %259 : vector<2x128xf32>
    %261 = vector.shape_cast %260 : vector<2x128xf32> to vector<2x1x1x128xf32>
    %262 = vector.shape_cast %261 : vector<2x1x1x128xf32> to vector<2x1x1x128xf32>
    %263 = vector.broadcast %262 : vector<2x1x1x128xf32> to vector<2x2x2x128xf32>
    %c0_71 = arith.constant 0 : index
    %c5_72 = arith.constant 5 : index
    %c5_73 = arith.constant 5 : index
    %c0_74 = arith.constant 0 : index
    %264 = vector.load %arg16[%c0_71, %c5_72, %c5_73, %c0_74] : memref<2x10x10x128xf32, #tpu.memory_space<vmem>>, vector<2x2x2x128xf32>
    tpu.vector_store %arg16[%c0_71, %c5_72, %c5_73, %c0_74], %263 {strides = array<i32>} : memref<2x10x10x128xf32, #tpu.memory_space<vmem>>, vector<2x2x2x128xf32>,
    %265 = vector.extract_strided_slice %5 {offsets = [0, 1408], sizes = [2, 128], strides = [1, 1]} : vector<2x2048xf32> to vector<2x128xf32>
    %266 = vector.broadcast %160 : vector<1x128xf32> to vector<2x128xf32>
    %267 = arith.mulf %265, %266 : vector<2x128xf32>
    %268 = vector.broadcast %163 : vector<1x128xf32> to vector<2x128xf32>
    %269 = arith.addf %267, %268 : vector<2x128xf32>
    %270 = vector.shape_cast %269 : vector<2x128xf32> to vector<2x1x1x128xf32>
    %271 = vector.shape_cast %270 : vector<2x1x1x128xf32> to vector<2x1x1x128xf32>
    %272 = vector.broadcast %271 : vector<2x1x1x128xf32> to vector<2x2x2x128xf32>
    %c0_75 = arith.constant 0 : index
    %c5_76 = arith.constant 5 : index
    %c7_77 = arith.constant 7 : index
    %c0_78 = arith.constant 0 : index
    %273 = vector.load %arg16[%c0_75, %c5_76, %c7_77, %c0_78] : memref<2x10x10x128xf32, #tpu.memory_space<vmem>>, vector<2x2x2x128xf32>
    tpu.vector_store %arg16[%c0_75, %c5_76, %c7_77, %c0_78], %272 {strides = array<i32>} : memref<2x10x10x128xf32, #tpu.memory_space<vmem>>, vector<2x2x2x128xf32>,
    %274 = vector.extract_strided_slice %5 {offsets = [0, 1536], sizes = [2, 128], strides = [1, 1]} : vector<2x2048xf32> to vector<2x128xf32>
    %275 = vector.broadcast %160 : vector<1x128xf32> to vector<2x128xf32>
    %276 = arith.mulf %274, %275 : vector<2x128xf32>
    %277 = vector.broadcast %163 : vector<1x128xf32> to vector<2x128xf32>
    %278 = arith.addf %276, %277 : vector<2x128xf32>
    %279 = vector.shape_cast %278 : vector<2x128xf32> to vector<2x1x1x128xf32>
    %280 = vector.shape_cast %279 : vector<2x1x1x128xf32> to vector<2x1x1x128xf32>
    %281 = vector.broadcast %280 : vector<2x1x1x128xf32> to vector<2x2x2x128xf32>
    %c0_79 = arith.constant 0 : index
    %c7_80 = arith.constant 7 : index
    %c1_81 = arith.constant 1 : index
    %c0_82 = arith.constant 0 : index
    %282 = vector.load %arg16[%c0_79, %c7_80, %c1_81, %c0_82] : memref<2x10x10x128xf32, #tpu.memory_space<vmem>>, vector<2x2x2x128xf32>
    tpu.vector_store %arg16[%c0_79, %c7_80, %c1_81, %c0_82], %281 {strides = array<i32>} : memref<2x10x10x128xf32, #tpu.memory_space<vmem>>, vector<2x2x2x128xf32>,
    %283 = vector.extract_strided_slice %5 {offsets = [0, 1664], sizes = [2, 128], strides = [1, 1]} : vector<2x2048xf32> to vector<2x128xf32>
    %284 = vector.broadcast %160 : vector<1x128xf32> to vector<2x128xf32>
    %285 = arith.mulf %283, %284 : vector<2x128xf32>
    %286 = vector.broadcast %163 : vector<1x128xf32> to vector<2x128xf32>
    %287 = arith.addf %285, %286 : vector<2x128xf32>
    %288 = vector.shape_cast %287 : vector<2x128xf32> to vector<2x1x1x128xf32>
    %289 = vector.shape_cast %288 : vector<2x1x1x128xf32> to vector<2x1x1x128xf32>
    %290 = vector.broadcast %289 : vector<2x1x1x128xf32> to vector<2x2x2x128xf32>
    %c0_83 = arith.constant 0 : index
    %c7_84 = arith.constant 7 : index
    %c3_85 = arith.constant 3 : index
    %c0_86 = arith.constant 0 : index
    %291 = vector.load %arg16[%c0_83, %c7_84, %c3_85, %c0_86] : memref<2x10x10x128xf32, #tpu.memory_space<vmem>>, vector<2x2x2x128xf32>
    tpu.vector_store %arg16[%c0_83, %c7_84, %c3_85, %c0_86], %290 {strides = array<i32>} : memref<2x10x10x128xf32, #tpu.memory_space<vmem>>, vector<2x2x2x128xf32>,
    %292 = vector.extract_strided_slice %5 {offsets = [0, 1792], sizes = [2, 128], strides = [1, 1]} : vector<2x2048xf32> to vector<2x128xf32>
    %293 = vector.broadcast %160 : vector<1x128xf32> to vector<2x128xf32>
    %294 = arith.mulf %292, %293 : vector<2x128xf32>
    %295 = vector.broadcast %163 : vector<1x128xf32> to vector<2x128xf32>
    %296 = arith.addf %294, %295 : vector<2x128xf32>
    %297 = vector.shape_cast %296 : vector<2x128xf32> to vector<2x1x1x128xf32>
    %298 = vector.shape_cast %297 : vector<2x1x1x128xf32> to vector<2x1x1x128xf32>
    %299 = vector.broadcast %298 : vector<2x1x1x128xf32> to vector<2x2x2x128xf32>
    %c0_87 = arith.constant 0 : index
    %c7_88 = arith.constant 7 : index
    %c5_89 = arith.constant 5 : index
    %c0_90 = arith.constant 0 : index
    %300 = vector.load %arg16[%c0_87, %c7_88, %c5_89, %c0_90] : memref<2x10x10x128xf32, #tpu.memory_space<vmem>>, vector<2x2x2x128xf32>
    tpu.vector_store %arg16[%c0_87, %c7_88, %c5_89, %c0_90], %299 {strides = array<i32>} : memref<2x10x10x128xf32, #tpu.memory_space<vmem>>, vector<2x2x2x128xf32>,
    %301 = vector.extract_strided_slice %5 {offsets = [0, 1920], sizes = [2, 128], strides = [1, 1]} : vector<2x2048xf32> to vector<2x128xf32>
    %302 = vector.broadcast %160 : vector<1x128xf32> to vector<2x128xf32>
    %303 = arith.mulf %301, %302 : vector<2x128xf32>
    %304 = vector.broadcast %163 : vector<1x128xf32> to vector<2x128xf32>
    %305 = arith.addf %303, %304 : vector<2x128xf32>
    %306 = vector.shape_cast %305 : vector<2x128xf32> to vector<2x1x1x128xf32>
    %307 = vector.shape_cast %306 : vector<2x1x1x128xf32> to vector<2x1x1x128xf32>
    %308 = vector.broadcast %307 : vector<2x1x1x128xf32> to vector<2x2x2x128xf32>
    %c0_91 = arith.constant 0 : index
    %c7_92 = arith.constant 7 : index
    %c7_93 = arith.constant 7 : index
    %c0_94 = arith.constant 0 : index
    %309 = vector.load %arg16[%c0_91, %c7_92, %c7_93, %c0_94] : memref<2x10x10x128xf32, #tpu.memory_space<vmem>>, vector<2x2x2x128xf32>
    tpu.vector_store %arg16[%c0_91, %c7_92, %c7_93, %c0_94], %308 {strides = array<i32>} : memref<2x10x10x128xf32, #tpu.memory_space<vmem>>, vector<2x2x2x128xf32>,
    %c0_95 = arith.constant 0 : index
    %c0_96 = arith.constant 0 : index
    %c0_97 = arith.constant 0 : index
    %c0_98 = arith.constant 0 : index
    %310 = vector.load %arg16[%c0_95, %c0_96, %c0_97, %c0_98] : memref<2x10x10x128xf32, #tpu.memory_space<vmem>>, vector<2x10x10x128xf32>
    %311 = vector.extract_strided_slice %310 {offsets = [0, 0, 0, 0], sizes = [2, 10, 8, 128], strides = [1, 1, 1, 1]} : vector<2x10x10x128xf32> to vector<2x10x8x128xf32>
    %312 = vector.extract_strided_slice %310 {offsets = [0, 0, 1, 0], sizes = [2, 10, 8, 128], strides = [1, 1, 1, 1]} : vector<2x10x10x128xf32> to vector<2x10x8x128xf32>
    %313 = vector.extract_strided_slice %310 {offsets = [0, 0, 2, 0], sizes = [2, 10, 8, 128], strides = [1, 1, 1, 1]} : vector<2x10x10x128xf32> to vector<2x10x8x128xf32>
    %314 = tpu.concatenate %311, %312, %313 in 3 : vector<2x10x8x128xf32>, vector<2x10x8x128xf32>, vector<2x10x8x128xf32> -> vector<2x10x8x384xf32>
    %315 = vector.extract_strided_slice %314 {offsets = [0, 0, 0, 0], sizes = [2, 8, 8, 384], strides = [1, 1, 1, 1]} : vector<2x10x8x384xf32> to vector<2x8x8x384xf32>
    %316 = vector.extract_strided_slice %314 {offsets = [0, 1, 0, 0], sizes = [2, 8, 8, 384], strides = [1, 1, 1, 1]} : vector<2x10x8x384xf32> to vector<2x8x8x384xf32>
    %317 = vector.extract_strided_slice %314 {offsets = [0, 2, 0, 0], sizes = [2, 8, 8, 384], strides = [1, 1, 1, 1]} : vector<2x10x8x384xf32> to vector<2x8x8x384xf32>
    %318 = tpu.concatenate %315, %316, %317 in 3 : vector<2x8x8x384xf32>, vector<2x8x8x384xf32>, vector<2x8x8x384xf32> -> vector<2x8x8x1152xf32>
    %319 = vector.shape_cast %318 : vector<2x8x8x1152xf32> to vector<16x8x1152xf32>
    %320 = vector.shape_cast %319 : vector<16x8x1152xf32> to vector<128x1152xf32>
    %321 = arith.truncf %320 : vector<128x1152xf32> to vector<128x1152xbf16>
    %c0_99 = arith.constant 0 : index
    %c0_100 = arith.constant 0 : index
    %322 = vector.load %arg5[%c0_99, %c0_100] : memref<1152x128xbf16, #tpu.memory_space<vmem>>, vector<1152x128xbf16>
    %cst_101 = arith.constant dense<0.000000e+00> : vector<128x128xf32>
    %323 = tpu.matmul %321, %322, %cst_101 {dimension_numbers = #tpu.dot_dimension_numbers<[1], [0], [0], [1], [0, 0, 1, 1], [], []>} : vector<128x1152xbf16>, vector<1152x128xbf16>, vector<128x128xf32> -> vector<128x128xf32>
    %c0_102 = arith.constant 0 : index
    %c0_103 = arith.constant 0 : index
    %324 = vector.load %arg6[%c0_102, %c0_103] : memref<1x128xf32, #tpu.memory_space<vmem>>, vector<1x128xf32>
    %325 = vector.broadcast %324 : vector<1x128xf32> to vector<128x128xf32>
    %326 = arith.addf %323, %325 : vector<128x128xf32>
    %cst_104 = arith.constant dense<0.000000e+00> : vector<128xf32>
    %327 = vector.multi_reduction <add>, %326, %cst_104 [0] : vector<128x128xf32> to vector<128xf32>
    %328 = vector.shape_cast %327 : vector<128xf32> to vector<1x128xf32>
    %cst_105 = arith.constant 1.280000e+02 : f32
    %329 = vector.broadcast %cst_105 : f32 to vector<1x128xf32>
    %330 = arith.divf %328, %329 : vector<1x128xf32>
    %331 = vector.broadcast %330 : vector<1x128xf32> to vector<128x128xf32>
    %332 = arith.subf %326, %331 : vector<128x128xf32>
    %333 = arith.mulf %332, %332 : vector<128x128xf32>
    %cst_106 = arith.constant dense<0.000000e+00> : vector<128xf32>
    %334 = vector.multi_reduction <add>, %333, %cst_106 [0] : vector<128x128xf32> to vector<128xf32>
    %335 = vector.shape_cast %334 : vector<128xf32> to vector<1x128xf32>
    %cst_107 = arith.constant 1.280000e+02 : f32
    %336 = vector.broadcast %cst_107 : f32 to vector<1x128xf32>
    %337 = arith.divf %335, %336 : vector<1x128xf32>
    %c0_108 = arith.constant 0 : index
    %c0_109 = arith.constant 0 : index
    %338 = vector.load %arg7[%c0_108, %c0_109] : memref<1x128xf32, #tpu.memory_space<vmem>>, vector<1x128xf32>
    %cst_110 = arith.constant 8.000000e-01 : f32
    %339 = vector.broadcast %cst_110 : f32 to vector<1x128xf32>
    %340 = arith.addf %337, %339 : vector<1x128xf32>
    %341 = math.rsqrt %340 : vector<1x128xf32>
    %342 = arith.mulf %338, %341 : vector<1x128xf32>
    %c0_111 = arith.constant 0 : index
    %c0_112 = arith.constant 0 : index
    %343 = vector.load %arg8[%c0_111, %c0_112] : memref<1x128xf32, #tpu.memory_space<vmem>>, vector<1x128xf32>
    %344 = arith.mulf %330, %342 : vector<1x128xf32>
    %345 = arith.subf %343, %344 : vector<1x128xf32>
    %346 = vector.broadcast %342 : vector<1x128xf32> to vector<128x128xf32>
    %347 = arith.mulf %326, %346 : vector<128x128xf32>
    %348 = vector.broadcast %345 : vector<1x128xf32> to vector<128x128xf32>
    %349 = arith.addf %347, %348 : vector<128x128xf32>
    %cst_113 = arith.constant 0.000000e+00 : f32
    %350 = vector.broadcast %cst_113 : f32 to vector<128x128xf32>
    %351 = arith.maximumf %349, %350 : vector<128x128xf32>
    %352 = vector.shape_cast %351 : vector<128x128xf32> to vector<16x8x128xf32>
    %353 = vector.shape_cast %352 : vector<16x8x128xf32> to vector<2x8x8x128xf32>
    %cst_114 = arith.constant 0.000000e+00 : f32
    %354 = vector.broadcast %cst_114 : f32 to vector<2x18x18x128xf32>
    %c0_115 = arith.constant 0 : index
    %c0_116 = arith.constant 0 : index
    %c0_117 = arith.constant 0 : index
    %c0_118 = arith.constant 0 : index
    %355 = vector.load %arg17[%c0_115, %c0_116, %c0_117, %c0_118] : memref<2x18x18x128xf32, #tpu.memory_space<vmem>>, vector<2x18x18x128xf32>
    tpu.vector_store %arg17[%c0_115, %c0_116, %c0_117, %c0_118], %354 {strides = array<i32>} : memref<2x18x18x128xf32, #tpu.memory_space<vmem>>, vector<2x18x18x128xf32>,
    %356 = vector.shape_cast %353 : vector<2x8x8x128xf32> to vector<16x8x128xf32>
    %357 = vector.shape_cast %356 : vector<16x8x128xf32> to vector<16x1x8x128xf32>
    %358 = vector.shape_cast %356 : vector<16x8x128xf32> to vector<16x1x8x128xf32>
    %359 = tpu.concatenate %357, %358 in 1 : vector<16x1x8x128xf32>, vector<16x1x8x128xf32> -> vector<16x2x8x128xf32>
    %360 = vector.shape_cast %359 : vector<16x2x8x128xf32> to vector<32x8x128xf32>
    %361 = vector.shape_cast %360 : vector<32x8x128xf32> to vector<2x16x8x128xf32>
    %362 = vector.extract_strided_slice %361 {offsets = [0, 0, 0, 0], sizes = [2, 16, 1, 128], strides = [1, 1, 1, 1]} : vector<2x16x8x128xf32> to vector<2x16x1x128xf32>
    %363 = vector.shape_cast %362 : vector<2x16x1x128xf32> to vector<2x16x1x128xf32>
    %364 = vector.broadcast %363 : vector<2x16x1x128xf32> to vector<2x16x2x128xf32>
    %c0_119 = arith.constant 0 : index
    %c1_120 = arith.constant 1 : index
    %c1_121 = arith.constant 1 : index
    %c0_122 = arith.constant 0 : index
    %365 = vector.load %arg17[%c0_119, %c1_120, %c1_121, %c0_122] : memref<2x18x18x128xf32, #tpu.memory_space<vmem>>, vector<2x16x2x128xf32>
    tpu.vector_store %arg17[%c0_119, %c1_120, %c1_121, %c0_122], %364 {strides = array<i32>} : memref<2x18x18x128xf32, #tpu.memory_space<vmem>>, vector<2x16x2x128xf32>,
    %366 = vector.extract_strided_slice %361 {offsets = [0, 0, 1, 0], sizes = [2, 16, 1, 128], strides = [1, 1, 1, 1]} : vector<2x16x8x128xf32> to vector<2x16x1x128xf32>
    %367 = vector.shape_cast %366 : vector<2x16x1x128xf32> to vector<2x16x1x128xf32>
    %368 = vector.broadcast %367 : vector<2x16x1x128xf32> to vector<2x16x2x128xf32>
    %c0_123 = arith.constant 0 : index
    %c1_124 = arith.constant 1 : index
    %c3_125 = arith.constant 3 : index
    %c0_126 = arith.constant 0 : index
    %369 = vector.load %arg17[%c0_123, %c1_124, %c3_125, %c0_126] : memref<2x18x18x128xf32, #tpu.memory_space<vmem>>, vector<2x16x2x128xf32>
    tpu.vector_store %arg17[%c0_123, %c1_124, %c3_125, %c0_126], %368 {strides = array<i32>} : memref<2x18x18x128xf32, #tpu.memory_space<vmem>>, vector<2x16x2x128xf32>,
    %370 = vector.extract_strided_slice %361 {offsets = [0, 0, 2, 0], sizes = [2, 16, 1, 128], strides = [1, 1, 1, 1]} : vector<2x16x8x128xf32> to vector<2x16x1x128xf32>
    %371 = vector.shape_cast %370 : vector<2x16x1x128xf32> to vector<2x16x1x128xf32>
    %372 = vector.broadcast %371 : vector<2x16x1x128xf32> to vector<2x16x2x128xf32>
    %c0_127 = arith.constant 0 : index
    %c1_128 = arith.constant 1 : index
    %c5_129 = arith.constant 5 : index
    %c0_130 = arith.constant 0 : index
    %373 = vector.load %arg17[%c0_127, %c1_128, %c5_129, %c0_130] : memref<2x18x18x128xf32, #tpu.memory_space<vmem>>, vector<2x16x2x128xf32>
    tpu.vector_store %arg17[%c0_127, %c1_128, %c5_129, %c0_130], %372 {strides = array<i32>} : memref<2x18x18x128xf32, #tpu.memory_space<vmem>>, vector<2x16x2x128xf32>,
    %374 = vector.extract_strided_slice %361 {offsets = [0, 0, 3, 0], sizes = [2, 16, 1, 128], strides = [1, 1, 1, 1]} : vector<2x16x8x128xf32> to vector<2x16x1x128xf32>
    %375 = vector.shape_cast %374 : vector<2x16x1x128xf32> to vector<2x16x1x128xf32>
    %376 = vector.broadcast %375 : vector<2x16x1x128xf32> to vector<2x16x2x128xf32>
    %c0_131 = arith.constant 0 : index
    %c1_132 = arith.constant 1 : index
    %c7_133 = arith.constant 7 : index
    %c0_134 = arith.constant 0 : index
    %377 = vector.load %arg17[%c0_131, %c1_132, %c7_133, %c0_134] : memref<2x18x18x128xf32, #tpu.memory_space<vmem>>, vector<2x16x2x128xf32>
    tpu.vector_store %arg17[%c0_131, %c1_132, %c7_133, %c0_134], %376 {strides = array<i32>} : memref<2x18x18x128xf32, #tpu.memory_space<vmem>>, vector<2x16x2x128xf32>,
    %378 = vector.extract_strided_slice %361 {offsets = [0, 0, 4, 0], sizes = [2, 16, 1, 128], strides = [1, 1, 1, 1]} : vector<2x16x8x128xf32> to vector<2x16x1x128xf32>
    %379 = vector.shape_cast %378 : vector<2x16x1x128xf32> to vector<2x16x1x128xf32>
    %380 = vector.broadcast %379 : vector<2x16x1x128xf32> to vector<2x16x2x128xf32>
    %c0_135 = arith.constant 0 : index
    %c1_136 = arith.constant 1 : index
    %c9 = arith.constant 9 : index
    %c0_137 = arith.constant 0 : index
    %381 = vector.load %arg17[%c0_135, %c1_136, %c9, %c0_137] : memref<2x18x18x128xf32, #tpu.memory_space<vmem>>, vector<2x16x2x128xf32>
    tpu.vector_store %arg17[%c0_135, %c1_136, %c9, %c0_137], %380 {strides = array<i32>} : memref<2x18x18x128xf32, #tpu.memory_space<vmem>>, vector<2x16x2x128xf32>,
    %382 = vector.extract_strided_slice %361 {offsets = [0, 0, 5, 0], sizes = [2, 16, 1, 128], strides = [1, 1, 1, 1]} : vector<2x16x8x128xf32> to vector<2x16x1x128xf32>
    %383 = vector.shape_cast %382 : vector<2x16x1x128xf32> to vector<2x16x1x128xf32>
    %384 = vector.broadcast %383 : vector<2x16x1x128xf32> to vector<2x16x2x128xf32>
    %c0_138 = arith.constant 0 : index
    %c1_139 = arith.constant 1 : index
    %c11 = arith.constant 11 : index
    %c0_140 = arith.constant 0 : index
    %385 = vector.load %arg17[%c0_138, %c1_139, %c11, %c0_140] : memref<2x18x18x128xf32, #tpu.memory_space<vmem>>, vector<2x16x2x128xf32>
    tpu.vector_store %arg17[%c0_138, %c1_139, %c11, %c0_140], %384 {strides = array<i32>} : memref<2x18x18x128xf32, #tpu.memory_space<vmem>>, vector<2x16x2x128xf32>,
    %386 = vector.extract_strided_slice %361 {offsets = [0, 0, 6, 0], sizes = [2, 16, 1, 128], strides = [1, 1, 1, 1]} : vector<2x16x8x128xf32> to vector<2x16x1x128xf32>
    %387 = vector.shape_cast %386 : vector<2x16x1x128xf32> to vector<2x16x1x128xf32>
    %388 = vector.broadcast %387 : vector<2x16x1x128xf32> to vector<2x16x2x128xf32>
    %c0_141 = arith.constant 0 : index
    %c1_142 = arith.constant 1 : index
    %c13 = arith.constant 13 : index
    %c0_143 = arith.constant 0 : index
    %389 = vector.load %arg17[%c0_141, %c1_142, %c13, %c0_143] : memref<2x18x18x128xf32, #tpu.memory_space<vmem>>, vector<2x16x2x128xf32>
    tpu.vector_store %arg17[%c0_141, %c1_142, %c13, %c0_143], %388 {strides = array<i32>} : memref<2x18x18x128xf32, #tpu.memory_space<vmem>>, vector<2x16x2x128xf32>,
    %390 = vector.extract_strided_slice %361 {offsets = [0, 0, 7, 0], sizes = [2, 16, 1, 128], strides = [1, 1, 1, 1]} : vector<2x16x8x128xf32> to vector<2x16x1x128xf32>
    %391 = vector.shape_cast %390 : vector<2x16x1x128xf32> to vector<2x16x1x128xf32>
    %392 = vector.broadcast %391 : vector<2x16x1x128xf32> to vector<2x16x2x128xf32>
    %c0_144 = arith.constant 0 : index
    %c1_145 = arith.constant 1 : index
    %c15 = arith.constant 15 : index
    %c0_146 = arith.constant 0 : index
    %393 = vector.load %arg17[%c0_144, %c1_145, %c15, %c0_146] : memref<2x18x18x128xf32, #tpu.memory_space<vmem>>, vector<2x16x2x128xf32>
    tpu.vector_store %arg17[%c0_144, %c1_145, %c15, %c0_146], %392 {strides = array<i32>} : memref<2x18x18x128xf32, #tpu.memory_space<vmem>>, vector<2x16x2x128xf32>,
    %c0_147 = arith.constant 0 : index
    %c0_148 = arith.constant 0 : index
    %c0_149 = arith.constant 0 : index
    %c0_150 = arith.constant 0 : index
    %394 = vector.load %arg17[%c0_147, %c0_148, %c0_149, %c0_150] : memref<2x18x18x128xf32, #tpu.memory_space<vmem>>, vector<2x18x18x128xf32>
    %395 = vector.extract_strided_slice %394 {offsets = [0, 0, 0, 0], sizes = [2, 18, 16, 128], strides = [1, 1, 1, 1]} : vector<2x18x18x128xf32> to vector<2x18x16x128xf32>
    %396 = vector.extract_strided_slice %394 {offsets = [0, 0, 1, 0], sizes = [2, 18, 16, 128], strides = [1, 1, 1, 1]} : vector<2x18x18x128xf32> to vector<2x18x16x128xf32>
    %397 = vector.extract_strided_slice %394 {offsets = [0, 0, 2, 0], sizes = [2, 18, 16, 128], strides = [1, 1, 1, 1]} : vector<2x18x18x128xf32> to vector<2x18x16x128xf32>
    %398 = tpu.concatenate %395, %396, %397 in 3 : vector<2x18x16x128xf32>, vector<2x18x16x128xf32>, vector<2x18x16x128xf32> -> vector<2x18x16x384xf32>
    %399 = vector.extract_strided_slice %398 {offsets = [0, 0, 0, 0], sizes = [2, 16, 16, 384], strides = [1, 1, 1, 1]} : vector<2x18x16x384xf32> to vector<2x16x16x384xf32>
    %400 = vector.extract_strided_slice %398 {offsets = [0, 1, 0, 0], sizes = [2, 16, 16, 384], strides = [1, 1, 1, 1]} : vector<2x18x16x384xf32> to vector<2x16x16x384xf32>
    %401 = vector.extract_strided_slice %398 {offsets = [0, 2, 0, 0], sizes = [2, 16, 16, 384], strides = [1, 1, 1, 1]} : vector<2x18x16x384xf32> to vector<2x16x16x384xf32>
    %402 = tpu.concatenate %399, %400, %401 in 3 : vector<2x16x16x384xf32>, vector<2x16x16x384xf32>, vector<2x16x16x384xf32> -> vector<2x16x16x1152xf32>
    %403 = vector.shape_cast %402 : vector<2x16x16x1152xf32> to vector<32x16x1152xf32>
    %404 = vector.shape_cast %403 : vector<32x16x1152xf32> to vector<512x1152xf32>
    %405 = arith.truncf %404 : vector<512x1152xf32> to vector<512x1152xbf16>
    %c0_151 = arith.constant 0 : index
    %c0_152 = arith.constant 0 : index
    %406 = vector.load %arg9[%c0_151, %c0_152] : memref<1152x64xbf16, #tpu.memory_space<vmem>>, vector<1152x64xbf16>
    %cst_153 = arith.constant dense<0.000000e+00> : vector<512x64xf32>
    %407 = tpu.matmul %405, %406, %cst_153 {dimension_numbers = #tpu.dot_dimension_numbers<[1], [0], [0], [1], [0, 0, 1, 1], [], []>} : vector<512x1152xbf16>, vector<1152x64xbf16>, vector<512x64xf32> -> vector<512x64xf32>
    %c0_154 = arith.constant 0 : index
    %c0_155 = arith.constant 0 : index
    %408 = vector.load %arg10[%c0_154, %c0_155] : memref<1x64xf32, #tpu.memory_space<vmem>>, vector<1x64xf32>
    %409 = vector.broadcast %408 : vector<1x64xf32> to vector<512x64xf32>
    %410 = arith.addf %407, %409 : vector<512x64xf32>
    %cst_156 = arith.constant dense<0.000000e+00> : vector<64xf32>
    %411 = vector.multi_reduction <add>, %410, %cst_156 [0] : vector<512x64xf32> to vector<64xf32>
    %412 = vector.shape_cast %411 : vector<64xf32> to vector<1x64xf32>
    %cst_157 = arith.constant 5.120000e+02 : f32
    %413 = vector.broadcast %cst_157 : f32 to vector<1x64xf32>
    %414 = arith.divf %412, %413 : vector<1x64xf32>
    %415 = vector.broadcast %414 : vector<1x64xf32> to vector<512x64xf32>
    %416 = arith.subf %410, %415 : vector<512x64xf32>
    %417 = arith.mulf %416, %416 : vector<512x64xf32>
    %cst_158 = arith.constant dense<0.000000e+00> : vector<64xf32>
    %418 = vector.multi_reduction <add>, %417, %cst_158 [0] : vector<512x64xf32> to vector<64xf32>
    %419 = vector.shape_cast %418 : vector<64xf32> to vector<1x64xf32>
    %cst_159 = arith.constant 5.120000e+02 : f32
    %420 = vector.broadcast %cst_159 : f32 to vector<1x64xf32>
    %421 = arith.divf %419, %420 : vector<1x64xf32>
    %c0_160 = arith.constant 0 : index
    %c0_161 = arith.constant 0 : index
    %422 = vector.load %arg11[%c0_160, %c0_161] : memref<1x64xf32, #tpu.memory_space<vmem>>, vector<1x64xf32>
    %cst_162 = arith.constant 8.000000e-01 : f32
    %423 = vector.broadcast %cst_162 : f32 to vector<1x64xf32>
    %424 = arith.addf %421, %423 : vector<1x64xf32>
    %425 = math.rsqrt %424 : vector<1x64xf32>
    %426 = arith.mulf %422, %425 : vector<1x64xf32>
    %c0_163 = arith.constant 0 : index
    %c0_164 = arith.constant 0 : index
    %427 = vector.load %arg12[%c0_163, %c0_164] : memref<1x64xf32, #tpu.memory_space<vmem>>, vector<1x64xf32>
    %428 = arith.mulf %414, %426 : vector<1x64xf32>
    %429 = arith.subf %427, %428 : vector<1x64xf32>
    %430 = vector.broadcast %426 : vector<1x64xf32> to vector<512x64xf32>
    %431 = arith.mulf %410, %430 : vector<512x64xf32>
    %432 = vector.broadcast %429 : vector<1x64xf32> to vector<512x64xf32>
    %433 = arith.addf %431, %432 : vector<512x64xf32>
    %cst_165 = arith.constant 0.000000e+00 : f32
    %434 = vector.broadcast %cst_165 : f32 to vector<512x64xf32>
    %435 = arith.maximumf %433, %434 : vector<512x64xf32>
    %436 = vector.shape_cast %435 : vector<512x64xf32> to vector<32x16x64xf32>
    %437 = vector.shape_cast %436 : vector<32x16x64xf32> to vector<2x16x16x64xf32>
    %cst_166 = arith.constant 0.000000e+00 : f32
    %438 = vector.broadcast %cst_166 : f32 to vector<2x18x18x64xf32>
    %c0_167 = arith.constant 0 : index
    %c0_168 = arith.constant 0 : index
    %c0_169 = arith.constant 0 : index
    %c0_170 = arith.constant 0 : index
    %439 = vector.load %arg18[%c0_167, %c0_168, %c0_169, %c0_170] : memref<2x18x18x64xf32, #tpu.memory_space<vmem>>, vector<2x18x18x64xf32>
    tpu.vector_store %arg18[%c0_167, %c0_168, %c0_169, %c0_170], %438 {strides = array<i32>} : memref<2x18x18x64xf32, #tpu.memory_space<vmem>>, vector<2x18x18x64xf32>,
    %c0_171 = arith.constant 0 : index
    %c1_172 = arith.constant 1 : index
    %c1_173 = arith.constant 1 : index
    %c0_174 = arith.constant 0 : index
    %440 = vector.load %arg18[%c0_171, %c1_172, %c1_173, %c0_174] : memref<2x18x18x64xf32, #tpu.memory_space<vmem>>, vector<2x16x16x64xf32>
    tpu.vector_store %arg18[%c0_171, %c1_172, %c1_173, %c0_174], %437 {strides = array<i32>} : memref<2x18x18x64xf32, #tpu.memory_space<vmem>>, vector<2x16x16x64xf32>,
    %c0_175 = arith.constant 0 : index
    %c0_176 = arith.constant 0 : index
    %c0_177 = arith.constant 0 : index
    %c0_178 = arith.constant 0 : index
    %441 = vector.load %arg18[%c0_175, %c0_176, %c0_177, %c0_178] : memref<2x18x18x64xf32, #tpu.memory_space<vmem>>, vector<2x18x18x64xf32>
    %442 = vector.extract_strided_slice %441 {offsets = [0, 0, 0, 0], sizes = [2, 18, 16, 64], strides = [1, 1, 1, 1]} : vector<2x18x18x64xf32> to vector<2x18x16x64xf32>
    %443 = vector.extract_strided_slice %441 {offsets = [0, 0, 1, 0], sizes = [2, 18, 16, 64], strides = [1, 1, 1, 1]} : vector<2x18x18x64xf32> to vector<2x18x16x64xf32>
    %444 = vector.extract_strided_slice %441 {offsets = [0, 0, 2, 0], sizes = [2, 18, 16, 64], strides = [1, 1, 1, 1]} : vector<2x18x18x64xf32> to vector<2x18x16x64xf32>
    %445 = tpu.concatenate %442, %443, %444 in 3 : vector<2x18x16x64xf32>, vector<2x18x16x64xf32>, vector<2x18x16x64xf32> -> vector<2x18x16x192xf32>
    %446 = vector.extract_strided_slice %445 {offsets = [0, 0, 0, 0], sizes = [2, 16, 16, 192], strides = [1, 1, 1, 1]} : vector<2x18x16x192xf32> to vector<2x16x16x192xf32>
    %c0_179 = arith.constant 0 : index
    %c0_180 = arith.constant 0 : index
    %447 = vector.load %arg13[%c0_179, %c0_180] : memref<3x192xf32, #tpu.memory_space<vmem>>, vector<1x192xf32>
    %448 = vector.shape_cast %447 : vector<1x192xf32> to vector<1x1x1x192xf32>
    %449 = vector.broadcast %448 : vector<1x1x1x192xf32> to vector<2x16x16x192xf32>
    %450 = arith.mulf %446, %449 : vector<2x16x16x192xf32>
    %451 = vector.extract_strided_slice %445 {offsets = [0, 1, 0, 0], sizes = [2, 16, 16, 192], strides = [1, 1, 1, 1]} : vector<2x18x16x192xf32> to vector<2x16x16x192xf32>
    %c1_181 = arith.constant 1 : index
    %c0_182 = arith.constant 0 : index
    %452 = vector.load %arg13[%c1_181, %c0_182] : memref<3x192xf32, #tpu.memory_space<vmem>>, vector<1x192xf32>
    %453 = vector.shape_cast %452 : vector<1x192xf32> to vector<1x1x1x192xf32>
    %454 = vector.broadcast %453 : vector<1x1x1x192xf32> to vector<2x16x16x192xf32>
    %455 = arith.mulf %451, %454 : vector<2x16x16x192xf32>
    %456 = arith.addf %450, %455 : vector<2x16x16x192xf32>
    %457 = vector.extract_strided_slice %445 {offsets = [0, 2, 0, 0], sizes = [2, 16, 16, 192], strides = [1, 1, 1, 1]} : vector<2x18x16x192xf32> to vector<2x16x16x192xf32>
    %c2 = arith.constant 2 : index
    %c0_183 = arith.constant 0 : index
    %458 = vector.load %arg13[%c2, %c0_183] : memref<3x192xf32, #tpu.memory_space<vmem>>, vector<1x192xf32>
    %459 = vector.shape_cast %458 : vector<1x192xf32> to vector<1x1x1x192xf32>
    %460 = vector.broadcast %459 : vector<1x1x1x192xf32> to vector<2x16x16x192xf32>
    %461 = arith.mulf %457, %460 : vector<2x16x16x192xf32>
    %462 = arith.addf %456, %461 : vector<2x16x16x192xf32>
    %cst_184 = arith.constant dense<0.000000e+00> : vector<2x16x16xf32>
    %463 = vector.multi_reduction <add>, %462, %cst_184 [3] : vector<2x16x16x192xf32> to vector<2x16x16xf32>
    %464 = vector.shape_cast %463 : vector<2x16x16xf32> to vector<2x16x16x1xf32>
    %c0_185 = arith.constant 0 : index
    %c0_186 = arith.constant 0 : index
    %465 = vector.load %arg14[%c0_185, %c0_186] : memref<1x1xf32, #tpu.memory_space<vmem>>, vector<1x1xf32>
    %466 = vector.shape_cast %465 : vector<1x1xf32> to vector<1x1x1x1xf32>
    %467 = vector.broadcast %466 : vector<1x1x1x1xf32> to vector<2x16x16x1xf32>
    %468 = arith.addf %464, %467 : vector<2x16x16x1xf32>
    %469 = math.tanh %468 : vector<2x16x16x1xf32>
    %c0_187 = arith.constant 0 : index
    %c0_188 = arith.constant 0 : index
    %c0_189 = arith.constant 0 : index
    %c0_190 = arith.constant 0 : index
    %470 = vector.load %arg15[%c0_187, %c0_188, %c0_189, %c0_190] : memref<2x16x16x1xf32, #tpu.memory_space<vmem>>, vector<2x16x16x1xf32>
    tpu.vector_store %arg15[%c0_187, %c0_188, %c0_189, %c0_190], %469 {strides = array<i32>} : memref<2x16x16x1xf32, #tpu.memory_space<vmem>>, vector<2x16x16x1xf32>,
    return
  }
}

</mosaic_0001>

<llo_original>
// kernel: generator_forward.1
$region0: #{generator_forward.1}
  #allocation0 [shape = 'u32[]', space=smem, size = 0x4, offset = 0x4, fixed_abs, tag = 'smem constant byte address 0x4 - core index']
  #allocation1 [shape = 'u32[144,128]{1,0:T(1,128)}', space=vmem, size = 0x12000, scoped, tag = 'internal scratch']
  #allocation2 [shape = 'f32[2,10,10,128]{3,2,1,0:T(8,128)}', space=vmem, size = 0x28000, scoped, tag = 'scratch operand']
  #allocation3 [shape = 'f32[2,18,18,128]{3,2,1,0:T(8,128)}', space=vmem, size = 0x6c000, scoped, tag = 'scratch operand']
  #allocation4 [shape = 'f32[2,18,18,64]{3,2,1,0:T(8,128)}', space=vmem, size = 0x6c000, scoped, tag = 'scratch operand']
  #allocation5 [shape = 'f32[1,1]{1,0:T(1,128)S(1)}', space=vmem, size = 0x200, scoped, tag = 'scoped memory for generator_forward.1']
  %s0 = inlined_call_operand.vmem [shape: f32[2,32], index: 0, kind: input, shape index: {}]
  %s1 = inlined_call_operand.hbm [shape: f32[32,2048], index: 1, kind: input, shape index: {}]
  %s2 = inlined_call_operand.vmem [shape: f32[1,2048], index: 2, kind: input, shape index: {}]
  %s3 = inlined_call_operand.vmem [shape: f32[1,128], index: 3, kind: input, shape index: {}]
  %s4 = inlined_call_operand.vmem [shape: f32[1,128], index: 4, kind: input, shape index: {}]
  %s5 = inlined_call_operand.vmem [shape: bf16[1152,128], index: 5, kind: input, shape index: {}]
  %s6 = inlined_call_operand.vmem [shape: f32[1,128], index: 6, kind: input, shape index: {}]
  %s7 = inlined_call_operand.vmem [shape: f32[1,128], index: 7, kind: input, shape index: {}]
  %s8 = inlined_call_operand.vmem [shape: f32[1,128], index: 8, kind: input, shape index: {}]
  %s9 = inlined_call_operand.vmem [shape: bf16[1152,64], index: 9, kind: input, shape index: {}]
  %s10 = inlined_call_operand.vmem [shape: f32[1,64], index: 10, kind: input, shape index: {}]
  %s11 = inlined_call_operand.vmem [shape: f32[1,64], index: 11, kind: input, shape index: {}]
  %s12 = inlined_call_operand.vmem [shape: f32[1,64], index: 12, kind: input, shape index: {}]
  %s13 = inlined_call_operand.vmem [shape: f32[3,192], index: 13, kind: input, shape index: {}]
  %s14 = inlined_call_operand.<no memory space> [shape: f32[1,1], index: 14, kind: input, shape index: {}]
  %s15 = inlined_call_operand.vmem [shape: f32[2,16,16,1], index: 15, kind: output, shape index: {}]
  %s16 = sld [smem:[#allocation0]]
  $region74: #{generator_forward.1} parent=0
    _
  %s18 = ssub.s32 1, %s16
  %s19 = scalar_select 0, %s18, %s16
  %v20 = vstv %s14
  %21 = vst [vmem:[#allocation5] sm:$0x1] %v20
  $region1: #{generator_forward.1} parent=0
    #allocation6 [shape = 'u8[262144]{0}', space=vmem, size = 0x40000, scoped, tag = 'input window, operand 1, single buffered']
    #allocation7 [shape = 's32[1]{0}', space=sflag, size = 0x4, scoped, tag = 'scoped memory for generator_forward.1']
    %22 = vsyncpa [#allocation7], 0
    // Predicated region
    $region2: #{generator_forward.1} parent=1 // pred_check
      _
    $region3: #{generator_forward.1} parent=1 // pred_check_branch
      %24 = sbr.rel (0) target = $region5
    $region4: #{generator_forward.1} parent=1 // pred_region
      _
    $region5: #{generator_forward.1} parent=1 // pred_fallthru
      _
    // Predicated region
    $region6: #{generator_forward.1} parent=1 // pred_check
      _
    $region7: #{generator_forward.1} parent=1 // pred_check_branch
      %26 = sbr.rel (0) target = $region9
    $region8: #{generator_forward.1} parent=1 // pred_region
      %s28 = ssub.s32 8192, 8192
      %29 = vsyncadd [#allocation7], %s28
      %s30 = sshll.u32 [#allocation6], 4
      %s31 = int_to_ptr.vmem [resolvable:$true] %s30
      %36 = dma.hbm_to_vmem [thread:$0]  %s1, 8192, %s31, [#allocation7], 2048, 2048, 128
    $region9: #{generator_forward.1} parent=1 // pred_fallthru
      _
    // Predicated region
    $region10: #{generator_forward.1} parent=1 // pred_check
      _
    $region11: #{generator_forward.1} parent=1 // pred_check_branch
      %38 = sbr.rel (0) target = $region13
    $region12: #{generator_forward.1} parent=1 // pred_region
      _
    $region13: #{generator_forward.1} parent=1 // pred_fallthru
      _
    // Predicated region
    $region14: #{generator_forward.1} parent=1 // pred_check
      _
    $region15: #{generator_forward.1} parent=1 // pred_check_branch
      %40 = sbr.rel (0) target = $region17
    $region16: #{generator_forward.1} parent=1 // pred_region
      _
    $region17: #{generator_forward.1} parent=1 // pred_fallthru
      _
    // Predicated region
    $region18: #{generator_forward.1} parent=1 // pred_check
      _
    $region19: #{generator_forward.1} parent=1 // pred_check_branch
      %42 = sbr.rel (0) target = $region21
    $region20: #{generator_forward.1} parent=1 // pred_region
      _
    $region21: #{generator_forward.1} parent=1 // pred_fallthru
      _
    // Predicated region
    $region22: #{generator_forward.1} parent=1 // pred_check
      _
    $region23: #{generator_forward.1} parent=1 // pred_check_branch
      %44 = sbr.rel (0) target = $region25
    $region24: #{generator_forward.1} parent=1 // pred_region
      _
    $region25: #{generator_forward.1} parent=1 // pred_fallthru
      _
    // Predicated region
    $region26: #{generator_forward.1} parent=1 // pred_check
      _
    $region27: #{generator_forward.1} parent=1 // pred_check_branch
      %46 = sbr.rel (0) target = $region29
    $region28: #{generator_forward.1} parent=1 // pred_region
      _
    $region29: #{generator_forward.1} parent=1 // pred_fallthru
      _
    // Predicated region
    $region30: #{generator_forward.1} parent=1 // pred_check
      _
    $region31: #{generator_forward.1} parent=1 // pred_check_branch
      %48 = sbr.rel (0) target = $region33
    $region32: #{generator_forward.1} parent=1 // pred_region
      _
    $region33: #{generator_forward.1} parent=1 // pred_fallthru
      _
    // Predicated region
    $region34: #{generator_forward.1} parent=1 // pred_check
      _
    $region35: #{generator_forward.1} parent=1 // pred_check_branch
      %50 = sbr.rel (0) target = $region37
    $region36: #{generator_forward.1} parent=1 // pred_region
      _
    $region37: #{generator_forward.1} parent=1 // pred_fallthru
      _
    // Predicated region
    $region38: #{generator_forward.1} parent=1 // pred_check
      _
    $region39: #{generator_forward.1} parent=1 // pred_check_branch
      %52 = sbr.rel (0) target = $region41
    $region40: #{generator_forward.1} parent=1 // pred_region
      _
    $region41: #{generator_forward.1} parent=1 // pred_fallthru
      _
    // Predicated region
    $region42: #{generator_forward.1} parent=1 // pred_check
      _
    $region43: #{generator_forward.1} parent=1 // pred_check_branch
      %54 = sbr.rel (0) target = $region45
    $region44: #{generator_forward.1} parent=1 // pred_region
      _
    $region45: #{generator_forward.1} parent=1 // pred_fallthru
      _
    // Predicated region
    $region46: #{generator_forward.1} parent=1 // pred_check
      _
    $region47: #{generator_forward.1} parent=1 // pred_check_branch
      %56 = sbr.rel (0) target = $region49
    $region48: #{generator_forward.1} parent=1 // pred_region
      _
    $region49: #{generator_forward.1} parent=1 // pred_fallthru
      _
    // Predicated region
    $region50: #{generator_forward.1} parent=1 // pred_check
      _
    $region51: #{generator_forward.1} parent=1 // pred_check_branch
      %58 = sbr.rel (0) target = $region53
    $region52: #{generator_forward.1} parent=1 // pred_region
      _
    $region53: #{generator_forward.1} parent=1 // pred_fallthru
      _
    // Predicated region
    $region54: #{generator_forward.1} parent=1 // pred_check
      _
    $region55: #{generator_forward.1} parent=1 // pred_check_branch
      %60 = sbr.rel (0) target = $region57
    $region56: #{generator_forward.1} parent=1 // pred_region
      _
    $region57: #{generator_forward.1} parent=1 // pred_fallthru
      _
    // Predicated region
    $region58: #{generator_forward.1} parent=1 // pred_check
      _
    $region59: #{generator_forward.1} parent=1 // pred_check_branch
      %62 = sbr.rel (0) target = $region61
    $region60: #{generator_forward.1} parent=1 // pred_region
      _
    $region61: #{generator_forward.1} parent=1 // pred_fallthru
      _
    // Predicated region
    $region62: #{generator_forward.1} parent=1 // pred_check
      _
    $region63: #{generator_forward.1} parent=1 // pred_check_branch
      %64 = sbr.rel (0) target = $region65
    $region64: #{generator_forward.1} parent=1 // pred_region
      %65 = dma.done [#allocation7], 8192
    $region65: #{generator_forward.1} parent=1 // pred_fallthru
      _
    %v67 = vld [vmem:[%s0] sm:$0x3]
    %v68 = vld [vmem:[#allocation6] sm:$0xff]
    %v69 = vld [vmem:[#allocation6 + $0x8] sm:$0xff]
    %v70 = vld [vmem:[#allocation6 + $0x10] sm:$0xff]
    %v71 = vld [vmem:[#allocation6 + $0x18] sm:$0xff]
    %v72 = vld [vmem:[#allocation6 + $0x20] sm:$0xff]
    %v73 = vld [vmem:[#allocation6 + $0x28] sm:$0xff]
    %v74 = vld [vmem:[#allocation6 + $0x30] sm:$0xff]
    %v75 = vld [vmem:[#allocation6 + $0x38] sm:$0xff]
    %v76 = vld [vmem:[#allocation6 + $0x40] sm:$0xff]
    %v77 = vld [vmem:[#allocation6 + $0x48] sm:$0xff]
    %v78 = vld [vmem:[#allocation6 + $0x50] sm:$0xff]
    %v79 = vld [vmem:[#allocation6 + $0x58] sm:$0xff]
    %v80 = vld [vmem:[#allocation6 + $0x60] sm:$0xff]
    %v81 = vld [vmem:[#allocation6 + $0x68] sm:$0xff]
    %v82 = vld [vmem:[#allocation6 + $0x70] sm:$0xff]
    %v83 = vld [vmem:[#allocation6 + $0x78] sm:$0xff]
    %v84 = vld [vmem:[#allocation6 + $0x80] sm:$0xff]
    %v85 = vld [vmem:[#allocation6 + $0x88] sm:$0xff]
    %v86 = vld [vmem:[#allocation6 + $0x90] sm:$0xff]
    %v87 = vld [vmem:[#allocation6 + $0x98] sm:$0xff]
    %v88 = vld [vmem:[#allocation6 + $0xa0] sm:$0xff]
    %v89 = vld [vmem:[#allocation6 + $0xa8] sm:$0xff]
    %v90 = vld [vmem:[#allocation6 + $0xb0] sm:$0xff]
    %v91 = vld [vmem:[#allocation6 + $0xb8] sm:$0xff]
    %v92 = vld [vmem:[#allocation6 + $0xc0] sm:$0xff]
    %v93 = vld [vmem:[#allocation6 + $0xc8] sm:$0xff]
    %v94 = vld [vmem:[#allocation6 + $0xd0] sm:$0xff]
    %v95 = vld [vmem:[#allocation6 + $0xd8] sm:$0xff]
    %v96 = vld [vmem:[#allocation6 + $0xe0] sm:$0xff]
    %v97 = vld [vmem:[#allocation6 + $0xe8] sm:$0xff]
    %v98 = vld [vmem:[#allocation6 + $0xf0] sm:$0xff]
    %v99 = vld [vmem:[#allocation6 + $0xf8] sm:$0xff]
    %v100 = vld [vmem:[#allocation6 + $0x100] sm:$0xff]
    %v101 = vld [vmem:[#allocation6 + $0x108] sm:$0xff]
    %v102 = vld [vmem:[#allocation6 + $0x110] sm:$0xff]
    %v103 = vld [vmem:[#allocation6 + $0x118] sm:$0xff]
    %v104 = vld [vmem:[#allocation6 + $0x120] sm:$0xff]
    %v105 = vld [vmem:[#allocation6 + $0x128] sm:$0xff]
    %v106 = vld [vmem:[#allocation6 + $0x130] sm:$0xff]
    %v107 = vld [vmem:[#allocation6 + $0x138] sm:$0xff]
    %v108 = vld [vmem:[#allocation6 + $0x140] sm:$0xff]
    %v109 = vld [vmem:[#allocation6 + $0x148] sm:$0xff]
    %v110 = vld [vmem:[#allocation6 + $0x150] sm:$0xff]
    %v111 = vld [vmem:[#allocation6 + $0x158] sm:$0xff]
    %v112 = vld [vmem:[#allocation6 + $0x160] sm:$0xff]
    %v113 = vld [vmem:[#allocation6 + $0x168] sm:$0xff]
    %v114 = vld [vmem:[#allocation6 + $0x170] sm:$0xff]
    %v115 = vld [vmem:[#allocation6 + $0x178] sm:$0xff]
    %v116 = vld [vmem:[#allocation6 + $0x180] sm:$0xff]
    %v117 = vld [vmem:[#allocation6 + $0x188] sm:$0xff]
    %v118 = vld [vmem:[#allocation6 + $0x190] sm:$0xff]
    %v119 = vld [vmem:[#allocation6 + $0x198] sm:$0xff]
    %v120 = vld [vmem:[#allocation6 + $0x1a0] sm:$0xff]
    %v121 = vld [vmem:[#allocation6 + $0x1a8] sm:$0xff]
    %v122 = vld [vmem:[#allocation6 + $0x1b0] sm:$0xff]
    %v123 = vld [vmem:[#allocation6 + $0x1b8] sm:$0xff]
    %v124 = vld [vmem:[#allocation6 + $0x1c0] sm:$0xff]
    %v125 = vld [vmem:[#allocation6 + $0x1c8] sm:$0xff]
    %v126 = vld [vmem:[#allocation6 + $0x1d0] sm:$0xff]
    %v127 = vld [vmem:[#allocation6 + $0x1d8] sm:$0xff]
    %v128 = vld [vmem:[#allocation6 + $0x1e0] sm:$0xff]
    %v129 = vld [vmem:[#allocation6 + $0x1e8] sm:$0xff]
    %v130 = vld [vmem:[#allocation6 + $0x1f0] sm:$0xff]
    %v131 = vld [vmem:[#allocation6 + $0x1f8] sm:$0xff]
    %v132 = vld [vmem:[%s2] sm:$0xff]
    %v133 = vld [vmem:[%s2 + $0x8] sm:$0xff]
    %v136 = vlaneseq
    %v137 = vshrl.u32 %v136, 7
    %v138 = vsub.s32 0, %v137
    %v139 = vrot.slane %v132, %v138
    %v140 = vlaneseq
    %v141 = vshrl.u32 %v140, 7
    %v142 = vsub.s32 1, %v141
    %v143 = vrot.slane %v132, %v142
    %v144 = vlaneseq
    %v145 = vshrl.u32 %v144, 7
    %v146 = vsub.s32 2, %v145
    %v147 = vrot.slane %v132, %v146
    %v148 = vlaneseq
    %v149 = vshrl.u32 %v148, 7
    %v150 = vsub.s32 3, %v149
    %v151 = vrot.slane %v132, %v150
    %v152 = vlaneseq
    %v153 = vshrl.u32 %v152, 7
    %v154 = vsub.s32 4, %v153
    %v155 = vrot.slane %v132, %v154
    %v156 = vlaneseq
    %v157 = vshrl.u32 %v156, 7
    %v158 = vsub.s32 5, %v157
    %v159 = vrot.slane %v132, %v158
    %v160 = vlaneseq
    %v161 = vshrl.u32 %v160, 7
    %v162 = vsub.s32 6, %v161
    %v163 = vrot.slane %v132, %v162
    %v164 = vlaneseq
    %v165 = vshrl.u32 %v164, 7
    %v166 = vsub.s32 7, %v165
    %v167 = vrot.slane %v132, %v166
    %v168 = vlaneseq
    %v169 = vshrl.u32 %v168, 7
    %v170 = vsub.s32 0, %v169
    %v171 = vrot.slane %v133, %v170
    %v172 = vlaneseq
    %v173 = vshrl.u32 %v172, 7
    %v174 = vsub.s32 1, %v173
    %v175 = vrot.slane %v133, %v174
    %v176 = vlaneseq
    %v177 = vshrl.u32 %v176, 7
    %v178 = vsub.s32 2, %v177
    %v179 = vrot.slane %v133, %v178
    %v180 = vlaneseq
    %v181 = vshrl.u32 %v180, 7
    %v182 = vsub.s32 3, %v181
    %v183 = vrot.slane %v133, %v182
    %v184 = vlaneseq
    %v185 = vshrl.u32 %v184, 7
    %v186 = vsub.s32 4, %v185
    %v187 = vrot.slane %v133, %v186
    %v188 = vlaneseq
    %v189 = vshrl.u32 %v188, 7
    %v190 = vsub.s32 5, %v189
    %v191 = vrot.slane %v133, %v190
    %v192 = vlaneseq
    %v193 = vshrl.u32 %v192, 7
    %v194 = vsub.s32 6, %v193
    %v195 = vrot.slane %v133, %v194
    %v196 = vlaneseq
    %v197 = vshrl.u32 %v196, 7
    %v198 = vsub.s32 7, %v197
    %v199 = vrot.slane %v133, %v198
    %vm216 = vcmask 261120
    %v218 = vsel %vm216, %v67, 0
    %220 = vmatprep.subr.mxu0 0.0
    %221 = vmatpush1.msra.mxu0 0.0
    %222 = vmatprep.subr.mxu0 0.0
    %223 = vmatpush1.msra.mxu0 0.0
    %224 = vmatprep.subr.mxu0 0.0
    %225 = vmatpush1.msra.mxu0 0.0
    %226 = vmatprep.subr.mxu0 0.0
    %227 = vmatpush1.msra.mxu0 0.0
    %228 = vmatprep.subr.mxu0 0.0
    %229 = vmatpush1.msra.mxu0 0.0
    %230 = vmatprep.subr.mxu0 0.0
    %231 = vmatpush1.msra.mxu0 0.0
    %232 = vmatprep.subr.mxu0 0.0
    %233 = vmatpush1.msra.mxu0 0.0
    %234 = vmatprep.subr.mxu0 0.0
    %235 = vmatpush1.msra.mxu0 0.0
    %236 = vmatprep.subr.mxu0 0.0
    %237 = vmatpush1.msra.mxu0 0.0
    %238 = vmatprep.subr.mxu0 0.0
    %239 = vmatpush1.msra.mxu0 0.0
    %240 = vmatprep.subr.mxu0 0.0
    %241 = vmatpush1.msra.mxu0 0.0
    %242 = vmatprep.subr.mxu0 0.0
    %243 = vmatpush1.msra.mxu0 0.0
    %244 = vmatprep.subr.mxu0 %v117
    %245 = vmatpush1.msra.mxu0 %v116
    %246 = vmatprep.subr.mxu0 %v101
    %247 = vmatpush1.msra.mxu0 %v100
    %248 = vmatprep.subr.mxu0 %v85
    %249 = vmatpush1.msra.mxu0 %v84
    %250 = vmatprep.subr.mxu0 %v69
    %251 = vmatpush1.msra.mxu0 %v68
    %252 = vmatprep.subr.mxu0 0.0
    %253 = vmatpush2.msra.mxu0 0.0
    %254 = vmatprep.subr.mxu0 0.0
    %255 = vmatpush2.msra.mxu0 0.0
    %256 = vmatprep.subr.mxu0 0.0
    %257 = vmatpush2.msra.mxu0 0.0
    %258 = vmatprep.subr.mxu0 0.0
    %259 = vmatpush2.msra.mxu0 0.0
    %260 = vmatprep.subr.mxu0 0.0
    %261 = vmatpush2.msra.mxu0 0.0
    %262 = vmatprep.subr.mxu0 0.0
    %263 = vmatpush2.msra.mxu0 0.0
    %264 = vmatprep.subr.mxu0 0.0
    %265 = vmatpush2.msra.mxu0 0.0
    %266 = vmatprep.subr.mxu0 0.0
    %267 = vmatpush2.msra.mxu0 0.0
    %268 = vmatprep.subr.mxu0 0.0
    %269 = vmatpush2.msra.mxu0 0.0
    %270 = vmatprep.subr.mxu0 0.0
    %271 = vmatpush2.msra.mxu0 0.0
    %272 = vmatprep.subr.mxu0 0.0
    %273 = vmatpush2.msra.mxu0 0.0
    %274 = vmatprep.subr.mxu0 0.0
    %275 = vmatpush2.msra.mxu0 0.0
    %276 = vmatprep.subr.mxu0 0.0
    %277 = vmatpush2.msra.mxu0 0.0
    %278 = vmatprep.subr.mxu0 0.0
    %279 = vmatpush2.msra.mxu0 0.0
    %280 = vmatprep.subr.mxu0 0.0
    %281 = vmatpush2.msra.mxu0 0.0
    %282 = vmatprep.subr.mxu0 0.0
    %283 = vmatpush2.msra.mxu0 0.0
    %284 = vmatprep.mubr.f32.mxu0 0.0
    %285 = vmatmul.mubr.f32.gmra.mxu0 %v218
    %v286 = vpop.f32.mrf.mxu0
    %v287 = vadd.f32 %v139, %v286
    %v288 = vpop.f32.mrf.mxu0
    %v289 = vadd.f32 %v143, %v288
    %290 = vdwg.mxu0
    %291 = vmatprep.subr.mxu0 0.0
    %292 = vmatpush1.msra.mxu0 0.0
    %293 = vmatprep.subr.mxu0 0.0
    %294 = vmatpush1.msra.mxu0 0.0
    %295 = vmatprep.subr.mxu0 0.0
    %296 = vmatpush1.msra.mxu0 0.0
    %297 = vmatprep.subr.mxu0 0.0
    %298 = vmatpush1.msra.mxu0 0.0
    %299 = vmatprep.subr.mxu0 0.0
    %300 = vmatpush1.msra.mxu0 0.0
    %301 = vmatprep.subr.mxu0 0.0
    %302 = vmatpush1.msra.mxu0 0.0
    %303 = vmatprep.subr.mxu0 0.0
    %304 = vmatpush1.msra.mxu0 0.0
    %305 = vmatprep.subr.mxu0 0.0
    %306 = vmatpush1.msra.mxu0 0.0
    %307 = vmatprep.subr.mxu0 0.0
    %308 = vmatpush1.msra.mxu0 0.0
    %309 = vmatprep.subr.mxu0 0.0
    %310 = vmatpush1.msra.mxu0 0.0
    %311 = vmatprep.subr.mxu0 0.0
    %312 = vmatpush1.msra.mxu0 0.0
    %313 = vmatprep.subr.mxu0 0.0
    %314 = vmatpush1.msra.mxu0 0.0
    %315 = vmatprep.subr.mxu0 %v119
    %316 = vmatpush1.msra.mxu0 %v118
    %317 = vmatprep.subr.mxu0 %v103
    %318 = vmatpush1.msra.mxu0 %v102
    %319 = vmatprep.subr.mxu0 %v87
    %320 = vmatpush1.msra.mxu0 %v86
    %321 = vmatprep.subr.mxu0 %v71
    %322 = vmatpush1.msra.mxu0 %v70
    %323 = vmatprep.subr.mxu0 0.0
    %324 = vmatpush2.msra.mxu0 0.0
    %325 = vmatprep.subr.mxu0 0.0
    %326 = vmatpush2.msra.mxu0 0.0
    %327 = vmatprep.subr.mxu0 0.0
    %328 = vmatpush2.msra.mxu0 0.0
    %329 = vmatprep.subr.mxu0 0.0
    %330 = vmatpush2.msra.mxu0 0.0
    %331 = vmatprep.subr.mxu0 0.0
    %332 = vmatpush2.msra.mxu0 0.0
    %333 = vmatprep.subr.mxu0 0.0
    %334 = vmatpush2.msra.mxu0 0.0
    %335 = vmatprep.subr.mxu0 0.0
    %336 = vmatpush2.msra.mxu0 0.0
    %337 = vmatprep.subr.mxu0 0.0
    %338 = vmatpush2.msra.mxu0 0.0
    %339 = vmatprep.subr.mxu0 0.0
    %340 = vmatpush2.msra.mxu0 0.0
    %341 = vmatprep.subr.mxu0 0.0
    %342 = vmatpush2.msra.mxu0 0.0
    %343 = vmatprep.subr.mxu0 0.0
    %344 = vmatpush2.msra.mxu0 0.0
    %345 = vmatprep.subr.mxu0 0.0
    %346 = vmatpush2.msra.mxu0 0.0
    %347 = vmatprep.subr.mxu0 0.0
    %348 = vmatpush2.msra.mxu0 0.0
    %349 = vmatprep.subr.mxu0 0.0
    %350 = vmatpush2.msra.mxu0 0.0
    %351 = vmatprep.subr.mxu0 0.0
    %352 = vmatpush2.msra.mxu0 0.0
    %353 = vmatprep.subr.mxu0 0.0
    %354 = vmatpush2.msra.mxu0 0.0
    %355 = vmatprep.mubr.f32.mxu0 0.0
    %356 = vmatmul.mubr.f32.gmra.mxu0 %v218
    %v357 = vpop.f32.mrf.mxu0
    %v358 = vadd.f32 %v147, %v357
    %v359 = vpop.f32.mrf.mxu0
    %v360 = vadd.f32 %v151, %v359
    %361 = vdwg.mxu0
    %362 = vmatprep.subr.mxu0 0.0
    %363 = vmatpush1.msra.mxu0 0.0
    %364 = vmatprep.subr.mxu0 0.0
    %365 = vmatpush1.msra.mxu0 0.0
    %366 = vmatprep.subr.mxu0 0.0
    %367 = vmatpush1.msra.mxu0 0.0
    %368 = vmatprep.subr.mxu0 0.0
    %369 = vmatpush1.msra.mxu0 0.0
    %370 = vmatprep.subr.mxu0 0.0
    %371 = vmatpush1.msra.mxu0 0.0
    %372 = vmatprep.subr.mxu0 0.0
    %373 = vmatpush1.msra.mxu0 0.0
    %374 = vmatprep.subr.mxu0 0.0
    %375 = vmatpush1.msra.mxu0 0.0
    %376 = vmatprep.subr.mxu0 0.0
    %377 = vmatpush1.msra.mxu0 0.0
    %378 = vmatprep.subr.mxu0 0.0
    %379 = vmatpush1.msra.mxu0 0.0
    %380 = vmatprep.subr.mxu0 0.0
    %381 = vmatpush1.msra.mxu0 0.0
    %382 = vmatprep.subr.mxu0 0.0
    %383 = vmatpush1.msra.mxu0 0.0
    %384 = vmatprep.subr.mxu0 0.0
    %385 = vmatpush1.msra.mxu0 0.0
    %386 = vmatprep.subr.mxu0 %v121
    %387 = vmatpush1.msra.mxu0 %v120
    %388 = vmatprep.subr.mxu0 %v105
    %389 = vmatpush1.msra.mxu0 %v104
    %390 = vmatprep.subr.mxu0 %v89
    %391 = vmatpush1.msra.mxu0 %v88
    %392 = vmatprep.subr.mxu0 %v73
    %393 = vmatpush1.msra.mxu0 %v72
    %394 = vmatprep.subr.mxu0 0.0
    %395 = vmatpush2.msra.mxu0 0.0
    %396 = vmatprep.subr.mxu0 0.0
    %397 = vmatpush2.msra.mxu0 0.0
    %398 = vmatprep.subr.mxu0 0.0
    %399 = vmatpush2.msra.mxu0 0.0
    %400 = vmatprep.subr.mxu0 0.0
    %401 = vmatpush2.msra.mxu0 0.0
    %402 = vmatprep.subr.mxu0 0.0
    %403 = vmatpush2.msra.mxu0 0.0
    %404 = vmatprep.subr.mxu0 0.0
    %405 = vmatpush2.msra.mxu0 0.0
    %406 = vmatprep.subr.mxu0 0.0
    %407 = vmatpush2.msra.mxu0 0.0
    %408 = vmatprep.subr.mxu0 0.0
    %409 = vmatpush2.msra.mxu0 0.0
    %410 = vmatprep.subr.mxu0 0.0
    %411 = vmatpush2.msra.mxu0 0.0
    %412 = vmatprep.subr.mxu0 0.0
    %413 = vmatpush2.msra.mxu0 0.0
    %414 = vmatprep.subr.mxu0 0.0
    %415 = vmatpush2.msra.mxu0 0.0
    %416 = vmatprep.subr.mxu0 0.0
    %417 = vmatpush2.msra.mxu0 0.0
    %418 = vmatprep.subr.mxu0 0.0
    %419 = vmatpush2.msra.mxu0 0.0
    %420 = vmatprep.subr.mxu0 0.0
    %421 = vmatpush2.msra.mxu0 0.0
    %422 = vmatprep.subr.mxu0 0.0
    %423 = vmatpush2.msra.mxu0 0.0
    %424 = vmatprep.subr.mxu0 0.0
    %425 = vmatpush2.msra.mxu0 0.0
    %426 = vmatprep.mubr.f32.mxu0 0.0
    %427 = vmatmul.mubr.f32.gmra.mxu0 %v218
    %v428 = vpop.f32.mrf.mxu0
    %v429 = vadd.f32 %v155, %v428
    %v430 = vpop.f32.mrf.mxu0
    %v431 = vadd.f32 %v159, %v430
    %432 = vdwg.mxu0
    %433 = vmatprep.subr.mxu0 0.0
    %434 = vmatpush1.msra.mxu0 0.0
    %435 = vmatprep.subr.mxu0 0.0
    %436 = vmatpush1.msra.mxu0 0.0
    %437 = vmatprep.subr.mxu0 0.0
    %438 = vmatpush1.msra.mxu0 0.0
    %439 = vmatprep.subr.mxu0 0.0
    %440 = vmatpush1.msra.mxu0 0.0
    %441 = vmatprep.subr.mxu0 0.0
    %442 = vmatpush1.msra.mxu0 0.0
    %443 = vmatprep.subr.mxu0 0.0
    %444 = vmatpush1.msra.mxu0 0.0
    %445 = vmatprep.subr.mxu0 0.0
    %446 = vmatpush1.msra.mxu0 0.0
    %447 = vmatprep.subr.mxu0 0.0
    %448 = vmatpush1.msra.mxu0 0.0
    %449 = vmatprep.subr.mxu0 0.0
    %450 = vmatpush1.msra.mxu0 0.0
    %451 = vmatprep.subr.mxu0 0.0
    %452 = vmatpush1.msra.mxu0 0.0
    %453 = vmatprep.subr.mxu0 0.0
    %454 = vmatpush1.msra.mxu0 0.0
    %455 = vmatprep.subr.mxu0 0.0
    %456 = vmatpush1.msra.mxu0 0.0
    %457 = vmatprep.subr.mxu0 %v123
    %458 = vmatpush1.msra.mxu0 %v122
    %459 = vmatprep.subr.mxu0 %v107
    %460 = vmatpush1.msra.mxu0 %v106
    %461 = vmatprep.subr.mxu0 %v91
    %462 = vmatpush1.msra.mxu0 %v90
    %463 = vmatprep.subr.mxu0 %v75
    %464 = vmatpush1.msra.mxu0 %v74
    %465 = vmatprep.subr.mxu0 0.0
    %466 = vmatpush2.msra.mxu0 0.0
    %467 = vmatprep.subr.mxu0 0.0
    %468 = vmatpush2.msra.mxu0 0.0
    %469 = vmatprep.subr.mxu0 0.0
    %470 = vmatpush2.msra.mxu0 0.0
    %471 = vmatprep.subr.mxu0 0.0
    %472 = vmatpush2.msra.mxu0 0.0
    %473 = vmatprep.subr.mxu0 0.0
    %474 = vmatpush2.msra.mxu0 0.0
    %475 = vmatprep.subr.mxu0 0.0
    %476 = vmatpush2.msra.mxu0 0.0
    %477 = vmatprep.subr.mxu0 0.0
    %478 = vmatpush2.msra.mxu0 0.0
    %479 = vmatprep.subr.mxu0 0.0
    %480 = vmatpush2.msra.mxu0 0.0
    %481 = vmatprep.subr.mxu0 0.0
    %482 = vmatpush2.msra.mxu0 0.0
    %483 = vmatprep.subr.mxu0 0.0
    %484 = vmatpush2.msra.mxu0 0.0
    %485 = vmatprep.subr.mxu0 0.0
    %486 = vmatpush2.msra.mxu0 0.0
    %487 = vmatprep.subr.mxu0 0.0
    %488 = vmatpush2.msra.mxu0 0.0
    %489 = vmatprep.subr.mxu0 0.0
    %490 = vmatpush2.msra.mxu0 0.0
    %491 = vmatprep.subr.mxu0 0.0
    %492 = vmatpush2.msra.mxu0 0.0
    %493 = vmatprep.subr.mxu0 0.0
    %494 = vmatpush2.msra.mxu0 0.0
    %495 = vmatprep.subr.mxu0 0.0
    %496 = vmatpush2.msra.mxu0 0.0
    %497 = vmatprep.mubr.f32.mxu0 0.0
    %498 = vmatmul.mubr.f32.gmra.mxu0 %v218
    %v499 = vpop.f32.mrf.mxu0
    %v500 = vadd.f32 %v163, %v499
    %v501 = vpop.f32.mrf.mxu0
    %v502 = vadd.f32 %v167, %v501
    %503 = vdwg.mxu0
    %504 = vmatprep.subr.mxu0 0.0
    %505 = vmatpush1.msra.mxu0 0.0
    %506 = vmatprep.subr.mxu0 0.0
    %507 = vmatpush1.msra.mxu0 0.0
    %508 = vmatprep.subr.mxu0 0.0
    %509 = vmatpush1.msra.mxu0 0.0
    %510 = vmatprep.subr.mxu0 0.0
    %511 = vmatpush1.msra.mxu0 0.0
    %512 = vmatprep.subr.mxu0 0.0
    %513 = vmatpush1.msra.mxu0 0.0
    %514 = vmatprep.subr.mxu0 0.0
    %515 = vmatpush1.msra.mxu0 0.0
    %516 = vmatprep.subr.mxu0 0.0
    %517 = vmatpush1.msra.mxu0 0.0
    %518 = vmatprep.subr.mxu0 0.0
    %519 = vmatpush1.msra.mxu0 0.0
    %520 = vmatprep.subr.mxu0 0.0
    %521 = vmatpush1.msra.mxu0 0.0
    %522 = vmatprep.subr.mxu0 0.0
    %523 = vmatpush1.msra.mxu0 0.0
    %524 = vmatprep.subr.mxu0 0.0
    %525 = vmatpush1.msra.mxu0 0.0
    %526 = vmatprep.subr.mxu0 0.0
    %527 = vmatpush1.msra.mxu0 0.0
    %528 = vmatprep.subr.mxu0 %v125
    %529 = vmatpush1.msra.mxu0 %v124
    %530 = vmatprep.subr.mxu0 %v109
    %531 = vmatpush1.msra.mxu0 %v108
    %532 = vmatprep.subr.mxu0 %v93
    %533 = vmatpush1.msra.mxu0 %v92
    %534 = vmatprep.subr.mxu0 %v77
    %535 = vmatpush1.msra.mxu0 %v76
    %536 = vmatprep.subr.mxu0 0.0
    %537 = vmatpush2.msra.mxu0 0.0
    %538 = vmatprep.subr.mxu0 0.0
    %539 = vmatpush2.msra.mxu0 0.0
    %540 = vmatprep.subr.mxu0 0.0
    %541 = vmatpush2.msra.mxu0 0.0
    %542 = vmatprep.subr.mxu0 0.0
    %543 = vmatpush2.msra.mxu0 0.0
    %544 = vmatprep.subr.mxu0 0.0
    %545 = vmatpush2.msra.mxu0 0.0
    %546 = vmatprep.subr.mxu0 0.0
    %547 = vmatpush2.msra.mxu0 0.0
    %548 = vmatprep.subr.mxu0 0.0
    %549 = vmatpush2.msra.mxu0 0.0
    %550 = vmatprep.subr.mxu0 0.0
    %551 = vmatpush2.msra.mxu0 0.0
    %552 = vmatprep.subr.mxu0 0.0
    %553 = vmatpush2.msra.mxu0 0.0
    %554 = vmatprep.subr.mxu0 0.0
    %555 = vmatpush2.msra.mxu0 0.0
    %556 = vmatprep.subr.mxu0 0.0
    %557 = vmatpush2.msra.mxu0 0.0
    %558 = vmatprep.subr.mxu0 0.0
    %559 = vmatpush2.msra.mxu0 0.0
    %560 = vmatprep.subr.mxu0 0.0
    %561 = vmatpush2.msra.mxu0 0.0
    %562 = vmatprep.subr.mxu0 0.0
    %563 = vmatpush2.msra.mxu0 0.0
    %564 = vmatprep.subr.mxu0 0.0
    %565 = vmatpush2.msra.mxu0 0.0
    %566 = vmatprep.subr.mxu0 0.0
    %567 = vmatpush2.msra.mxu0 0.0
    %568 = vmatprep.mubr.f32.mxu0 0.0
    %569 = vmatmul.mubr.f32.gmra.mxu0 %v218
    %v570 = vpop.f32.mrf.mxu0
    %v571 = vadd.f32 %v171, %v570
    %v572 = vpop.f32.mrf.mxu0
    %v573 = vadd.f32 %v175, %v572
    %574 = vdwg.mxu0
    %575 = vmatprep.subr.mxu0 0.0
    %576 = vmatpush1.msra.mxu0 0.0
    %577 = vmatprep.subr.mxu0 0.0
    %578 = vmatpush1.msra.mxu0 0.0
    %579 = vmatprep.subr.mxu0 0.0
    %580 = vmatpush1.msra.mxu0 0.0
    %581 = vmatprep.subr.mxu0 0.0
    %582 = vmatpush1.msra.mxu0 0.0
    %583 = vmatprep.subr.mxu0 0.0
    %584 = vmatpush1.msra.mxu0 0.0
    %585 = vmatprep.subr.mxu0 0.0
    %586 = vmatpush1.msra.mxu0 0.0
    %587 = vmatprep.subr.mxu0 0.0
    %588 = vmatpush1.msra.mxu0 0.0
    %589 = vmatprep.subr.mxu0 0.0
    %590 = vmatpush1.msra.mxu0 0.0
    %591 = vmatprep.subr.mxu0 0.0
    %592 = vmatpush1.msra.mxu0 0.0
    %593 = vmatprep.subr.mxu0 0.0
    %594 = vmatpush1.msra.mxu0 0.0
    %595 = vmatprep.subr.mxu0 0.0
    %596 = vmatpush1.msra.mxu0 0.0
    %597 = vmatprep.subr.mxu0 0.0
    %598 = vmatpush1.msra.mxu0 0.0
    %599 = vmatprep.subr.mxu0 %v127
    %600 = vmatpush1.msra.mxu0 %v126
    %601 = vmatprep.subr.mxu0 %v111
    %602 = vmatpush1.msra.mxu0 %v110
    %603 = vmatprep.subr.mxu0 %v95
    %604 = vmatpush1.msra.mxu0 %v94
    %605 = vmatprep.subr.mxu0 %v79
    %606 = vmatpush1.msra.mxu0 %v78
    %607 = vmatprep.subr.mxu0 0.0
    %608 = vmatpush2.msra.mxu0 0.0
    %609 = vmatprep.subr.mxu0 0.0
    %610 = vmatpush2.msra.mxu0 0.0
    %611 = vmatprep.subr.mxu0 0.0
    %612 = vmatpush2.msra.mxu0 0.0
    %613 = vmatprep.subr.mxu0 0.0
    %614 = vmatpush2.msra.mxu0 0.0
    %615 = vmatprep.subr.mxu0 0.0
    %616 = vmatpush2.msra.mxu0 0.0
    %617 = vmatprep.subr.mxu0 0.0
    %618 = vmatpush2.msra.mxu0 0.0
    %619 = vmatprep.subr.mxu0 0.0
    %620 = vmatpush2.msra.mxu0 0.0
    %621 = vmatprep.subr.mxu0 0.0
    %622 = vmatpush2.msra.mxu0 0.0
    %623 = vmatprep.subr.mxu0 0.0
    %624 = vmatpush2.msra.mxu0 0.0
    %625 = vmatprep.subr.mxu0 0.0
    %626 = vmatpush2.msra.mxu0 0.0
    %627 = vmatprep.subr.mxu0 0.0
    %628 = vmatpush2.msra.mxu0 0.0
    %629 = vmatprep.subr.mxu0 0.0
    %630 = vmatpush2.msra.mxu0 0.0
    %631 = vmatprep.subr.mxu0 0.0
    %632 = vmatpush2.msra.mxu0 0.0
    %633 = vmatprep.subr.mxu0 0.0
    %634 = vmatpush2.msra.mxu0 0.0
    %635 = vmatprep.subr.mxu0 0.0
    %636 = vmatpush2.msra.mxu0 0.0
    %637 = vmatprep.subr.mxu0 0.0
    %638 = vmatpush2.msra.mxu0 0.0
    %639 = vmatprep.mubr.f32.mxu0 0.0
    %640 = vmatmul.mubr.f32.gmra.mxu0 %v218
    %v641 = vpop.f32.mrf.mxu0
    %v642 = vadd.f32 %v179, %v641
    %v643 = vpop.f32.mrf.mxu0
    %v644 = vadd.f32 %v183, %v643
    %645 = vdwg.mxu0
    %646 = vmatprep.subr.mxu0 0.0
    %647 = vmatpush1.msra.mxu0 0.0
    %648 = vmatprep.subr.mxu0 0.0
    %649 = vmatpush1.msra.mxu0 0.0
    %650 = vmatprep.subr.mxu0 0.0
    %651 = vmatpush1.msra.mxu0 0.0
    %652 = vmatprep.subr.mxu0 0.0
    %653 = vmatpush1.msra.mxu0 0.0
    %654 = vmatprep.subr.mxu0 0.0
    %655 = vmatpush1.msra.mxu0 0.0
    %656 = vmatprep.subr.mxu0 0.0
    %657 = vmatpush1.msra.mxu0 0.0
    %658 = vmatprep.subr.mxu0 0.0
    %659 = vmatpush1.msra.mxu0 0.0
    %660 = vmatprep.subr.mxu0 0.0
    %661 = vmatpush1.msra.mxu0 0.0
    %662 = vmatprep.subr.mxu0 0.0
    %663 = vmatpush1.msra.mxu0 0.0
    %664 = vmatprep.subr.mxu0 0.0
    %665 = vmatpush1.msra.mxu0 0.0
    %666 = vmatprep.subr.mxu0 0.0
    %667 = vmatpush1.msra.mxu0 0.0
    %668 = vmatprep.subr.mxu0 0.0
    %669 = vmatpush1.msra.mxu0 0.0
    %670 = vmatprep.subr.mxu0 %v129
    %671 = vmatpush1.msra.mxu0 %v128
    %672 = vmatprep.subr.mxu0 %v113
    %673 = vmatpush1.msra.mxu0 %v112
    %674 = vmatprep.subr.mxu0 %v97
    %675 = vmatpush1.msra.mxu0 %v96
    %676 = vmatprep.subr.mxu0 %v81
    %677 = vmatpush1.msra.mxu0 %v80
    %678 = vmatprep.subr.mxu0 0.0
    %679 = vmatpush2.msra.mxu0 0.0
    %680 = vmatprep.subr.mxu0 0.0
    %681 = vmatpush2.msra.mxu0 0.0
    %682 = vmatprep.subr.mxu0 0.0
    %683 = vmatpush2.msra.mxu0 0.0
    %684 = vmatprep.subr.mxu0 0.0
    %685 = vmatpush2.msra.mxu0 0.0
    %686 = vmatprep.subr.mxu0 0.0
    %687 = vmatpush2.msra.mxu0 0.0
    %688 = vmatprep.subr.mxu0 0.0
    %689 = vmatpush2.msra.mxu0 0.0
    %690 = vmatprep.subr.mxu0 0.0
    %691 = vmatpush2.msra.mxu0 0.0
    %692 = vmatprep.subr.mxu0 0.0
    %693 = vmatpush2.msra.mxu0 0.0
    %694 = vmatprep.subr.mxu0 0.0
    %695 = vmatpush2.msra.mxu0 0.0
    %696 = vmatprep.subr.mxu0 0.0
    %697 = vmatpush2.msra.mxu0 0.0
    %698 = vmatprep.subr.mxu0 0.0
    %699 = vmatpush2.msra.mxu0 0.0
    %700 = vmatprep.subr.mxu0 0.0
    %701 = vmatpush2.msra.mxu0 0.0
    %702 = vmatprep.subr.mxu0 0.0
    %703 = vmatpush2.msra.mxu0 0.0
    %704 = vmatprep.subr.mxu0 0.0
    %705 = vmatpush2.msra.mxu0 0.0
    %706 = vmatprep.subr.mxu0 0.0
    %707 = vmatpush2.msra.mxu0 0.0
    %708 = vmatprep.subr.mxu0 0.0
    %709 = vmatpush2.msra.mxu0 0.0
    %710 = vmatprep.mubr.f32.mxu0 0.0
    %711 = vmatmul.mubr.f32.gmra.mxu0 %v218
    %v712 = vpop.f32.mrf.mxu0
    %v713 = vadd.f32 %v187, %v712
    %v714 = vpop.f32.mrf.mxu0
    %v715 = vadd.f32 %v191, %v714
    %716 = vdwg.mxu0
    %717 = vmatprep.subr.mxu0 0.0
    %718 = vmatpush1.msra.mxu0 0.0
    %719 = vmatprep.subr.mxu0 0.0
    %720 = vmatpush1.msra.mxu0 0.0
    %721 = vmatprep.subr.mxu0 0.0
    %722 = vmatpush1.msra.mxu0 0.0
    %723 = vmatprep.subr.mxu0 0.0
    %724 = vmatpush1.msra.mxu0 0.0
    %725 = vmatprep.subr.mxu0 0.0
    %726 = vmatpush1.msra.mxu0 0.0
    %727 = vmatprep.subr.mxu0 0.0
    %728 = vmatpush1.msra.mxu0 0.0
    %729 = vmatprep.subr.mxu0 0.0
    %730 = vmatpush1.msra.mxu0 0.0
    %731 = vmatprep.subr.mxu0 0.0
    %732 = vmatpush1.msra.mxu0 0.0
    %733 = vmatprep.subr.mxu0 0.0
    %734 = vmatpush1.msra.mxu0 0.0
    %735 = vmatprep.subr.mxu0 0.0
    %736 = vmatpush1.msra.mxu0 0.0
    %737 = vmatprep.subr.mxu0 0.0
    %738 = vmatpush1.msra.mxu0 0.0
    %739 = vmatprep.subr.mxu0 0.0
    %740 = vmatpush1.msra.mxu0 0.0
    %741 = vmatprep.subr.mxu0 %v131
    %742 = vmatpush1.msra.mxu0 %v130
    %743 = vmatprep.subr.mxu0 %v115
    %744 = vmatpush1.msra.mxu0 %v114
    %745 = vmatprep.subr.mxu0 %v99
    %746 = vmatpush1.msra.mxu0 %v98
    %747 = vmatprep.subr.mxu0 %v83
    %748 = vmatpush1.msra.mxu0 %v82
    %749 = vmatprep.subr.mxu0 0.0
    %750 = vmatpush2.msra.mxu0 0.0
    %751 = vmatprep.subr.mxu0 0.0
    %752 = vmatpush2.msra.mxu0 0.0
    %753 = vmatprep.subr.mxu0 0.0
    %754 = vmatpush2.msra.mxu0 0.0
    %755 = vmatprep.subr.mxu0 0.0
    %756 = vmatpush2.msra.mxu0 0.0
    %757 = vmatprep.subr.mxu0 0.0
    %758 = vmatpush2.msra.mxu0 0.0
    %759 = vmatprep.subr.mxu0 0.0
    %760 = vmatpush2.msra.mxu0 0.0
    %761 = vmatprep.subr.mxu0 0.0
    %762 = vmatpush2.msra.mxu0 0.0
    %763 = vmatprep.subr.mxu0 0.0
    %764 = vmatpush2.msra.mxu0 0.0
    %765 = vmatprep.subr.mxu0 0.0
    %766 = vmatpush2.msra.mxu0 0.0
    %767 = vmatprep.subr.mxu0 0.0
    %768 = vmatpush2.msra.mxu0 0.0
    %769 = vmatprep.subr.mxu0 0.0
    %770 = vmatpush2.msra.mxu0 0.0
    %771 = vmatprep.subr.mxu0 0.0
    %772 = vmatpush2.msra.mxu0 0.0
    %773 = vmatprep.subr.mxu0 0.0
    %774 = vmatpush2.msra.mxu0 0.0
    %775 = vmatprep.subr.mxu0 0.0
    %776 = vmatpush2.msra.mxu0 0.0
    %777 = vmatprep.subr.mxu0 0.0
    %778 = vmatpush2.msra.mxu0 0.0
    %779 = vmatprep.subr.mxu0 0.0
    %780 = vmatpush2.msra.mxu0 0.0
    %781 = vmatprep.mubr.f32.mxu0 0.0
    %782 = vmatmul.mubr.f32.gmra.mxu0 %v218
    %v783 = vpop.f32.mrf.mxu0
    %v784 = vadd.f32 %v195, %v783
    %v785 = vpop.f32.mrf.mxu0
    %v786 = vadd.f32 %v199, %v785
    %787 = vdwg.mxu0
    %vm788 = vcmask 1041408
    %v789 = vsel %vm788, %v287, 0.0
    %v790 = vrot.slane %v789, 4
    %v791 = vadd.f32 %v789, %v790
    %v792 = vrot.slane %v791, 2
    %v793 = vadd.f32 %v791, %v792
    %v794 = vrot.slane %v793, 1
    %v795 = vadd.f32 %v793, %v794
    %v796 = vsel %vm788, %v289, 0.0
    %v797 = vrot.slane %v796, 4
    %v798 = vadd.f32 %v796, %v797
    %v799 = vrot.slane %v798, 2
    %v800 = vadd.f32 %v798, %v799
    %v801 = vrot.slane %v800, 1
    %v802 = vadd.f32 %v800, %v801
    %v803 = vsel %vm788, %v358, 0.0
    %v804 = vrot.slane %v803, 4
    %v805 = vadd.f32 %v803, %v804
    %v806 = vrot.slane %v805, 2
    %v807 = vadd.f32 %v805, %v806
    %v808 = vrot.slane %v807, 1
    %v809 = vadd.f32 %v807, %v808
    %v810 = vsel %vm788, %v360, 0.0
    %v811 = vrot.slane %v810, 4
    %v812 = vadd.f32 %v810, %v811
    %v813 = vrot.slane %v812, 2
    %v814 = vadd.f32 %v812, %v813
    %v815 = vrot.slane %v814, 1
    %v816 = vadd.f32 %v814, %v815
    %v817 = vsel %vm788, %v429, 0.0
    %v818 = vrot.slane %v817, 4
    %v819 = vadd.f32 %v817, %v818
    %v820 = vrot.slane %v819, 2
    %v821 = vadd.f32 %v819, %v820
    %v822 = vrot.slane %v821, 1
    %v823 = vadd.f32 %v821, %v822
    %v824 = vsel %vm788, %v431, 0.0
    %v825 = vrot.slane %v824, 4
    %v826 = vadd.f32 %v824, %v825
    %v827 = vrot.slane %v826, 2
    %v828 = vadd.f32 %v826, %v827
    %v829 = vrot.slane %v828, 1
    %v830 = vadd.f32 %v828, %v829
    %v831 = vsel %vm788, %v500, 0.0
    %v832 = vrot.slane %v831, 4
    %v833 = vadd.f32 %v831, %v832
    %v834 = vrot.slane %v833, 2
    %v835 = vadd.f32 %v833, %v834
    %v836 = vrot.slane %v835, 1
    %v837 = vadd.f32 %v835, %v836
    %v838 = vsel %vm788, %v502, 0.0
    %v839 = vrot.slane %v838, 4
    %v840 = vadd.f32 %v838, %v839
    %v841 = vrot.slane %v840, 2
    %v842 = vadd.f32 %v840, %v841
    %v843 = vrot.slane %v842, 1
    %v844 = vadd.f32 %v842, %v843
    %v845 = vsel %vm788, %v571, 0.0
    %v846 = vrot.slane %v845, 4
    %v847 = vadd.f32 %v845, %v846
    %v848 = vrot.slane %v847, 2
    %v849 = vadd.f32 %v847, %v848
    %v850 = vrot.slane %v849, 1
    %v851 = vadd.f32 %v849, %v850
    %v852 = vsel %vm788, %v573, 0.0
    %v853 = vrot.slane %v852, 4
    %v854 = vadd.f32 %v852, %v853
    %v855 = vrot.slane %v854, 2
    %v856 = vadd.f32 %v854, %v855
    %v857 = vrot.slane %v856, 1
    %v858 = vadd.f32 %v856, %v857
    %v859 = vsel %vm788, %v642, 0.0
    %v860 = vrot.slane %v859, 4
    %v861 = vadd.f32 %v859, %v860
    %v862 = vrot.slane %v861, 2
    %v863 = vadd.f32 %v861, %v862
    %v864 = vrot.slane %v863, 1
    %v865 = vadd.f32 %v863, %v864
    %v866 = vsel %vm788, %v644, 0.0
    %v867 = vrot.slane %v866, 4
    %v868 = vadd.f32 %v866, %v867
    %v869 = vrot.slane %v868, 2
    %v870 = vadd.f32 %v868, %v869
    %v871 = vrot.slane %v870, 1
    %v872 = vadd.f32 %v870, %v871
    %v873 = vsel %vm788, %v713, 0.0
    %v874 = vrot.slane %v873, 4
    %v875 = vadd.f32 %v873, %v874
    %v876 = vrot.slane %v875, 2
    %v877 = vadd.f32 %v875, %v876
    %v878 = vrot.slane %v877, 1
    %v879 = vadd.f32 %v877, %v878
    %v880 = vsel %vm788, %v715, 0.0
    %v881 = vrot.slane %v880, 4
    %v882 = vadd.f32 %v880, %v881
    %v883 = vrot.slane %v882, 2
    %v884 = vadd.f32 %v882, %v883
    %v885 = vrot.slane %v884, 1
    %v886 = vadd.f32 %v884, %v885
    %v887 = vsel %vm788, %v784, 0.0
    %v888 = vrot.slane %v887, 4
    %v889 = vadd.f32 %v887, %v888
    %v890 = vrot.slane %v889, 2
    %v891 = vadd.f32 %v889, %v890
    %v892 = vrot.slane %v891, 1
    %v893 = vadd.f32 %v891, %v892
    %v894 = vsel %vm788, %v786, 0.0
    %v895 = vrot.slane %v894, 4
    %v896 = vadd.f32 %v894, %v895
    %v897 = vrot.slane %v896, 2
    %v898 = vadd.f32 %v896, %v897
    %v899 = vrot.slane %v898, 1
    %v900 = vadd.f32 %v898, %v899
    %v901 = vadd.f32 %v795, %v802
    %v902 = vadd.f32 %v901, %v809
    %v903 = vadd.f32 %v902, %v816
    %v904 = vadd.f32 %v903, %v823
    %v905 = vadd.f32 %v904, %v830
    %v906 = vadd.f32 %v905, %v837
    %v907 = vadd.f32 %v906, %v844
    %v908 = vadd.f32 %v907, %v851
    %v909 = vadd.f32 %v908, %v858
    %v910 = vadd.f32 %v909, %v865
    %v911 = vadd.f32 %v910, %v872
    %v912 = vadd.f32 %v911, %v879
    %v913 = vadd.f32 %v912, %v886
    %v914 = vadd.f32 %v913, %v893
    %v915 = vadd.f32 %v914, %v900
    %v916 = vrcp.pop 32.0
    %v917 = vmul.f32 %v915, %v916
    %v918 = vsub.f32 %v287, %v917
    %v919 = vmul.f32 %v918, %v918
    %v920 = vsel %vm788, %v919, 0.0
    %v921 = vrot.slane %v920, 4
    %v922 = vadd.f32 %v920, %v921
    %v923 = vrot.slane %v922, 2
    %v924 = vadd.f32 %v922, %v923
    %v925 = vrot.slane %v924, 1
    %v926 = vadd.f32 %v924, %v925
    %v927 = vadd.f32 %v926, 0.0
    %v928 = vsub.f32 %v289, %v917
    %v929 = vmul.f32 %v928, %v928
    %v930 = vsel %vm788, %v929, 0.0
    %v931 = vrot.slane %v930, 4
    %v932 = vadd.f32 %v930, %v931
    %v933 = vrot.slane %v932, 2
    %v934 = vadd.f32 %v932, %v933
    %v935 = vrot.slane %v934, 1
    %v936 = vadd.f32 %v934, %v935
    %v937 = vadd.f32 %v927, %v936
    %v938 = vsub.f32 %v358, %v917
    %v939 = vmul.f32 %v938, %v938
    %v940 = vsel %vm788, %v939, 0.0
    %v941 = vrot.slane %v940, 4
    %v942 = vadd.f32 %v940, %v941
    %v943 = vrot.slane %v942, 2
    %v944 = vadd.f32 %v942, %v943
    %v945 = vrot.slane %v944, 1
    %v946 = vadd.f32 %v944, %v945
    %v947 = vadd.f32 %v937, %v946
    %v948 = vsub.f32 %v360, %v917
    %v949 = vmul.f32 %v948, %v948
    %v950 = vsel %vm788, %v949, 0.0
    %v951 = vrot.slane %v950, 4
    %v952 = vadd.f32 %v950, %v951
    %v953 = vrot.slane %v952, 2
    %v954 = vadd.f32 %v952, %v953
    %v955 = vrot.slane %v954, 1
    %v956 = vadd.f32 %v954, %v955
    %v957 = vadd.f32 %v947, %v956
    %v958 = vsub.f32 %v429, %v917
    %v959 = vmul.f32 %v958, %v958
    %v960 = vsel %vm788, %v959, 0.0
    %v961 = vrot.slane %v960, 4
    %v962 = vadd.f32 %v960, %v961
    %v963 = vrot.slane %v962, 2
    %v964 = vadd.f32 %v962, %v963
    %v965 = vrot.slane %v964, 1
    %v966 = vadd.f32 %v964, %v965
    %v967 = vadd.f32 %v957, %v966
    %v968 = vsub.f32 %v431, %v917
    %v969 = vmul.f32 %v968, %v968
    %v970 = vsel %vm788, %v969, 0.0
    %v971 = vrot.slane %v970, 4
    %v972 = vadd.f32 %v970, %v971
    %v973 = vrot.slane %v972, 2
    %v974 = vadd.f32 %v972, %v973
    %v975 = vrot.slane %v974, 1
    %v976 = vadd.f32 %v974, %v975
    %v977 = vadd.f32 %v967, %v976
    %v978 = vsub.f32 %v500, %v917
    %v979 = vmul.f32 %v978, %v978
    %v980 = vsel %vm788, %v979, 0.0
    %v981 = vrot.slane %v980, 4
    %v982 = vadd.f32 %v980, %v981
    %v983 = vrot.slane %v982, 2
    %v984 = vadd.f32 %v982, %v983
    %v985 = vrot.slane %v984, 1
    %v986 = vadd.f32 %v984, %v985
    %v987 = vadd.f32 %v977, %v986
    %v988 = vsub.f32 %v502, %v917
    %v989 = vmul.f32 %v988, %v988
    %v990 = vsel %vm788, %v989, 0.0
    %v991 = vrot.slane %v990, 4
    %v992 = vadd.f32 %v990, %v991
    %v993 = vrot.slane %v992, 2
    %v994 = vadd.f32 %v992, %v993
    %v995 = vrot.slane %v994, 1
    %v996 = vadd.f32 %v994, %v995
    %v997 = vadd.f32 %v987, %v996
    %v998 = vsub.f32 %v571, %v917
    %v999 = vmul.f32 %v998, %v998
    %v1000 = vsel %vm788, %v999, 0.0
    %v1001 = vrot.slane %v1000, 4
    %v1002 = vadd.f32 %v1000, %v1001
    %v1003 = vrot.slane %v1002, 2
    %v1004 = vadd.f32 %v1002, %v1003
    %v1005 = vrot.slane %v1004, 1
    %v1006 = vadd.f32 %v1004, %v1005
    %v1007 = vadd.f32 %v997, %v1006
    %v1008 = vsub.f32 %v573, %v917
    %v1009 = vmul.f32 %v1008, %v1008
    %v1010 = vsel %vm788, %v1009, 0.0
    %v1011 = vrot.slane %v1010, 4
    %v1012 = vadd.f32 %v1010, %v1011
    %v1013 = vrot.slane %v1012, 2
    %v1014 = vadd.f32 %v1012, %v1013
    %v1015 = vrot.slane %v1014, 1
    %v1016 = vadd.f32 %v1014, %v1015
    %v1017 = vadd.f32 %v1007, %v1016
    %v1018 = vsub.f32 %v642, %v917
    %v1019 = vmul.f32 %v1018, %v1018
    %v1020 = vsel %vm788, %v1019, 0.0
    %v1021 = vrot.slane %v1020, 4
    %v1022 = vadd.f32 %v1020, %v1021
    %v1023 = vrot.slane %v1022, 2
    %v1024 = vadd.f32 %v1022, %v1023
    %v1025 = vrot.slane %v1024, 1
    %v1026 = vadd.f32 %v1024, %v1025
    %v1027 = vadd.f32 %v1017, %v1026
    %v1028 = vsub.f32 %v644, %v917
    %v1029 = vmul.f32 %v1028, %v1028
    %v1030 = vsel %vm788, %v1029, 0.0
    %v1031 = vrot.slane %v1030, 4
    %v1032 = vadd.f32 %v1030, %v1031
    %v1033 = vrot.slane %v1032, 2
    %v1034 = vadd.f32 %v1032, %v1033
    %v1035 = vrot.slane %v1034, 1
    %v1036 = vadd.f32 %v1034, %v1035
    %v1037 = vadd.f32 %v1027, %v1036
    %v1038 = vsub.f32 %v713, %v917
    %v1039 = vmul.f32 %v1038, %v1038
    %v1040 = vsel %vm788, %v1039, 0.0
    %v1041 = vrot.slane %v1040, 4
    %v1042 = vadd.f32 %v1040, %v1041
    %v1043 = vrot.slane %v1042, 2
    %v1044 = vadd.f32 %v1042, %v1043
    %v1045 = vrot.slane %v1044, 1
    %v1046 = vadd.f32 %v1044, %v1045
    %v1047 = vadd.f32 %v1037, %v1046
    %v1048 = vsub.f32 %v715, %v917
    %v1049 = vmul.f32 %v1048, %v1048
    %v1050 = vsel %vm788, %v1049, 0.0
    %v1051 = vrot.slane %v1050, 4
    %v1052 = vadd.f32 %v1050, %v1051
    %v1053 = vrot.slane %v1052, 2
    %v1054 = vadd.f32 %v1052, %v1053
    %v1055 = vrot.slane %v1054, 1
    %v1056 = vadd.f32 %v1054, %v1055
    %v1057 = vadd.f32 %v1047, %v1056
    %v1058 = vsub.f32 %v784, %v917
    %v1059 = vmul.f32 %v1058, %v1058
    %v1060 = vsel %vm788, %v1059, 0.0
    %v1061 = vrot.slane %v1060, 4
    %v1062 = vadd.f32 %v1060, %v1061
    %v1063 = vrot.slane %v1062, 2
    %v1064 = vadd.f32 %v1062, %v1063
    %v1065 = vrot.slane %v1064, 1
    %v1066 = vadd.f32 %v1064, %v1065
    %v1067 = vadd.f32 %v1057, %v1066
    %v1068 = vsub.f32 %v786, %v917
    %v1069 = vmul.f32 %v1068, %v1068
    %v1070 = vsel %vm788, %v1069, 0.0
    %v1071 = vrot.slane %v1070, 4
    %v1072 = vadd.f32 %v1070, %v1071
    %v1073 = vrot.slane %v1072, 2
    %v1074 = vadd.f32 %v1072, %v1073
    %v1075 = vrot.slane %v1074, 1
    %v1076 = vadd.f32 %v1074, %v1075
    %v1077 = vadd.f32 %v1067, %v1076
    %v1078 = vmul.f32 %v1077, %v916
    %v1079 = vld [vmem:[%s3] sm:$0x1]
    %v1080 = vadd.f32 %v1078, 1e-05
    %v1081 = vrsqrt.pop %v1080
    %v1082 = vmul.f32 %v1079, %v1081
    %v1083 = vld [vmem:[%s4] sm:$0x1]
    %v1084 = vmul.f32 %v917, %v1082
    %v1085 = vsub.f32 %v1083, %v1084
    %1086 = vst [vmem:[#allocation2] sm:$0xff] 0.0
    %1087 = vst [vmem:[#allocation2 + $0x8] sm:$0x3] 0.0
    %1088 = vst [vmem:[#allocation2 + $0x10] sm:$0xff] 0.0
    %1089 = vst [vmem:[#allocation2 + $0x18] sm:$0x3] 0.0
    %1090 = vst [vmem:[#allocation2 + $0x20] sm:$0xff] 0.0
    %1091 = vst [vmem:[#allocation2 + $0x28] sm:$0x3] 0.0
    %1092 = vst [vmem:[#allocation2 + $0x30] sm:$0xff] 0.0
    %1093 = vst [vmem:[#allocation2 + $0x38] sm:$0x3] 0.0
    %1094 = vst [vmem:[#allocation2 + $0x40] sm:$0xff] 0.0
    %1095 = vst [vmem:[#allocation2 + $0x48] sm:$0x3] 0.0
    %1096 = vst [vmem:[#allocation2 + $0x50] sm:$0xff] 0.0
    %1097 = vst [vmem:[#allocation2 + $0x58] sm:$0x3] 0.0
    %1098 = vst [vmem:[#allocation2 + $0x60] sm:$0xff] 0.0
    %1099 = vst [vmem:[#allocation2 + $0x68] sm:$0x3] 0.0
    %1100 = vst [vmem:[#allocation2 + $0x70] sm:$0xff] 0.0
    %1101 = vst [vmem:[#allocation2 + $0x78] sm:$0x3] 0.0
    %1102 = vst [vmem:[#allocation2 + $0x80] sm:$0xff] 0.0
    %1103 = vst [vmem:[#allocation2 + $0x88] sm:$0x3] 0.0
    %1104 = vst [vmem:[#allocation2 + $0x90] sm:$0xff] 0.0
    %1105 = vst [vmem:[#allocation2 + $0x98] sm:$0x3] 0.0
    %1106 = vst [vmem:[#allocation2 + $0xa0] sm:$0xff] 0.0
    %1107 = vst [vmem:[#allocation2 + $0xa8] sm:$0x3] 0.0
    %1108 = vst [vmem:[#allocation2 + $0xb0] sm:$0xff] 0.0
    %1109 = vst [vmem:[#allocation2 + $0xb8] sm:$0x3] 0.0
    %1110 = vst [vmem:[#allocation2 + $0xc0] sm:$0xff] 0.0
    %1111 = vst [vmem:[#allocation2 + $0xc8] sm:$0x3] 0.0
    %1112 = vst [vmem:[#allocation2 + $0xd0] sm:$0xff] 0.0
    %1113 = vst [vmem:[#allocation2 + $0xd8] sm:$0x3] 0.0
    %1114 = vst [vmem:[#allocation2 + $0xe0] sm:$0xff] 0.0
    %1115 = vst [vmem:[#allocation2 + $0xe8] sm:$0x3] 0.0
    %1116 = vst [vmem:[#allocation2 + $0xf0] sm:$0xff] 0.0
    %1117 = vst [vmem:[#allocation2 + $0xf8] sm:$0x3] 0.0
    %1118 = vst [vmem:[#allocation2 + $0x100] sm:$0xff] 0.0
    %1119 = vst [vmem:[#allocation2 + $0x108] sm:$0x3] 0.0
    %1120 = vst [vmem:[#allocation2 + $0x110] sm:$0xff] 0.0
    %1121 = vst [vmem:[#allocation2 + $0x118] sm:$0x3] 0.0
    %1122 = vst [vmem:[#allocation2 + $0x120] sm:$0xff] 0.0
    %1123 = vst [vmem:[#allocation2 + $0x128] sm:$0x3] 0.0
    %1124 = vst [vmem:[#allocation2 + $0x130] sm:$0xff] 0.0
    %1125 = vst [vmem:[#allocation2 + $0x138] sm:$0x3] 0.0
    %v1127 = vlaneseq
    %v1128 = vshrl.u32 %v1127, 7
    %v1129 = vsub.s32 0, %v1128
    %v1130 = vrot.slane %v1082, %v1129
    %v1132 = vmul.f32 %v287, %v1130
    %v1134 = vlaneseq
    %v1135 = vshrl.u32 %v1134, 7
    %v1136 = vsub.s32 0, %v1135
    %v1137 = vrot.slane %v1085, %v1136
    %v1139 = vadd.f32 %v1132, %v1137
    %v1142 = vunpack.c.l.s4 1966171168
    %v1143 = vunpack.c.0.s8 %v1142
    %v1144 = vlaneseq
    %v1145 = vshrl.u32 %v1144, 7
    %v1146 = vsub.s32 %v1143, %v1145
    %v1147 = vrot.slane %v1139, %v1146
    %v1148 = vcombine.high %v1147, %v1147
    %v1150 = vunpack.c.l.s4 1966171168
    %v1151 = vunpack.c.0.s8 %v1150
    %v1152 = vlaneseq
    %v1153 = vshrl.u32 %v1152, 7
    %v1154 = vsub.s32 %v1151, %v1153
    %v1155 = vrot.slane %v1147, %v1154
    %v1157 = vunpack.c.l.s4 1966171168
    %v1158 = vunpack.c.0.s8 %v1157
    %v1159 = vlaneseq
    %v1160 = vshrl.u32 %v1159, 7
    %v1161 = vsub.s32 %v1158, %v1160
    %v1162 = vrot.slane %v1148, %v1161
    %v1163 = vlaneseq
    %v1164 = vshrl.u32 %v1163, 7
    %v1165 = vsub.s32 0, %v1164
    %v1166 = vrot.slane %v1155, %v1165
    %v1167 = vlaneseq
    %v1168 = vshrl.u32 %v1167, 7
    %v1169 = vsub.s32 0, %v1168
    %v1170 = vrot.slane %v1162, %v1169
    %s1173 = scalar_lea.vmem [#allocation2], 16
    %1174 = vst [vmem:[%s1173 + $0x1] sm:$0x3] %v1166
    %1175 = vst [vmem:[%s1173 + $0x11] sm:$0x3] %v1166
    %1176 = vst [vmem:[%s1173 + $0xa1] sm:$0x3] %v1170
    %1177 = vst [vmem:[%s1173 + $0xb1] sm:$0x3] %v1170
    %v1178 = vmul.f32 %v289, %v1130
    %v1179 = vadd.f32 %v1178, %v1137
    %v1182 = vunpack.c.l.s4 1966171168
    %v1183 = vunpack.c.0.s8 %v1182
    %v1184 = vlaneseq
    %v1185 = vshrl.u32 %v1184, 7
    %v1186 = vsub.s32 %v1183, %v1185
    %v1187 = vrot.slane %v1179, %v1186
    %v1188 = vcombine.high %v1187, %v1187
    %v1190 = vunpack.c.l.s4 1966171168
    %v1191 = vunpack.c.0.s8 %v1190
    %v1192 = vlaneseq
    %v1193 = vshrl.u32 %v1192, 7
    %v1194 = vsub.s32 %v1191, %v1193
    %v1195 = vrot.slane %v1187, %v1194
    %v1197 = vunpack.c.l.s4 1966171168
    %v1198 = vunpack.c.0.s8 %v1197
    %v1199 = vlaneseq
    %v1200 = vshrl.u32 %v1199, 7
    %v1201 = vsub.s32 %v1198, %v1200
    %v1202 = vrot.slane %v1188, %v1201
    %v1203 = vlaneseq
    %v1204 = vshrl.u32 %v1203, 7
    %v1205 = vsub.s32 0, %v1204
    %v1206 = vrot.slane %v1195, %v1205
    %v1207 = vlaneseq
    %v1208 = vshrl.u32 %v1207, 7
    %v1209 = vsub.s32 0, %v1208
    %v1210 = vrot.slane %v1202, %v1209
    %1213 = vst [vmem:[%s1173 + $0x3] sm:$0x3] %v1206
    %1214 = vst [vmem:[%s1173 + $0x13] sm:$0x3] %v1206
    %1215 = vst [vmem:[%s1173 + $0xa3] sm:$0x3] %v1210
    %1216 = vst [vmem:[%s1173 + $0xb3] sm:$0x3] %v1210
    %v1217 = vmul.f32 %v358, %v1130
    %v1218 = vadd.f32 %v1217, %v1137
    %v1221 = vunpack.c.l.s4 1966171168
    %v1222 = vunpack.c.0.s8 %v1221
    %v1223 = vlaneseq
    %v1224 = vshrl.u32 %v1223, 7
    %v1225 = vsub.s32 %v1222, %v1224
    %v1226 = vrot.slane %v1218, %v1225
    %v1227 = vcombine.high %v1226, %v1226
    %v1229 = vunpack.c.l.s4 1966171168
    %v1230 = vunpack.c.0.s8 %v1229
    %v1231 = vlaneseq
    %v1232 = vshrl.u32 %v1231, 7
    %v1233 = vsub.s32 %v1230, %v1232
    %v1234 = vrot.slane %v1226, %v1233
    %v1236 = vunpack.c.l.s4 1966171168
    %v1237 = vunpack.c.0.s8 %v1236
    %v1238 = vlaneseq
    %v1239 = vshrl.u32 %v1238, 7
    %v1240 = vsub.s32 %v1237, %v1239
    %v1241 = vrot.slane %v1227, %v1240
    %v1242 = vlaneseq
    %v1243 = vshrl.u32 %v1242, 7
    %v1244 = vsub.s32 0, %v1243
    %v1245 = vrot.slane %v1234, %v1244
    %v1246 = vlaneseq
    %v1247 = vshrl.u32 %v1246, 7
    %v1248 = vsub.s32 0, %v1247
    %v1249 = vrot.slane %v1241, %v1248
    %1252 = vst [vmem:[%s1173 + $0x5] sm:$0x3] %v1245
    %1253 = vst [vmem:[%s1173 + $0x15] sm:$0x3] %v1245
    %1254 = vst [vmem:[%s1173 + $0xa5] sm:$0x3] %v1249
    %1255 = vst [vmem:[%s1173 + $0xb5] sm:$0x3] %v1249
    %v1256 = vmul.f32 %v360, %v1130
    %v1257 = vadd.f32 %v1256, %v1137
    %v1260 = vunpack.c.l.s4 1966171168
    %v1261 = vunpack.c.0.s8 %v1260
    %v1262 = vlaneseq
    %v1263 = vshrl.u32 %v1262, 7
    %v1264 = vsub.s32 %v1261, %v1263
    %v1265 = vrot.slane %v1257, %v1264
    %v1266 = vcombine.high %v1265, %v1265
    %v1268 = vunpack.c.l.s4 1966171168
    %v1269 = vunpack.c.0.s8 %v1268
    %v1270 = vlaneseq
    %v1271 = vshrl.u32 %v1270, 7
    %v1272 = vsub.s32 %v1269, %v1271
    %v1273 = vrot.slane %v1265, %v1272
    %v1275 = vunpack.c.l.s4 1966171168
    %v1276 = vunpack.c.0.s8 %v1275
    %v1277 = vlaneseq
    %v1278 = vshrl.u32 %v1277, 7
    %v1279 = vsub.s32 %v1276, %v1278
    %v1280 = vrot.slane %v1266, %v1279
    %v1281 = vlaneseq
    %v1282 = vshrl.u32 %v1281, 7
    %v1283 = vsub.s32 0, %v1282
    %v1284 = vrot.slane %v1273, %v1283
    %v1285 = vlaneseq
    %v1286 = vshrl.u32 %v1285, 7
    %v1287 = vsub.s32 0, %v1286
    %v1288 = vrot.slane %v1280, %v1287
    %1291 = vst [vmem:[%s1173 + $0x7] sm:$0x3] %v1284
    %1292 = vst [vmem:[%s1173 + $0x17] sm:$0x3] %v1284
    %1293 = vst [vmem:[%s1173 + $0xa7] sm:$0x3] %v1288
    %1294 = vst [vmem:[%s1173 + $0xb7] sm:$0x3] %v1288
    %v1295 = vmul.f32 %v429, %v1130
    %v1296 = vadd.f32 %v1295, %v1137
    %v1299 = vunpack.c.l.s4 1966171168
    %v1300 = vunpack.c.0.s8 %v1299
    %v1301 = vlaneseq
    %v1302 = vshrl.u32 %v1301, 7
    %v1303 = vsub.s32 %v1300, %v1302
    %v1304 = vrot.slane %v1296, %v1303
    %v1305 = vcombine.high %v1304, %v1304
    %v1307 = vunpack.c.l.s4 1966171168
    %v1308 = vunpack.c.0.s8 %v1307
    %v1309 = vlaneseq
    %v1310 = vshrl.u32 %v1309, 7
    %v1311 = vsub.s32 %v1308, %v1310
    %v1312 = vrot.slane %v1304, %v1311
    %v1314 = vunpack.c.l.s4 1966171168
    %v1315 = vunpack.c.0.s8 %v1314
    %v1316 = vlaneseq
    %v1317 = vshrl.u32 %v1316, 7
    %v1318 = vsub.s32 %v1315, %v1317
    %v1319 = vrot.slane %v1305, %v1318
    %v1320 = vlaneseq
    %v1321 = vshrl.u32 %v1320, 7
    %v1322 = vsub.s32 0, %v1321
    %v1323 = vrot.slane %v1312, %v1322
    %v1324 = vlaneseq
    %v1325 = vshrl.u32 %v1324, 7
    %v1326 = vsub.s32 0, %v1325
    %v1327 = vrot.slane %v1319, %v1326
    %s1330 = scalar_lea.vmem [#allocation2], 48
    %1331 = vst [vmem:[%s1330 + $0x1] sm:$0x3] %v1323
    %1332 = vst [vmem:[%s1330 + $0x11] sm:$0x3] %v1323
    %1333 = vst [vmem:[%s1330 + $0xa1] sm:$0x3] %v1327
    %1334 = vst [vmem:[%s1330 + $0xb1] sm:$0x3] %v1327
    %v1335 = vmul.f32 %v431, %v1130
    %v1336 = vadd.f32 %v1335, %v1137
    %v1339 = vunpack.c.l.s4 1966171168
    %v1340 = vunpack.c.0.s8 %v1339
    %v1341 = vlaneseq
    %v1342 = vshrl.u32 %v1341, 7
    %v1343 = vsub.s32 %v1340, %v1342
    %v1344 = vrot.slane %v1336, %v1343
    %v1345 = vcombine.high %v1344, %v1344
    %v1347 = vunpack.c.l.s4 1966171168
    %v1348 = vunpack.c.0.s8 %v1347
    %v1349 = vlaneseq
    %v1350 = vshrl.u32 %v1349, 7
    %v1351 = vsub.s32 %v1348, %v1350
    %v1352 = vrot.slane %v1344, %v1351
    %v1354 = vunpack.c.l.s4 1966171168
    %v1355 = vunpack.c.0.s8 %v1354
    %v1356 = vlaneseq
    %v1357 = vshrl.u32 %v1356, 7
    %v1358 = vsub.s32 %v1355, %v1357
    %v1359 = vrot.slane %v1345, %v1358
    %v1360 = vlaneseq
    %v1361 = vshrl.u32 %v1360, 7
    %v1362 = vsub.s32 0, %v1361
    %v1363 = vrot.slane %v1352, %v1362
    %v1364 = vlaneseq
    %v1365 = vshrl.u32 %v1364, 7
    %v1366 = vsub.s32 0, %v1365
    %v1367 = vrot.slane %v1359, %v1366
    %1370 = vst [vmem:[%s1330 + $0x3] sm:$0x3] %v1363
    %1371 = vst [vmem:[%s1330 + $0x13] sm:$0x3] %v1363
    %1372 = vst [vmem:[%s1330 + $0xa3] sm:$0x3] %v1367
    %1373 = vst [vmem:[%s1330 + $0xb3] sm:$0x3] %v1367
    %v1374 = vmul.f32 %v500, %v1130
    %v1375 = vadd.f32 %v1374, %v1137
    %v1378 = vunpack.c.l.s4 1966171168
    %v1379 = vunpack.c.0.s8 %v1378
    %v1380 = vlaneseq
    %v1381 = vshrl.u32 %v1380, 7
    %v1382 = vsub.s32 %v1379, %v1381
    %v1383 = vrot.slane %v1375, %v1382
    %v1384 = vcombine.high %v1383, %v1383
    %v1386 = vunpack.c.l.s4 1966171168
    %v1387 = vunpack.c.0.s8 %v1386
    %v1388 = vlaneseq
    %v1389 = vshrl.u32 %v1388, 7
    %v1390 = vsub.s32 %v1387, %v1389
    %v1391 = vrot.slane %v1383, %v1390
    %v1393 = vunpack.c.l.s4 1966171168
    %v1394 = vunpack.c.0.s8 %v1393
    %v1395 = vlaneseq
    %v1396 = vshrl.u32 %v1395, 7
    %v1397 = vsub.s32 %v1394, %v1396
    %v1398 = vrot.slane %v1384, %v1397
    %v1399 = vlaneseq
    %v1400 = vshrl.u32 %v1399, 7
    %v1401 = vsub.s32 0, %v1400
    %v1402 = vrot.slane %v1391, %v1401
    %v1403 = vlaneseq
    %v1404 = vshrl.u32 %v1403, 7
    %v1405 = vsub.s32 0, %v1404
    %v1406 = vrot.slane %v1398, %v1405
    %1409 = vst [vmem:[%s1330 + $0x5] sm:$0x3] %v1402
    %1410 = vst [vmem:[%s1330 + $0x15] sm:$0x3] %v1402
    %1411 = vst [vmem:[%s1330 + $0xa5] sm:$0x3] %v1406
    %1412 = vst [vmem:[%s1330 + $0xb5] sm:$0x3] %v1406
    %v1413 = vmul.f32 %v502, %v1130
    %v1414 = vadd.f32 %v1413, %v1137
    %v1417 = vunpack.c.l.s4 1966171168
    %v1418 = vunpack.c.0.s8 %v1417
    %v1419 = vlaneseq
    %v1420 = vshrl.u32 %v1419, 7
    %v1421 = vsub.s32 %v1418, %v1420
    %v1422 = vrot.slane %v1414, %v1421
    %v1423 = vcombine.high %v1422, %v1422
    %v1425 = vunpack.c.l.s4 1966171168
    %v1426 = vunpack.c.0.s8 %v1425
    %v1427 = vlaneseq
    %v1428 = vshrl.u32 %v1427, 7
    %v1429 = vsub.s32 %v1426, %v1428
    %v1430 = vrot.slane %v1422, %v1429
    %v1432 = vunpack.c.l.s4 1966171168
    %v1433 = vunpack.c.0.s8 %v1432
    %v1434 = vlaneseq
    %v1435 = vshrl.u32 %v1434, 7
    %v1436 = vsub.s32 %v1433, %v1435
    %v1437 = vrot.slane %v1423, %v1436
    %v1438 = vlaneseq
    %v1439 = vshrl.u32 %v1438, 7
    %v1440 = vsub.s32 0, %v1439
    %v1441 = vrot.slane %v1430, %v1440
    %v1442 = vlaneseq
    %v1443 = vshrl.u32 %v1442, 7
    %v1444 = vsub.s32 0, %v1443
    %v1445 = vrot.slane %v1437, %v1444
    %1448 = vst [vmem:[%s1330 + $0x7] sm:$0x3] %v1441
    %1449 = vst [vmem:[%s1330 + $0x17] sm:$0x3] %v1441
    %1450 = vst [vmem:[%s1330 + $0xa7] sm:$0x3] %v1445
    %1451 = vst [vmem:[%s1330 + $0xb7] sm:$0x3] %v1445
    %v1452 = vmul.f32 %v571, %v1130
    %v1453 = vadd.f32 %v1452, %v1137
    %v1456 = vunpack.c.l.s4 1966171168
    %v1457 = vunpack.c.0.s8 %v1456
    %v1458 = vlaneseq
    %v1459 = vshrl.u32 %v1458, 7
    %v1460 = vsub.s32 %v1457, %v1459
    %v1461 = vrot.slane %v1453, %v1460
    %v1462 = vcombine.high %v1461, %v1461
    %v1464 = vunpack.c.l.s4 1966171168
    %v1465 = vunpack.c.0.s8 %v1464
    %v1466 = vlaneseq
    %v1467 = vshrl.u32 %v1466, 7
    %v1468 = vsub.s32 %v1465, %v1467
    %v1469 = vrot.slane %v1461, %v1468
    %v1471 = vunpack.c.l.s4 1966171168
    %v1472 = vunpack.c.0.s8 %v1471
    %v1473 = vlaneseq
    %v1474 = vshrl.u32 %v1473, 7
    %v1475 = vsub.s32 %v1472, %v1474
    %v1476 = vrot.slane %v1462, %v1475
    %v1477 = vlaneseq
    %v1478 = vshrl.u32 %v1477, 7
    %v1479 = vsub.s32 0, %v1478
    %v1480 = vrot.slane %v1469, %v1479
    %v1481 = vlaneseq
    %v1482 = vshrl.u32 %v1481, 7
    %v1483 = vsub.s32 0, %v1482
    %v1484 = vrot.slane %v1476, %v1483
    %s1487 = scalar_lea.vmem [#allocation2], 80
    %1488 = vst [vmem:[%s1487 + $0x1] sm:$0x3] %v1480
    %1489 = vst [vmem:[%s1487 + $0x11] sm:$0x3] %v1480
    %1490 = vst [vmem:[%s1487 + $0xa1] sm:$0x3] %v1484
    %1491 = vst [vmem:[%s1487 + $0xb1] sm:$0x3] %v1484
    %v1492 = vmul.f32 %v573, %v1130
    %v1493 = vadd.f32 %v1492, %v1137
    %v1496 = vunpack.c.l.s4 1966171168
    %v1497 = vunpack.c.0.s8 %v1496
    %v1498 = vlaneseq
    %v1499 = vshrl.u32 %v1498, 7
    %v1500 = vsub.s32 %v1497, %v1499
    %v1501 = vrot.slane %v1493, %v1500
    %v1502 = vcombine.high %v1501, %v1501
    %v1504 = vunpack.c.l.s4 1966171168
    %v1505 = vunpack.c.0.s8 %v1504
    %v1506 = vlaneseq
    %v1507 = vshrl.u32 %v1506, 7
    %v1508 = vsub.s32 %v1505, %v1507
    %v1509 = vrot.slane %v1501, %v1508
    %v1511 = vunpack.c.l.s4 1966171168
    %v1512 = vunpack.c.0.s8 %v1511
    %v1513 = vlaneseq
    %v1514 = vshrl.u32 %v1513, 7
    %v1515 = vsub.s32 %v1512, %v1514
    %v1516 = vrot.slane %v1502, %v1515
    %v1517 = vlaneseq
    %v1518 = vshrl.u32 %v1517, 7
    %v1519 = vsub.s32 0, %v1518
    %v1520 = vrot.slane %v1509, %v1519
    %v1521 = vlaneseq
    %v1522 = vshrl.u32 %v1521, 7
    %v1523 = vsub.s32 0, %v1522
    %v1524 = vrot.slane %v1516, %v1523
    %1527 = vst [vmem:[%s1487 + $0x3] sm:$0x3] %v1520
    %1528 = vst [vmem:[%s1487 + $0x13] sm:$0x3] %v1520
    %1529 = vst [vmem:[%s1487 + $0xa3] sm:$0x3] %v1524
    %1530 = vst [vmem:[%s1487 + $0xb3] sm:$0x3] %v1524
    %v1531 = vmul.f32 %v642, %v1130
    %v1532 = vadd.f32 %v1531, %v1137
    %v1535 = vunpack.c.l.s4 1966171168
    %v1536 = vunpack.c.0.s8 %v1535
    %v1537 = vlaneseq
    %v1538 = vshrl.u32 %v1537, 7
    %v1539 = vsub.s32 %v1536, %v1538
    %v1540 = vrot.slane %v1532, %v1539
    %v1541 = vcombine.high %v1540, %v1540
    %v1543 = vunpack.c.l.s4 1966171168
    %v1544 = vunpack.c.0.s8 %v1543
    %v1545 = vlaneseq
    %v1546 = vshrl.u32 %v1545, 7
    %v1547 = vsub.s32 %v1544, %v1546
    %v1548 = vrot.slane %v1540, %v1547
    %v1550 = vunpack.c.l.s4 1966171168
    %v1551 = vunpack.c.0.s8 %v1550
    %v1552 = vlaneseq
    %v1553 = vshrl.u32 %v1552, 7
    %v1554 = vsub.s32 %v1551, %v1553
    %v1555 = vrot.slane %v1541, %v1554
    %v1556 = vlaneseq
    %v1557 = vshrl.u32 %v1556, 7
    %v1558 = vsub.s32 0, %v1557
    %v1559 = vrot.slane %v1548, %v1558
    %v1560 = vlaneseq
    %v1561 = vshrl.u32 %v1560, 7
    %v1562 = vsub.s32 0, %v1561
    %v1563 = vrot.slane %v1555, %v1562
    %1566 = vst [vmem:[%s1487 + $0x5] sm:$0x3] %v1559
    %1567 = vst [vmem:[%s1487 + $0x15] sm:$0x3] %v1559
    %1568 = vst [vmem:[%s1487 + $0xa5] sm:$0x3] %v1563
    %1569 = vst [vmem:[%s1487 + $0xb5] sm:$0x3] %v1563
    %v1570 = vmul.f32 %v644, %v1130
    %v1571 = vadd.f32 %v1570, %v1137
    %v1574 = vunpack.c.l.s4 1966171168
    %v1575 = vunpack.c.0.s8 %v1574
    %v1576 = vlaneseq
    %v1577 = vshrl.u32 %v1576, 7
    %v1578 = vsub.s32 %v1575, %v1577
    %v1579 = vrot.slane %v1571, %v1578
    %v1580 = vcombine.high %v1579, %v1579
    %v1582 = vunpack.c.l.s4 1966171168
    %v1583 = vunpack.c.0.s8 %v1582
    %v1584 = vlaneseq
    %v1585 = vshrl.u32 %v1584, 7
    %v1586 = vsub.s32 %v1583, %v1585
    %v1587 = vrot.slane %v1579, %v1586
    %v1589 = vunpack.c.l.s4 1966171168
    %v1590 = vunpack.c.0.s8 %v1589
    %v1591 = vlaneseq
    %v1592 = vshrl.u32 %v1591, 7
    %v1593 = vsub.s32 %v1590, %v1592
    %v1594 = vrot.slane %v1580, %v1593
    %v1595 = vlaneseq
    %v1596 = vshrl.u32 %v1595, 7
    %v1597 = vsub.s32 0, %v1596
    %v1598 = vrot.slane %v1587, %v1597
    %v1599 = vlaneseq
    %v1600 = vshrl.u32 %v1599, 7
    %v1601 = vsub.s32 0, %v1600
    %v1602 = vrot.slane %v1594, %v1601
    %1605 = vst [vmem:[%s1487 + $0x7] sm:$0x3] %v1598
    %1606 = vst [vmem:[%s1487 + $0x17] sm:$0x3] %v1598
    %1607 = vst [vmem:[%s1487 + $0xa7] sm:$0x3] %v1602
    %1608 = vst [vmem:[%s1487 + $0xb7] sm:$0x3] %v1602
    %v1609 = vmul.f32 %v713, %v1130
    %v1610 = vadd.f32 %v1609, %v1137
    %v1613 = vunpack.c.l.s4 1966171168
    %v1614 = vunpack.c.0.s8 %v1613
    %v1615 = vlaneseq
    %v1616 = vshrl.u32 %v1615, 7
    %v1617 = vsub.s32 %v1614, %v1616
    %v1618 = vrot.slane %v1610, %v1617
    %v1619 = vcombine.high %v1618, %v1618
    %v1621 = vunpack.c.l.s4 1966171168
    %v1622 = vunpack.c.0.s8 %v1621
    %v1623 = vlaneseq
    %v1624 = vshrl.u32 %v1623, 7
    %v1625 = vsub.s32 %v1622, %v1624
    %v1626 = vrot.slane %v1618, %v1625
    %v1628 = vunpack.c.l.s4 1966171168
    %v1629 = vunpack.c.0.s8 %v1628
    %v1630 = vlaneseq
    %v1631 = vshrl.u32 %v1630, 7
    %v1632 = vsub.s32 %v1629, %v1631
    %v1633 = vrot.slane %v1619, %v1632
    %v1634 = vlaneseq
    %v1635 = vshrl.u32 %v1634, 7
    %v1636 = vsub.s32 0, %v1635
    %v1637 = vrot.slane %v1626, %v1636
    %v1638 = vlaneseq
    %v1639 = vshrl.u32 %v1638, 7
    %v1640 = vsub.s32 0, %v1639
    %v1641 = vrot.slane %v1633, %v1640
    %s1644 = scalar_lea.vmem [#allocation2], 112
    %1645 = vst [vmem:[%s1644 + $0x1] sm:$0x3] %v1637
    %1646 = vst [vmem:[%s1644 + $0x11] sm:$0x3] %v1637
    %1647 = vst [vmem:[%s1644 + $0xa1] sm:$0x3] %v1641
    %1648 = vst [vmem:[%s1644 + $0xb1] sm:$0x3] %v1641
    %v1649 = vmul.f32 %v715, %v1130
    %v1650 = vadd.f32 %v1649, %v1137
    %v1653 = vunpack.c.l.s4 1966171168
    %v1654 = vunpack.c.0.s8 %v1653
    %v1655 = vlaneseq
    %v1656 = vshrl.u32 %v1655, 7
    %v1657 = vsub.s32 %v1654, %v1656
    %v1658 = vrot.slane %v1650, %v1657
    %v1659 = vcombine.high %v1658, %v1658
    %v1661 = vunpack.c.l.s4 1966171168
    %v1662 = vunpack.c.0.s8 %v1661
    %v1663 = vlaneseq
    %v1664 = vshrl.u32 %v1663, 7
    %v1665 = vsub.s32 %v1662, %v1664
    %v1666 = vrot.slane %v1658, %v1665
    %v1668 = vunpack.c.l.s4 1966171168
    %v1669 = vunpack.c.0.s8 %v1668
    %v1670 = vlaneseq
    %v1671 = vshrl.u32 %v1670, 7
    %v1672 = vsub.s32 %v1669, %v1671
    %v1673 = vrot.slane %v1659, %v1672
    %v1674 = vlaneseq
    %v1675 = vshrl.u32 %v1674, 7
    %v1676 = vsub.s32 0, %v1675
    %v1677 = vrot.slane %v1666, %v1676
    %v1678 = vlaneseq
    %v1679 = vshrl.u32 %v1678, 7
    %v1680 = vsub.s32 0, %v1679
    %v1681 = vrot.slane %v1673, %v1680
    %1684 = vst [vmem:[%s1644 + $0x3] sm:$0x3] %v1677
    %1685 = vst [vmem:[%s1644 + $0x13] sm:$0x3] %v1677
    %1686 = vst [vmem:[%s1644 + $0xa3] sm:$0x3] %v1681
    %1687 = vst [vmem:[%s1644 + $0xb3] sm:$0x3] %v1681
    %v1688 = vmul.f32 %v784, %v1130
    %v1689 = vadd.f32 %v1688, %v1137
    %v1692 = vunpack.c.l.s4 1966171168
    %v1693 = vunpack.c.0.s8 %v1692
    %v1694 = vlaneseq
    %v1695 = vshrl.u32 %v1694, 7
    %v1696 = vsub.s32 %v1693, %v1695
    %v1697 = vrot.slane %v1689, %v1696
    %v1698 = vcombine.high %v1697, %v1697
    %v1700 = vunpack.c.l.s4 1966171168
    %v1701 = vunpack.c.0.s8 %v1700
    %v1702 = vlaneseq
    %v1703 = vshrl.u32 %v1702, 7
    %v1704 = vsub.s32 %v1701, %v1703
    %v1705 = vrot.slane %v1697, %v1704
    %v1707 = vunpack.c.l.s4 1966171168
    %v1708 = vunpack.c.0.s8 %v1707
    %v1709 = vlaneseq
    %v1710 = vshrl.u32 %v1709, 7
    %v1711 = vsub.s32 %v1708, %v1710
    %v1712 = vrot.slane %v1698, %v1711
    %v1713 = vlaneseq
    %v1714 = vshrl.u32 %v1713, 7
    %v1715 = vsub.s32 0, %v1714
    %v1716 = vrot.slane %v1705, %v1715
    %v1717 = vlaneseq
    %v1718 = vshrl.u32 %v1717, 7
    %v1719 = vsub.s32 0, %v1718
    %v1720 = vrot.slane %v1712, %v1719
    %1723 = vst [vmem:[%s1644 + $0x5] sm:$0x3] %v1716
    %1724 = vst [vmem:[%s1644 + $0x15] sm:$0x3] %v1716
    %1725 = vst [vmem:[%s1644 + $0xa5] sm:$0x3] %v1720
    %1726 = vst [vmem:[%s1644 + $0xb5] sm:$0x3] %v1720
    %v1727 = vmul.f32 %v786, %v1130
    %v1728 = vadd.f32 %v1727, %v1137
    %v1731 = vunpack.c.l.s4 1966171168
    %v1732 = vunpack.c.0.s8 %v1731
    %v1733 = vlaneseq
    %v1734 = vshrl.u32 %v1733, 7
    %v1735 = vsub.s32 %v1732, %v1734
    %v1736 = vrot.slane %v1728, %v1735
    %v1737 = vcombine.high %v1736, %v1736
    %v1739 = vunpack.c.l.s4 1966171168
    %v1740 = vunpack.c.0.s8 %v1739
    %v1741 = vlaneseq
    %v1742 = vshrl.u32 %v1741, 7
    %v1743 = vsub.s32 %v1740, %v1742
    %v1744 = vrot.slane %v1736, %v1743
    %v1746 = vunpack.c.l.s4 1966171168
    %v1747 = vunpack.c.0.s8 %v1746
    %v1748 = vlaneseq
    %v1749 = vshrl.u32 %v1748, 7
    %v1750 = vsub.s32 %v1747, %v1749
    %v1751 = vrot.slane %v1737, %v1750
    %v1752 = vlaneseq
    %v1753 = vshrl.u32 %v1752, 7
    %v1754 = vsub.s32 0, %v1753
    %v1755 = vrot.slane %v1744, %v1754
    %v1756 = vlaneseq
    %v1757 = vshrl.u32 %v1756, 7
    %v1758 = vsub.s32 0, %v1757
    %v1759 = vrot.slane %v1751, %v1758
    %1762 = vst [vmem:[%s1644 + $0x7] sm:$0x3] %v1755
    %1763 = vst [vmem:[%s1644 + $0x17] sm:$0x3] %v1755
    %1764 = vst [vmem:[%s1644 + $0xa7] sm:$0x3] %v1759
    %1765 = vst [vmem:[%s1644 + $0xb7] sm:$0x3] %v1759
    %v1766 = vld [vmem:[#allocation2] sm:$0xff]
    %v1767 = vld [vmem:[#allocation2 + $0x8] sm:$0x3]
    %v1768 = vld [vmem:[#allocation2 + $0x10] sm:$0xff]
    %v1769 = vld [vmem:[#allocation2 + $0x18] sm:$0x3]
    %v1770 = vld [vmem:[#allocation2 + $0x20] sm:$0xff]
    %v1771 = vld [vmem:[#allocation2 + $0x28] sm:$0x3]
    %v1772 = vld [vmem:[#allocation2 + $0x30] sm:$0xff]
    %v1773 = vld [vmem:[#allocation2 + $0x38] sm:$0x3]
    %v1774 = vld [vmem:[#allocation2 + $0x40] sm:$0xff]
    %v1775 = vld [vmem:[#allocation2 + $0x48] sm:$0x3]
    %v1776 = vld [vmem:[#allocation2 + $0x50] sm:$0xff]
    %v1777 = vld [vmem:[#allocation2 + $0x58] sm:$0x3]
    %v1778 = vld [vmem:[#allocation2 + $0x60] sm:$0xff]
    %v1779 = vld [vmem:[#allocation2 + $0x68] sm:$0x3]
    %v1780 = vld [vmem:[#allocation2 + $0x70] sm:$0xff]
    %v1781 = vld [vmem:[#allocation2 + $0x78] sm:$0x3]
    %v1782 = vld [vmem:[#allocation2 + $0x80] sm:$0xff]
    %v1783 = vld [vmem:[#allocation2 + $0x88] sm:$0x3]
    %v1784 = vld [vmem:[#allocation2 + $0x90] sm:$0xff]
    %v1785 = vld [vmem:[#allocation2 + $0x98] sm:$0x3]
    %v1786 = vld [vmem:[#allocation2 + $0xa0] sm:$0xff]
    %v1787 = vld [vmem:[#allocation2 + $0xa8] sm:$0x3]
    %v1788 = vld [vmem:[#allocation2 + $0xb0] sm:$0xff]
    %v1789 = vld [vmem:[#allocation2 + $0xb8] sm:$0x3]
    %v1790 = vld [vmem:[#allocation2 + $0xc0] sm:$0xff]
    %v1791 = vld [vmem:[#allocation2 + $0xc8] sm:$0x3]
    %v1792 = vld [vmem:[#allocation2 + $0xd0] sm:$0xff]
    %v1793 = vld [vmem:[#allocation2 + $0xd8] sm:$0x3]
    %v1794 = vld [vmem:[#allocation2 + $0xe0] sm:$0xff]
    %v1795 = vld [vmem:[#allocation2 + $0xe8] sm:$0x3]
    %v1796 = vld [vmem:[#allocation2 + $0xf0] sm:$0xff]
    %v1797 = vld [vmem:[#allocation2 + $0xf8] sm:$0x3]
    %v1798 = vld [vmem:[#allocation2 + $0x100] sm:$0xff]
    %v1799 = vld [vmem:[#allocation2 + $0x108] sm:$0x3]
    %v1800 = vld [vmem:[#allocation2 + $0x110] sm:$0xff]
    %v1801 = vld [vmem:[#allocation2 + $0x118] sm:$0x3]
    %v1802 = vld [vmem:[#allocation2 + $0x120] sm:$0xff]
    %v1803 = vld [vmem:[#allocation2 + $0x128] sm:$0x3]
    %v1804 = vld [vmem:[#allocation2 + $0x130] sm:$0xff]
    %v1805 = vld [vmem:[#allocation2 + $0x138] sm:$0x3]
    %vm1846 = vcmask 1046528
    %v1847 = vrot.slane %v1766, 1
    %v1848 = vrot.slane %v1767, 1
    %v1849 = vsel %vm1846, %v1847, %v1848
    %v1850 = vrot.slane %v1768, 1
    %v1851 = vrot.slane %v1769, 1
    %v1852 = vsel %vm1846, %v1850, %v1851
    %v1853 = vrot.slane %v1770, 1
    %v1854 = vrot.slane %v1771, 1
    %v1855 = vsel %vm1846, %v1853, %v1854
    %v1856 = vrot.slane %v1772, 1
    %v1857 = vrot.slane %v1773, 1
    %v1858 = vsel %vm1846, %v1856, %v1857
    %v1859 = vrot.slane %v1774, 1
    %v1860 = vrot.slane %v1775, 1
    %v1861 = vsel %vm1846, %v1859, %v1860
    %v1862 = vrot.slane %v1776, 1
    %v1863 = vrot.slane %v1777, 1
    %v1864 = vsel %vm1846, %v1862, %v1863
    %v1865 = vrot.slane %v1778, 1
    %v1866 = vrot.slane %v1779, 1
    %v1867 = vsel %vm1846, %v1865, %v1866
    %v1868 = vrot.slane %v1780, 1
    %v1869 = vrot.slane %v1781, 1
    %v1870 = vsel %vm1846, %v1868, %v1869
    %v1871 = vrot.slane %v1782, 1
    %v1872 = vrot.slane %v1783, 1
    %v1873 = vsel %vm1846, %v1871, %v1872
    %v1874 = vrot.slane %v1784, 1
    %v1875 = vrot.slane %v1785, 1
    %v1876 = vsel %vm1846, %v1874, %v1875
    %v1877 = vrot.slane %v1786, 1
    %v1878 = vrot.slane %v1787, 1
    %v1879 = vsel %vm1846, %v1877, %v1878
    %v1880 = vrot.slane %v1788, 1
    %v1881 = vrot.slane %v1789, 1
    %v1882 = vsel %vm1846, %v1880, %v1881
    %v1883 = vrot.slane %v1790, 1
    %v1884 = vrot.slane %v1791, 1
    %v1885 = vsel %vm1846, %v1883, %v1884
    %v1886 = vrot.slane %v1792, 1
    %v1887 = vrot.slane %v1793, 1
    %v1888 = vsel %vm1846, %v1886, %v1887
    %v1889 = vrot.slane %v1794, 1
    %v1890 = vrot.slane %v1795, 1
    %v1891 = vsel %vm1846, %v1889, %v1890
    %v1892 = vrot.slane %v1796, 1
    %v1893 = vrot.slane %v1797, 1
    %v1894 = vsel %vm1846, %v1892, %v1893
    %v1895 = vrot.slane %v1798, 1
    %v1896 = vrot.slane %v1799, 1
    %v1897 = vsel %vm1846, %v1895, %v1896
    %v1898 = vrot.slane %v1800, 1
    %v1899 = vrot.slane %v1801, 1
    %v1900 = vsel %vm1846, %v1898, %v1899
    %v1901 = vrot.slane %v1802, 1
    %v1902 = vrot.slane %v1803, 1
    %v1903 = vsel %vm1846, %v1901, %v1902
    %v1904 = vrot.slane %v1804, 1
    %v1905 = vrot.slane %v1805, 1
    %v1906 = vsel %vm1846, %v1904, %v1905
    %vm1927 = vcmask 1045504
    %v1928 = vrot.slane %v1766, 2
    %v1929 = vrot.slane %v1767, 2
    %v1930 = vsel %vm1927, %v1928, %v1929
    %v1931 = vrot.slane %v1768, 2
    %v1932 = vrot.slane %v1769, 2
    %v1933 = vsel %vm1927, %v1931, %v1932
    %v1934 = vrot.slane %v1770, 2
    %v1935 = vrot.slane %v1771, 2
    %v1936 = vsel %vm1927, %v1934, %v1935
    %v1937 = vrot.slane %v1772, 2
    %v1938 = vrot.slane %v1773, 2
    %v1939 = vsel %vm1927, %v1937, %v1938
    %v1940 = vrot.slane %v1774, 2
    %v1941 = vrot.slane %v1775, 2
    %v1942 = vsel %vm1927, %v1940, %v1941
    %v1943 = vrot.slane %v1776, 2
    %v1944 = vrot.slane %v1777, 2
    %v1945 = vsel %vm1927, %v1943, %v1944
    %v1946 = vrot.slane %v1778, 2
    %v1947 = vrot.slane %v1779, 2
    %v1948 = vsel %vm1927, %v1946, %v1947
    %v1949 = vrot.slane %v1780, 2
    %v1950 = vrot.slane %v1781, 2
    %v1951 = vsel %vm1927, %v1949, %v1950
    %v1952 = vrot.slane %v1782, 2
    %v1953 = vrot.slane %v1783, 2
    %v1954 = vsel %vm1927, %v1952, %v1953
    %v1955 = vrot.slane %v1784, 2
    %v1956 = vrot.slane %v1785, 2
    %v1957 = vsel %vm1927, %v1955, %v1956
    %v1958 = vrot.slane %v1786, 2
    %v1959 = vrot.slane %v1787, 2
    %v1960 = vsel %vm1927, %v1958, %v1959
    %v1961 = vrot.slane %v1788, 2
    %v1962 = vrot.slane %v1789, 2
    %v1963 = vsel %vm1927, %v1961, %v1962
    %v1964 = vrot.slane %v1790, 2
    %v1965 = vrot.slane %v1791, 2
    %v1966 = vsel %vm1927, %v1964, %v1965
    %v1967 = vrot.slane %v1792, 2
    %v1968 = vrot.slane %v1793, 2
    %v1969 = vsel %vm1927, %v1967, %v1968
    %v1970 = vrot.slane %v1794, 2
    %v1971 = vrot.slane %v1795, 2
    %v1972 = vsel %vm1927, %v1970, %v1971
    %v1973 = vrot.slane %v1796, 2
    %v1974 = vrot.slane %v1797, 2
    %v1975 = vsel %vm1927, %v1973, %v1974
    %v1976 = vrot.slane %v1798, 2
    %v1977 = vrot.slane %v1799, 2
    %v1978 = vsel %vm1927, %v1976, %v1977
    %v1979 = vrot.slane %v1800, 2
    %v1980 = vrot.slane %v1801, 2
    %v1981 = vsel %vm1927, %v1979, %v1980
    %v1982 = vrot.slane %v1802, 2
    %v1983 = vrot.slane %v1803, 2
    %v1984 = vsel %vm1927, %v1982, %v1983
    %v1985 = vrot.slane %v1804, 2
    %v1986 = vrot.slane %v1805, 2
    %v1987 = vsel %vm1927, %v1985, %v1986
    %v2008 = vpack.c.bf16 %v1768, %v1766
    %v2009 = vpack.c.bf16 %v1852, %v1849
    %v2010 = vpack.c.bf16 %v1933, %v1930
    %v2011 = vpack.c.bf16 %v1770, %v1768
    %v2012 = vpack.c.bf16 %v1855, %v1852
    %v2013 = vpack.c.bf16 %v1936, %v1933
    %v2014 = vpack.c.bf16 %v1772, %v1770
    %v2015 = vpack.c.bf16 %v1858, %v1855
    %v2016 = vpack.c.bf16 %v1939, %v1936
    %v2017 = vpack.c.bf16 %v1774, %v1772
    %v2018 = vpack.c.bf16 %v1861, %v1858
    %v2019 = vpack.c.bf16 %v1942, %v1939
    %v2020 = vpack.c.bf16 %v1776, %v1774
    %v2021 = vpack.c.bf16 %v1864, %v1861
    %v2022 = vpack.c.bf16 %v1945, %v1942
    %v2023 = vpack.c.bf16 %v1778, %v1776
    %v2024 = vpack.c.bf16 %v1867, %v1864
    %v2025 = vpack.c.bf16 %v1948, %v1945
    %v2026 = vpack.c.bf16 %v1780, %v1778
    %v2027 = vpack.c.bf16 %v1870, %v1867
    %v2028 = vpack.c.bf16 %v1951, %v1948
    %v2029 = vpack.c.bf16 %v1782, %v1780
    %v2030 = vpack.c.bf16 %v1873, %v1870
    %v2031 = vpack.c.bf16 %v1954, %v1951
    %v2032 = vpack.c.bf16 %v1784, %v1782
    %v2033 = vpack.c.bf16 %v1876, %v1873
    %v2034 = vpack.c.bf16 %v1957, %v1954
    %v2035 = vpack.c.bf16 %v1788, %v1786
    %v2036 = vpack.c.bf16 %v1882, %v1879
    %v2037 = vpack.c.bf16 %v1963, %v1960
    %v2038 = vpack.c.bf16 %v1790, %v1788
    %v2039 = vpack.c.bf16 %v1885, %v1882
    %v2040 = vpack.c.bf16 %v1966, %v1963
    %v2041 = vpack.c.bf16 %v1792, %v1790
    %v2042 = vpack.c.bf16 %v1888, %v1885
    %v2043 = vpack.c.bf16 %v1969, %v1966
    %v2044 = vpack.c.bf16 %v1794, %v1792
    %v2045 = vpack.c.bf16 %v1891, %v1888
    %v2046 = vpack.c.bf16 %v1972, %v1969
    %v2047 = vpack.c.bf16 %v1796, %v1794
    %v2048 = vpack.c.bf16 %v1894, %v1891
    %v2049 = vpack.c.bf16 %v1975, %v1972
    %v2050 = vpack.c.bf16 %v1798, %v1796
    %v2051 = vpack.c.bf16 %v1897, %v1894
    %v2052 = vpack.c.bf16 %v1978, %v1975
    %v2053 = vpack.c.bf16 %v1800, %v1798
    %v2054 = vpack.c.bf16 %v1900, %v1897
    %v2055 = vpack.c.bf16 %v1981, %v1978
    %v2056 = vpack.c.bf16 %v1802, %v1800
    %v2057 = vpack.c.bf16 %v1903, %v1900
    %v2058 = vpack.c.bf16 %v1984, %v1981
    %v2059 = vpack.c.bf16 %v1804, %v1802
    %v2060 = vpack.c.bf16 %v1906, %v1903
    %v2061 = vpack.c.bf16 %v1987, %v1984
    %v2062 = vld [vmem:[%s5] sm:$0xf]
    %v2063 = vld [vmem:[%s5 + $0x4] sm:$0xf]
    %v2064 = vld [vmem:[%s5 + $0x8] sm:$0xf]
    %v2065 = vld [vmem:[%s5 + $0xc] sm:$0xf]
    %v2066 = vld [vmem:[%s5 + $0x10] sm:$0xf]
    %v2067 = vld [vmem:[%s5 + $0x14] sm:$0xf]
    %v2068 = vld [vmem:[%s5 + $0x18] sm:$0xf]
    %v2069 = vld [vmem:[%s5 + $0x1c] sm:$0xf]
    %v2070 = vld [vmem:[%s5 + $0x20] sm:$0xf]
    %v2071 = vld [vmem:[%s5 + $0x24] sm:$0xf]
    %v2072 = vld [vmem:[%s5 + $0x28] sm:$0xf]
    %v2073 = vld [vmem:[%s5 + $0x2c] sm:$0xf]
    %v2074 = vld [vmem:[%s5 + $0x30] sm:$0xf]
    %v2075 = vld [vmem:[%s5 + $0x34] sm:$0xf]
    %v2076 = vld [vmem:[%s5 + $0x38] sm:$0xf]
    %v2077 = vld [vmem:[%s5 + $0x3c] sm:$0xf]
    %v2078 = vld [vmem:[%s5 + $0x40] sm:$0xf]
    %v2079 = vld [vmem:[%s5 + $0x44] sm:$0xf]
    %v2080 = vld [vmem:[%s5 + $0x48] sm:$0xf]
    %v2081 = vld [vmem:[%s5 + $0x4c] sm:$0xf]
    %v2082 = vld [vmem:[%s5 + $0x50] sm:$0xf]
    %v2083 = vld [vmem:[%s5 + $0x54] sm:$0xf]
    %v2084 = vld [vmem:[%s5 + $0x58] sm:$0xf]
    %v2085 = vld [vmem:[%s5 + $0x5c] sm:$0xf]
    %v2086 = vld [vmem:[%s5 + $0x60] sm:$0xf]
    %v2087 = vld [vmem:[%s5 + $0x64] sm:$0xf]
    %v2088 = vld [vmem:[%s5 + $0x68] sm:$0xf]
    %v2089 = vld [vmem:[%s5 + $0x6c] sm:$0xf]
    %v2090 = vld [vmem:[%s5 + $0x70] sm:$0xf]
    %v2091 = vld [vmem:[%s5 + $0x74] sm:$0xf]
    %v2092 = vld [vmem:[%s5 + $0x78] sm:$0xf]
    %v2093 = vld [vmem:[%s5 + $0x7c] sm:$0xf]
    %v2094 = vld [vmem:[%s5 + $0x80] sm:$0xf]
    %v2095 = vld [vmem:[%s5 + $0x84] sm:$0xf]
    %v2096 = vld [vmem:[%s5 + $0x88] sm:$0xf]
    %v2097 = vld [vmem:[%s5 + $0x8c] sm:$0xf]
    %v2098 = vld [vmem:[%s5 + $0x90] sm:$0xf]
    %v2099 = vld [vmem:[%s5 + $0x94] sm:$0xf]
    %v2100 = vld [vmem:[%s5 + $0x98] sm:$0xf]
    %v2101 = vld [vmem:[%s5 + $0x9c] sm:$0xf]
    %v2102 = vld [vmem:[%s5 + $0xa0] sm:$0xf]
    %v2103 = vld [vmem:[%s5 + $0xa4] sm:$0xf]
    %v2104 = vld [vmem:[%s5 + $0xa8] sm:$0xf]
    %v2105 = vld [vmem:[%s5 + $0xac] sm:$0xf]
    %v2106 = vld [vmem:[%s5 + $0xb0] sm:$0xf]
    %v2107 = vld [vmem:[%s5 + $0xb4] sm:$0xf]
    %v2108 = vld [vmem:[%s5 + $0xb8] sm:$0xf]
    %v2109 = vld [vmem:[%s5 + $0xbc] sm:$0xf]
    %v2110 = vld [vmem:[%s5 + $0xc0] sm:$0xf]
    %v2111 = vld [vmem:[%s5 + $0xc4] sm:$0xf]
    %v2112 = vld [vmem:[%s5 + $0xc8] sm:$0xf]
    %v2113 = vld [vmem:[%s5 + $0xcc] sm:$0xf]
    %v2114 = vld [vmem:[%s5 + $0xd0] sm:$0xf]
    %v2115 = vld [vmem:[%s5 + $0xd4] sm:$0xf]
    %v2116 = vld [vmem:[%s5 + $0xd8] sm:$0xf]
    %v2117 = vld [vmem:[%s5 + $0xdc] sm:$0xf]
    %v2118 = vld [vmem:[%s5 + $0xe0] sm:$0xf]
    %v2119 = vld [vmem:[%s5 + $0xe4] sm:$0xf]
    %v2120 = vld [vmem:[%s5 + $0xe8] sm:$0xf]
    %v2121 = vld [vmem:[%s5 + $0xec] sm:$0xf]
    %v2122 = vld [vmem:[%s5 + $0xf0] sm:$0xf]
    %v2123 = vld [vmem:[%s5 + $0xf4] sm:$0xf]
    %v2124 = vld [vmem:[%s5 + $0xf8] sm:$0xf]
    %v2125 = vld [vmem:[%s5 + $0xfc] sm:$0xf]
    %v2126 = vld [vmem:[%s5 + $0x100] sm:$0xf]
    %v2127 = vld [vmem:[%s5 + $0x104] sm:$0xf]
    %v2128 = vld [vmem:[%s5 + $0x108] sm:$0xf]
    %v2129 = vld [vmem:[%s5 + $0x10c] sm:$0xf]
    %v2130 = vld [vmem:[%s5 + $0x110] sm:$0xf]
    %v2131 = vld [vmem:[%s5 + $0x114] sm:$0xf]
    %v2132 = vld [vmem:[%s5 + $0x118] sm:$0xf]
    %v2133 = vld [vmem:[%s5 + $0x11c] sm:$0xf]
    %v2134 = vld [vmem:[%s5 + $0x120] sm:$0xf]
    %v2135 = vld [vmem:[%s5 + $0x124] sm:$0xf]
    %v2136 = vld [vmem:[%s5 + $0x128] sm:$0xf]
    %v2137 = vld [vmem:[%s5 + $0x12c] sm:$0xf]
    %v2138 = vld [vmem:[%s5 + $0x130] sm:$0xf]
    %v2139 = vld [vmem:[%s5 + $0x134] sm:$0xf]
    %v2140 = vld [vmem:[%s5 + $0x138] sm:$0xf]
    %v2141 = vld [vmem:[%s5 + $0x13c] sm:$0xf]
    %v2142 = vld [vmem:[%s5 + $0x140] sm:$0xf]
    %v2143 = vld [vmem:[%s5 + $0x144] sm:$0xf]
    %v2144 = vld [vmem:[%s5 + $0x148] sm:$0xf]
    %v2145 = vld [vmem:[%s5 + $0x14c] sm:$0xf]
    %v2146 = vld [vmem:[%s5 + $0x150] sm:$0xf]
    %v2147 = vld [vmem:[%s5 + $0x154] sm:$0xf]
    %v2148 = vld [vmem:[%s5 + $0x158] sm:$0xf]
    %v2149 = vld [vmem:[%s5 + $0x15c] sm:$0xf]
    %v2150 = vld [vmem:[%s5 + $0x160] sm:$0xf]
    %v2151 = vld [vmem:[%s5 + $0x164] sm:$0xf]
    %v2152 = vld [vmem:[%s5 + $0x168] sm:$0xf]
    %v2153 = vld [vmem:[%s5 + $0x16c] sm:$0xf]
    %v2154 = vld [vmem:[%s5 + $0x170] sm:$0xf]
    %v2155 = vld [vmem:[%s5 + $0x174] sm:$0xf]
    %v2156 = vld [vmem:[%s5 + $0x178] sm:$0xf]
    %v2157 = vld [vmem:[%s5 + $0x17c] sm:$0xf]
    %v2158 = vld [vmem:[%s5 + $0x180] sm:$0xf]
    %v2159 = vld [vmem:[%s5 + $0x184] sm:$0xf]
    %v2160 = vld [vmem:[%s5 + $0x188] sm:$0xf]
    %v2161 = vld [vmem:[%s5 + $0x18c] sm:$0xf]
    %v2162 = vld [vmem:[%s5 + $0x190] sm:$0xf]
    %v2163 = vld [vmem:[%s5 + $0x194] sm:$0xf]
    %v2164 = vld [vmem:[%s5 + $0x198] sm:$0xf]
    %v2165 = vld [vmem:[%s5 + $0x19c] sm:$0xf]
    %v2166 = vld [vmem:[%s5 + $0x1a0] sm:$0xf]
    %v2167 = vld [vmem:[%s5 + $0x1a4] sm:$0xf]
    %v2168 = vld [vmem:[%s5 + $0x1a8] sm:$0xf]
    %v2169 = vld [vmem:[%s5 + $0x1ac] sm:$0xf]
    %v2170 = vld [vmem:[%s5 + $0x1b0] sm:$0xf]
    %v2171 = vld [vmem:[%s5 + $0x1b4] sm:$0xf]
    %v2172 = vld [vmem:[%s5 + $0x1b8] sm:$0xf]
    %v2173 = vld [vmem:[%s5 + $0x1bc] sm:$0xf]
    %v2174 = vld [vmem:[%s5 + $0x1c0] sm:$0xf]
    %v2175 = vld [vmem:[%s5 + $0x1c4] sm:$0xf]
    %v2176 = vld [vmem:[%s5 + $0x1c8] sm:$0xf]
    %v2177 = vld [vmem:[%s5 + $0x1cc] sm:$0xf]
    %v2178 = vld [vmem:[%s5 + $0x1d0] sm:$0xf]
    %v2179 = vld [vmem:[%s5 + $0x1d4] sm:$0xf]
    %v2180 = vld [vmem:[%s5 + $0x1d8] sm:$0xf]
    %v2181 = vld [vmem:[%s5 + $0x1dc] sm:$0xf]
    %v2182 = vld [vmem:[%s5 + $0x1e0] sm:$0xf]
    %v2183 = vld [vmem:[%s5 + $0x1e4] sm:$0xf]
    %v2184 = vld [vmem:[%s5 + $0x1e8] sm:$0xf]
    %v2185 = vld [vmem:[%s5 + $0x1ec] sm:$0xf]
    %v2186 = vld [vmem:[%s5 + $0x1f0] sm:$0xf]
    %v2187 = vld [vmem:[%s5 + $0x1f4] sm:$0xf]
    %v2188 = vld [vmem:[%s5 + $0x1f8] sm:$0xf]
    %v2189 = vld [vmem:[%s5 + $0x1fc] sm:$0xf]
    %v2190 = vld [vmem:[%s5 + $0x200] sm:$0xf]
    %v2191 = vld [vmem:[%s5 + $0x204] sm:$0xf]
    %v2192 = vld [vmem:[%s5 + $0x208] sm:$0xf]
    %v2193 = vld [vmem:[%s5 + $0x20c] sm:$0xf]
    %v2194 = vld [vmem:[%s5 + $0x210] sm:$0xf]
    %v2195 = vld [vmem:[%s5 + $0x214] sm:$0xf]
    %v2196 = vld [vmem:[%s5 + $0x218] sm:$0xf]
    %v2197 = vld [vmem:[%s5 + $0x21c] sm:$0xf]
    %v2198 = vld [vmem:[%s5 + $0x220] sm:$0xf]
    %v2199 = vld [vmem:[%s5 + $0x224] sm:$0xf]
    %v2200 = vld [vmem:[%s5 + $0x228] sm:$0xf]
    %v2201 = vld [vmem:[%s5 + $0x22c] sm:$0xf]
    %v2202 = vld [vmem:[%s5 + $0x230] sm:$0xf]
    %v2203 = vld [vmem:[%s5 + $0x234] sm:$0xf]
    %v2204 = vld [vmem:[%s5 + $0x238] sm:$0xf]
    %v2205 = vld [vmem:[%s5 + $0x23c] sm:$0xf]
    %v2206 = vld [vmem:[%s6] sm:$0x1]
    %v2208 = vlaneseq
    %v2209 = vshrl.u32 %v2208, 7
    %v2210 = vsub.s32 0, %v2209
    %v2211 = vrot.slane %v2206, %v2210
    %v2357 = vunpack.c.l.b16 %v2062
    %v2358 = vunpack.c.l.b16 %v2063
    %v2359 = vunpack.c.l.b16 %v2064
    %v2360 = vunpack.c.l.b16 %v2065
    %v2361 = vunpack.c.l.b16 %v2066
    %v2362 = vunpack.c.l.b16 %v2067
    %v2363 = vunpack.c.l.b16 %v2068
    %v2364 = vunpack.c.l.b16 %v2069
    %v2365 = vunpack.c.l.b16 %v2070
    %v2366 = vunpack.c.l.b16 %v2071
    %v2367 = vunpack.c.l.b16 %v2072
    %v2368 = vunpack.c.l.b16 %v2073
    %v2369 = vunpack.c.l.b16 %v2074
    %v2370 = vunpack.c.l.b16 %v2075
    %v2371 = vunpack.c.l.b16 %v2076
    %v2372 = vunpack.c.l.b16 %v2077
    %v2373 = vunpack.c.l.b16 %v2078
    %v2374 = vunpack.c.l.b16 %v2079
    %v2375 = vunpack.c.l.b16 %v2080
    %v2376 = vunpack.c.l.b16 %v2081
    %v2377 = vunpack.c.l.b16 %v2082
    %v2378 = vunpack.c.l.b16 %v2083
    %v2379 = vunpack.c.l.b16 %v2084
    %v2380 = vunpack.c.l.b16 %v2085
    %v2381 = vunpack.c.l.b16 %v2086
    %v2382 = vunpack.c.l.b16 %v2087
    %v2383 = vunpack.c.l.b16 %v2088
    %v2384 = vunpack.c.l.b16 %v2089
    %v2385 = vunpack.c.l.b16 %v2090
    %v2386 = vunpack.c.l.b16 %v2091
    %v2387 = vunpack.c.l.b16 %v2092
    %v2388 = vunpack.c.l.b16 %v2093
    %v2389 = vunpack.c.l.b16 %v2094
    %v2390 = vunpack.c.l.b16 %v2095
    %v2391 = vunpack.c.l.b16 %v2096
    %v2392 = vunpack.c.l.b16 %v2097
    %v2393 = vunpack.c.l.b16 %v2098
    %v2394 = vunpack.c.l.b16 %v2099
    %v2395 = vunpack.c.l.b16 %v2100
    %v2396 = vunpack.c.l.b16 %v2101
    %v2397 = vunpack.c.l.b16 %v2102
    %v2398 = vunpack.c.l.b16 %v2103
    %v2399 = vunpack.c.l.b16 %v2104
    %v2400 = vunpack.c.l.b16 %v2105
    %v2401 = vunpack.c.l.b16 %v2106
    %v2402 = vunpack.c.l.b16 %v2107
    %v2403 = vunpack.c.l.b16 %v2108
    %v2404 = vunpack.c.l.b16 %v2109
    %v2405 = vunpack.c.l.b16 %v2110
    %v2406 = vunpack.c.l.b16 %v2111
    %v2407 = vunpack.c.l.b16 %v2112
    %v2408 = vunpack.c.l.b16 %v2113
    %v2409 = vunpack.c.l.b16 %v2114
    %v2410 = vunpack.c.l.b16 %v2115
    %v2411 = vunpack.c.l.b16 %v2116
    %v2412 = vunpack.c.l.b16 %v2117
    %v2413 = vunpack.c.l.b16 %v2118
    %v2414 = vunpack.c.l.b16 %v2119
    %v2415 = vunpack.c.l.b16 %v2120
    %v2416 = vunpack.c.l.b16 %v2121
    %v2417 = vunpack.c.l.b16 %v2122
    %v2418 = vunpack.c.l.b16 %v2123
    %v2419 = vunpack.c.l.b16 %v2124
    %v2420 = vunpack.c.l.b16 %v2125
    %v2421 = vunpack.c.l.b16 %v2126
    %v2422 = vunpack.c.l.b16 %v2127
    %v2423 = vunpack.c.l.b16 %v2128
    %v2424 = vunpack.c.l.b16 %v2129
    %v2425 = vunpack.c.l.b16 %v2130
    %v2426 = vunpack.c.l.b16 %v2131
    %v2427 = vunpack.c.l.b16 %v2132
    %v2428 = vunpack.c.l.b16 %v2133
    %v2429 = vunpack.c.l.b16 %v2134
    %v2430 = vunpack.c.l.b16 %v2135
    %v2431 = vunpack.c.l.b16 %v2136
    %v2432 = vunpack.c.l.b16 %v2137
    %v2433 = vunpack.c.l.b16 %v2138
    %v2434 = vunpack.c.l.b16 %v2139
    %v2435 = vunpack.c.l.b16 %v2140
    %v2436 = vunpack.c.l.b16 %v2141
    %v2437 = vunpack.c.l.b16 %v2142
    %v2438 = vunpack.c.l.b16 %v2143
    %v2439 = vunpack.c.l.b16 %v2144
    %v2440 = vunpack.c.l.b16 %v2145
    %v2441 = vunpack.c.l.b16 %v2146
    %v2442 = vunpack.c.l.b16 %v2147
    %v2443 = vunpack.c.l.b16 %v2148
    %v2444 = vunpack.c.l.b16 %v2149
    %v2445 = vunpack.c.l.b16 %v2150
    %v2446 = vunpack.c.l.b16 %v2151
    %v2447 = vunpack.c.l.b16 %v2152
    %v2448 = vunpack.c.l.b16 %v2153
    %v2449 = vunpack.c.l.b16 %v2154
    %v2450 = vunpack.c.l.b16 %v2155
    %v2451 = vunpack.c.l.b16 %v2156
    %v2452 = vunpack.c.l.b16 %v2157
    %v2453 = vunpack.c.l.b16 %v2158
    %v2454 = vunpack.c.l.b16 %v2159
    %v2455 = vunpack.c.l.b16 %v2160
    %v2456 = vunpack.c.l.b16 %v2161
    %v2457 = vunpack.c.l.b16 %v2162
    %v2458 = vunpack.c.l.b16 %v2163
    %v2459 = vunpack.c.l.b16 %v2164
    %v2460 = vunpack.c.l.b16 %v2165
    %v2461 = vunpack.c.l.b16 %v2166
    %v2462 = vunpack.c.l.b16 %v2167
    %v2463 = vunpack.c.l.b16 %v2168
    %v2464 = vunpack.c.l.b16 %v2169
    %v2465 = vunpack.c.l.b16 %v2170
    %v2466 = vunpack.c.l.b16 %v2171
    %v2467 = vunpack.c.l.b16 %v2172
    %v2468 = vunpack.c.l.b16 %v2173
    %v2469 = vunpack.c.l.b16 %v2174
    %v2470 = vunpack.c.l.b16 %v2175
    %v2471 = vunpack.c.l.b16 %v2176
    %v2472 = vunpack.c.l.b16 %v2177
    %v2473 = vunpack.c.l.b16 %v2178
    %v2474 = vunpack.c.l.b16 %v2179
    %v2475 = vunpack.c.l.b16 %v2180
    %v2476 = vunpack.c.l.b16 %v2181
    %v2477 = vunpack.c.l.b16 %v2182
    %v2478 = vunpack.c.l.b16 %v2183
    %v2479 = vunpack.c.l.b16 %v2184
    %v2480 = vunpack.c.l.b16 %v2185
    %v2481 = vunpack.c.l.b16 %v2186
    %v2482 = vunpack.c.l.b16 %v2187
    %v2483 = vunpack.c.l.b16 %v2188
    %v2484 = vunpack.c.l.b16 %v2189
    %v2485 = vunpack.c.l.b16 %v2190
    %v2486 = vunpack.c.l.b16 %v2191
    %v2487 = vunpack.c.l.b16 %v2192
    %v2488 = vunpack.c.l.b16 %v2193
    %v2489 = vunpack.c.l.b16 %v2194
    %v2490 = vunpack.c.l.b16 %v2195
    %v2491 = vunpack.c.l.b16 %v2196
    %v2492 = vunpack.c.l.b16 %v2197
    %v2493 = vunpack.c.l.b16 %v2198
    %v2494 = vunpack.c.l.b16 %v2199
    %v2495 = vunpack.c.l.b16 %v2200
    %v2496 = vunpack.c.l.b16 %v2201
    %v2497 = vunpack.c.l.b16 %v2202
    %v2498 = vunpack.c.l.b16 %v2203
    %v2499 = vunpack.c.l.b16 %v2204
    %v2500 = vunpack.c.l.b16 %v2205
    %v2501 = vpack.c.b16 %v2358, %v2357
    %v2502 = vpack.c.b16 %v2360, %v2359
    %v2503 = vpack.c.b16 %v2362, %v2361
    %v2504 = vpack.c.b16 %v2364, %v2363
    %v2505 = vpack.c.b16 %v2366, %v2365
    %v2506 = vpack.c.b16 %v2368, %v2367
    %v2507 = vpack.c.b16 %v2370, %v2369
    %v2508 = vpack.c.b16 %v2372, %v2371
    %v2509 = vpack.c.b16 %v2374, %v2373
    %v2510 = vpack.c.b16 %v2376, %v2375
    %v2511 = vpack.c.b16 %v2378, %v2377
    %v2512 = vpack.c.b16 %v2380, %v2379
    %v2513 = vpack.c.b16 %v2382, %v2381
    %v2514 = vpack.c.b16 %v2384, %v2383
    %v2515 = vpack.c.b16 %v2386, %v2385
    %v2516 = vpack.c.b16 %v2388, %v2387
    %v2517 = vpack.c.b16 %v2390, %v2389
    %v2518 = vpack.c.b16 %v2392, %v2391
    %v2519 = vpack.c.b16 %v2394, %v2393
    %v2520 = vpack.c.b16 %v2396, %v2395
    %v2521 = vpack.c.b16 %v2398, %v2397
    %v2522 = vpack.c.b16 %v2400, %v2399
    %v2523 = vpack.c.b16 %v2402, %v2401
    %v2524 = vpack.c.b16 %v2404, %v2403
    %v2525 = vpack.c.b16 %v2406, %v2405
    %v2526 = vpack.c.b16 %v2408, %v2407
    %v2527 = vpack.c.b16 %v2410, %v2409
    %v2528 = vpack.c.b16 %v2412, %v2411
    %v2529 = vpack.c.b16 %v2414, %v2413
    %v2530 = vpack.c.b16 %v2416, %v2415
    %v2531 = vpack.c.b16 %v2418, %v2417
    %v2532 = vpack.c.b16 %v2420, %v2419
    %v2533 = vpack.c.b16 %v2422, %v2421
    %v2534 = vpack.c.b16 %v2424, %v2423
    %v2535 = vpack.c.b16 %v2426, %v2425
    %v2536 = vpack.c.b16 %v2428, %v2427
    %v2537 = vpack.c.b16 %v2430, %v2429
    %v2538 = vpack.c.b16 %v2432, %v2431
    %v2539 = vpack.c.b16 %v2434, %v2433
    %v2540 = vpack.c.b16 %v2436, %v2435
    %v2541 = vpack.c.b16 %v2438, %v2437
    %v2542 = vpack.c.b16 %v2440, %v2439
    %v2543 = vpack.c.b16 %v2442, %v2441
    %v2544 = vpack.c.b16 %v2444, %v2443
    %v2545 = vpack.c.b16 %v2446, %v2445
    %v2546 = vpack.c.b16 %v2448, %v2447
    %v2547 = vpack.c.b16 %v2450, %v2449
    %v2548 = vpack.c.b16 %v2452, %v2451
    %v2549 = vpack.c.b16 %v2454, %v2453
    %v2550 = vpack.c.b16 %v2456, %v2455
    %v2551 = vpack.c.b16 %v2458, %v2457
    %v2552 = vpack.c.b16 %v2460, %v2459
    %v2553 = vpack.c.b16 %v2462, %v2461
    %v2554 = vpack.c.b16 %v2464, %v2463
    %v2555 = vpack.c.b16 %v2466, %v2465
    %v2556 = vpack.c.b16 %v2468, %v2467
    %v2557 = vpack.c.b16 %v2470, %v2469
    %v2558 = vpack.c.b16 %v2472, %v2471
    %v2559 = vpack.c.b16 %v2474, %v2473
    %v2560 = vpack.c.b16 %v2476, %v2475
    %v2561 = vpack.c.b16 %v2478, %v2477
    %v2562 = vpack.c.b16 %v2480, %v2479
    %v2563 = vpack.c.b16 %v2482, %v2481
    %v2564 = vpack.c.b16 %v2484, %v2483
    %v2565 = vpack.c.b16 %v2486, %v2485
    %v2566 = vpack.c.b16 %v2488, %v2487
    %v2567 = vpack.c.b16 %v2490, %v2489
    %v2568 = vpack.c.b16 %v2492, %v2491
    %v2569 = vpack.c.b16 %v2494, %v2493
    %v2570 = vpack.c.b16 %v2496, %v2495
    %v2571 = vpack.c.b16 %v2498, %v2497
    %v2572 = vpack.c.b16 %v2500, %v2499
    %2645 = vmatprep.subr.bf16.mxu0 0
    %2646 = vmatpush1.bf16.msra.mxu0 %v2508
    %2647 = vmatprep.subr.bf16.mxu0 0
    %2648 = vmatpush1.bf16.msra.mxu0 %v2507
    %2649 = vmatprep.subr.bf16.mxu0 0
    %2650 = vmatpush1.bf16.msra.mxu0 %v2506
    %2651 = vmatprep.subr.bf16.mxu0 0
    %2652 = vmatpush1.bf16.msra.mxu0 %v2505
    %2653 = vmatprep.subr.bf16.mxu0 0
    %2654 = vmatpush1.bf16.msra.mxu0 %v2504
    %2655 = vmatprep.subr.bf16.mxu0 0
    %2656 = vmatpush1.bf16.msra.mxu0 %v2503
    %2657 = vmatprep.subr.bf16.mxu0 0
    %2658 = vmatpush1.bf16.msra.mxu0 %v2502
    %2659 = vmatprep.subr.bf16.mxu0 0
    %2660 = vmatpush1.bf16.msra.mxu0 %v2501
    %2661 = vmatprep.subr.bf16.mxu0 0
    %2662 = vmatpush2.bf16.msra.mxu0 %v2516
    %2663 = vmatprep.subr.bf16.mxu0 0
    %2664 = vmatpush2.bf16.msra.mxu0 %v2515
    %2665 = vmatprep.subr.bf16.mxu0 0
    %2666 = vmatpush2.bf16.msra.mxu0 %v2514
    %2667 = vmatprep.subr.bf16.mxu0 0
    %2668 = vmatpush2.bf16.msra.mxu0 %v2513
    %2669 = vmatprep.subr.bf16.mxu0 0
    %2670 = vmatpush2.bf16.msra.mxu0 %v2512
    %2671 = vmatprep.subr.bf16.mxu0 0
    %2672 = vmatpush2.bf16.msra.mxu0 %v2511
    %2673 = vmatprep.subr.bf16.mxu0 0
    %2674 = vmatpush2.bf16.msra.mxu0 %v2510
    %2675 = vmatprep.subr.bf16.mxu0 0
    %2676 = vmatpush2.bf16.msra.mxu0 %v2509
    %2677 = vmatprep.mubr.bf16.mxu0 %v2009
    %2678 = vmatmul.mubr.bf16.gmra.mxu0 %v2008
    %v2679 = vpop.f32.mrf.mxu0
    %v2680 = vadd.f32 %v2211, %v2679
    %v2681 = vpop.f32.mrf.mxu0
    %v2682 = vpop.f32.mrf.mxu0
    %v2683 = vadd.f32 %v2211, %v2682
    %v2684 = vpop.f32.mrf.mxu0
    %2685 = vmatprep.mubr.bf16.mxu0 %v2015
    %2686 = vmatmul.mubr.bf16.gmra.mxu0 %v2014
    %v2687 = vpop.f32.mrf.mxu0
    %v2688 = vadd.f32 %v2211, %v2687
    %v2689 = vpop.f32.mrf.mxu0
    %v2690 = vpop.f32.mrf.mxu0
    %v2691 = vadd.f32 %v2211, %v2690
    %v2692 = vpop.f32.mrf.mxu0
    %2693 = vmatprep.mubr.bf16.mxu0 %v2021
    %2694 = vmatmul.mubr.bf16.gmra.mxu0 %v2020
    %v2695 = vpop.f32.mrf.mxu0
    %v2696 = vadd.f32 %v2211, %v2695
    %v2697 = vpop.f32.mrf.mxu0
    %v2698 = vpop.f32.mrf.mxu0
    %v2699 = vadd.f32 %v2211, %v2698
    %v2700 = vpop.f32.mrf.mxu0
    %2701 = vmatprep.mubr.bf16.mxu0 %v2027
    %2702 = vmatmul.mubr.bf16.gmra.mxu0 %v2026
    %v2703 = vpop.f32.mrf.mxu0
    %v2704 = vadd.f32 %v2211, %v2703
    %v2705 = vpop.f32.mrf.mxu0
    %v2706 = vpop.f32.mrf.mxu0
    %v2707 = vadd.f32 %v2211, %v2706
    %v2708 = vpop.f32.mrf.mxu0
    %2709 = vmatprep.mubr.bf16.mxu0 %v2036
    %2710 = vmatmul.mubr.bf16.gmra.mxu0 %v2035
    %v2711 = vpop.f32.mrf.mxu0
    %v2712 = vadd.f32 %v2211, %v2711
    %v2713 = vpop.f32.mrf.mxu0
    %v2714 = vpop.f32.mrf.mxu0
    %v2715 = vadd.f32 %v2211, %v2714
    %v2716 = vpop.f32.mrf.mxu0
    %2717 = vmatprep.mubr.bf16.mxu0 %v2042
    %2718 = vmatmul.mubr.bf16.gmra.mxu0 %v2041
    %v2719 = vpop.f32.mrf.mxu0
    %v2720 = vadd.f32 %v2211, %v2719
    %v2721 = vpop.f32.mrf.mxu0
    %v2722 = vpop.f32.mrf.mxu0
    %v2723 = vadd.f32 %v2211, %v2722
    %v2724 = vpop.f32.mrf.mxu0
    %2725 = vmatprep.mubr.bf16.mxu0 %v2048
    %2726 = vmatmul.mubr.bf16.gmra.mxu0 %v2047
    %v2727 = vpop.f32.mrf.mxu0
    %v2728 = vadd.f32 %v2211, %v2727
    %v2729 = vpop.f32.mrf.mxu0
    %v2730 = vpop.f32.mrf.mxu0
    %v2731 = vadd.f32 %v2211, %v2730
    %v2732 = vpop.f32.mrf.mxu0
    %2733 = vmatprep.mubr.bf16.mxu0 %v2054
    %2734 = vmatmul.mubr.bf16.gmra.mxu0 %v2053
    %v2735 = vpop.f32.mrf.mxu0
    %v2736 = vadd.f32 %v2211, %v2735
    %v2737 = vpop.f32.mrf.mxu0
    %v2738 = vpop.f32.mrf.mxu0
    %v2739 = vadd.f32 %v2211, %v2738
    %v2740 = vpop.f32.mrf.mxu0
    %2741 = vdwg.mxu0
    %2742 = vmatprep.subr.bf16.mxu0 0
    %2743 = vmatpush1.bf16.msra.mxu0 %v2524
    %2744 = vmatprep.subr.bf16.mxu0 0
    %2745 = vmatpush1.bf16.msra.mxu0 %v2523
    %2746 = vmatprep.subr.bf16.mxu0 0
    %2747 = vmatpush1.bf16.msra.mxu0 %v2522
    %2748 = vmatprep.subr.bf16.mxu0 0
    %2749 = vmatpush1.bf16.msra.mxu0 %v2521
    %2750 = vmatprep.subr.bf16.mxu0 0
    %2751 = vmatpush1.bf16.msra.mxu0 %v2520
    %2752 = vmatprep.subr.bf16.mxu0 0
    %2753 = vmatpush1.bf16.msra.mxu0 %v2519
    %2754 = vmatprep.subr.bf16.mxu0 0
    %2755 = vmatpush1.bf16.msra.mxu0 %v2518
    %2756 = vmatprep.subr.bf16.mxu0 0
    %2757 = vmatpush1.bf16.msra.mxu0 %v2517
    %2758 = vmatprep.subr.bf16.mxu0 0
    %2759 = vmatpush2.bf16.msra.mxu0 %v2532
    %2760 = vmatprep.subr.bf16.mxu0 0
    %2761 = vmatpush2.bf16.msra.mxu0 %v2531
    %2762 = vmatprep.subr.bf16.mxu0 0
    %2763 = vmatpush2.bf16.msra.mxu0 %v2530
    %2764 = vmatprep.subr.bf16.mxu0 0
    %2765 = vmatpush2.bf16.msra.mxu0 %v2529
    %2766 = vmatprep.subr.bf16.mxu0 0
    %2767 = vmatpush2.bf16.msra.mxu0 %v2528
    %2768 = vmatprep.subr.bf16.mxu0 0
    %2769 = vmatpush2.bf16.msra.mxu0 %v2527
    %2770 = vmatprep.subr.bf16.mxu0 0
    %2771 = vmatpush2.bf16.msra.mxu0 %v2526
    %2772 = vmatprep.subr.bf16.mxu0 0
    %2773 = vmatpush2.bf16.msra.mxu0 %v2525
    %2774 = vmatprep.mubr.bf16.mxu0 %v2011
    %2775 = vmatmul.mubr.bf16.gmra.mxu0 %v2010
    %v2776 = vpop.f32.mrf.mxu0
    %v2777 = vadd.f32 %v2680, %v2776
    %v2778 = vpop.f32.mrf.mxu0
    %v2779 = vpop.f32.mrf.mxu0
    %v2780 = vadd.f32 %v2683, %v2779
    %v2781 = vpop.f32.mrf.mxu0
    %2782 = vmatprep.mubr.bf16.mxu0 %v2017
    %2783 = vmatmul.mubr.bf16.gmra.mxu0 %v2016
    %v2784 = vpop.f32.mrf.mxu0
    %v2785 = vadd.f32 %v2688, %v2784
    %v2786 = vpop.f32.mrf.mxu0
    %v2787 = vpop.f32.mrf.mxu0
    %v2788 = vadd.f32 %v2691, %v2787
    %v2789 = vpop.f32.mrf.mxu0
    %2790 = vmatprep.mubr.bf16.mxu0 %v2023
    %2791 = vmatmul.mubr.bf16.gmra.mxu0 %v2022
    %v2792 = vpop.f32.mrf.mxu0
    %v2793 = vadd.f32 %v2696, %v2792
    %v2794 = vpop.f32.mrf.mxu0
    %v2795 = vpop.f32.mrf.mxu0
    %v2796 = vadd.f32 %v2699, %v2795
    %v2797 = vpop.f32.mrf.mxu0
    %2798 = vmatprep.mubr.bf16.mxu0 %v2029
    %2799 = vmatmul.mubr.bf16.gmra.mxu0 %v2028
    %v2800 = vpop.f32.mrf.mxu0
    %v2801 = vadd.f32 %v2704, %v2800
    %v2802 = vpop.f32.mrf.mxu0
    %v2803 = vpop.f32.mrf.mxu0
    %v2804 = vadd.f32 %v2707, %v2803
    %v2805 = vpop.f32.mrf.mxu0
    %2806 = vmatprep.mubr.bf16.mxu0 %v2038
    %2807 = vmatmul.mubr.bf16.gmra.mxu0 %v2037
    %v2808 = vpop.f32.mrf.mxu0
    %v2809 = vadd.f32 %v2712, %v2808
    %v2810 = vpop.f32.mrf.mxu0
    %v2811 = vpop.f32.mrf.mxu0
    %v2812 = vadd.f32 %v2715, %v2811
    %v2813 = vpop.f32.mrf.mxu0
    %2814 = vmatprep.mubr.bf16.mxu0 %v2044
    %2815 = vmatmul.mubr.bf16.gmra.mxu0 %v2043
    %v2816 = vpop.f32.mrf.mxu0
    %v2817 = vadd.f32 %v2720, %v2816
    %v2818 = vpop.f32.mrf.mxu0
    %v2819 = vpop.f32.mrf.mxu0
    %v2820 = vadd.f32 %v2723, %v2819
    %v2821 = vpop.f32.mrf.mxu0
    %2822 = vmatprep.mubr.bf16.mxu0 %v2050
    %2823 = vmatmul.mubr.bf16.gmra.mxu0 %v2049
    %v2824 = vpop.f32.mrf.mxu0
    %v2825 = vadd.f32 %v2728, %v2824
    %v2826 = vpop.f32.mrf.mxu0
    %v2827 = vpop.f32.mrf.mxu0
    %v2828 = vadd.f32 %v2731, %v2827
    %v2829 = vpop.f32.mrf.mxu0
    %2830 = vmatprep.mubr.bf16.mxu0 %v2056
    %2831 = vmatmul.mubr.bf16.gmra.mxu0 %v2055
    %v2832 = vpop.f32.mrf.mxu0
    %v2833 = vadd.f32 %v2736, %v2832
    %v2834 = vpop.f32.mrf.mxu0
    %v2835 = vpop.f32.mrf.mxu0
    %v2836 = vadd.f32 %v2739, %v2835
    %v2837 = vpop.f32.mrf.mxu0
    %2838 = vdwg.mxu0
    %2839 = vmatprep.subr.bf16.mxu0 0
    %2840 = vmatpush1.bf16.msra.mxu0 %v2540
    %2841 = vmatprep.subr.bf16.mxu0 0
    %2842 = vmatpush1.bf16.msra.mxu0 %v2539
    %2843 = vmatprep.subr.bf16.mxu0 0
    %2844 = vmatpush1.bf16.msra.mxu0 %v2538
    %2845 = vmatprep.subr.bf16.mxu0 0
    %2846 = vmatpush1.bf16.msra.mxu0 %v2537
    %2847 = vmatprep.subr.bf16.mxu0 0
    %2848 = vmatpush1.bf16.msra.mxu0 %v2536
    %2849 = vmatprep.subr.bf16.mxu0 0
    %2850 = vmatpush1.bf16.msra.mxu0 %v2535
    %2851 = vmatprep.subr.bf16.mxu0 0
    %2852 = vmatpush1.bf16.msra.mxu0 %v2534
    %2853 = vmatprep.subr.bf16.mxu0 0
    %2854 = vmatpush1.bf16.msra.mxu0 %v2533
    %2855 = vmatprep.subr.bf16.mxu0 0
    %2856 = vmatpush2.bf16.msra.mxu0 %v2548
    %2857 = vmatprep.subr.bf16.mxu0 0
    %2858 = vmatpush2.bf16.msra.mxu0 %v2547
    %2859 = vmatprep.subr.bf16.mxu0 0
    %2860 = vmatpush2.bf16.msra.mxu0 %v2546
    %2861 = vmatprep.subr.bf16.mxu0 0
    %2862 = vmatpush2.bf16.msra.mxu0 %v2545
    %2863 = vmatprep.subr.bf16.mxu0 0
    %2864 = vmatpush2.bf16.msra.mxu0 %v2544
    %2865 = vmatprep.subr.bf16.mxu0 0
    %2866 = vmatpush2.bf16.msra.mxu0 %v2543
    %2867 = vmatprep.subr.bf16.mxu0 0
    %2868 = vmatpush2.bf16.msra.mxu0 %v2542
    %2869 = vmatprep.subr.bf16.mxu0 0
    %2870 = vmatpush2.bf16.msra.mxu0 %v2541
    %2871 = vmatprep.mubr.bf16.mxu0 %v2013
    %2872 = vmatmul.mubr.bf16.gmra.mxu0 %v2012
    %v2873 = vpop.f32.mrf.mxu0
    %v2874 = vadd.f32 %v2777, %v2873
    %v2875 = vpop.f32.mrf.mxu0
    %v2876 = vpop.f32.mrf.mxu0
    %v2877 = vadd.f32 %v2780, %v2876
    %v2878 = vpop.f32.mrf.mxu0
    %2879 = vmatprep.mubr.bf16.mxu0 %v2019
    %2880 = vmatmul.mubr.bf16.gmra.mxu0 %v2018
    %v2881 = vpop.f32.mrf.mxu0
    %v2882 = vadd.f32 %v2785, %v2881
    %v2883 = vpop.f32.mrf.mxu0
    %v2884 = vpop.f32.mrf.mxu0
    %v2885 = vadd.f32 %v2788, %v2884
    %v2886 = vpop.f32.mrf.mxu0
    %2887 = vmatprep.mubr.bf16.mxu0 %v2025
    %2888 = vmatmul.mubr.bf16.gmra.mxu0 %v2024
    %v2889 = vpop.f32.mrf.mxu0
    %v2890 = vadd.f32 %v2793, %v2889
    %v2891 = vpop.f32.mrf.mxu0
    %v2892 = vpop.f32.mrf.mxu0
    %v2893 = vadd.f32 %v2796, %v2892
    %v2894 = vpop.f32.mrf.mxu0
    %2895 = vmatprep.mubr.bf16.mxu0 %v2031
    %2896 = vmatmul.mubr.bf16.gmra.mxu0 %v2030
    %v2897 = vpop.f32.mrf.mxu0
    %v2898 = vadd.f32 %v2801, %v2897
    %v2899 = vpop.f32.mrf.mxu0
    %v2900 = vpop.f32.mrf.mxu0
    %v2901 = vadd.f32 %v2804, %v2900
    %v2902 = vpop.f32.mrf.mxu0
    %2903 = vmatprep.mubr.bf16.mxu0 %v2040
    %2904 = vmatmul.mubr.bf16.gmra.mxu0 %v2039
    %v2905 = vpop.f32.mrf.mxu0
    %v2906 = vadd.f32 %v2809, %v2905
    %v2907 = vpop.f32.mrf.mxu0
    %v2908 = vpop.f32.mrf.mxu0
    %v2909 = vadd.f32 %v2812, %v2908
    %v2910 = vpop.f32.mrf.mxu0
    %2911 = vmatprep.mubr.bf16.mxu0 %v2046
    %2912 = vmatmul.mubr.bf16.gmra.mxu0 %v2045
    %v2913 = vpop.f32.mrf.mxu0
    %v2914 = vadd.f32 %v2817, %v2913
    %v2915 = vpop.f32.mrf.mxu0
    %v2916 = vpop.f32.mrf.mxu0
    %v2917 = vadd.f32 %v2820, %v2916
    %v2918 = vpop.f32.mrf.mxu0
    %2919 = vmatprep.mubr.bf16.mxu0 %v2052
    %2920 = vmatmul.mubr.bf16.gmra.mxu0 %v2051
    %v2921 = vpop.f32.mrf.mxu0
    %v2922 = vadd.f32 %v2825, %v2921
    %v2923 = vpop.f32.mrf.mxu0
    %v2924 = vpop.f32.mrf.mxu0
    %v2925 = vadd.f32 %v2828, %v2924
    %v2926 = vpop.f32.mrf.mxu0
    %2927 = vmatprep.mubr.bf16.mxu0 %v2058
    %2928 = vmatmul.mubr.bf16.gmra.mxu0 %v2057
    %v2929 = vpop.f32.mrf.mxu0
    %v2930 = vadd.f32 %v2833, %v2929
    %v2931 = vpop.f32.mrf.mxu0
    %v2932 = vpop.f32.mrf.mxu0
    %v2933 = vadd.f32 %v2836, %v2932
    %v2934 = vpop.f32.mrf.mxu0
    %2935 = vdwg.mxu0
    %2936 = vmatprep.subr.bf16.mxu0 0
    %2937 = vmatpush1.bf16.msra.mxu0 %v2556
    %2938 = vmatprep.subr.bf16.mxu0 0
    %2939 = vmatpush1.bf16.msra.mxu0 %v2555
    %2940 = vmatprep.subr.bf16.mxu0 0
    %2941 = vmatpush1.bf16.msra.mxu0 %v2554
    %2942 = vmatprep.subr.bf16.mxu0 0
    %2943 = vmatpush1.bf16.msra.mxu0 %v2553
    %2944 = vmatprep.subr.bf16.mxu0 0
    %2945 = vmatpush1.bf16.msra.mxu0 %v2552
    %2946 = vmatprep.subr.bf16.mxu0 0
    %2947 = vmatpush1.bf16.msra.mxu0 %v2551
    %2948 = vmatprep.subr.bf16.mxu0 0
    %2949 = vmatpush1.bf16.msra.mxu0 %v2550
    %2950 = vmatprep.subr.bf16.mxu0 0
    %2951 = vmatpush1.bf16.msra.mxu0 %v2549
    %2952 = vmatprep.subr.bf16.mxu0 0
    %2953 = vmatpush2.bf16.msra.mxu0 %v2564
    %2954 = vmatprep.subr.bf16.mxu0 0
    %2955 = vmatpush2.bf16.msra.mxu0 %v2563
    %2956 = vmatprep.subr.bf16.mxu0 0
    %2957 = vmatpush2.bf16.msra.mxu0 %v2562
    %2958 = vmatprep.subr.bf16.mxu0 0
    %2959 = vmatpush2.bf16.msra.mxu0 %v2561
    %2960 = vmatprep.subr.bf16.mxu0 0
    %2961 = vmatpush2.bf16.msra.mxu0 %v2560
    %2962 = vmatprep.subr.bf16.mxu0 0
    %2963 = vmatpush2.bf16.msra.mxu0 %v2559
    %2964 = vmatprep.subr.bf16.mxu0 0
    %2965 = vmatpush2.bf16.msra.mxu0 %v2558
    %2966 = vmatprep.subr.bf16.mxu0 0
    %2967 = vmatpush2.bf16.msra.mxu0 %v2557
    %2968 = vmatprep.mubr.bf16.mxu0 %v2015
    %2969 = vmatmul.mubr.bf16.gmra.mxu0 %v2014
    %v2970 = vpop.f32.mrf.mxu0
    %v2971 = vadd.f32 %v2874, %v2970
    %v2972 = vpop.f32.mrf.mxu0
    %v2973 = vpop.f32.mrf.mxu0
    %v2974 = vadd.f32 %v2877, %v2973
    %v2975 = vpop.f32.mrf.mxu0
    %2976 = vmatprep.mubr.bf16.mxu0 %v2021
    %2977 = vmatmul.mubr.bf16.gmra.mxu0 %v2020
    %v2978 = vpop.f32.mrf.mxu0
    %v2979 = vadd.f32 %v2882, %v2978
    %v2980 = vpop.f32.mrf.mxu0
    %v2981 = vpop.f32.mrf.mxu0
    %v2982 = vadd.f32 %v2885, %v2981
    %v2983 = vpop.f32.mrf.mxu0
    %2984 = vmatprep.mubr.bf16.mxu0 %v2027
    %2985 = vmatmul.mubr.bf16.gmra.mxu0 %v2026
    %v2986 = vpop.f32.mrf.mxu0
    %v2987 = vadd.f32 %v2890, %v2986
    %v2988 = vpop.f32.mrf.mxu0
    %v2989 = vpop.f32.mrf.mxu0
    %v2990 = vadd.f32 %v2893, %v2989
    %v2991 = vpop.f32.mrf.mxu0
    %2992 = vmatprep.mubr.bf16.mxu0 %v2033
    %2993 = vmatmul.mubr.bf16.gmra.mxu0 %v2032
    %v2994 = vpop.f32.mrf.mxu0
    %v2995 = vadd.f32 %v2898, %v2994
    %v2996 = vpop.f32.mrf.mxu0
    %v2997 = vpop.f32.mrf.mxu0
    %v2998 = vadd.f32 %v2901, %v2997
    %v2999 = vpop.f32.mrf.mxu0
    %3000 = vmatprep.mubr.bf16.mxu0 %v2042
    %3001 = vmatmul.mubr.bf16.gmra.mxu0 %v2041
    %v3002 = vpop.f32.mrf.mxu0
    %v3003 = vadd.f32 %v2906, %v3002
    %v3004 = vpop.f32.mrf.mxu0
    %v3005 = vpop.f32.mrf.mxu0
    %v3006 = vadd.f32 %v2909, %v3005
    %v3007 = vpop.f32.mrf.mxu0
    %3008 = vmatprep.mubr.bf16.mxu0 %v2048
    %3009 = vmatmul.mubr.bf16.gmra.mxu0 %v2047
    %v3010 = vpop.f32.mrf.mxu0
    %v3011 = vadd.f32 %v2914, %v3010
    %v3012 = vpop.f32.mrf.mxu0
    %v3013 = vpop.f32.mrf.mxu0
    %v3014 = vadd.f32 %v2917, %v3013
    %v3015 = vpop.f32.mrf.mxu0
    %3016 = vmatprep.mubr.bf16.mxu0 %v2054
    %3017 = vmatmul.mubr.bf16.gmra.mxu0 %v2053
    %v3018 = vpop.f32.mrf.mxu0
    %v3019 = vadd.f32 %v2922, %v3018
    %v3020 = vpop.f32.mrf.mxu0
    %v3021 = vpop.f32.mrf.mxu0
    %v3022 = vadd.f32 %v2925, %v3021
    %v3023 = vpop.f32.mrf.mxu0
    %3024 = vmatprep.mubr.bf16.mxu0 %v2060
    %3025 = vmatmul.mubr.bf16.gmra.mxu0 %v2059
    %v3026 = vpop.f32.mrf.mxu0
    %v3027 = vadd.f32 %v2930, %v3026
    %v3028 = vpop.f32.mrf.mxu0
    %v3029 = vpop.f32.mrf.mxu0
    %v3030 = vadd.f32 %v2933, %v3029
    %v3031 = vpop.f32.mrf.mxu0
    %3032 = vdwg.mxu0
    %3033 = vmatprep.subr.bf16.mxu0 0
    %3034 = vmatpush1.bf16.msra.mxu0 %v2572
    %3035 = vmatprep.subr.bf16.mxu0 0
    %3036 = vmatpush1.bf16.msra.mxu0 %v2571
    %3037 = vmatprep.subr.bf16.mxu0 0
    %3038 = vmatpush1.bf16.msra.mxu0 %v2570
    %3039 = vmatprep.subr.bf16.mxu0 0
    %3040 = vmatpush1.bf16.msra.mxu0 %v2569
    %3041 = vmatprep.subr.bf16.mxu0 0
    %3042 = vmatpush1.bf16.msra.mxu0 %v2568
    %3043 = vmatprep.subr.bf16.mxu0 0
    %3044 = vmatpush1.bf16.msra.mxu0 %v2567
    %3045 = vmatprep.subr.bf16.mxu0 0
    %3046 = vmatpush1.bf16.msra.mxu0 %v2566
    %3047 = vmatprep.subr.bf16.mxu0 0
    %3048 = vmatpush1.bf16.msra.mxu0 %v2565
    %3049 = vmatprep.subr.bf16.mxu0 0
    %3050 = vmatpush2.bf16.msra.mxu0 0
    %3051 = vmatprep.subr.bf16.mxu0 0
    %3052 = vmatpush2.bf16.msra.mxu0 0
    %3053 = vmatprep.subr.bf16.mxu0 0
    %3054 = vmatpush2.bf16.msra.mxu0 0
    %3055 = vmatprep.subr.bf16.mxu0 0
    %3056 = vmatpush2.bf16.msra.mxu0 0
    %3057 = vmatprep.subr.bf16.mxu0 0
    %3058 = vmatpush2.bf16.msra.mxu0 0
    %3059 = vmatprep.subr.bf16.mxu0 0
    %3060 = vmatpush2.bf16.msra.mxu0 0
    %3061 = vmatprep.subr.bf16.mxu0 0
    %3062 = vmatpush2.bf16.msra.mxu0 0
    %3063 = vmatprep.subr.bf16.mxu0 0
    %3064 = vmatpush2.bf16.msra.mxu0 0
    %3065 = vmatprep.mubr.bf16.mxu0 0
    %3066 = vmatmul.mubr.bf16.gmra.mxu0 %v2016
    %v3067 = vpop.f32.mrf.mxu0
    %v3068 = vadd.f32 %v2971, %v3067
    %v3069 = vpop.f32.mrf.mxu0
    %v3070 = vpop.f32.mrf.mxu0
    %v3071 = vadd.f32 %v2974, %v3070
    %v3072 = vpop.f32.mrf.mxu0
    %3073 = vmatprep.mubr.bf16.mxu0 0
    %3074 = vmatmul.mubr.bf16.gmra.mxu0 %v2022
    %v3075 = vpop.f32.mrf.mxu0
    %v3076 = vadd.f32 %v2979, %v3075
    %v3077 = vpop.f32.mrf.mxu0
    %v3078 = vpop.f32.mrf.mxu0
    %v3079 = vadd.f32 %v2982, %v3078
    %v3080 = vpop.f32.mrf.mxu0
    %3081 = vmatprep.mubr.bf16.mxu0 0
    %3082 = vmatmul.mubr.bf16.gmra.mxu0 %v2028
    %v3083 = vpop.f32.mrf.mxu0
    %v3084 = vadd.f32 %v2987, %v3083
    %v3085 = vpop.f32.mrf.mxu0
    %v3086 = vpop.f32.mrf.mxu0
    %v3087 = vadd.f32 %v2990, %v3086
    %v3088 = vpop.f32.mrf.mxu0
    %3089 = vmatprep.mubr.bf16.mxu0 0
    %3090 = vmatmul.mubr.bf16.gmra.mxu0 %v2034
    %v3091 = vpop.f32.mrf.mxu0
    %v3092 = vadd.f32 %v2995, %v3091
    %v3093 = vpop.f32.mrf.mxu0
    %v3094 = vpop.f32.mrf.mxu0
    %v3095 = vadd.f32 %v2998, %v3094
    %v3096 = vpop.f32.mrf.mxu0
    %3097 = vmatprep.mubr.bf16.mxu0 0
    %3098 = vmatmul.mubr.bf16.gmra.mxu0 %v2043
    %v3099 = vpop.f32.mrf.mxu0
    %v3100 = vadd.f32 %v3003, %v3099
    %v3101 = vpop.f32.mrf.mxu0
    %v3102 = vpop.f32.mrf.mxu0
    %v3103 = vadd.f32 %v3006, %v3102
    %v3104 = vpop.f32.mrf.mxu0
    %3105 = vmatprep.mubr.bf16.mxu0 0
    %3106 = vmatmul.mubr.bf16.gmra.mxu0 %v2049
    %v3107 = vpop.f32.mrf.mxu0
    %v3108 = vadd.f32 %v3011, %v3107
    %v3109 = vpop.f32.mrf.mxu0
    %v3110 = vpop.f32.mrf.mxu0
    %v3111 = vadd.f32 %v3014, %v3110
    %v3112 = vpop.f32.mrf.mxu0
    %3113 = vmatprep.mubr.bf16.mxu0 0
    %3114 = vmatmul.mubr.bf16.gmra.mxu0 %v2055
    %v3115 = vpop.f32.mrf.mxu0
    %v3116 = vadd.f32 %v3019, %v3115
    %v3117 = vpop.f32.mrf.mxu0
    %v3118 = vpop.f32.mrf.mxu0
    %v3119 = vadd.f32 %v3022, %v3118
    %v3120 = vpop.f32.mrf.mxu0
    %3121 = vmatprep.mubr.bf16.mxu0 0
    %3122 = vmatmul.mubr.bf16.gmra.mxu0 %v2061
    %v3123 = vpop.f32.mrf.mxu0
    %v3124 = vadd.f32 %v3027, %v3123
    %v3125 = vpop.f32.mrf.mxu0
    %v3126 = vpop.f32.mrf.mxu0
    %v3127 = vadd.f32 %v3030, %v3126
    %v3128 = vpop.f32.mrf.mxu0
    %3129 = vdwg.mxu0
    %v3130 = vadd.f32 %v3068, %v3071
    %v3131 = vadd.f32 %v3130, %v3076
    %v3132 = vadd.f32 %v3131, %v3079
    %v3133 = vadd.f32 %v3132, %v3084
    %v3134 = vadd.f32 %v3133, %v3087
    %v3135 = vadd.f32 %v3134, %v3092
    %v3136 = vadd.f32 %v3135, %v3095
    %v3137 = vadd.f32 %v3136, %v3100
    %v3138 = vadd.f32 %v3137, %v3103
    %v3139 = vadd.f32 %v3138, %v3108
    %v3140 = vadd.f32 %v3139, %v3111
    %v3141 = vadd.f32 %v3140, %v3116
    %v3142 = vadd.f32 %v3141, %v3119
    %v3143 = vadd.f32 %v3142, %v3124
    %v3144 = vadd.f32 %v3143, %v3127
    %v3145 = vrot.slane %v3144, 4
    %v3146 = vadd.f32 %v3144, %v3145
    %v3147 = vrot.slane %v3146, 2
    %v3148 = vadd.f32 %v3146, %v3147
    %v3149 = vrot.slane %v3148, 1
    %v3150 = vadd.f32 %v3148, %v3149
    %v3151 = vrcp.pop 128.0
    %v3152 = vmul.f32 %v3150, %v3151
    %v3153 = vsub.f32 %v3068, %v3152
    %v3154 = vsub.f32 %v3071, %v3152
    %v3155 = vsub.f32 %v3076, %v3152
    %v3156 = vsub.f32 %v3079, %v3152
    %v3157 = vsub.f32 %v3084, %v3152
    %v3158 = vsub.f32 %v3087, %v3152
    %v3159 = vsub.f32 %v3092, %v3152
    %v3160 = vsub.f32 %v3095, %v3152
    %v3161 = vsub.f32 %v3100, %v3152
    %v3162 = vsub.f32 %v3103, %v3152
    %v3163 = vsub.f32 %v3108, %v3152
    %v3164 = vsub.f32 %v3111, %v3152
    %v3165 = vsub.f32 %v3116, %v3152
    %v3166 = vsub.f32 %v3119, %v3152
    %v3167 = vsub.f32 %v3124, %v3152
    %v3168 = vsub.f32 %v3127, %v3152
    %v3169 = vmul.f32 %v3153, %v3153
    %v3170 = vmul.f32 %v3154, %v3154
    %v3171 = vmul.f32 %v3155, %v3155
    %v3172 = vmul.f32 %v3156, %v3156
    %v3173 = vmul.f32 %v3157, %v3157
    %v3174 = vmul.f32 %v3158, %v3158
    %v3175 = vmul.f32 %v3159, %v3159
    %v3176 = vmul.f32 %v3160, %v3160
    %v3177 = vmul.f32 %v3161, %v3161
    %v3178 = vmul.f32 %v3162, %v3162
    %v3179 = vmul.f32 %v3163, %v3163
    %v3180 = vmul.f32 %v3164, %v3164
    %v3181 = vmul.f32 %v3165, %v3165
    %v3182 = vmul.f32 %v3166, %v3166
    %v3183 = vmul.f32 %v3167, %v3167
    %v3184 = vmul.f32 %v3168, %v3168
    %v3185 = vadd.f32 %v3169, %v3170
    %v3186 = vadd.f32 %v3185, %v3171
    %v3187 = vadd.f32 %v3186, %v3172
    %v3188 = vadd.f32 %v3187, %v3173
    %v3189 = vadd.f32 %v3188, %v3174
    %v3190 = vadd.f32 %v3189, %v3175
    %v3191 = vadd.f32 %v3190, %v3176
    %v3192 = vadd.f32 %v3191, %v3177
    %v3193 = vadd.f32 %v3192, %v3178
    %v3194 = vadd.f32 %v3193, %v3179
    %v3195 = vadd.f32 %v3194, %v3180
    %v3196 = vadd.f32 %v3195, %v3181
    %v3197 = vadd.f32 %v3196, %v3182
    %v3198 = vadd.f32 %v3197, %v3183
    %v3199 = vadd.f32 %v3198, %v3184
    %v3200 = vrot.slane %v3199, 4
    %v3201 = vadd.f32 %v3199, %v3200
    %v3202 = vrot.slane %v3201, 2
    %v3203 = vadd.f32 %v3201, %v3202
    %v3204 = vrot.slane %v3203, 1
    %v3205 = vadd.f32 %v3203, %v3204
    %v3206 = vmul.f32 %v3205, %v3151
    %v3207 = vld [vmem:[%s7] sm:$0x1]
    %v3208 = vadd.f32 %v3206, 0.8
    %v3209 = vrsqrt.pop %v3208
    %v3210 = vmul.f32 %v3207, %v3209
    %v3211 = vld [vmem:[%s8] sm:$0x1]
    %v3212 = vmul.f32 %v3152, %v3210
    %v3213 = vsub.f32 %v3211, %v3212
    %v3215 = vlaneseq
    %v3216 = vshrl.u32 %v3215, 7
    %v3217 = vsub.s32 0, %v3216
    %v3218 = vrot.slane %v3210, %v3217
    %v3220 = vmul.f32 %v3068, %v3218
    %v3221 = vmul.f32 %v3071, %v3218
    %v3222 = vmul.f32 %v3076, %v3218
    %v3223 = vmul.f32 %v3079, %v3218
    %v3224 = vmul.f32 %v3084, %v3218
    %v3225 = vmul.f32 %v3087, %v3218
    %v3226 = vmul.f32 %v3092, %v3218
    %v3227 = vmul.f32 %v3095, %v3218
    %v3228 = vmul.f32 %v3100, %v3218
    %v3229 = vmul.f32 %v3103, %v3218
    %v3230 = vmul.f32 %v3108, %v3218
    %v3231 = vmul.f32 %v3111, %v3218
    %v3232 = vmul.f32 %v3116, %v3218
    %v3233 = vmul.f32 %v3119, %v3218
    %v3234 = vmul.f32 %v3124, %v3218
    %v3235 = vmul.f32 %v3127, %v3218
    %v3237 = vlaneseq
    %v3238 = vshrl.u32 %v3237, 7
    %v3239 = vsub.s32 0, %v3238
    %v3240 = vrot.slane %v3213, %v3239
    %v3242 = vadd.f32 %v3220, %v3240
    %v3243 = vadd.f32 %v3221, %v3240
    %v3244 = vadd.f32 %v3222, %v3240
    %v3245 = vadd.f32 %v3223, %v3240
    %v3246 = vadd.f32 %v3224, %v3240
    %v3247 = vadd.f32 %v3225, %v3240
    %v3248 = vadd.f32 %v3226, %v3240
    %v3249 = vadd.f32 %v3227, %v3240
    %v3250 = vadd.f32 %v3228, %v3240
    %v3251 = vadd.f32 %v3229, %v3240
    %v3252 = vadd.f32 %v3230, %v3240
    %v3253 = vadd.f32 %v3231, %v3240
    %v3254 = vadd.f32 %v3232, %v3240
    %v3255 = vadd.f32 %v3233, %v3240
    %v3256 = vadd.f32 %v3234, %v3240
    %v3257 = vadd.f32 %v3235, %v3240
    %v3258 = vmax.f32 %v3242, 0.0
    %v3259 = vmax.f32 %v3243, 0.0
    %v3260 = vmax.f32 %v3244, 0.0
    %v3261 = vmax.f32 %v3245, 0.0
    %v3262 = vmax.f32 %v3246, 0.0
    %v3263 = vmax.f32 %v3247, 0.0
    %v3264 = vmax.f32 %v3248, 0.0
    %v3265 = vmax.f32 %v3249, 0.0
    %v3266 = vmax.f32 %v3250, 0.0
    %v3267 = vmax.f32 %v3251, 0.0
    %v3268 = vmax.f32 %v3252, 0.0
    %v3269 = vmax.f32 %v3253, 0.0
    %v3270 = vmax.f32 %v3254, 0.0
    %v3271 = vmax.f32 %v3255, 0.0
    %v3272 = vmax.f32 %v3256, 0.0
    %v3273 = vmax.f32 %v3257, 0.0
    %3274 = vst [vmem:[#allocation3] sm:$0xff] 0.0
    %3275 = vst [vmem:[#allocation3 + $0x8] sm:$0xff] 0.0
    %3276 = vst [vmem:[#allocation3 + $0x10] sm:$0x3] 0.0
    %3277 = vst [vmem:[#allocation3 + $0x18] sm:$0xff] 0.0
    %3278 = vst [vmem:[#allocation3 + $0x20] sm:$0xff] 0.0
    %3279 = vst [vmem:[#allocation3 + $0x28] sm:$0x3] 0.0
    %3280 = vst [vmem:[#allocation3 + $0x30] sm:$0xff] 0.0
    %3281 = vst [vmem:[#allocation3 + $0x38] sm:$0xff] 0.0
    %3282 = vst [vmem:[#allocation3 + $0x40] sm:$0x3] 0.0
    %3283 = vst [vmem:[#allocation3 + $0x48] sm:$0xff] 0.0
    %3284 = vst [vmem:[#allocation3 + $0x50] sm:$0xff] 0.0
    %3285 = vst [vmem:[#allocation3 + $0x58] sm:$0x3] 0.0
    %3286 = vst [vmem:[#allocation3 + $0x60] sm:$0xff] 0.0
    %3287 = vst [vmem:[#allocation3 + $0x68] sm:$0xff] 0.0
    %3288 = vst [vmem:[#allocation3 + $0x70] sm:$0x3] 0.0
    %3289 = vst [vmem:[#allocation3 + $0x78] sm:$0xff] 0.0
    %3290 = vst [vmem:[#allocation3 + $0x80] sm:$0xff] 0.0
    %3291 = vst [vmem:[#allocation3 + $0x88] sm:$0x3] 0.0
    %3292 = vst [vmem:[#allocation3 + $0x90] sm:$0xff] 0.0
    %3293 = vst [vmem:[#allocation3 + $0x98] sm:$0xff] 0.0
    %3294 = vst [vmem:[#allocation3 + $0xa0] sm:$0x3] 0.0
    %3295 = vst [vmem:[#allocation3 + $0xa8] sm:$0xff] 0.0
    %3296 = vst [vmem:[#allocation3 + $0xb0] sm:$0xff] 0.0
    %3297 = vst [vmem:[#allocation3 + $0xb8] sm:$0x3] 0.0
    %3298 = vst [vmem:[#allocation3 + $0xc0] sm:$0xff] 0.0
    %3299 = vst [vmem:[#allocation3 + $0xc8] sm:$0xff] 0.0
    %3300 = vst [vmem:[#allocation3 + $0xd0] sm:$0x3] 0.0
    %3301 = vst [vmem:[#allocation3 + $0xd8] sm:$0xff] 0.0
    %3302 = vst [vmem:[#allocation3 + $0xe0] sm:$0xff] 0.0
    %3303 = vst [vmem:[#allocation3 + $0xe8] sm:$0x3] 0.0
    %3304 = vst [vmem:[#allocation3 + $0xf0] sm:$0xff] 0.0
    %3305 = vst [vmem:[#allocation3 + $0xf8] sm:$0xff] 0.0
    %3306 = vst [vmem:[#allocation3 + $0x100] sm:$0x3] 0.0
    %3307 = vst [vmem:[#allocation3 + $0x108] sm:$0xff] 0.0
    %3308 = vst [vmem:[#allocation3 + $0x110] sm:$0xff] 0.0
    %3309 = vst [vmem:[#allocation3 + $0x118] sm:$0x3] 0.0
    %3310 = vst [vmem:[#allocation3 + $0x120] sm:$0xff] 0.0
    %3311 = vst [vmem:[#allocation3 + $0x128] sm:$0xff] 0.0
    %3312 = vst [vmem:[#allocation3 + $0x130] sm:$0x3] 0.0
    %3313 = vst [vmem:[#allocation3 + $0x138] sm:$0xff] 0.0
    %3314 = vst [vmem:[#allocation3 + $0x140] sm:$0xff] 0.0
    %3315 = vst [vmem:[#allocation3 + $0x148] sm:$0x3] 0.0
    %3316 = vst [vmem:[#allocation3 + $0x150] sm:$0xff] 0.0
    %3317 = vst [vmem:[#allocation3 + $0x158] sm:$0xff] 0.0
    %3318 = vst [vmem:[#allocation3 + $0x160] sm:$0x3] 0.0
    %3319 = vst [vmem:[#allocation3 + $0x168] sm:$0xff] 0.0
    %3320 = vst [vmem:[#allocation3 + $0x170] sm:$0xff] 0.0
    %3321 = vst [vmem:[#allocation3 + $0x178] sm:$0x3] 0.0
    %3322 = vst [vmem:[#allocation3 + $0x180] sm:$0xff] 0.0
    %3323 = vst [vmem:[#allocation3 + $0x188] sm:$0xff] 0.0
    %3324 = vst [vmem:[#allocation3 + $0x190] sm:$0x3] 0.0
    %3325 = vst [vmem:[#allocation3 + $0x198] sm:$0xff] 0.0
    %3326 = vst [vmem:[#allocation3 + $0x1a0] sm:$0xff] 0.0
    %3327 = vst [vmem:[#allocation3 + $0x1a8] sm:$0x3] 0.0
    %3328 = vst [vmem:[#allocation3 + $0x1b0] sm:$0xff] 0.0
    %3329 = vst [vmem:[#allocation3 + $0x1b8] sm:$0xff] 0.0
    %3330 = vst [vmem:[#allocation3 + $0x1c0] sm:$0x3] 0.0
    %3331 = vst [vmem:[#allocation3 + $0x1c8] sm:$0xff] 0.0
    %3332 = vst [vmem:[#allocation3 + $0x1d0] sm:$0xff] 0.0
    %3333 = vst [vmem:[#allocation3 + $0x1d8] sm:$0x3] 0.0
    %3334 = vst [vmem:[#allocation3 + $0x1e0] sm:$0xff] 0.0
    %3335 = vst [vmem:[#allocation3 + $0x1e8] sm:$0xff] 0.0
    %3336 = vst [vmem:[#allocation3 + $0x1f0] sm:$0x3] 0.0
    %3337 = vst [vmem:[#allocation3 + $0x1f8] sm:$0xff] 0.0
    %3338 = vst [vmem:[#allocation3 + $0x200] sm:$0xff] 0.0
    %3339 = vst [vmem:[#allocation3 + $0x208] sm:$0x3] 0.0
    %3340 = vst [vmem:[#allocation3 + $0x210] sm:$0xff] 0.0
    %3341 = vst [vmem:[#allocation3 + $0x218] sm:$0xff] 0.0
    %3342 = vst [vmem:[#allocation3 + $0x220] sm:$0x3] 0.0
    %3343 = vst [vmem:[#allocation3 + $0x228] sm:$0xff] 0.0
    %3344 = vst [vmem:[#allocation3 + $0x230] sm:$0xff] 0.0
    %3345 = vst [vmem:[#allocation3 + $0x238] sm:$0x3] 0.0
    %3346 = vst [vmem:[#allocation3 + $0x240] sm:$0xff] 0.0
    %3347 = vst [vmem:[#allocation3 + $0x248] sm:$0xff] 0.0
    %3348 = vst [vmem:[#allocation3 + $0x250] sm:$0x3] 0.0
    %3349 = vst [vmem:[#allocation3 + $0x258] sm:$0xff] 0.0
    %3350 = vst [vmem:[#allocation3 + $0x260] sm:$0xff] 0.0
    %3351 = vst [vmem:[#allocation3 + $0x268] sm:$0x3] 0.0
    %3352 = vst [vmem:[#allocation3 + $0x270] sm:$0xff] 0.0
    %3353 = vst [vmem:[#allocation3 + $0x278] sm:$0xff] 0.0
    %3354 = vst [vmem:[#allocation3 + $0x280] sm:$0x3] 0.0
    %3355 = vst [vmem:[#allocation3 + $0x288] sm:$0xff] 0.0
    %3356 = vst [vmem:[#allocation3 + $0x290] sm:$0xff] 0.0
    %3357 = vst [vmem:[#allocation3 + $0x298] sm:$0x3] 0.0
    %3358 = vst [vmem:[#allocation3 + $0x2a0] sm:$0xff] 0.0
    %3359 = vst [vmem:[#allocation3 + $0x2a8] sm:$0xff] 0.0
    %3360 = vst [vmem:[#allocation3 + $0x2b0] sm:$0x3] 0.0
    %3361 = vst [vmem:[#allocation3 + $0x2b8] sm:$0xff] 0.0
    %3362 = vst [vmem:[#allocation3 + $0x2c0] sm:$0xff] 0.0
    %3363 = vst [vmem:[#allocation3 + $0x2c8] sm:$0x3] 0.0
    %3364 = vst [vmem:[#allocation3 + $0x2d0] sm:$0xff] 0.0
    %3365 = vst [vmem:[#allocation3 + $0x2d8] sm:$0xff] 0.0
    %3366 = vst [vmem:[#allocation3 + $0x2e0] sm:$0x3] 0.0
    %3367 = vst [vmem:[#allocation3 + $0x2e8] sm:$0xff] 0.0
    %3368 = vst [vmem:[#allocation3 + $0x2f0] sm:$0xff] 0.0
    %3369 = vst [vmem:[#allocation3 + $0x2f8] sm:$0x3] 0.0
    %3370 = vst [vmem:[#allocation3 + $0x300] sm:$0xff] 0.0
    %3371 = vst [vmem:[#allocation3 + $0x308] sm:$0xff] 0.0
    %3372 = vst [vmem:[#allocation3 + $0x310] sm:$0x3] 0.0
    %3373 = vst [vmem:[#allocation3 + $0x318] sm:$0xff] 0.0
    %3374 = vst [vmem:[#allocation3 + $0x320] sm:$0xff] 0.0
    %3375 = vst [vmem:[#allocation3 + $0x328] sm:$0x3] 0.0
    %3376 = vst [vmem:[#allocation3 + $0x330] sm:$0xff] 0.0
    %3377 = vst [vmem:[#allocation3 + $0x338] sm:$0xff] 0.0
    %3378 = vst [vmem:[#allocation3 + $0x340] sm:$0x3] 0.0
    %3379 = vst [vmem:[#allocation3 + $0x348] sm:$0xff] 0.0
    %3380 = vst [vmem:[#allocation3 + $0x350] sm:$0xff] 0.0
    %3381 = vst [vmem:[#allocation3 + $0x358] sm:$0x3] 0.0
    %v3382 = vlaneseq
    %v3383 = vshrl.u32 %v3382, 7
    %v3384 = vsub.s32 0, %v3383
    %v3385 = vrot.slane %v3258, %v3384
    %v3386 = vlaneseq
    %v3387 = vshrl.u32 %v3386, 7
    %v3388 = vsub.s32 0, %v3387
    %v3389 = vrot.slane %v3259, %v3388
    %v3390 = vlaneseq
    %v3391 = vshrl.u32 %v3390, 7
    %v3392 = vsub.s32 0, %v3391
    %v3393 = vrot.slane %v3260, %v3392
    %v3394 = vlaneseq
    %v3395 = vshrl.u32 %v3394, 7
    %v3396 = vsub.s32 0, %v3395
    %v3397 = vrot.slane %v3261, %v3396
    %v3398 = vlaneseq
    %v3399 = vshrl.u32 %v3398, 7
    %v3400 = vsub.s32 0, %v3399
    %v3401 = vrot.slane %v3262, %v3400
    %v3402 = vlaneseq
    %v3403 = vshrl.u32 %v3402, 7
    %v3404 = vsub.s32 0, %v3403
    %v3405 = vrot.slane %v3263, %v3404
    %v3406 = vlaneseq
    %v3407 = vshrl.u32 %v3406, 7
    %v3408 = vsub.s32 0, %v3407
    %v3409 = vrot.slane %v3264, %v3408
    %v3410 = vlaneseq
    %v3411 = vshrl.u32 %v3410, 7
    %v3412 = vsub.s32 0, %v3411
    %v3413 = vrot.slane %v3265, %v3412
    %v3414 = vlaneseq
    %v3415 = vshrl.u32 %v3414, 7
    %v3416 = vsub.s32 0, %v3415
    %v3417 = vrot.slane %v3266, %v3416
    %v3418 = vlaneseq
    %v3419 = vshrl.u32 %v3418, 7
    %v3420 = vsub.s32 0, %v3419
    %v3421 = vrot.slane %v3267, %v3420
    %v3422 = vlaneseq
    %v3423 = vshrl.u32 %v3422, 7
    %v3424 = vsub.s32 0, %v3423
    %v3425 = vrot.slane %v3268, %v3424
    %v3426 = vlaneseq
    %v3427 = vshrl.u32 %v3426, 7
    %v3428 = vsub.s32 0, %v3427
    %v3429 = vrot.slane %v3269, %v3428
    %v3430 = vlaneseq
    %v3431 = vshrl.u32 %v3430, 7
    %v3432 = vsub.s32 0, %v3431
    %v3433 = vrot.slane %v3270, %v3432
    %v3434 = vlaneseq
    %v3435 = vshrl.u32 %v3434, 7
    %v3436 = vsub.s32 0, %v3435
    %v3437 = vrot.slane %v3271, %v3436
    %v3438 = vlaneseq
    %v3439 = vshrl.u32 %v3438, 7
    %v3440 = vsub.s32 0, %v3439
    %v3441 = vrot.slane %v3272, %v3440
    %v3442 = vlaneseq
    %v3443 = vshrl.u32 %v3442, 7
    %v3444 = vsub.s32 0, %v3443
    %v3445 = vrot.slane %v3273, %v3444
    %s3446 = scalar_lea.vmem [#allocation3], 24
    %3447 = vst [vmem:[%s3446 + $0x1] sm:$0x3] %v3385
    %3448 = vst [vmem:[%s3446 + $0x19] sm:$0x3] %v3385
    %3449 = vst [vmem:[%s3446 + $0x31] sm:$0x3] %v3389
    %3450 = vst [vmem:[%s3446 + $0x49] sm:$0x3] %v3389
    %3451 = vst [vmem:[%s3446 + $0x61] sm:$0x3] %v3393
    %3452 = vst [vmem:[%s3446 + $0x79] sm:$0x3] %v3393
    %3453 = vst [vmem:[%s3446 + $0x91] sm:$0x3] %v3397
    %3454 = vst [vmem:[%s3446 + $0xa9] sm:$0x3] %v3397
    %3455 = vst [vmem:[%s3446 + $0xc1] sm:$0x3] %v3401
    %3456 = vst [vmem:[%s3446 + $0xd9] sm:$0x3] %v3401
    %3457 = vst [vmem:[%s3446 + $0xf1] sm:$0x3] %v3405
    %3458 = vst [vmem:[%s3446 + $0x109] sm:$0x3] %v3405
    %3459 = vst [vmem:[%s3446 + $0x121] sm:$0x3] %v3409
    %3460 = vst [vmem:[%s3446 + $0x139] sm:$0x3] %v3409
    %3461 = vst [vmem:[%s3446 + $0x151] sm:$0x3] %v3413
    %3462 = vst [vmem:[%s3446 + $0x169] sm:$0x3] %v3413
    %3463 = vst [vmem:[%s3446 + $0x1b1] sm:$0x3] %v3417
    %3464 = vst [vmem:[%s3446 + $0x1c9] sm:$0x3] %v3417
    %3465 = vst [vmem:[%s3446 + $0x1e1] sm:$0x3] %v3421
    %3466 = vst [vmem:[%s3446 + $0x1f9] sm:$0x3] %v3421
    %3467 = vst [vmem:[%s3446 + $0x211] sm:$0x3] %v3425
    %3468 = vst [vmem:[%s3446 + $0x229] sm:$0x3] %v3425
    %3469 = vst [vmem:[%s3446 + $0x241] sm:$0x3] %v3429
    %3470 = vst [vmem:[%s3446 + $0x259] sm:$0x3] %v3429
    %3471 = vst [vmem:[%s3446 + $0x271] sm:$0x3] %v3433
    %3472 = vst [vmem:[%s3446 + $0x289] sm:$0x3] %v3433
    %3473 = vst [vmem:[%s3446 + $0x2a1] sm:$0x3] %v3437
    %3474 = vst [vmem:[%s3446 + $0x2b9] sm:$0x3] %v3437
    %3475 = vst [vmem:[%s3446 + $0x2d1] sm:$0x3] %v3441
    %3476 = vst [vmem:[%s3446 + $0x2e9] sm:$0x3] %v3441
    %3477 = vst [vmem:[%s3446 + $0x301] sm:$0x3] %v3445
    %3478 = vst [vmem:[%s3446 + $0x319] sm:$0x3] %v3445
    %v3479 = vlaneseq
    %v3480 = vshrl.u32 %v3479, 7
    %v3481 = vsub.s32 1, %v3480
    %v3482 = vrot.slane %v3258, %v3481
    %v3483 = vlaneseq
    %v3484 = vshrl.u32 %v3483, 7
    %v3485 = vsub.s32 1, %v3484
    %v3486 = vrot.slane %v3259, %v3485
    %v3487 = vlaneseq
    %v3488 = vshrl.u32 %v3487, 7
    %v3489 = vsub.s32 1, %v3488
    %v3490 = vrot.slane %v3260, %v3489
    %v3491 = vlaneseq
    %v3492 = vshrl.u32 %v3491, 7
    %v3493 = vsub.s32 1, %v3492
    %v3494 = vrot.slane %v3261, %v3493
    %v3495 = vlaneseq
    %v3496 = vshrl.u32 %v3495, 7
    %v3497 = vsub.s32 1, %v3496
    %v3498 = vrot.slane %v3262, %v3497
    %v3499 = vlaneseq
    %v3500 = vshrl.u32 %v3499, 7
    %v3501 = vsub.s32 1, %v3500
    %v3502 = vrot.slane %v3263, %v3501
    %v3503 = vlaneseq
    %v3504 = vshrl.u32 %v3503, 7
    %v3505 = vsub.s32 1, %v3504
    %v3506 = vrot.slane %v3264, %v3505
    %v3507 = vlaneseq
    %v3508 = vshrl.u32 %v3507, 7
    %v3509 = vsub.s32 1, %v3508
    %v3510 = vrot.slane %v3265, %v3509
    %v3511 = vlaneseq
    %v3512 = vshrl.u32 %v3511, 7
    %v3513 = vsub.s32 1, %v3512
    %v3514 = vrot.slane %v3266, %v3513
    %v3515 = vlaneseq
    %v3516 = vshrl.u32 %v3515, 7
    %v3517 = vsub.s32 1, %v3516
    %v3518 = vrot.slane %v3267, %v3517
    %v3519 = vlaneseq
    %v3520 = vshrl.u32 %v3519, 7
    %v3521 = vsub.s32 1, %v3520
    %v3522 = vrot.slane %v3268, %v3521
    %v3523 = vlaneseq
    %v3524 = vshrl.u32 %v3523, 7
    %v3525 = vsub.s32 1, %v3524
    %v3526 = vrot.slane %v3269, %v3525
    %v3527 = vlaneseq
    %v3528 = vshrl.u32 %v3527, 7
    %v3529 = vsub.s32 1, %v3528
    %v3530 = vrot.slane %v3270, %v3529
    %v3531 = vlaneseq
    %v3532 = vshrl.u32 %v3531, 7
    %v3533 = vsub.s32 1, %v3532
    %v3534 = vrot.slane %v3271, %v3533
    %v3535 = vlaneseq
    %v3536 = vshrl.u32 %v3535, 7
    %v3537 = vsub.s32 1, %v3536
    %v3538 = vrot.slane %v3272, %v3537
    %v3539 = vlaneseq
    %v3540 = vshrl.u32 %v3539, 7
    %v3541 = vsub.s32 1, %v3540
    %v3542 = vrot.slane %v3273, %v3541
    %3543 = vst [vmem:[%s3446 + $0x3] sm:$0x3] %v3482
    %3544 = vst [vmem:[%s3446 + $0x1b] sm:$0x3] %v3482
    %3545 = vst [vmem:[%s3446 + $0x33] sm:$0x3] %v3486
    %3546 = vst [vmem:[%s3446 + $0x4b] sm:$0x3] %v3486
    %3547 = vst [vmem:[%s3446 + $0x63] sm:$0x3] %v3490
    %3548 = vst [vmem:[%s3446 + $0x7b] sm:$0x3] %v3490
    %3549 = vst [vmem:[%s3446 + $0x93] sm:$0x3] %v3494
    %3550 = vst [vmem:[%s3446 + $0xab] sm:$0x3] %v3494
    %3551 = vst [vmem:[%s3446 + $0xc3] sm:$0x3] %v3498
    %3552 = vst [vmem:[%s3446 + $0xdb] sm:$0x3] %v3498
    %3553 = vst [vmem:[%s3446 + $0xf3] sm:$0x3] %v3502
    %3554 = vst [vmem:[%s3446 + $0x10b] sm:$0x3] %v3502
    %3555 = vst [vmem:[%s3446 + $0x123] sm:$0x3] %v3506
    %3556 = vst [vmem:[%s3446 + $0x13b] sm:$0x3] %v3506
    %3557 = vst [vmem:[%s3446 + $0x153] sm:$0x3] %v3510
    %3558 = vst [vmem:[%s3446 + $0x16b] sm:$0x3] %v3510
    %3559 = vst [vmem:[%s3446 + $0x1b3] sm:$0x3] %v3514
    %3560 = vst [vmem:[%s3446 + $0x1cb] sm:$0x3] %v3514
    %3561 = vst [vmem:[%s3446 + $0x1e3] sm:$0x3] %v3518
    %3562 = vst [vmem:[%s3446 + $0x1fb] sm:$0x3] %v3518
    %3563 = vst [vmem:[%s3446 + $0x213] sm:$0x3] %v3522
    %3564 = vst [vmem:[%s3446 + $0x22b] sm:$0x3] %v3522
    %3565 = vst [vmem:[%s3446 + $0x243] sm:$0x3] %v3526
    %3566 = vst [vmem:[%s3446 + $0x25b] sm:$0x3] %v3526
    %3567 = vst [vmem:[%s3446 + $0x273] sm:$0x3] %v3530
    %3568 = vst [vmem:[%s3446 + $0x28b] sm:$0x3] %v3530
    %3569 = vst [vmem:[%s3446 + $0x2a3] sm:$0x3] %v3534
    %3570 = vst [vmem:[%s3446 + $0x2bb] sm:$0x3] %v3534
    %3571 = vst [vmem:[%s3446 + $0x2d3] sm:$0x3] %v3538
    %3572 = vst [vmem:[%s3446 + $0x2eb] sm:$0x3] %v3538
    %3573 = vst [vmem:[%s3446 + $0x303] sm:$0x3] %v3542
    %3574 = vst [vmem:[%s3446 + $0x31b] sm:$0x3] %v3542
    %v3575 = vlaneseq
    %v3576 = vshrl.u32 %v3575, 7
    %v3577 = vsub.s32 2, %v3576
    %v3578 = vrot.slane %v3258, %v3577
    %v3579 = vlaneseq
    %v3580 = vshrl.u32 %v3579, 7
    %v3581 = vsub.s32 2, %v3580
    %v3582 = vrot.slane %v3259, %v3581
    %v3583 = vlaneseq
    %v3584 = vshrl.u32 %v3583, 7
    %v3585 = vsub.s32 2, %v3584
    %v3586 = vrot.slane %v3260, %v3585
    %v3587 = vlaneseq
    %v3588 = vshrl.u32 %v3587, 7
    %v3589 = vsub.s32 2, %v3588
    %v3590 = vrot.slane %v3261, %v3589
    %v3591 = vlaneseq
    %v3592 = vshrl.u32 %v3591, 7
    %v3593 = vsub.s32 2, %v3592
    %v3594 = vrot.slane %v3262, %v3593
    %v3595 = vlaneseq
    %v3596 = vshrl.u32 %v3595, 7
    %v3597 = vsub.s32 2, %v3596
    %v3598 = vrot.slane %v3263, %v3597
    %v3599 = vlaneseq
    %v3600 = vshrl.u32 %v3599, 7
    %v3601 = vsub.s32 2, %v3600
    %v3602 = vrot.slane %v3264, %v3601
    %v3603 = vlaneseq
    %v3604 = vshrl.u32 %v3603, 7
    %v3605 = vsub.s32 2, %v3604
    %v3606 = vrot.slane %v3265, %v3605
    %v3607 = vlaneseq
    %v3608 = vshrl.u32 %v3607, 7
    %v3609 = vsub.s32 2, %v3608
    %v3610 = vrot.slane %v3266, %v3609
    %v3611 = vlaneseq
    %v3612 = vshrl.u32 %v3611, 7
    %v3613 = vsub.s32 2, %v3612
    %v3614 = vrot.slane %v3267, %v3613
    %v3615 = vlaneseq
    %v3616 = vshrl.u32 %v3615, 7
    %v3617 = vsub.s32 2, %v3616
    %v3618 = vrot.slane %v3268, %v3617
    %v3619 = vlaneseq
    %v3620 = vshrl.u32 %v3619, 7
    %v3621 = vsub.s32 2, %v3620
    %v3622 = vrot.slane %v3269, %v3621
    %v3623 = vlaneseq
    %v3624 = vshrl.u32 %v3623, 7
    %v3625 = vsub.s32 2, %v3624
    %v3626 = vrot.slane %v3270, %v3625
    %v3627 = vlaneseq
    %v3628 = vshrl.u32 %v3627, 7
    %v3629 = vsub.s32 2, %v3628
    %v3630 = vrot.slane %v3271, %v3629
    %v3631 = vlaneseq
    %v3632 = vshrl.u32 %v3631, 7
    %v3633 = vsub.s32 2, %v3632
    %v3634 = vrot.slane %v3272, %v3633
    %v3635 = vlaneseq
    %v3636 = vshrl.u32 %v3635, 7
    %v3637 = vsub.s32 2, %v3636
    %v3638 = vrot.slane %v3273, %v3637
    %3639 = vst [vmem:[%s3446 + $0x5] sm:$0x3] %v3578
    %3640 = vst [vmem:[%s3446 + $0x1d] sm:$0x3] %v3578
    %3641 = vst [vmem:[%s3446 + $0x35] sm:$0x3] %v3582
    %3642 = vst [vmem:[%s3446 + $0x4d] sm:$0x3] %v3582
    %3643 = vst [vmem:[%s3446 + $0x65] sm:$0x3] %v3586
    %3644 = vst [vmem:[%s3446 + $0x7d] sm:$0x3] %v3586
    %3645 = vst [vmem:[%s3446 + $0x95] sm:$0x3] %v3590
    %3646 = vst [vmem:[%s3446 + $0xad] sm:$0x3] %v3590
    %3647 = vst [vmem:[%s3446 + $0xc5] sm:$0x3] %v3594
    %3648 = vst [vmem:[%s3446 + $0xdd] sm:$0x3] %v3594
    %3649 = vst [vmem:[%s3446 + $0xf5] sm:$0x3] %v3598
    %3650 = vst [vmem:[%s3446 + $0x10d] sm:$0x3] %v3598
    %3651 = vst [vmem:[%s3446 + $0x125] sm:$0x3] %v3602
    %3652 = vst [vmem:[%s3446 + $0x13d] sm:$0x3] %v3602
    %3653 = vst [vmem:[%s3446 + $0x155] sm:$0x3] %v3606
    %3654 = vst [vmem:[%s3446 + $0x16d] sm:$0x3] %v3606
    %3655 = vst [vmem:[%s3446 + $0x1b5] sm:$0x3] %v3610
    %3656 = vst [vmem:[%s3446 + $0x1cd] sm:$0x3] %v3610
    %3657 = vst [vmem:[%s3446 + $0x1e5] sm:$0x3] %v3614
    %3658 = vst [vmem:[%s3446 + $0x1fd] sm:$0x3] %v3614
    %3659 = vst [vmem:[%s3446 + $0x215] sm:$0x3] %v3618
    %3660 = vst [vmem:[%s3446 + $0x22d] sm:$0x3] %v3618
    %3661 = vst [vmem:[%s3446 + $0x245] sm:$0x3] %v3622
    %3662 = vst [vmem:[%s3446 + $0x25d] sm:$0x3] %v3622
    %3663 = vst [vmem:[%s3446 + $0x275] sm:$0x3] %v3626
    %3664 = vst [vmem:[%s3446 + $0x28d] sm:$0x3] %v3626
    %3665 = vst [vmem:[%s3446 + $0x2a5] sm:$0x3] %v3630
    %3666 = vst [vmem:[%s3446 + $0x2bd] sm:$0x3] %v3630
    %3667 = vst [vmem:[%s3446 + $0x2d5] sm:$0x3] %v3634
    %3668 = vst [vmem:[%s3446 + $0x2ed] sm:$0x3] %v3634
    %3669 = vst [vmem:[%s3446 + $0x305] sm:$0x3] %v3638
    %3670 = vst [vmem:[%s3446 + $0x31d] sm:$0x3] %v3638
    %v3671 = vlaneseq
    %v3672 = vshrl.u32 %v3671, 7
    %v3673 = vsub.s32 3, %v3672
    %v3674 = vrot.slane %v3258, %v3673
    %v3675 = vlaneseq
    %v3676 = vshrl.u32 %v3675, 7
    %v3677 = vsub.s32 3, %v3676
    %v3678 = vrot.slane %v3259, %v3677
    %v3679 = vlaneseq
    %v3680 = vshrl.u32 %v3679, 7
    %v3681 = vsub.s32 3, %v3680
    %v3682 = vrot.slane %v3260, %v3681
    %v3683 = vlaneseq
    %v3684 = vshrl.u32 %v3683, 7
    %v3685 = vsub.s32 3, %v3684
    %v3686 = vrot.slane %v3261, %v3685
    %v3687 = vlaneseq
    %v3688 = vshrl.u32 %v3687, 7
    %v3689 = vsub.s32 3, %v3688
    %v3690 = vrot.slane %v3262, %v3689
    %v3691 = vlaneseq
    %v3692 = vshrl.u32 %v3691, 7
    %v3693 = vsub.s32 3, %v3692
    %v3694 = vrot.slane %v3263, %v3693
    %v3695 = vlaneseq
    %v3696 = vshrl.u32 %v3695, 7
    %v3697 = vsub.s32 3, %v3696
    %v3698 = vrot.slane %v3264, %v3697
    %v3699 = vlaneseq
    %v3700 = vshrl.u32 %v3699, 7
    %v3701 = vsub.s32 3, %v3700
    %v3702 = vrot.slane %v3265, %v3701
    %v3703 = vlaneseq
    %v3704 = vshrl.u32 %v3703, 7
    %v3705 = vsub.s32 3, %v3704
    %v3706 = vrot.slane %v3266, %v3705
    %v3707 = vlaneseq
    %v3708 = vshrl.u32 %v3707, 7
    %v3709 = vsub.s32 3, %v3708
    %v3710 = vrot.slane %v3267, %v3709
    %v3711 = vlaneseq
    %v3712 = vshrl.u32 %v3711, 7
    %v3713 = vsub.s32 3, %v3712
    %v3714 = vrot.slane %v3268, %v3713
    %v3715 = vlaneseq
    %v3716 = vshrl.u32 %v3715, 7
    %v3717 = vsub.s32 3, %v3716
    %v3718 = vrot.slane %v3269, %v3717
    %v3719 = vlaneseq
    %v3720 = vshrl.u32 %v3719, 7
    %v3721 = vsub.s32 3, %v3720
    %v3722 = vrot.slane %v3270, %v3721
    %v3723 = vlaneseq
    %v3724 = vshrl.u32 %v3723, 7
    %v3725 = vsub.s32 3, %v3724
    %v3726 = vrot.slane %v3271, %v3725
    %v3727 = vlaneseq
    %v3728 = vshrl.u32 %v3727, 7
    %v3729 = vsub.s32 3, %v3728
    %v3730 = vrot.slane %v3272, %v3729
    %v3731 = vlaneseq
    %v3732 = vshrl.u32 %v3731, 7
    %v3733 = vsub.s32 3, %v3732
    %v3734 = vrot.slane %v3273, %v3733
    %3735 = vst [vmem:[%s3446 + $0x7] sm:$0x3] %v3674
    %3736 = vst [vmem:[%s3446 + $0x1f] sm:$0x3] %v3674
    %3737 = vst [vmem:[%s3446 + $0x37] sm:$0x3] %v3678
    %3738 = vst [vmem:[%s3446 + $0x4f] sm:$0x3] %v3678
    %3739 = vst [vmem:[%s3446 + $0x67] sm:$0x3] %v3682
    %3740 = vst [vmem:[%s3446 + $0x7f] sm:$0x3] %v3682
    %3741 = vst [vmem:[%s3446 + $0x97] sm:$0x3] %v3686
    %3742 = vst [vmem:[%s3446 + $0xaf] sm:$0x3] %v3686
    %3743 = vst [vmem:[%s3446 + $0xc7] sm:$0x3] %v3690
    %3744 = vst [vmem:[%s3446 + $0xdf] sm:$0x3] %v3690
    %3745 = vst [vmem:[%s3446 + $0xf7] sm:$0x3] %v3694
    %3746 = vst [vmem:[%s3446 + $0x10f] sm:$0x3] %v3694
    %3747 = vst [vmem:[%s3446 + $0x127] sm:$0x3] %v3698
    %3748 = vst [vmem:[%s3446 + $0x13f] sm:$0x3] %v3698
    %3749 = vst [vmem:[%s3446 + $0x157] sm:$0x3] %v3702
    %3750 = vst [vmem:[%s3446 + $0x16f] sm:$0x3] %v3702
    %3751 = vst [vmem:[%s3446 + $0x1b7] sm:$0x3] %v3706
    %3752 = vst [vmem:[%s3446 + $0x1cf] sm:$0x3] %v3706
    %3753 = vst [vmem:[%s3446 + $0x1e7] sm:$0x3] %v3710
    %3754 = vst [vmem:[%s3446 + $0x1ff] sm:$0x3] %v3710
    %3755 = vst [vmem:[%s3446 + $0x217] sm:$0x3] %v3714
    %3756 = vst [vmem:[%s3446 + $0x22f] sm:$0x3] %v3714
    %3757 = vst [vmem:[%s3446 + $0x247] sm:$0x3] %v3718
    %3758 = vst [vmem:[%s3446 + $0x25f] sm:$0x3] %v3718
    %3759 = vst [vmem:[%s3446 + $0x277] sm:$0x3] %v3722
    %3760 = vst [vmem:[%s3446 + $0x28f] sm:$0x3] %v3722
    %3761 = vst [vmem:[%s3446 + $0x2a7] sm:$0x3] %v3726
    %3762 = vst [vmem:[%s3446 + $0x2bf] sm:$0x3] %v3726
    %3763 = vst [vmem:[%s3446 + $0x2d7] sm:$0x3] %v3730
    %3764 = vst [vmem:[%s3446 + $0x2ef] sm:$0x3] %v3730
    %3765 = vst [vmem:[%s3446 + $0x307] sm:$0x3] %v3734
    %3766 = vst [vmem:[%s3446 + $0x31f] sm:$0x3] %v3734
    %v3767 = vlaneseq
    %v3768 = vshrl.u32 %v3767, 7
    %v3769 = vsub.s32 4, %v3768
    %v3770 = vrot.slane %v3258, %v3769
    %v3771 = vlaneseq
    %v3772 = vshrl.u32 %v3771, 7
    %v3773 = vsub.s32 4, %v3772
    %v3774 = vrot.slane %v3259, %v3773
    %v3775 = vlaneseq
    %v3776 = vshrl.u32 %v3775, 7
    %v3777 = vsub.s32 4, %v3776
    %v3778 = vrot.slane %v3260, %v3777
    %v3779 = vlaneseq
    %v3780 = vshrl.u32 %v3779, 7
    %v3781 = vsub.s32 4, %v3780
    %v3782 = vrot.slane %v3261, %v3781
    %v3783 = vlaneseq
    %v3784 = vshrl.u32 %v3783, 7
    %v3785 = vsub.s32 4, %v3784
    %v3786 = vrot.slane %v3262, %v3785
    %v3787 = vlaneseq
    %v3788 = vshrl.u32 %v3787, 7
    %v3789 = vsub.s32 4, %v3788
    %v3790 = vrot.slane %v3263, %v3789
    %v3791 = vlaneseq
    %v3792 = vshrl.u32 %v3791, 7
    %v3793 = vsub.s32 4, %v3792
    %v3794 = vrot.slane %v3264, %v3793
    %v3795 = vlaneseq
    %v3796 = vshrl.u32 %v3795, 7
    %v3797 = vsub.s32 4, %v3796
    %v3798 = vrot.slane %v3265, %v3797
    %v3799 = vlaneseq
    %v3800 = vshrl.u32 %v3799, 7
    %v3801 = vsub.s32 4, %v3800
    %v3802 = vrot.slane %v3266, %v3801
    %v3803 = vlaneseq
    %v3804 = vshrl.u32 %v3803, 7
    %v3805 = vsub.s32 4, %v3804
    %v3806 = vrot.slane %v3267, %v3805
    %v3807 = vlaneseq
    %v3808 = vshrl.u32 %v3807, 7
    %v3809 = vsub.s32 4, %v3808
    %v3810 = vrot.slane %v3268, %v3809
    %v3811 = vlaneseq
    %v3812 = vshrl.u32 %v3811, 7
    %v3813 = vsub.s32 4, %v3812
    %v3814 = vrot.slane %v3269, %v3813
    %v3815 = vlaneseq
    %v3816 = vshrl.u32 %v3815, 7
    %v3817 = vsub.s32 4, %v3816
    %v3818 = vrot.slane %v3270, %v3817
    %v3819 = vlaneseq
    %v3820 = vshrl.u32 %v3819, 7
    %v3821 = vsub.s32 4, %v3820
    %v3822 = vrot.slane %v3271, %v3821
    %v3823 = vlaneseq
    %v3824 = vshrl.u32 %v3823, 7
    %v3825 = vsub.s32 4, %v3824
    %v3826 = vrot.slane %v3272, %v3825
    %v3827 = vlaneseq
    %v3828 = vshrl.u32 %v3827, 7
    %v3829 = vsub.s32 4, %v3828
    %v3830 = vrot.slane %v3273, %v3829
    %3831 = vst [vmem:[%s3446 + $0x9] sm:$0x3] %v3770
    %3832 = vst [vmem:[%s3446 + $0x21] sm:$0x3] %v3770
    %3833 = vst [vmem:[%s3446 + $0x39] sm:$0x3] %v3774
    %3834 = vst [vmem:[%s3446 + $0x51] sm:$0x3] %v3774
    %3835 = vst [vmem:[%s3446 + $0x69] sm:$0x3] %v3778
    %3836 = vst [vmem:[%s3446 + $0x81] sm:$0x3] %v3778
    %3837 = vst [vmem:[%s3446 + $0x99] sm:$0x3] %v3782
    %3838 = vst [vmem:[%s3446 + $0xb1] sm:$0x3] %v3782
    %3839 = vst [vmem:[%s3446 + $0xc9] sm:$0x3] %v3786
    %3840 = vst [vmem:[%s3446 + $0xe1] sm:$0x3] %v3786
    %3841 = vst [vmem:[%s3446 + $0xf9] sm:$0x3] %v3790
    %3842 = vst [vmem:[%s3446 + $0x111] sm:$0x3] %v3790
    %3843 = vst [vmem:[%s3446 + $0x129] sm:$0x3] %v3794
    %3844 = vst [vmem:[%s3446 + $0x141] sm:$0x3] %v3794
    %3845 = vst [vmem:[%s3446 + $0x159] sm:$0x3] %v3798
    %3846 = vst [vmem:[%s3446 + $0x171] sm:$0x3] %v3798
    %3847 = vst [vmem:[%s3446 + $0x1b9] sm:$0x3] %v3802
    %3848 = vst [vmem:[%s3446 + $0x1d1] sm:$0x3] %v3802
    %3849 = vst [vmem:[%s3446 + $0x1e9] sm:$0x3] %v3806
    %3850 = vst [vmem:[%s3446 + $0x201] sm:$0x3] %v3806
    %3851 = vst [vmem:[%s3446 + $0x219] sm:$0x3] %v3810
    %3852 = vst [vmem:[%s3446 + $0x231] sm:$0x3] %v3810
    %3853 = vst [vmem:[%s3446 + $0x249] sm:$0x3] %v3814
    %3854 = vst [vmem:[%s3446 + $0x261] sm:$0x3] %v3814
    %3855 = vst [vmem:[%s3446 + $0x279] sm:$0x3] %v3818
    %3856 = vst [vmem:[%s3446 + $0x291] sm:$0x3] %v3818
    %3857 = vst [vmem:[%s3446 + $0x2a9] sm:$0x3] %v3822
    %3858 = vst [vmem:[%s3446 + $0x2c1] sm:$0x3] %v3822
    %3859 = vst [vmem:[%s3446 + $0x2d9] sm:$0x3] %v3826
    %3860 = vst [vmem:[%s3446 + $0x2f1] sm:$0x3] %v3826
    %3861 = vst [vmem:[%s3446 + $0x309] sm:$0x3] %v3830
    %3862 = vst [vmem:[%s3446 + $0x321] sm:$0x3] %v3830
    %v3863 = vlaneseq
    %v3864 = vshrl.u32 %v3863, 7
    %v3865 = vsub.s32 5, %v3864
    %v3866 = vrot.slane %v3258, %v3865
    %v3867 = vlaneseq
    %v3868 = vshrl.u32 %v3867, 7
    %v3869 = vsub.s32 5, %v3868
    %v3870 = vrot.slane %v3259, %v3869
    %v3871 = vlaneseq
    %v3872 = vshrl.u32 %v3871, 7
    %v3873 = vsub.s32 5, %v3872
    %v3874 = vrot.slane %v3260, %v3873
    %v3875 = vlaneseq
    %v3876 = vshrl.u32 %v3875, 7
    %v3877 = vsub.s32 5, %v3876
    %v3878 = vrot.slane %v3261, %v3877
    %v3879 = vlaneseq
    %v3880 = vshrl.u32 %v3879, 7
    %v3881 = vsub.s32 5, %v3880
    %v3882 = vrot.slane %v3262, %v3881
    %v3883 = vlaneseq
    %v3884 = vshrl.u32 %v3883, 7
    %v3885 = vsub.s32 5, %v3884
    %v3886 = vrot.slane %v3263, %v3885
    %v3887 = vlaneseq
    %v3888 = vshrl.u32 %v3887, 7
    %v3889 = vsub.s32 5, %v3888
    %v3890 = vrot.slane %v3264, %v3889
    %v3891 = vlaneseq
    %v3892 = vshrl.u32 %v3891, 7
    %v3893 = vsub.s32 5, %v3892
    %v3894 = vrot.slane %v3265, %v3893
    %v3895 = vlaneseq
    %v3896 = vshrl.u32 %v3895, 7
    %v3897 = vsub.s32 5, %v3896
    %v3898 = vrot.slane %v3266, %v3897
    %v3899 = vlaneseq
    %v3900 = vshrl.u32 %v3899, 7
    %v3901 = vsub.s32 5, %v3900
    %v3902 = vrot.slane %v3267, %v3901
    %v3903 = vlaneseq
    %v3904 = vshrl.u32 %v3903, 7
    %v3905 = vsub.s32 5, %v3904
    %v3906 = vrot.slane %v3268, %v3905
    %v3907 = vlaneseq
    %v3908 = vshrl.u32 %v3907, 7
    %v3909 = vsub.s32 5, %v3908
    %v3910 = vrot.slane %v3269, %v3909
    %v3911 = vlaneseq
    %v3912 = vshrl.u32 %v3911, 7
    %v3913 = vsub.s32 5, %v3912
    %v3914 = vrot.slane %v3270, %v3913
    %v3915 = vlaneseq
    %v3916 = vshrl.u32 %v3915, 7
    %v3917 = vsub.s32 5, %v3916
    %v3918 = vrot.slane %v3271, %v3917
    %v3919 = vlaneseq
    %v3920 = vshrl.u32 %v3919, 7
    %v3921 = vsub.s32 5, %v3920
    %v3922 = vrot.slane %v3272, %v3921
    %v3923 = vlaneseq
    %v3924 = vshrl.u32 %v3923, 7
    %v3925 = vsub.s32 5, %v3924
    %v3926 = vrot.slane %v3273, %v3925
    %3927 = vst [vmem:[%s3446 + $0xb] sm:$0x3] %v3866
    %3928 = vst [vmem:[%s3446 + $0x23] sm:$0x3] %v3866
    %3929 = vst [vmem:[%s3446 + $0x3b] sm:$0x3] %v3870
    %3930 = vst [vmem:[%s3446 + $0x53] sm:$0x3] %v3870
    %3931 = vst [vmem:[%s3446 + $0x6b] sm:$0x3] %v3874
    %3932 = vst [vmem:[%s3446 + $0x83] sm:$0x3] %v3874
    %3933 = vst [vmem:[%s3446 + $0x9b] sm:$0x3] %v3878
    %3934 = vst [vmem:[%s3446 + $0xb3] sm:$0x3] %v3878
    %3935 = vst [vmem:[%s3446 + $0xcb] sm:$0x3] %v3882
    %3936 = vst [vmem:[%s3446 + $0xe3] sm:$0x3] %v3882
    %3937 = vst [vmem:[%s3446 + $0xfb] sm:$0x3] %v3886
    %3938 = vst [vmem:[%s3446 + $0x113] sm:$0x3] %v3886
    %3939 = vst [vmem:[%s3446 + $0x12b] sm:$0x3] %v3890
    %3940 = vst [vmem:[%s3446 + $0x143] sm:$0x3] %v3890
    %3941 = vst [vmem:[%s3446 + $0x15b] sm:$0x3] %v3894
    %3942 = vst [vmem:[%s3446 + $0x173] sm:$0x3] %v3894
    %3943 = vst [vmem:[%s3446 + $0x1bb] sm:$0x3] %v3898
    %3944 = vst [vmem:[%s3446 + $0x1d3] sm:$0x3] %v3898
    %3945 = vst [vmem:[%s3446 + $0x1eb] sm:$0x3] %v3902
    %3946 = vst [vmem:[%s3446 + $0x203] sm:$0x3] %v3902
    %3947 = vst [vmem:[%s3446 + $0x21b] sm:$0x3] %v3906
    %3948 = vst [vmem:[%s3446 + $0x233] sm:$0x3] %v3906
    %3949 = vst [vmem:[%s3446 + $0x24b] sm:$0x3] %v3910
    %3950 = vst [vmem:[%s3446 + $0x263] sm:$0x3] %v3910
    %3951 = vst [vmem:[%s3446 + $0x27b] sm:$0x3] %v3914
    %3952 = vst [vmem:[%s3446 + $0x293] sm:$0x3] %v3914
    %3953 = vst [vmem:[%s3446 + $0x2ab] sm:$0x3] %v3918
    %3954 = vst [vmem:[%s3446 + $0x2c3] sm:$0x3] %v3918
    %3955 = vst [vmem:[%s3446 + $0x2db] sm:$0x3] %v3922
    %3956 = vst [vmem:[%s3446 + $0x2f3] sm:$0x3] %v3922
    %3957 = vst [vmem:[%s3446 + $0x30b] sm:$0x3] %v3926
    %3958 = vst [vmem:[%s3446 + $0x323] sm:$0x3] %v3926
    %v3959 = vlaneseq
    %v3960 = vshrl.u32 %v3959, 7
    %v3961 = vsub.s32 6, %v3960
    %v3962 = vrot.slane %v3258, %v3961
    %v3963 = vlaneseq
    %v3964 = vshrl.u32 %v3963, 7
    %v3965 = vsub.s32 6, %v3964
    %v3966 = vrot.slane %v3259, %v3965
    %v3967 = vlaneseq
    %v3968 = vshrl.u32 %v3967, 7
    %v3969 = vsub.s32 6, %v3968
    %v3970 = vrot.slane %v3260, %v3969
    %v3971 = vlaneseq
    %v3972 = vshrl.u32 %v3971, 7
    %v3973 = vsub.s32 6, %v3972
    %v3974 = vrot.slane %v3261, %v3973
    %v3975 = vlaneseq
    %v3976 = vshrl.u32 %v3975, 7
    %v3977 = vsub.s32 6, %v3976
    %v3978 = vrot.slane %v3262, %v3977
    %v3979 = vlaneseq
    %v3980 = vshrl.u32 %v3979, 7
    %v3981 = vsub.s32 6, %v3980
    %v3982 = vrot.slane %v3263, %v3981
    %v3983 = vlaneseq
    %v3984 = vshrl.u32 %v3983, 7
    %v3985 = vsub.s32 6, %v3984
    %v3986 = vrot.slane %v3264, %v3985
    %v3987 = vlaneseq
    %v3988 = vshrl.u32 %v3987, 7
    %v3989 = vsub.s32 6, %v3988
    %v3990 = vrot.slane %v3265, %v3989
    %v3991 = vlaneseq
    %v3992 = vshrl.u32 %v3991, 7
    %v3993 = vsub.s32 6, %v3992
    %v3994 = vrot.slane %v3266, %v3993
    %v3995 = vlaneseq
    %v3996 = vshrl.u32 %v3995, 7
    %v3997 = vsub.s32 6, %v3996
    %v3998 = vrot.slane %v3267, %v3997
    %v3999 = vlaneseq
    %v4000 = vshrl.u32 %v3999, 7
    %v4001 = vsub.s32 6, %v4000
    %v4002 = vrot.slane %v3268, %v4001
    %v4003 = vlaneseq
    %v4004 = vshrl.u32 %v4003, 7
    %v4005 = vsub.s32 6, %v4004
    %v4006 = vrot.slane %v3269, %v4005
    %v4007 = vlaneseq
    %v4008 = vshrl.u32 %v4007, 7
    %v4009 = vsub.s32 6, %v4008
    %v4010 = vrot.slane %v3270, %v4009
    %v4011 = vlaneseq
    %v4012 = vshrl.u32 %v4011, 7
    %v4013 = vsub.s32 6, %v4012
    %v4014 = vrot.slane %v3271, %v4013
    %v4015 = vlaneseq
    %v4016 = vshrl.u32 %v4015, 7
    %v4017 = vsub.s32 6, %v4016
    %v4018 = vrot.slane %v3272, %v4017
    %v4019 = vlaneseq
    %v4020 = vshrl.u32 %v4019, 7
    %v4021 = vsub.s32 6, %v4020
    %v4022 = vrot.slane %v3273, %v4021
    %4023 = vst [vmem:[%s3446 + $0xd] sm:$0x3] %v3962
    %4024 = vst [vmem:[%s3446 + $0x25] sm:$0x3] %v3962
    %4025 = vst [vmem:[%s3446 + $0x3d] sm:$0x3] %v3966
    %4026 = vst [vmem:[%s3446 + $0x55] sm:$0x3] %v3966
    %4027 = vst [vmem:[%s3446 + $0x6d] sm:$0x3] %v3970
    %4028 = vst [vmem:[%s3446 + $0x85] sm:$0x3] %v3970
    %4029 = vst [vmem:[%s3446 + $0x9d] sm:$0x3] %v3974
    %4030 = vst [vmem:[%s3446 + $0xb5] sm:$0x3] %v3974
    %4031 = vst [vmem:[%s3446 + $0xcd] sm:$0x3] %v3978
    %4032 = vst [vmem:[%s3446 + $0xe5] sm:$0x3] %v3978
    %4033 = vst [vmem:[%s3446 + $0xfd] sm:$0x3] %v3982
    %4034 = vst [vmem:[%s3446 + $0x115] sm:$0x3] %v3982
    %4035 = vst [vmem:[%s3446 + $0x12d] sm:$0x3] %v3986
    %4036 = vst [vmem:[%s3446 + $0x145] sm:$0x3] %v3986
    %4037 = vst [vmem:[%s3446 + $0x15d] sm:$0x3] %v3990
    %4038 = vst [vmem:[%s3446 + $0x175] sm:$0x3] %v3990
    %4039 = vst [vmem:[%s3446 + $0x1bd] sm:$0x3] %v3994
    %4040 = vst [vmem:[%s3446 + $0x1d5] sm:$0x3] %v3994
    %4041 = vst [vmem:[%s3446 + $0x1ed] sm:$0x3] %v3998
    %4042 = vst [vmem:[%s3446 + $0x205] sm:$0x3] %v3998
    %4043 = vst [vmem:[%s3446 + $0x21d] sm:$0x3] %v4002
    %4044 = vst [vmem:[%s3446 + $0x235] sm:$0x3] %v4002
    %4045 = vst [vmem:[%s3446 + $0x24d] sm:$0x3] %v4006
    %4046 = vst [vmem:[%s3446 + $0x265] sm:$0x3] %v4006
    %4047 = vst [vmem:[%s3446 + $0x27d] sm:$0x3] %v4010
    %4048 = vst [vmem:[%s3446 + $0x295] sm:$0x3] %v4010
    %4049 = vst [vmem:[%s3446 + $0x2ad] sm:$0x3] %v4014
    %4050 = vst [vmem:[%s3446 + $0x2c5] sm:$0x3] %v4014
    %4051 = vst [vmem:[%s3446 + $0x2dd] sm:$0x3] %v4018
    %4052 = vst [vmem:[%s3446 + $0x2f5] sm:$0x3] %v4018
    %4053 = vst [vmem:[%s3446 + $0x30d] sm:$0x3] %v4022
    %4054 = vst [vmem:[%s3446 + $0x325] sm:$0x3] %v4022
    %v4055 = vlaneseq
    %v4056 = vshrl.u32 %v4055, 7
    %v4057 = vsub.s32 7, %v4056
    %v4058 = vrot.slane %v3258, %v4057
    %v4059 = vlaneseq
    %v4060 = vshrl.u32 %v4059, 7
    %v4061 = vsub.s32 7, %v4060
    %v4062 = vrot.slane %v3259, %v4061
    %v4063 = vlaneseq
    %v4064 = vshrl.u32 %v4063, 7
    %v4065 = vsub.s32 7, %v4064
    %v4066 = vrot.slane %v3260, %v4065
    %v4067 = vlaneseq
    %v4068 = vshrl.u32 %v4067, 7
    %v4069 = vsub.s32 7, %v4068
    %v4070 = vrot.slane %v3261, %v4069
    %v4071 = vlaneseq
    %v4072 = vshrl.u32 %v4071, 7
    %v4073 = vsub.s32 7, %v4072
    %v4074 = vrot.slane %v3262, %v4073
    %v4075 = vlaneseq
    %v4076 = vshrl.u32 %v4075, 7
    %v4077 = vsub.s32 7, %v4076
    %v4078 = vrot.slane %v3263, %v4077
    %v4079 = vlaneseq
    %v4080 = vshrl.u32 %v4079, 7
    %v4081 = vsub.s32 7, %v4080
    %v4082 = vrot.slane %v3264, %v4081
    %v4083 = vlaneseq
    %v4084 = vshrl.u32 %v4083, 7
    %v4085 = vsub.s32 7, %v4084
    %v4086 = vrot.slane %v3265, %v4085
    %v4087 = vlaneseq
    %v4088 = vshrl.u32 %v4087, 7
    %v4089 = vsub.s32 7, %v4088
    %v4090 = vrot.slane %v3266, %v4089
    %v4091 = vlaneseq
    %v4092 = vshrl.u32 %v4091, 7
    %v4093 = vsub.s32 7, %v4092
    %v4094 = vrot.slane %v3267, %v4093
    %v4095 = vlaneseq
    %v4096 = vshrl.u32 %v4095, 7
    %v4097 = vsub.s32 7, %v4096
    %v4098 = vrot.slane %v3268, %v4097
    %v4099 = vlaneseq
    %v4100 = vshrl.u32 %v4099, 7
    %v4101 = vsub.s32 7, %v4100
    %v4102 = vrot.slane %v3269, %v4101
    %v4103 = vlaneseq
    %v4104 = vshrl.u32 %v4103, 7
    %v4105 = vsub.s32 7, %v4104
    %v4106 = vrot.slane %v3270, %v4105
    %v4107 = vlaneseq
    %v4108 = vshrl.u32 %v4107, 7
    %v4109 = vsub.s32 7, %v4108
    %v4110 = vrot.slane %v3271, %v4109
    %v4111 = vlaneseq
    %v4112 = vshrl.u32 %v4111, 7
    %v4113 = vsub.s32 7, %v4112
    %v4114 = vrot.slane %v3272, %v4113
    %v4115 = vlaneseq
    %v4116 = vshrl.u32 %v4115, 7
    %v4117 = vsub.s32 7, %v4116
    %v4118 = vrot.slane %v3273, %v4117
    %4119 = vst [vmem:[%s3446 + $0xf] sm:$0x3] %v4058
    %4120 = vst [vmem:[%s3446 + $0x27] sm:$0x3] %v4058
    %4121 = vst [vmem:[%s3446 + $0x3f] sm:$0x3] %v4062
    %4122 = vst [vmem:[%s3446 + $0x57] sm:$0x3] %v4062
    %4123 = vst [vmem:[%s3446 + $0x6f] sm:$0x3] %v4066
    %4124 = vst [vmem:[%s3446 + $0x87] sm:$0x3] %v4066
    %4125 = vst [vmem:[%s3446 + $0x9f] sm:$0x3] %v4070
    %4126 = vst [vmem:[%s3446 + $0xb7] sm:$0x3] %v4070
    %4127 = vst [vmem:[%s3446 + $0xcf] sm:$0x3] %v4074
    %4128 = vst [vmem:[%s3446 + $0xe7] sm:$0x3] %v4074
    %4129 = vst [vmem:[%s3446 + $0xff] sm:$0x3] %v4078
    %4130 = vst [vmem:[%s3446 + $0x117] sm:$0x3] %v4078
    %4131 = vst [vmem:[%s3446 + $0x12f] sm:$0x3] %v4082
    %4132 = vst [vmem:[%s3446 + $0x147] sm:$0x3] %v4082
    %4133 = vst [vmem:[%s3446 + $0x15f] sm:$0x3] %v4086
    %4134 = vst [vmem:[%s3446 + $0x177] sm:$0x3] %v4086
    %4135 = vst [vmem:[%s3446 + $0x1bf] sm:$0x3] %v4090
    %4136 = vst [vmem:[%s3446 + $0x1d7] sm:$0x3] %v4090
    %4137 = vst [vmem:[%s3446 + $0x1ef] sm:$0x3] %v4094
    %4138 = vst [vmem:[%s3446 + $0x207] sm:$0x3] %v4094
    %4139 = vst [vmem:[%s3446 + $0x21f] sm:$0x3] %v4098
    %4140 = vst [vmem:[%s3446 + $0x237] sm:$0x3] %v4098
    %4141 = vst [vmem:[%s3446 + $0x24f] sm:$0x3] %v4102
    %4142 = vst [vmem:[%s3446 + $0x267] sm:$0x3] %v4102
    %4143 = vst [vmem:[%s3446 + $0x27f] sm:$0x3] %v4106
    %4144 = vst [vmem:[%s3446 + $0x297] sm:$0x3] %v4106
    %4145 = vst [vmem:[%s3446 + $0x2af] sm:$0x3] %v4110
    %4146 = vst [vmem:[%s3446 + $0x2c7] sm:$0x3] %v4110
    %4147 = vst [vmem:[%s3446 + $0x2df] sm:$0x3] %v4114
    %4148 = vst [vmem:[%s3446 + $0x2f7] sm:$0x3] %v4114
    %4149 = vst [vmem:[%s3446 + $0x30f] sm:$0x3] %v4118
    %4150 = vst [vmem:[%s3446 + $0x327] sm:$0x3] %v4118
    %v4151 = vld [vmem:[#allocation3] sm:$0xff]
    %v4152 = vld [vmem:[#allocation3 + $0x8] sm:$0xff]
    %v4153 = vld [vmem:[#allocation3 + $0x10] sm:$0x3]
    %v4154 = vld [vmem:[#allocation3 + $0x18] sm:$0xff]
    %v4155 = vld [vmem:[#allocation3 + $0x20] sm:$0xff]
    %v4156 = vld [vmem:[#allocation3 + $0x28] sm:$0x3]
    %v4157 = vld [vmem:[#allocation3 + $0x30] sm:$0xff]
    %v4158 = vld [vmem:[#allocation3 + $0x38] sm:$0xff]
    %v4159 = vld [vmem:[#allocation3 + $0x40] sm:$0x3]
    %v4160 = vld [vmem:[#allocation3 + $0x48] sm:$0xff]
    %v4161 = vld [vmem:[#allocation3 + $0x50] sm:$0xff]
    %v4162 = vld [vmem:[#allocation3 + $0x58] sm:$0x3]
    %v4163 = vld [vmem:[#allocation3 + $0x60] sm:$0xff]
    %v4164 = vld [vmem:[#allocation3 + $0x68] sm:$0xff]
    %v4165 = vld [vmem:[#allocation3 + $0x70] sm:$0x3]
    %v4166 = vld [vmem:[#allocation3 + $0x78] sm:$0xff]
    %v4167 = vld [vmem:[#allocation3 + $0x80] sm:$0xff]
    %v4168 = vld [vmem:[#allocation3 + $0x88] sm:$0x3]
    %v4169 = vld [vmem:[#allocation3 + $0x90] sm:$0xff]
    %v4170 = vld [vmem:[#allocation3 + $0x98] sm:$0xff]
    %v4171 = vld [vmem:[#allocation3 + $0xa0] sm:$0x3]
    %v4172 = vld [vmem:[#allocation3 + $0xa8] sm:$0xff]
    %v4173 = vld [vmem:[#allocation3 + $0xb0] sm:$0xff]
    %v4174 = vld [vmem:[#allocation3 + $0xb8] sm:$0x3]
    %v4175 = vld [vmem:[#allocation3 + $0xc0] sm:$0xff]
    %v4176 = vld [vmem:[#allocation3 + $0xc8] sm:$0xff]
    %v4177 = vld [vmem:[#allocation3 + $0xd0] sm:$0x3]
    %v4178 = vld [vmem:[#allocation3 + $0xd8] sm:$0xff]
    %v4179 = vld [vmem:[#allocation3 + $0xe0] sm:$0xff]
    %v4180 = vld [vmem:[#allocation3 + $0xe8] sm:$0x3]
    %v4181 = vld [vmem:[#allocation3 + $0xf0] sm:$0xff]
    %v4182 = vld [vmem:[#allocation3 + $0xf8] sm:$0xff]
    %v4183 = vld [vmem:[#allocation3 + $0x100] sm:$0x3]
    %v4184 = vld [vmem:[#allocation3 + $0x108] sm:$0xff]
    %v4185 = vld [vmem:[#allocation3 + $0x110] sm:$0xff]
    %v4186 = vld [vmem:[#allocation3 + $0x118] sm:$0x3]
    %v4187 = vld [vmem:[#allocation3 + $0x120] sm:$0xff]
    %v4188 = vld [vmem:[#allocation3 + $0x128] sm:$0xff]
    %v4189 = vld [vmem:[#allocation3 + $0x130] sm:$0x3]
    %v4190 = vld [vmem:[#allocation3 + $0x138] sm:$0xff]
    %v4191 = vld [vmem:[#allocation3 + $0x140] sm:$0xff]
    %v4192 = vld [vmem:[#allocation3 + $0x148] sm:$0x3]
    %v4193 = vld [vmem:[#allocation3 + $0x150] sm:$0xff]
    %v4194 = vld [vmem:[#allocation3 + $0x158] sm:$0xff]
    %v4195 = vld [vmem:[#allocation3 + $0x160] sm:$0x3]
    %v4196 = vld [vmem:[#allocation3 + $0x168] sm:$0xff]
    %v4197 = vld [vmem:[#allocation3 + $0x170] sm:$0xff]
    %v4198 = vld [vmem:[#allocation3 + $0x178] sm:$0x3]
    %v4199 = vld [vmem:[#allocation3 + $0x180] sm:$0xff]
    %v4200 = vld [vmem:[#allocation3 + $0x188] sm:$0xff]
    %v4201 = vld [vmem:[#allocation3 + $0x190] sm:$0x3]
    %v4202 = vld [vmem:[#allocation3 + $0x198] sm:$0xff]
    %v4203 = vld [vmem:[#allocation3 + $0x1a0] sm:$0xff]
    %v4204 = vld [vmem:[#allocation3 + $0x1a8] sm:$0x3]
    %v4205 = vld [vmem:[#allocation3 + $0x1b0] sm:$0xff]
    %v4206 = vld [vmem:[#allocation3 + $0x1b8] sm:$0xff]
    %v4207 = vld [vmem:[#allocation3 + $0x1c0] sm:$0x3]
    %v4208 = vld [vmem:[#allocation3 + $0x1c8] sm:$0xff]
    %v4209 = vld [vmem:[#allocation3 + $0x1d0] sm:$0xff]
    %v4210 = vld [vmem:[#allocation3 + $0x1d8] sm:$0x3]
    %v4211 = vld [vmem:[#allocation3 + $0x1e0] sm:$0xff]
    %v4212 = vld [vmem:[#allocation3 + $0x1e8] sm:$0xff]
    %v4213 = vld [vmem:[#allocation3 + $0x1f0] sm:$0x3]
    %v4214 = vld [vmem:[#allocation3 + $0x1f8] sm:$0xff]
    %v4215 = vld [vmem:[#allocation3 + $0x200] sm:$0xff]
    %v4216 = vld [vmem:[#allocation3 + $0x208] sm:$0x3]
    %v4217 = vld [vmem:[#allocation3 + $0x210] sm:$0xff]
    %v4218 = vld [vmem:[#allocation3 + $0x218] sm:$0xff]
    %v4219 = vld [vmem:[#allocation3 + $0x220] sm:$0x3]
    %v4220 = vld [vmem:[#allocation3 + $0x228] sm:$0xff]
    %v4221 = vld [vmem:[#allocation3 + $0x230] sm:$0xff]
    %v4222 = vld [vmem:[#allocation3 + $0x238] sm:$0x3]
    %v4223 = vld [vmem:[#allocation3 + $0x240] sm:$0xff]
    %v4224 = vld [vmem:[#allocation3 + $0x248] sm:$0xff]
    %v4225 = vld [vmem:[#allocation3 + $0x250] sm:$0x3]
    %v4226 = vld [vmem:[#allocation3 + $0x258] sm:$0xff]
    %v4227 = vld [vmem:[#allocation3 + $0x260] sm:$0xff]
    %v4228 = vld [vmem:[#allocation3 + $0x268] sm:$0x3]
    %v4229 = vld [vmem:[#allocation3 + $0x270] sm:$0xff]
    %v4230 = vld [vmem:[#allocation3 + $0x278] sm:$0xff]
    %v4231 = vld [vmem:[#allocation3 + $0x280] sm:$0x3]
    %v4232 = vld [vmem:[#allocation3 + $0x288] sm:$0xff]
    %v4233 = vld [vmem:[#allocation3 + $0x290] sm:$0xff]
    %v4234 = vld [vmem:[#allocation3 + $0x298] sm:$0x3]
    %v4235 = vld [vmem:[#allocation3 + $0x2a0] sm:$0xff]
    %v4236 = vld [vmem:[#allocation3 + $0x2a8] sm:$0xff]
    %v4237 = vld [vmem:[#allocation3 + $0x2b0] sm:$0x3]
    %v4238 = vld [vmem:[#allocation3 + $0x2b8] sm:$0xff]
    %v4239 = vld [vmem:[#allocation3 + $0x2c0] sm:$0xff]
    %v4240 = vld [vmem:[#allocation3 + $0x2c8] sm:$0x3]
    %v4241 = vld [vmem:[#allocation3 + $0x2d0] sm:$0xff]
    %v4242 = vld [vmem:[#allocation3 + $0x2d8] sm:$0xff]
    %v4243 = vld [vmem:[#allocation3 + $0x2e0] sm:$0x3]
    %v4244 = vld [vmem:[#allocation3 + $0x2e8] sm:$0xff]
    %v4245 = vld [vmem:[#allocation3 + $0x2f0] sm:$0xff]
    %v4246 = vld [vmem:[#allocation3 + $0x2f8] sm:$0x3]
    %v4247 = vld [vmem:[#allocation3 + $0x300] sm:$0xff]
    %v4248 = vld [vmem:[#allocation3 + $0x308] sm:$0xff]
    %v4249 = vld [vmem:[#allocation3 + $0x310] sm:$0x3]
    %v4250 = vld [vmem:[#allocation3 + $0x318] sm:$0xff]
    %v4251 = vld [vmem:[#allocation3 + $0x320] sm:$0xff]
    %v4252 = vld [vmem:[#allocation3 + $0x328] sm:$0x3]
    %v4253 = vld [vmem:[#allocation3 + $0x330] sm:$0xff]
    %v4254 = vld [vmem:[#allocation3 + $0x338] sm:$0xff]
    %v4255 = vld [vmem:[#allocation3 + $0x340] sm:$0x3]
    %v4256 = vld [vmem:[#allocation3 + $0x348] sm:$0xff]
    %v4257 = vld [vmem:[#allocation3 + $0x350] sm:$0xff]
    %v4258 = vld [vmem:[#allocation3 + $0x358] sm:$0x3]
    %v4367 = vrot.slane %v4151, 1
    %v4368 = vrot.slane %v4152, 1
    %v4369 = vsel %vm1846, %v4367, %v4368
    %v4370 = vrot.slane %v4153, 1
    %v4371 = vsel %vm1846, %v4368, %v4370
    %v4372 = vrot.slane %v4154, 1
    %v4373 = vrot.slane %v4155, 1
    %v4374 = vsel %vm1846, %v4372, %v4373
    %v4375 = vrot.slane %v4156, 1
    %v4376 = vsel %vm1846, %v4373, %v4375
    %v4377 = vrot.slane %v4157, 1
    %v4378 = vrot.slane %v4158, 1
    %v4379 = vsel %vm1846, %v4377, %v4378
    %v4380 = vrot.slane %v4159, 1
    %v4381 = vsel %vm1846, %v4378, %v4380
    %v4382 = vrot.slane %v4160, 1
    %v4383 = vrot.slane %v4161, 1
    %v4384 = vsel %vm1846, %v4382, %v4383
    %v4385 = vrot.slane %v4162, 1
    %v4386 = vsel %vm1846, %v4383, %v4385
    %v4387 = vrot.slane %v4163, 1
    %v4388 = vrot.slane %v4164, 1
    %v4389 = vsel %vm1846, %v4387, %v4388
    %v4390 = vrot.slane %v4165, 1
    %v4391 = vsel %vm1846, %v4388, %v4390
    %v4392 = vrot.slane %v4166, 1
    %v4393 = vrot.slane %v4167, 1
    %v4394 = vsel %vm1846, %v4392, %v4393
    %v4395 = vrot.slane %v4168, 1
    %v4396 = vsel %vm1846, %v4393, %v4395
    %v4397 = vrot.slane %v4169, 1
    %v4398 = vrot.slane %v4170, 1
    %v4399 = vsel %vm1846, %v4397, %v4398
    %v4400 = vrot.slane %v4171, 1
    %v4401 = vsel %vm1846, %v4398, %v4400
    %v4402 = vrot.slane %v4172, 1
    %v4403 = vrot.slane %v4173, 1
    %v4404 = vsel %vm1846, %v4402, %v4403
    %v4405 = vrot.slane %v4174, 1
    %v4406 = vsel %vm1846, %v4403, %v4405
    %v4407 = vrot.slane %v4175, 1
    %v4408 = vrot.slane %v4176, 1
    %v4409 = vsel %vm1846, %v4407, %v4408
    %v4410 = vrot.slane %v4177, 1
    %v4411 = vsel %vm1846, %v4408, %v4410
    %v4412 = vrot.slane %v4178, 1
    %v4413 = vrot.slane %v4179, 1
    %v4414 = vsel %vm1846, %v4412, %v4413
    %v4415 = vrot.slane %v4180, 1
    %v4416 = vsel %vm1846, %v4413, %v4415
    %v4417 = vrot.slane %v4181, 1
    %v4418 = vrot.slane %v4182, 1
    %v4419 = vsel %vm1846, %v4417, %v4418
    %v4420 = vrot.slane %v4183, 1
    %v4421 = vsel %vm1846, %v4418, %v4420
    %v4422 = vrot.slane %v4184, 1
    %v4423 = vrot.slane %v4185, 1
    %v4424 = vsel %vm1846, %v4422, %v4423
    %v4425 = vrot.slane %v4186, 1
    %v4426 = vsel %vm1846, %v4423, %v4425
    %v4427 = vrot.slane %v4187, 1
    %v4428 = vrot.slane %v4188, 1
    %v4429 = vsel %vm1846, %v4427, %v4428
    %v4430 = vrot.slane %v4189, 1
    %v4431 = vsel %vm1846, %v4428, %v4430
    %v4432 = vrot.slane %v4190, 1
    %v4433 = vrot.slane %v4191, 1
    %v4434 = vsel %vm1846, %v4432, %v4433
    %v4435 = vrot.slane %v4192, 1
    %v4436 = vsel %vm1846, %v4433, %v4435
    %v4437 = vrot.slane %v4193, 1
    %v4438 = vrot.slane %v4194, 1
    %v4439 = vsel %vm1846, %v4437, %v4438
    %v4440 = vrot.slane %v4195, 1
    %v4441 = vsel %vm1846, %v4438, %v4440
    %v4442 = vrot.slane %v4196, 1
    %v4443 = vrot.slane %v4197, 1
    %v4444 = vsel %vm1846, %v4442, %v4443
    %v4445 = vrot.slane %v4198, 1
    %v4446 = vsel %vm1846, %v4443, %v4445
    %v4447 = vrot.slane %v4199, 1
    %v4448 = vrot.slane %v4200, 1
    %v4449 = vsel %vm1846, %v4447, %v4448
    %v4450 = vrot.slane %v4201, 1
    %v4451 = vsel %vm1846, %v4448, %v4450
    %v4452 = vrot.slane %v4202, 1
    %v4453 = vrot.slane %v4203, 1
    %v4454 = vsel %vm1846, %v4452, %v4453
    %v4455 = vrot.slane %v4204, 1
    %v4456 = vsel %vm1846, %v4453, %v4455
    %v4457 = vrot.slane %v4205, 1
    %v4458 = vrot.slane %v4206, 1
    %v4459 = vsel %vm1846, %v4457, %v4458
    %v4460 = vrot.slane %v4207, 1
    %v4461 = vsel %vm1846, %v4458, %v4460
    %v4462 = vrot.slane %v4208, 1
    %v4463 = vrot.slane %v4209, 1
    %v4464 = vsel %vm1846, %v4462, %v4463
    %v4465 = vrot.slane %v4210, 1
    %v4466 = vsel %vm1846, %v4463, %v4465
    %v4467 = vrot.slane %v4211, 1
    %v4468 = vrot.slane %v4212, 1
    %v4469 = vsel %vm1846, %v4467, %v4468
    %v4470 = vrot.slane %v4213, 1
    %v4471 = vsel %vm1846, %v4468, %v4470
    %v4472 = vrot.slane %v4214, 1
    %v4473 = vrot.slane %v4215, 1
    %v4474 = vsel %vm1846, %v4472, %v4473
    %v4475 = vrot.slane %v4216, 1
    %v4476 = vsel %vm1846, %v4473, %v4475
    %v4477 = vrot.slane %v4217, 1
    %v4478 = vrot.slane %v4218, 1
    %v4479 = vsel %vm1846, %v4477, %v4478
    %v4480 = vrot.slane %v4219, 1
    %v4481 = vsel %vm1846, %v4478, %v4480
    %v4482 = vrot.slane %v4220, 1
    %v4483 = vrot.slane %v4221, 1
    %v4484 = vsel %vm1846, %v4482, %v4483
    %v4485 = vrot.slane %v4222, 1
    %v4486 = vsel %vm1846, %v4483, %v4485
    %v4487 = vrot.slane %v4223, 1
    %v4488 = vrot.slane %v4224, 1
    %v4489 = vsel %vm1846, %v4487, %v4488
    %v4490 = vrot.slane %v4225, 1
    %v4491 = vsel %vm1846, %v4488, %v4490
    %v4492 = vrot.slane %v4226, 1
    %v4493 = vrot.slane %v4227, 1
    %v4494 = vsel %vm1846, %v4492, %v4493
    %v4495 = vrot.slane %v4228, 1
    %v4496 = vsel %vm1846, %v4493, %v4495
    %v4497 = vrot.slane %v4229, 1
    %v4498 = vrot.slane %v4230, 1
    %v4499 = vsel %vm1846, %v4497, %v4498
    %v4500 = vrot.slane %v4231, 1
    %v4501 = vsel %vm1846, %v4498, %v4500
    %v4502 = vrot.slane %v4232, 1
    %v4503 = vrot.slane %v4233, 1
    %v4504 = vsel %vm1846, %v4502, %v4503
    %v4505 = vrot.slane %v4234, 1
    %v4506 = vsel %vm1846, %v4503, %v4505
    %v4507 = vrot.slane %v4235, 1
    %v4508 = vrot.slane %v4236, 1
    %v4509 = vsel %vm1846, %v4507, %v4508
    %v4510 = vrot.slane %v4237, 1
    %v4511 = vsel %vm1846, %v4508, %v4510
    %v4512 = vrot.slane %v4238, 1
    %v4513 = vrot.slane %v4239, 1
    %v4514 = vsel %vm1846, %v4512, %v4513
    %v4515 = vrot.slane %v4240, 1
    %v4516 = vsel %vm1846, %v4513, %v4515
    %v4517 = vrot.slane %v4241, 1
    %v4518 = vrot.slane %v4242, 1
    %v4519 = vsel %vm1846, %v4517, %v4518
    %v4520 = vrot.slane %v4243, 1
    %v4521 = vsel %vm1846, %v4518, %v4520
    %v4522 = vrot.slane %v4244, 1
    %v4523 = vrot.slane %v4245, 1
    %v4524 = vsel %vm1846, %v4522, %v4523
    %v4525 = vrot.slane %v4246, 1
    %v4526 = vsel %vm1846, %v4523, %v4525
    %v4527 = vrot.slane %v4247, 1
    %v4528 = vrot.slane %v4248, 1
    %v4529 = vsel %vm1846, %v4527, %v4528
    %v4530 = vrot.slane %v4249, 1
    %v4531 = vsel %vm1846, %v4528, %v4530
    %v4532 = vrot.slane %v4250, 1
    %v4533 = vrot.slane %v4251, 1
    %v4534 = vsel %vm1846, %v4532, %v4533
    %v4535 = vrot.slane %v4252, 1
    %v4536 = vsel %vm1846, %v4533, %v4535
    %v4537 = vrot.slane %v4253, 1
    %v4538 = vrot.slane %v4254, 1
    %v4539 = vsel %vm1846, %v4537, %v4538
    %v4540 = vrot.slane %v4255, 1
    %v4541 = vsel %vm1846, %v4538, %v4540
    %v4542 = vrot.slane %v4256, 1
    %v4543 = vrot.slane %v4257, 1
    %v4544 = vsel %vm1846, %v4542, %v4543
    %v4545 = vrot.slane %v4258, 1
    %v4546 = vsel %vm1846, %v4543, %v4545
    %v4619 = vrot.slane %v4151, 2
    %v4620 = vrot.slane %v4152, 2
    %v4621 = vsel %vm1927, %v4619, %v4620
    %v4622 = vrot.slane %v4153, 2
    %v4623 = vsel %vm1927, %v4620, %v4622
    %v4624 = vrot.slane %v4154, 2
    %v4625 = vrot.slane %v4155, 2
    %v4626 = vsel %vm1927, %v4624, %v4625
    %v4627 = vrot.slane %v4156, 2
    %v4628 = vsel %vm1927, %v4625, %v4627
    %v4629 = vrot.slane %v4157, 2
    %v4630 = vrot.slane %v4158, 2
    %v4631 = vsel %vm1927, %v4629, %v4630
    %v4632 = vrot.slane %v4159, 2
    %v4633 = vsel %vm1927, %v4630, %v4632
    %v4634 = vrot.slane %v4160, 2
    %v4635 = vrot.slane %v4161, 2
    %v4636 = vsel %vm1927, %v4634, %v4635
    %v4637 = vrot.slane %v4162, 2
    %v4638 = vsel %vm1927, %v4635, %v4637
    %v4639 = vrot.slane %v4163, 2
    %v4640 = vrot.slane %v4164, 2
    %v4641 = vsel %vm1927, %v4639, %v4640
    %v4642 = vrot.slane %v4165, 2
    %v4643 = vsel %vm1927, %v4640, %v4642
    %v4644 = vrot.slane %v4166, 2
    %v4645 = vrot.slane %v4167, 2
    %v4646 = vsel %vm1927, %v4644, %v4645
    %v4647 = vrot.slane %v4168, 2
    %v4648 = vsel %vm1927, %v4645, %v4647
    %v4649 = vrot.slane %v4169, 2
    %v4650 = vrot.slane %v4170, 2
    %v4651 = vsel %vm1927, %v4649, %v4650
    %v4652 = vrot.slane %v4171, 2
    %v4653 = vsel %vm1927, %v4650, %v4652
    %v4654 = vrot.slane %v4172, 2
    %v4655 = vrot.slane %v4173, 2
    %v4656 = vsel %vm1927, %v4654, %v4655
    %v4657 = vrot.slane %v4174, 2
    %v4658 = vsel %vm1927, %v4655, %v4657
    %v4659 = vrot.slane %v4175, 2
    %v4660 = vrot.slane %v4176, 2
    %v4661 = vsel %vm1927, %v4659, %v4660
    %v4662 = vrot.slane %v4177, 2
    %v4663 = vsel %vm1927, %v4660, %v4662
    %v4664 = vrot.slane %v4178, 2
    %v4665 = vrot.slane %v4179, 2
    %v4666 = vsel %vm1927, %v4664, %v4665
    %v4667 = vrot.slane %v4180, 2
    %v4668 = vsel %vm1927, %v4665, %v4667
    %v4669 = vrot.slane %v4181, 2
    %v4670 = vrot.slane %v4182, 2
    %v4671 = vsel %vm1927, %v4669, %v4670
    %v4672 = vrot.slane %v4183, 2
    %v4673 = vsel %vm1927, %v4670, %v4672
    %v4674 = vrot.slane %v4184, 2
    %v4675 = vrot.slane %v4185, 2
    %v4676 = vsel %vm1927, %v4674, %v4675
    %v4677 = vrot.slane %v4186, 2
    %v4678 = vsel %vm1927, %v4675, %v4677
    %v4679 = vrot.slane %v4187, 2
    %v4680 = vrot.slane %v4188, 2
    %v4681 = vsel %vm1927, %v4679, %v4680
    %v4682 = vrot.slane %v4189, 2
    %v4683 = vsel %vm1927, %v4680, %v4682
    %v4684 = vrot.slane %v4190, 2
    %v4685 = vrot.slane %v4191, 2
    %v4686 = vsel %vm1927, %v4684, %v4685
    %v4687 = vrot.slane %v4192, 2
    %v4688 = vsel %vm1927, %v4685, %v4687
    %v4689 = vrot.slane %v4193, 2
    %v4690 = vrot.slane %v4194, 2
    %v4691 = vsel %vm1927, %v4689, %v4690
    %v4692 = vrot.slane %v4195, 2
    %v4693 = vsel %vm1927, %v4690, %v4692
    %v4694 = vrot.slane %v4196, 2
    %v4695 = vrot.slane %v4197, 2
    %v4696 = vsel %vm1927, %v4694, %v4695
    %v4697 = vrot.slane %v4198, 2
    %v4698 = vsel %vm1927, %v4695, %v4697
    %v4699 = vrot.slane %v4199, 2
    %v4700 = vrot.slane %v4200, 2
    %v4701 = vsel %vm1927, %v4699, %v4700
    %v4702 = vrot.slane %v4201, 2
    %v4703 = vsel %vm1927, %v4700, %v4702
    %v4704 = vrot.slane %v4202, 2
    %v4705 = vrot.slane %v4203, 2
    %v4706 = vsel %vm1927, %v4704, %v4705
    %v4707 = vrot.slane %v4204, 2
    %v4708 = vsel %vm1927, %v4705, %v4707
    %v4709 = vrot.slane %v4205, 2
    %v4710 = vrot.slane %v4206, 2
    %v4711 = vsel %vm1927, %v4709, %v4710
    %v4712 = vrot.slane %v4207, 2
    %v4713 = vsel %vm1927, %v4710, %v4712
    %v4714 = vrot.slane %v4208, 2
    %v4715 = vrot.slane %v4209, 2
    %v4716 = vsel %vm1927, %v4714, %v4715
    %v4717 = vrot.slane %v4210, 2
    %v4718 = vsel %vm1927, %v4715, %v4717
    %v4719 = vrot.slane %v4211, 2
    %v4720 = vrot.slane %v4212, 2
    %v4721 = vsel %vm1927, %v4719, %v4720
    %v4722 = vrot.slane %v4213, 2
    %v4723 = vsel %vm1927, %v4720, %v4722
    %v4724 = vrot.slane %v4214, 2
    %v4725 = vrot.slane %v4215, 2
    %v4726 = vsel %vm1927, %v4724, %v4725
    %v4727 = vrot.slane %v4216, 2
    %v4728 = vsel %vm1927, %v4725, %v4727
    %v4729 = vrot.slane %v4217, 2
    %v4730 = vrot.slane %v4218, 2
    %v4731 = vsel %vm1927, %v4729, %v4730
    %v4732 = vrot.slane %v4219, 2
    %v4733 = vsel %vm1927, %v4730, %v4732
    %v4734 = vrot.slane %v4220, 2
    %v4735 = vrot.slane %v4221, 2
    %v4736 = vsel %vm1927, %v4734, %v4735
    %v4737 = vrot.slane %v4222, 2
    %v4738 = vsel %vm1927, %v4735, %v4737
    %v4739 = vrot.slane %v4223, 2
    %v4740 = vrot.slane %v4224, 2
    %v4741 = vsel %vm1927, %v4739, %v4740
    %v4742 = vrot.slane %v4225, 2
    %v4743 = vsel %vm1927, %v4740, %v4742
    %v4744 = vrot.slane %v4226, 2
    %v4745 = vrot.slane %v4227, 2
    %v4746 = vsel %vm1927, %v4744, %v4745
    %v4747 = vrot.slane %v4228, 2
    %v4748 = vsel %vm1927, %v4745, %v4747
    %v4749 = vrot.slane %v4229, 2
    %v4750 = vrot.slane %v4230, 2
    %v4751 = vsel %vm1927, %v4749, %v4750
    %v4752 = vrot.slane %v4231, 2
    %v4753 = vsel %vm1927, %v4750, %v4752
    %v4754 = vrot.slane %v4232, 2
    %v4755 = vrot.slane %v4233, 2
    %v4756 = vsel %vm1927, %v4754, %v4755
    %v4757 = vrot.slane %v4234, 2
    %v4758 = vsel %vm1927, %v4755, %v4757
    %v4759 = vrot.slane %v4235, 2
    %v4760 = vrot.slane %v4236, 2
    %v4761 = vsel %vm1927, %v4759, %v4760
    %v4762 = vrot.slane %v4237, 2
    %v4763 = vsel %vm1927, %v4760, %v4762
    %v4764 = vrot.slane %v4238, 2
    %v4765 = vrot.slane %v4239, 2
    %v4766 = vsel %vm1927, %v4764, %v4765
    %v4767 = vrot.slane %v4240, 2
    %v4768 = vsel %vm1927, %v4765, %v4767
    %v4769 = vrot.slane %v4241, 2
    %v4770 = vrot.slane %v4242, 2
    %v4771 = vsel %vm1927, %v4769, %v4770
    %v4772 = vrot.slane %v4243, 2
    %v4773 = vsel %vm1927, %v4770, %v4772
    %v4774 = vrot.slane %v4244, 2
    %v4775 = vrot.slane %v4245, 2
    %v4776 = vsel %vm1927, %v4774, %v4775
    %v4777 = vrot.slane %v4246, 2
    %v4778 = vsel %vm1927, %v4775, %v4777
    %v4779 = vrot.slane %v4247, 2
    %v4780 = vrot.slane %v4248, 2
    %v4781 = vsel %vm1927, %v4779, %v4780
    %v4782 = vrot.slane %v4249, 2
    %v4783 = vsel %vm1927, %v4780, %v4782
    %v4784 = vrot.slane %v4250, 2
    %v4785 = vrot.slane %v4251, 2
    %v4786 = vsel %vm1927, %v4784, %v4785
    %v4787 = vrot.slane %v4252, 2
    %v4788 = vsel %vm1927, %v4785, %v4787
    %v4789 = vrot.slane %v4253, 2
    %v4790 = vrot.slane %v4254, 2
    %v4791 = vsel %vm1927, %v4789, %v4790
    %v4792 = vrot.slane %v4255, 2
    %v4793 = vsel %vm1927, %v4790, %v4792
    %v4794 = vrot.slane %v4256, 2
    %v4795 = vrot.slane %v4257, 2
    %v4796 = vsel %vm1927, %v4794, %v4795
    %v4797 = vrot.slane %v4258, 2
    %v4798 = vsel %vm1927, %v4795, %v4797
    %v4871 = vpack.c.bf16 %v4152, %v4151
    %v4872 = vpack.c.bf16 %v4371, %v4369
    %v4873 = vpack.c.bf16 %v4623, %v4621
    %v4874 = vpack.c.bf16 %v4155, %v4154
    %v4875 = vpack.c.bf16 %v4376, %v4374
    %v4876 = vpack.c.bf16 %v4628, %v4626
    %v4877 = vpack.c.bf16 %v4158, %v4157
    %v4878 = vpack.c.bf16 %v4381, %v4379
    %v4879 = vpack.c.bf16 %v4633, %v4631
    %v4880 = vpack.c.bf16 %v4161, %v4160
    %v4881 = vpack.c.bf16 %v4386, %v4384
    %v4882 = vpack.c.bf16 %v4638, %v4636
    %v4883 = vpack.c.bf16 %v4164, %v4163
    %v4884 = vpack.c.bf16 %v4391, %v4389
    %v4885 = vpack.c.bf16 %v4643, %v4641
    %v4886 = vpack.c.bf16 %v4167, %v4166
    %v4887 = vpack.c.bf16 %v4396, %v4394
    %v4888 = vpack.c.bf16 %v4648, %v4646
    %v4889 = vpack.c.bf16 %v4170, %v4169
    %v4890 = vpack.c.bf16 %v4401, %v4399
    %v4891 = vpack.c.bf16 %v4653, %v4651
    %v4892 = vpack.c.bf16 %v4173, %v4172
    %v4893 = vpack.c.bf16 %v4406, %v4404
    %v4894 = vpack.c.bf16 %v4658, %v4656
    %v4895 = vpack.c.bf16 %v4176, %v4175
    %v4896 = vpack.c.bf16 %v4411, %v4409
    %v4897 = vpack.c.bf16 %v4663, %v4661
    %v4898 = vpack.c.bf16 %v4179, %v4178
    %v4899 = vpack.c.bf16 %v4416, %v4414
    %v4900 = vpack.c.bf16 %v4668, %v4666
    %v4901 = vpack.c.bf16 %v4182, %v4181
    %v4902 = vpack.c.bf16 %v4421, %v4419
    %v4903 = vpack.c.bf16 %v4673, %v4671
    %v4904 = vpack.c.bf16 %v4185, %v4184
    %v4905 = vpack.c.bf16 %v4426, %v4424
    %v4906 = vpack.c.bf16 %v4678, %v4676
    %v4907 = vpack.c.bf16 %v4188, %v4187
    %v4908 = vpack.c.bf16 %v4431, %v4429
    %v4909 = vpack.c.bf16 %v4683, %v4681
    %v4910 = vpack.c.bf16 %v4191, %v4190
    %v4911 = vpack.c.bf16 %v4436, %v4434
    %v4912 = vpack.c.bf16 %v4688, %v4686
    %v4913 = vpack.c.bf16 %v4194, %v4193
    %v4914 = vpack.c.bf16 %v4441, %v4439
    %v4915 = vpack.c.bf16 %v4693, %v4691
    %v4916 = vpack.c.bf16 %v4197, %v4196
    %v4917 = vpack.c.bf16 %v4446, %v4444
    %v4918 = vpack.c.bf16 %v4698, %v4696
    %v4919 = vpack.c.bf16 %v4200, %v4199
    %v4920 = vpack.c.bf16 %v4451, %v4449
    %v4921 = vpack.c.bf16 %v4703, %v4701
    %v4922 = vpack.c.bf16 %v4203, %v4202
    %v4923 = vpack.c.bf16 %v4456, %v4454
    %v4924 = vpack.c.bf16 %v4708, %v4706
    %v4925 = vpack.c.bf16 %v4206, %v4205
    %v4926 = vpack.c.bf16 %v4461, %v4459
    %v4927 = vpack.c.bf16 %v4713, %v4711
    %v4928 = vpack.c.bf16 %v4209, %v4208
    %v4929 = vpack.c.bf16 %v4466, %v4464
    %v4930 = vpack.c.bf16 %v4718, %v4716
    %v4931 = vpack.c.bf16 %v4212, %v4211
    %v4932 = vpack.c.bf16 %v4471, %v4469
    %v4933 = vpack.c.bf16 %v4723, %v4721
    %v4934 = vpack.c.bf16 %v4215, %v4214
    %v4935 = vpack.c.bf16 %v4476, %v4474
    %v4936 = vpack.c.bf16 %v4728, %v4726
    %v4937 = vpack.c.bf16 %v4218, %v4217
    %v4938 = vpack.c.bf16 %v4481, %v4479
    %v4939 = vpack.c.bf16 %v4733, %v4731
    %v4940 = vpack.c.bf16 %v4221, %v4220
    %v4941 = vpack.c.bf16 %v4486, %v4484
    %v4942 = vpack.c.bf16 %v4738, %v4736
    %v4943 = vpack.c.bf16 %v4224, %v4223
    %v4944 = vpack.c.bf16 %v4491, %v4489
    %v4945 = vpack.c.bf16 %v4743, %v4741
    %v4946 = vpack.c.bf16 %v4227, %v4226
    %v4947 = vpack.c.bf16 %v4496, %v4494
    %v4948 = vpack.c.bf16 %v4748, %v4746
    %v4949 = vpack.c.bf16 %v4230, %v4229
    %v4950 = vpack.c.bf16 %v4501, %v4499
    %v4951 = vpack.c.bf16 %v4753, %v4751
    %v4952 = vpack.c.bf16 %v4233, %v4232
    %v4953 = vpack.c.bf16 %v4506, %v4504
    %v4954 = vpack.c.bf16 %v4758, %v4756
    %v4955 = vpack.c.bf16 %v4236, %v4235
    %v4956 = vpack.c.bf16 %v4511, %v4509
    %v4957 = vpack.c.bf16 %v4763, %v4761
    %v4958 = vpack.c.bf16 %v4239, %v4238
    %v4959 = vpack.c.bf16 %v4516, %v4514
    %v4960 = vpack.c.bf16 %v4768, %v4766
    %v4961 = vpack.c.bf16 %v4242, %v4241
    %v4962 = vpack.c.bf16 %v4521, %v4519
    %v4963 = vpack.c.bf16 %v4773, %v4771
    %v4964 = vpack.c.bf16 %v4245, %v4244
    %v4965 = vpack.c.bf16 %v4526, %v4524
    %v4966 = vpack.c.bf16 %v4778, %v4776
    %v4967 = vpack.c.bf16 %v4248, %v4247
    %v4968 = vpack.c.bf16 %v4531, %v4529
    %v4969 = vpack.c.bf16 %v4783, %v4781
    %v4970 = vpack.c.bf16 %v4251, %v4250
    %v4971 = vpack.c.bf16 %v4536, %v4534
    %v4972 = vpack.c.bf16 %v4788, %v4786
    %v4973 = vpack.c.bf16 %v4254, %v4253
    %v4974 = vpack.c.bf16 %v4541, %v4539
    %v4975 = vpack.c.bf16 %v4793, %v4791
    %v4976 = vpack.c.bf16 %v4257, %v4256
    %v4977 = vpack.c.bf16 %v4546, %v4544
    %v4978 = vpack.c.bf16 %v4798, %v4796
    %v4979 = vld [vmem:[%s9] sm:$0xf]
    %v4980 = vld [vmem:[%s9 + $0x4] sm:$0xf]
    %v4981 = vld [vmem:[%s9 + $0x8] sm:$0xf]
    %v4982 = vld [vmem:[%s9 + $0xc] sm:$0xf]
    %v4983 = vld [vmem:[%s9 + $0x10] sm:$0xf]
    %v4984 = vld [vmem:[%s9 + $0x14] sm:$0xf]
    %v4985 = vld [vmem:[%s9 + $0x18] sm:$0xf]
    %v4986 = vld [vmem:[%s9 + $0x1c] sm:$0xf]
    %v4987 = vld [vmem:[%s9 + $0x20] sm:$0xf]
    %v4988 = vld [vmem:[%s9 + $0x24] sm:$0xf]
    %v4989 = vld [vmem:[%s9 + $0x28] sm:$0xf]
    %v4990 = vld [vmem:[%s9 + $0x2c] sm:$0xf]
    %v4991 = vld [vmem:[%s9 + $0x30] sm:$0xf]
    %v4992 = vld [vmem:[%s9 + $0x34] sm:$0xf]
    %v4993 = vld [vmem:[%s9 + $0x38] sm:$0xf]
    %v4994 = vld [vmem:[%s9 + $0x3c] sm:$0xf]
    %v4995 = vld [vmem:[%s9 + $0x40] sm:$0xf]
    %v4996 = vld [vmem:[%s9 + $0x44] sm:$0xf]
    %v4997 = vld [vmem:[%s9 + $0x48] sm:$0xf]
    %v4998 = vld [vmem:[%s9 + $0x4c] sm:$0xf]
    %v4999 = vld [vmem:[%s9 + $0x50] sm:$0xf]
    %v5000 = vld [vmem:[%s9 + $0x54] sm:$0xf]
    %v5001 = vld [vmem:[%s9 + $0x58] sm:$0xf]
    %v5002 = vld [vmem:[%s9 + $0x5c] sm:$0xf]
    %v5003 = vld [vmem:[%s9 + $0x60] sm:$0xf]
    %v5004 = vld [vmem:[%s9 + $0x64] sm:$0xf]
    %v5005 = vld [vmem:[%s9 + $0x68] sm:$0xf]
    %v5006 = vld [vmem:[%s9 + $0x6c] sm:$0xf]
    %v5007 = vld [vmem:[%s9 + $0x70] sm:$0xf]
    %v5008 = vld [vmem:[%s9 + $0x74] sm:$0xf]
    %v5009 = vld [vmem:[%s9 + $0x78] sm:$0xf]
    %v5010 = vld [vmem:[%s9 + $0x7c] sm:$0xf]
    %v5011 = vld [vmem:[%s9 + $0x80] sm:$0xf]
    %v5012 = vld [vmem:[%s9 + $0x84] sm:$0xf]
    %v5013 = vld [vmem:[%s9 + $0x88] sm:$0xf]
    %v5014 = vld [vmem:[%s9 + $0x8c] sm:$0xf]
    %v5015 = vld [vmem:[%s9 + $0x90] sm:$0xf]
    %v5016 = vld [vmem:[%s9 + $0x94] sm:$0xf]
    %v5017 = vld [vmem:[%s9 + $0x98] sm:$0xf]
    %v5018 = vld [vmem:[%s9 + $0x9c] sm:$0xf]
    %v5019 = vld [vmem:[%s9 + $0xa0] sm:$0xf]
    %v5020 = vld [vmem:[%s9 + $0xa4] sm:$0xf]
    %v5021 = vld [vmem:[%s9 + $0xa8] sm:$0xf]
    %v5022 = vld [vmem:[%s9 + $0xac] sm:$0xf]
    %v5023 = vld [vmem:[%s9 + $0xb0] sm:$0xf]
    %v5024 = vld [vmem:[%s9 + $0xb4] sm:$0xf]
    %v5025 = vld [vmem:[%s9 + $0xb8] sm:$0xf]
    %v5026 = vld [vmem:[%s9 + $0xbc] sm:$0xf]
    %v5027 = vld [vmem:[%s9 + $0xc0] sm:$0xf]
    %v5028 = vld [vmem:[%s9 + $0xc4] sm:$0xf]
    %v5029 = vld [vmem:[%s9 + $0xc8] sm:$0xf]
    %v5030 = vld [vmem:[%s9 + $0xcc] sm:$0xf]
    %v5031 = vld [vmem:[%s9 + $0xd0] sm:$0xf]
    %v5032 = vld [vmem:[%s9 + $0xd4] sm:$0xf]
    %v5033 = vld [vmem:[%s9 + $0xd8] sm:$0xf]
    %v5034 = vld [vmem:[%s9 + $0xdc] sm:$0xf]
    %v5035 = vld [vmem:[%s9 + $0xe0] sm:$0xf]
    %v5036 = vld [vmem:[%s9 + $0xe4] sm:$0xf]
    %v5037 = vld [vmem:[%s9 + $0xe8] sm:$0xf]
    %v5038 = vld [vmem:[%s9 + $0xec] sm:$0xf]
    %v5039 = vld [vmem:[%s9 + $0xf0] sm:$0xf]
    %v5040 = vld [vmem:[%s9 + $0xf4] sm:$0xf]
    %v5041 = vld [vmem:[%s9 + $0xf8] sm:$0xf]
    %v5042 = vld [vmem:[%s9 + $0xfc] sm:$0xf]
    %v5043 = vld [vmem:[%s9 + $0x100] sm:$0xf]
    %v5044 = vld [vmem:[%s9 + $0x104] sm:$0xf]
    %v5045 = vld [vmem:[%s9 + $0x108] sm:$0xf]
    %v5046 = vld [vmem:[%s9 + $0x10c] sm:$0xf]
    %v5047 = vld [vmem:[%s9 + $0x110] sm:$0xf]
    %v5048 = vld [vmem:[%s9 + $0x114] sm:$0xf]
    %v5049 = vld [vmem:[%s9 + $0x118] sm:$0xf]
    %v5050 = vld [vmem:[%s9 + $0x11c] sm:$0xf]
    %v5051 = vld [vmem:[%s9 + $0x120] sm:$0xf]
    %v5052 = vld [vmem:[%s9 + $0x124] sm:$0xf]
    %v5053 = vld [vmem:[%s9 + $0x128] sm:$0xf]
    %v5054 = vld [vmem:[%s9 + $0x12c] sm:$0xf]
    %v5055 = vld [vmem:[%s9 + $0x130] sm:$0xf]
    %v5056 = vld [vmem:[%s9 + $0x134] sm:$0xf]
    %v5057 = vld [vmem:[%s9 + $0x138] sm:$0xf]
    %v5058 = vld [vmem:[%s9 + $0x13c] sm:$0xf]
    %v5059 = vld [vmem:[%s9 + $0x140] sm:$0xf]
    %v5060 = vld [vmem:[%s9 + $0x144] sm:$0xf]
    %v5061 = vld [vmem:[%s9 + $0x148] sm:$0xf]
    %v5062 = vld [vmem:[%s9 + $0x14c] sm:$0xf]
    %v5063 = vld [vmem:[%s9 + $0x150] sm:$0xf]
    %v5064 = vld [vmem:[%s9 + $0x154] sm:$0xf]
    %v5065 = vld [vmem:[%s9 + $0x158] sm:$0xf]
    %v5066 = vld [vmem:[%s9 + $0x15c] sm:$0xf]
    %v5067 = vld [vmem:[%s9 + $0x160] sm:$0xf]
    %v5068 = vld [vmem:[%s9 + $0x164] sm:$0xf]
    %v5069 = vld [vmem:[%s9 + $0x168] sm:$0xf]
    %v5070 = vld [vmem:[%s9 + $0x16c] sm:$0xf]
    %v5071 = vld [vmem:[%s9 + $0x170] sm:$0xf]
    %v5072 = vld [vmem:[%s9 + $0x174] sm:$0xf]
    %v5073 = vld [vmem:[%s9 + $0x178] sm:$0xf]
    %v5074 = vld [vmem:[%s9 + $0x17c] sm:$0xf]
    %v5075 = vld [vmem:[%s9 + $0x180] sm:$0xf]
    %v5076 = vld [vmem:[%s9 + $0x184] sm:$0xf]
    %v5077 = vld [vmem:[%s9 + $0x188] sm:$0xf]
    %v5078 = vld [vmem:[%s9 + $0x18c] sm:$0xf]
    %v5079 = vld [vmem:[%s9 + $0x190] sm:$0xf]
    %v5080 = vld [vmem:[%s9 + $0x194] sm:$0xf]
    %v5081 = vld [vmem:[%s9 + $0x198] sm:$0xf]
    %v5082 = vld [vmem:[%s9 + $0x19c] sm:$0xf]
    %v5083 = vld [vmem:[%s9 + $0x1a0] sm:$0xf]
    %v5084 = vld [vmem:[%s9 + $0x1a4] sm:$0xf]
    %v5085 = vld [vmem:[%s9 + $0x1a8] sm:$0xf]
    %v5086 = vld [vmem:[%s9 + $0x1ac] sm:$0xf]
    %v5087 = vld [vmem:[%s9 + $0x1b0] sm:$0xf]
    %v5088 = vld [vmem:[%s9 + $0x1b4] sm:$0xf]
    %v5089 = vld [vmem:[%s9 + $0x1b8] sm:$0xf]
    %v5090 = vld [vmem:[%s9 + $0x1bc] sm:$0xf]
    %v5091 = vld [vmem:[%s9 + $0x1c0] sm:$0xf]
    %v5092 = vld [vmem:[%s9 + $0x1c4] sm:$0xf]
    %v5093 = vld [vmem:[%s9 + $0x1c8] sm:$0xf]
    %v5094 = vld [vmem:[%s9 + $0x1cc] sm:$0xf]
    %v5095 = vld [vmem:[%s9 + $0x1d0] sm:$0xf]
    %v5096 = vld [vmem:[%s9 + $0x1d4] sm:$0xf]
    %v5097 = vld [vmem:[%s9 + $0x1d8] sm:$0xf]
    %v5098 = vld [vmem:[%s9 + $0x1dc] sm:$0xf]
    %v5099 = vld [vmem:[%s9 + $0x1e0] sm:$0xf]
    %v5100 = vld [vmem:[%s9 + $0x1e4] sm:$0xf]
    %v5101 = vld [vmem:[%s9 + $0x1e8] sm:$0xf]
    %v5102 = vld [vmem:[%s9 + $0x1ec] sm:$0xf]
    %v5103 = vld [vmem:[%s9 + $0x1f0] sm:$0xf]
    %v5104 = vld [vmem:[%s9 + $0x1f4] sm:$0xf]
    %v5105 = vld [vmem:[%s9 + $0x1f8] sm:$0xf]
    %v5106 = vld [vmem:[%s9 + $0x1fc] sm:$0xf]
    %v5107 = vld [vmem:[%s9 + $0x200] sm:$0xf]
    %v5108 = vld [vmem:[%s9 + $0x204] sm:$0xf]
    %v5109 = vld [vmem:[%s9 + $0x208] sm:$0xf]
    %v5110 = vld [vmem:[%s9 + $0x20c] sm:$0xf]
    %v5111 = vld [vmem:[%s9 + $0x210] sm:$0xf]
    %v5112 = vld [vmem:[%s9 + $0x214] sm:$0xf]
    %v5113 = vld [vmem:[%s9 + $0x218] sm:$0xf]
    %v5114 = vld [vmem:[%s9 + $0x21c] sm:$0xf]
    %v5115 = vld [vmem:[%s9 + $0x220] sm:$0xf]
    %v5116 = vld [vmem:[%s9 + $0x224] sm:$0xf]
    %v5117 = vld [vmem:[%s9 + $0x228] sm:$0xf]
    %v5118 = vld [vmem:[%s9 + $0x22c] sm:$0xf]
    %v5119 = vld [vmem:[%s9 + $0x230] sm:$0xf]
    %v5120 = vld [vmem:[%s9 + $0x234] sm:$0xf]
    %v5121 = vld [vmem:[%s9 + $0x238] sm:$0xf]
    %v5122 = vld [vmem:[%s9 + $0x23c] sm:$0xf]
    %v5123 = vld [vmem:[%s10] sm:$0x1]
    %v5125 = vlaneseq
    %v5126 = vshrl.u32 %v5125, 7
    %v5127 = vsub.s32 0, %v5126
    %v5128 = vrot.slane %v5123, %v5127
    %v5274 = vunpack.c.l.b16 %v4979
    %v5275 = vunpack.c.l.b16 %v4980
    %v5276 = vunpack.c.l.b16 %v4981
    %v5277 = vunpack.c.l.b16 %v4982
    %v5278 = vunpack.c.l.b16 %v4983
    %v5279 = vunpack.c.l.b16 %v4984
    %v5280 = vunpack.c.l.b16 %v4985
    %v5281 = vunpack.c.l.b16 %v4986
    %v5282 = vunpack.c.l.b16 %v4987
    %v5283 = vunpack.c.l.b16 %v4988
    %v5284 = vunpack.c.l.b16 %v4989
    %v5285 = vunpack.c.l.b16 %v4990
    %v5286 = vunpack.c.l.b16 %v4991
    %v5287 = vunpack.c.l.b16 %v4992
    %v5288 = vunpack.c.l.b16 %v4993
    %v5289 = vunpack.c.l.b16 %v4994
    %v5290 = vunpack.c.l.b16 %v4995
    %v5291 = vunpack.c.l.b16 %v4996
    %v5292 = vunpack.c.l.b16 %v4997
    %v5293 = vunpack.c.l.b16 %v4998
    %v5294 = vunpack.c.l.b16 %v4999
    %v5295 = vunpack.c.l.b16 %v5000
    %v5296 = vunpack.c.l.b16 %v5001
    %v5297 = vunpack.c.l.b16 %v5002
    %v5298 = vunpack.c.l.b16 %v5003
    %v5299 = vunpack.c.l.b16 %v5004
    %v5300 = vunpack.c.l.b16 %v5005
    %v5301 = vunpack.c.l.b16 %v5006
    %v5302 = vunpack.c.l.b16 %v5007
    %v5303 = vunpack.c.l.b16 %v5008
    %v5304 = vunpack.c.l.b16 %v5009
    %v5305 = vunpack.c.l.b16 %v5010
    %v5306 = vunpack.c.l.b16 %v5011
    %v5307 = vunpack.c.l.b16 %v5012
    %v5308 = vunpack.c.l.b16 %v5013
    %v5309 = vunpack.c.l.b16 %v5014
    %v5310 = vunpack.c.l.b16 %v5015
    %v5311 = vunpack.c.l.b16 %v5016
    %v5312 = vunpack.c.l.b16 %v5017
    %v5313 = vunpack.c.l.b16 %v5018
    %v5314 = vunpack.c.l.b16 %v5019
    %v5315 = vunpack.c.l.b16 %v5020
    %v5316 = vunpack.c.l.b16 %v5021
    %v5317 = vunpack.c.l.b16 %v5022
    %v5318 = vunpack.c.l.b16 %v5023
    %v5319 = vunpack.c.l.b16 %v5024
    %v5320 = vunpack.c.l.b16 %v5025
    %v5321 = vunpack.c.l.b16 %v5026
    %v5322 = vunpack.c.l.b16 %v5027
    %v5323 = vunpack.c.l.b16 %v5028
    %v5324 = vunpack.c.l.b16 %v5029
    %v5325 = vunpack.c.l.b16 %v5030
    %v5326 = vunpack.c.l.b16 %v5031
    %v5327 = vunpack.c.l.b16 %v5032
    %v5328 = vunpack.c.l.b16 %v5033
    %v5329 = vunpack.c.l.b16 %v5034
    %v5330 = vunpack.c.l.b16 %v5035
    %v5331 = vunpack.c.l.b16 %v5036
    %v5332 = vunpack.c.l.b16 %v5037
    %v5333 = vunpack.c.l.b16 %v5038
    %v5334 = vunpack.c.l.b16 %v5039
    %v5335 = vunpack.c.l.b16 %v5040
    %v5336 = vunpack.c.l.b16 %v5041
    %v5337 = vunpack.c.l.b16 %v5042
    %v5338 = vunpack.c.l.b16 %v5043
    %v5339 = vunpack.c.l.b16 %v5044
    %v5340 = vunpack.c.l.b16 %v5045
    %v5341 = vunpack.c.l.b16 %v5046
    %v5342 = vunpack.c.l.b16 %v5047
    %v5343 = vunpack.c.l.b16 %v5048
    %v5344 = vunpack.c.l.b16 %v5049
    %v5345 = vunpack.c.l.b16 %v5050
    %v5346 = vunpack.c.l.b16 %v5051
    %v5347 = vunpack.c.l.b16 %v5052
    %v5348 = vunpack.c.l.b16 %v5053
    %v5349 = vunpack.c.l.b16 %v5054
    %v5350 = vunpack.c.l.b16 %v5055
    %v5351 = vunpack.c.l.b16 %v5056
    %v5352 = vunpack.c.l.b16 %v5057
    %v5353 = vunpack.c.l.b16 %v5058
    %v5354 = vunpack.c.l.b16 %v5059
    %v5355 = vunpack.c.l.b16 %v5060
    %v5356 = vunpack.c.l.b16 %v5061
    %v5357 = vunpack.c.l.b16 %v5062
    %v5358 = vunpack.c.l.b16 %v5063
    %v5359 = vunpack.c.l.b16 %v5064
    %v5360 = vunpack.c.l.b16 %v5065
    %v5361 = vunpack.c.l.b16 %v5066
    %v5362 = vunpack.c.l.b16 %v5067
    %v5363 = vunpack.c.l.b16 %v5068
    %v5364 = vunpack.c.l.b16 %v5069
    %v5365 = vunpack.c.l.b16 %v5070
    %v5366 = vunpack.c.l.b16 %v5071
    %v5367 = vunpack.c.l.b16 %v5072
    %v5368 = vunpack.c.l.b16 %v5073
    %v5369 = vunpack.c.l.b16 %v5074
    %v5370 = vunpack.c.l.b16 %v5075
    %v5371 = vunpack.c.l.b16 %v5076
    %v5372 = vunpack.c.l.b16 %v5077
    %v5373 = vunpack.c.l.b16 %v5078
    %v5374 = vunpack.c.l.b16 %v5079
    %v5375 = vunpack.c.l.b16 %v5080
    %v5376 = vunpack.c.l.b16 %v5081
    %v5377 = vunpack.c.l.b16 %v5082
    %v5378 = vunpack.c.l.b16 %v5083
    %v5379 = vunpack.c.l.b16 %v5084
    %v5380 = vunpack.c.l.b16 %v5085
    %v5381 = vunpack.c.l.b16 %v5086
    %v5382 = vunpack.c.l.b16 %v5087
    %v5383 = vunpack.c.l.b16 %v5088
    %v5384 = vunpack.c.l.b16 %v5089
    %v5385 = vunpack.c.l.b16 %v5090
    %v5386 = vunpack.c.l.b16 %v5091
    %v5387 = vunpack.c.l.b16 %v5092
    %v5388 = vunpack.c.l.b16 %v5093
    %v5389 = vunpack.c.l.b16 %v5094
    %v5390 = vunpack.c.l.b16 %v5095
    %v5391 = vunpack.c.l.b16 %v5096
    %v5392 = vunpack.c.l.b16 %v5097
    %v5393 = vunpack.c.l.b16 %v5098
    %v5394 = vunpack.c.l.b16 %v5099
    %v5395 = vunpack.c.l.b16 %v5100
    %v5396 = vunpack.c.l.b16 %v5101
    %v5397 = vunpack.c.l.b16 %v5102
    %v5398 = vunpack.c.l.b16 %v5103
    %v5399 = vunpack.c.l.b16 %v5104
    %v5400 = vunpack.c.l.b16 %v5105
    %v5401 = vunpack.c.l.b16 %v5106
    %v5402 = vunpack.c.l.b16 %v5107
    %v5403 = vunpack.c.l.b16 %v5108
    %v5404 = vunpack.c.l.b16 %v5109
    %v5405 = vunpack.c.l.b16 %v5110
    %v5406 = vunpack.c.l.b16 %v5111
    %v5407 = vunpack.c.l.b16 %v5112
    %v5408 = vunpack.c.l.b16 %v5113
    %v5409 = vunpack.c.l.b16 %v5114
    %v5410 = vunpack.c.l.b16 %v5115
    %v5411 = vunpack.c.l.b16 %v5116
    %v5412 = vunpack.c.l.b16 %v5117
    %v5413 = vunpack.c.l.b16 %v5118
    %v5414 = vunpack.c.l.b16 %v5119
    %v5415 = vunpack.c.l.b16 %v5120
    %v5416 = vunpack.c.l.b16 %v5121
    %v5417 = vunpack.c.l.b16 %v5122
    %v5418 = vpack.c.b16 %v5275, %v5274
    %v5419 = vpack.c.b16 %v5277, %v5276
    %v5420 = vpack.c.b16 %v5279, %v5278
    %v5421 = vpack.c.b16 %v5281, %v5280
    %v5422 = vpack.c.b16 %v5283, %v5282
    %v5423 = vpack.c.b16 %v5285, %v5284
    %v5424 = vpack.c.b16 %v5287, %v5286
    %v5425 = vpack.c.b16 %v5289, %v5288
    %v5426 = vpack.c.b16 %v5291, %v5290
    %v5427 = vpack.c.b16 %v5293, %v5292
    %v5428 = vpack.c.b16 %v5295, %v5294
    %v5429 = vpack.c.b16 %v5297, %v5296
    %v5430 = vpack.c.b16 %v5299, %v5298
    %v5431 = vpack.c.b16 %v5301, %v5300
    %v5432 = vpack.c.b16 %v5303, %v5302
    %v5433 = vpack.c.b16 %v5305, %v5304
    %v5434 = vpack.c.b16 %v5307, %v5306
    %v5435 = vpack.c.b16 %v5309, %v5308
    %v5436 = vpack.c.b16 %v5311, %v5310
    %v5437 = vpack.c.b16 %v5313, %v5312
    %v5438 = vpack.c.b16 %v5315, %v5314
    %v5439 = vpack.c.b16 %v5317, %v5316
    %v5440 = vpack.c.b16 %v5319, %v5318
    %v5441 = vpack.c.b16 %v5321, %v5320
    %v5442 = vpack.c.b16 %v5323, %v5322
    %v5443 = vpack.c.b16 %v5325, %v5324
    %v5444 = vpack.c.b16 %v5327, %v5326
    %v5445 = vpack.c.b16 %v5329, %v5328
    %v5446 = vpack.c.b16 %v5331, %v5330
    %v5447 = vpack.c.b16 %v5333, %v5332
    %v5448 = vpack.c.b16 %v5335, %v5334
    %v5449 = vpack.c.b16 %v5337, %v5336
    %v5450 = vpack.c.b16 %v5339, %v5338
    %v5451 = vpack.c.b16 %v5341, %v5340
    %v5452 = vpack.c.b16 %v5343, %v5342
    %v5453 = vpack.c.b16 %v5345, %v5344
    %v5454 = vpack.c.b16 %v5347, %v5346
    %v5455 = vpack.c.b16 %v5349, %v5348
    %v5456 = vpack.c.b16 %v5351, %v5350
    %v5457 = vpack.c.b16 %v5353, %v5352
    %v5458 = vpack.c.b16 %v5355, %v5354
    %v5459 = vpack.c.b16 %v5357, %v5356
    %v5460 = vpack.c.b16 %v5359, %v5358
    %v5461 = vpack.c.b16 %v5361, %v5360
    %v5462 = vpack.c.b16 %v5363, %v5362
    %v5463 = vpack.c.b16 %v5365, %v5364
    %v5464 = vpack.c.b16 %v5367, %v5366
    %v5465 = vpack.c.b16 %v5369, %v5368
    %v5466 = vpack.c.b16 %v5371, %v5370
    %v5467 = vpack.c.b16 %v5373, %v5372
    %v5468 = vpack.c.b16 %v5375, %v5374
    %v5469 = vpack.c.b16 %v5377, %v5376
    %v5470 = vpack.c.b16 %v5379, %v5378
    %v5471 = vpack.c.b16 %v5381, %v5380
    %v5472 = vpack.c.b16 %v5383, %v5382
    %v5473 = vpack.c.b16 %v5385, %v5384
    %v5474 = vpack.c.b16 %v5387, %v5386
    %v5475 = vpack.c.b16 %v5389, %v5388
    %v5476 = vpack.c.b16 %v5391, %v5390
    %v5477 = vpack.c.b16 %v5393, %v5392
    %v5478 = vpack.c.b16 %v5395, %v5394
    %v5479 = vpack.c.b16 %v5397, %v5396
    %v5480 = vpack.c.b16 %v5399, %v5398
    %v5481 = vpack.c.b16 %v5401, %v5400
    %v5482 = vpack.c.b16 %v5403, %v5402
    %v5483 = vpack.c.b16 %v5405, %v5404
    %v5484 = vpack.c.b16 %v5407, %v5406
    %v5485 = vpack.c.b16 %v5409, %v5408
    %v5486 = vpack.c.b16 %v5411, %v5410
    %v5487 = vpack.c.b16 %v5413, %v5412
    %v5488 = vpack.c.b16 %v5415, %v5414
    %v5489 = vpack.c.b16 %v5417, %v5416
    %5562 = vmatprep.subr.bf16.mxu0 0
    %5563 = vmatpush1.bf16.msra.mxu0 %v5425
    %5564 = vmatprep.subr.bf16.mxu0 0
    %5565 = vmatpush1.bf16.msra.mxu0 %v5424
    %5566 = vmatprep.subr.bf16.mxu0 0
    %5567 = vmatpush1.bf16.msra.mxu0 %v5423
    %5568 = vmatprep.subr.bf16.mxu0 0
    %5569 = vmatpush1.bf16.msra.mxu0 %v5422
    %5570 = vmatprep.subr.bf16.mxu0 0
    %5571 = vmatpush1.bf16.msra.mxu0 %v5421
    %5572 = vmatprep.subr.bf16.mxu0 0
    %5573 = vmatpush1.bf16.msra.mxu0 %v5420
    %5574 = vmatprep.subr.bf16.mxu0 0
    %5575 = vmatpush1.bf16.msra.mxu0 %v5419
    %5576 = vmatprep.subr.bf16.mxu0 0
    %5577 = vmatpush1.bf16.msra.mxu0 %v5418
    %5578 = vmatprep.subr.bf16.mxu0 0
    %5579 = vmatpush2.bf16.msra.mxu0 %v5433
    %5580 = vmatprep.subr.bf16.mxu0 0
    %5581 = vmatpush2.bf16.msra.mxu0 %v5432
    %5582 = vmatprep.subr.bf16.mxu0 0
    %5583 = vmatpush2.bf16.msra.mxu0 %v5431
    %5584 = vmatprep.subr.bf16.mxu0 0
    %5585 = vmatpush2.bf16.msra.mxu0 %v5430
    %5586 = vmatprep.subr.bf16.mxu0 0
    %5587 = vmatpush2.bf16.msra.mxu0 %v5429
    %5588 = vmatprep.subr.bf16.mxu0 0
    %5589 = vmatpush2.bf16.msra.mxu0 %v5428
    %5590 = vmatprep.subr.bf16.mxu0 0
    %5591 = vmatpush2.bf16.msra.mxu0 %v5427
    %5592 = vmatprep.subr.bf16.mxu0 0
    %5593 = vmatpush2.bf16.msra.mxu0 %v5426
    %5594 = vmatprep.mubr.bf16.mxu0 %v4872
    %5595 = vmatmul.mubr.bf16.gmra.mxu0 %v4871
    %v5596 = vpop.f32.mrf.mxu0
    %v5597 = vadd.f32 %v5128, %v5596
    %v5598 = vpop.f32.mrf.mxu0
    %v5599 = vpop.f32.mrf.mxu0
    %v5600 = vadd.f32 %v5128, %v5599
    %v5601 = vpop.f32.mrf.mxu0
    %5602 = vmatprep.mubr.bf16.mxu0 %v4875
    %5603 = vmatmul.mubr.bf16.gmra.mxu0 %v4874
    %v5604 = vpop.f32.mrf.mxu0
    %v5605 = vadd.f32 %v5128, %v5604
    %v5606 = vpop.f32.mrf.mxu0
    %v5607 = vpop.f32.mrf.mxu0
    %v5608 = vadd.f32 %v5128, %v5607
    %v5609 = vpop.f32.mrf.mxu0
    %5610 = vmatprep.mubr.bf16.mxu0 %v4878
    %5611 = vmatmul.mubr.bf16.gmra.mxu0 %v4877
    %v5612 = vpop.f32.mrf.mxu0
    %v5613 = vadd.f32 %v5128, %v5612
    %v5614 = vpop.f32.mrf.mxu0
    %v5615 = vpop.f32.mrf.mxu0
    %v5616 = vadd.f32 %v5128, %v5615
    %v5617 = vpop.f32.mrf.mxu0
    %5618 = vmatprep.mubr.bf16.mxu0 %v4881
    %5619 = vmatmul.mubr.bf16.gmra.mxu0 %v4880
    %v5620 = vpop.f32.mrf.mxu0
    %v5621 = vadd.f32 %v5128, %v5620
    %v5622 = vpop.f32.mrf.mxu0
    %v5623 = vpop.f32.mrf.mxu0
    %v5624 = vadd.f32 %v5128, %v5623
    %v5625 = vpop.f32.mrf.mxu0
    %5626 = vmatprep.mubr.bf16.mxu0 %v4884
    %5627 = vmatmul.mubr.bf16.gmra.mxu0 %v4883
    %v5628 = vpop.f32.mrf.mxu0
    %v5629 = vadd.f32 %v5128, %v5628
    %v5630 = vpop.f32.mrf.mxu0
    %v5631 = vpop.f32.mrf.mxu0
    %v5632 = vadd.f32 %v5128, %v5631
    %v5633 = vpop.f32.mrf.mxu0
    %5634 = vmatprep.mubr.bf16.mxu0 %v4887
    %5635 = vmatmul.mubr.bf16.gmra.mxu0 %v4886
    %v5636 = vpop.f32.mrf.mxu0
    %v5637 = vadd.f32 %v5128, %v5636
    %v5638 = vpop.f32.mrf.mxu0
    %v5639 = vpop.f32.mrf.mxu0
    %v5640 = vadd.f32 %v5128, %v5639
    %v5641 = vpop.f32.mrf.mxu0
    %5642 = vmatprep.mubr.bf16.mxu0 %v4890
    %5643 = vmatmul.mubr.bf16.gmra.mxu0 %v4889
    %v5644 = vpop.f32.mrf.mxu0
    %v5645 = vadd.f32 %v5128, %v5644
    %v5646 = vpop.f32.mrf.mxu0
    %v5647 = vpop.f32.mrf.mxu0
    %v5648 = vadd.f32 %v5128, %v5647
    %v5649 = vpop.f32.mrf.mxu0
    %5650 = vmatprep.mubr.bf16.mxu0 %v4893
    %5651 = vmatmul.mubr.bf16.gmra.mxu0 %v4892
    %v5652 = vpop.f32.mrf.mxu0
    %v5653 = vadd.f32 %v5128, %v5652
    %v5654 = vpop.f32.mrf.mxu0
    %v5655 = vpop.f32.mrf.mxu0
    %v5656 = vadd.f32 %v5128, %v5655
    %v5657 = vpop.f32.mrf.mxu0
    %5658 = vmatprep.mubr.bf16.mxu0 %v4896
    %5659 = vmatmul.mubr.bf16.gmra.mxu0 %v4895
    %v5660 = vpop.f32.mrf.mxu0
    %v5661 = vadd.f32 %v5128, %v5660
    %v5662 = vpop.f32.mrf.mxu0
    %v5663 = vpop.f32.mrf.mxu0
    %v5664 = vadd.f32 %v5128, %v5663
    %v5665 = vpop.f32.mrf.mxu0
    %5666 = vmatprep.mubr.bf16.mxu0 %v4899
    %5667 = vmatmul.mubr.bf16.gmra.mxu0 %v4898
    %v5668 = vpop.f32.mrf.mxu0
    %v5669 = vadd.f32 %v5128, %v5668
    %v5670 = vpop.f32.mrf.mxu0
    %v5671 = vpop.f32.mrf.mxu0
    %v5672 = vadd.f32 %v5128, %v5671
    %v5673 = vpop.f32.mrf.mxu0
    %5674 = vmatprep.mubr.bf16.mxu0 %v4902
    %5675 = vmatmul.mubr.bf16.gmra.mxu0 %v4901
    %v5676 = vpop.f32.mrf.mxu0
    %v5677 = vadd.f32 %v5128, %v5676
    %v5678 = vpop.f32.mrf.mxu0
    %v5679 = vpop.f32.mrf.mxu0
    %v5680 = vadd.f32 %v5128, %v5679
    %v5681 = vpop.f32.mrf.mxu0
    %5682 = vmatprep.mubr.bf16.mxu0 %v4905
    %5683 = vmatmul.mubr.bf16.gmra.mxu0 %v4904
    %v5684 = vpop.f32.mrf.mxu0
    %v5685 = vadd.f32 %v5128, %v5684
    %v5686 = vpop.f32.mrf.mxu0
    %v5687 = vpop.f32.mrf.mxu0
    %v5688 = vadd.f32 %v5128, %v5687
    %v5689 = vpop.f32.mrf.mxu0
    %5690 = vmatprep.mubr.bf16.mxu0 %v4908
    %5691 = vmatmul.mubr.bf16.gmra.mxu0 %v4907
    %v5692 = vpop.f32.mrf.mxu0
    %v5693 = vadd.f32 %v5128, %v5692
    %v5694 = vpop.f32.mrf.mxu0
    %v5695 = vpop.f32.mrf.mxu0
    %v5696 = vadd.f32 %v5128, %v5695
    %v5697 = vpop.f32.mrf.mxu0
    %5698 = vmatprep.mubr.bf16.mxu0 %v4911
    %5699 = vmatmul.mubr.bf16.gmra.mxu0 %v4910
    %v5700 = vpop.f32.mrf.mxu0
    %v5701 = vadd.f32 %v5128, %v5700
    %v5702 = vpop.f32.mrf.mxu0
    %v5703 = vpop.f32.mrf.mxu0
    %v5704 = vadd.f32 %v5128, %v5703
    %v5705 = vpop.f32.mrf.mxu0
    %5706 = vmatprep.mubr.bf16.mxu0 %v4914
    %5707 = vmatmul.mubr.bf16.gmra.mxu0 %v4913
    %v5708 = vpop.f32.mrf.mxu0
    %v5709 = vadd.f32 %v5128, %v5708
    %v5710 = vpop.f32.mrf.mxu0
    %v5711 = vpop.f32.mrf.mxu0
    %v5712 = vadd.f32 %v5128, %v5711
    %v5713 = vpop.f32.mrf.mxu0
    %5714 = vmatprep.mubr.bf16.mxu0 %v4917
    %5715 = vmatmul.mubr.bf16.gmra.mxu0 %v4916
    %v5716 = vpop.f32.mrf.mxu0
    %v5717 = vadd.f32 %v5128, %v5716
    %v5718 = vpop.f32.mrf.mxu0
    %v5719 = vpop.f32.mrf.mxu0
    %v5720 = vadd.f32 %v5128, %v5719
    %v5721 = vpop.f32.mrf.mxu0
    %5722 = vmatprep.mubr.bf16.mxu0 %v4926
    %5723 = vmatmul.mubr.bf16.gmra.mxu0 %v4925
    %v5724 = vpop.f32.mrf.mxu0
    %v5725 = vadd.f32 %v5128, %v5724
    %v5726 = vpop.f32.mrf.mxu0
    %v5727 = vpop.f32.mrf.mxu0
    %v5728 = vadd.f32 %v5128, %v5727
    %v5729 = vpop.f32.mrf.mxu0
    %5730 = vmatprep.mubr.bf16.mxu0 %v4929
    %5731 = vmatmul.mubr.bf16.gmra.mxu0 %v4928
    %v5732 = vpop.f32.mrf.mxu0
    %v5733 = vadd.f32 %v5128, %v5732
    %v5734 = vpop.f32.mrf.mxu0
    %v5735 = vpop.f32.mrf.mxu0
    %v5736 = vadd.f32 %v5128, %v5735
    %v5737 = vpop.f32.mrf.mxu0
    %5738 = vmatprep.mubr.bf16.mxu0 %v4932
    %5739 = vmatmul.mubr.bf16.gmra.mxu0 %v4931
    %v5740 = vpop.f32.mrf.mxu0
    %v5741 = vadd.f32 %v5128, %v5740
    %v5742 = vpop.f32.mrf.mxu0
    %v5743 = vpop.f32.mrf.mxu0
    %v5744 = vadd.f32 %v5128, %v5743
    %v5745 = vpop.f32.mrf.mxu0
    %5746 = vmatprep.mubr.bf16.mxu0 %v4935
    %5747 = vmatmul.mubr.bf16.gmra.mxu0 %v4934
    %v5748 = vpop.f32.mrf.mxu0
    %v5749 = vadd.f32 %v5128, %v5748
    %v5750 = vpop.f32.mrf.mxu0
    %v5751 = vpop.f32.mrf.mxu0
    %v5752 = vadd.f32 %v5128, %v5751
    %v5753 = vpop.f32.mrf.mxu0
    %5754 = vmatprep.mubr.bf16.mxu0 %v4938
    %5755 = vmatmul.mubr.bf16.gmra.mxu0 %v4937
    %v5756 = vpop.f32.mrf.mxu0
    %v5757 = vadd.f32 %v5128, %v5756
    %v5758 = vpop.f32.mrf.mxu0
    %v5759 = vpop.f32.mrf.mxu0
    %v5760 = vadd.f32 %v5128, %v5759
    %v5761 = vpop.f32.mrf.mxu0
    %5762 = vmatprep.mubr.bf16.mxu0 %v4941
    %5763 = vmatmul.mubr.bf16.gmra.mxu0 %v4940
    %v5764 = vpop.f32.mrf.mxu0
    %v5765 = vadd.f32 %v5128, %v5764
    %v5766 = vpop.f32.mrf.mxu0
    %v5767 = vpop.f32.mrf.mxu0
    %v5768 = vadd.f32 %v5128, %v5767
    %v5769 = vpop.f32.mrf.mxu0
    %5770 = vmatprep.mubr.bf16.mxu0 %v4944
    %5771 = vmatmul.mubr.bf16.gmra.mxu0 %v4943
    %v5772 = vpop.f32.mrf.mxu0
    %v5773 = vadd.f32 %v5128, %v5772
    %v5774 = vpop.f32.mrf.mxu0
    %v5775 = vpop.f32.mrf.mxu0
    %v5776 = vadd.f32 %v5128, %v5775
    %v5777 = vpop.f32.mrf.mxu0
    %5778 = vmatprep.mubr.bf16.mxu0 %v4947
    %5779 = vmatmul.mubr.bf16.gmra.mxu0 %v4946
    %v5780 = vpop.f32.mrf.mxu0
    %v5781 = vadd.f32 %v5128, %v5780
    %v5782 = vpop.f32.mrf.mxu0
    %v5783 = vpop.f32.mrf.mxu0
    %v5784 = vadd.f32 %v5128, %v5783
    %v5785 = vpop.f32.mrf.mxu0
    %5786 = vmatprep.mubr.bf16.mxu0 %v4950
    %5787 = vmatmul.mubr.bf16.gmra.mxu0 %v4949
    %v5788 = vpop.f32.mrf.mxu0
    %v5789 = vadd.f32 %v5128, %v5788
    %v5790 = vpop.f32.mrf.mxu0
    %v5791 = vpop.f32.mrf.mxu0
    %v5792 = vadd.f32 %v5128, %v5791
    %v5793 = vpop.f32.mrf.mxu0
    %5794 = vmatprep.mubr.bf16.mxu0 %v4953
    %5795 = vmatmul.mubr.bf16.gmra.mxu0 %v4952
    %v5796 = vpop.f32.mrf.mxu0
    %v5797 = vadd.f32 %v5128, %v5796
    %v5798 = vpop.f32.mrf.mxu0
    %v5799 = vpop.f32.mrf.mxu0
    %v5800 = vadd.f32 %v5128, %v5799
    %v5801 = vpop.f32.mrf.mxu0
    %5802 = vmatprep.mubr.bf16.mxu0 %v4956
    %5803 = vmatmul.mubr.bf16.gmra.mxu0 %v4955
    %v5804 = vpop.f32.mrf.mxu0
    %v5805 = vadd.f32 %v5128, %v5804
    %v5806 = vpop.f32.mrf.mxu0
    %v5807 = vpop.f32.mrf.mxu0
    %v5808 = vadd.f32 %v5128, %v5807
    %v5809 = vpop.f32.mrf.mxu0
    %5810 = vmatprep.mubr.bf16.mxu0 %v4959
    %5811 = vmatmul.mubr.bf16.gmra.mxu0 %v4958
    %v5812 = vpop.f32.mrf.mxu0
    %v5813 = vadd.f32 %v5128, %v5812
    %v5814 = vpop.f32.mrf.mxu0
    %v5815 = vpop.f32.mrf.mxu0
    %v5816 = vadd.f32 %v5128, %v5815
    %v5817 = vpop.f32.mrf.mxu0
    %5818 = vmatprep.mubr.bf16.mxu0 %v4962
    %5819 = vmatmul.mubr.bf16.gmra.mxu0 %v4961
    %v5820 = vpop.f32.mrf.mxu0
    %v5821 = vadd.f32 %v5128, %v5820
    %v5822 = vpop.f32.mrf.mxu0
    %v5823 = vpop.f32.mrf.mxu0
    %v5824 = vadd.f32 %v5128, %v5823
    %v5825 = vpop.f32.mrf.mxu0
    %5826 = vmatprep.mubr.bf16.mxu0 %v4965
    %5827 = vmatmul.mubr.bf16.gmra.mxu0 %v4964
    %v5828 = vpop.f32.mrf.mxu0
    %v5829 = vadd.f32 %v5128, %v5828
    %v5830 = vpop.f32.mrf.mxu0
    %v5831 = vpop.f32.mrf.mxu0
    %v5832 = vadd.f32 %v5128, %v5831
    %v5833 = vpop.f32.mrf.mxu0
    %5834 = vmatprep.mubr.bf16.mxu0 %v4968
    %5835 = vmatmul.mubr.bf16.gmra.mxu0 %v4967
    %v5836 = vpop.f32.mrf.mxu0
    %v5837 = vadd.f32 %v5128, %v5836
    %v5838 = vpop.f32.mrf.mxu0
    %v5839 = vpop.f32.mrf.mxu0
    %v5840 = vadd.f32 %v5128, %v5839
    %v5841 = vpop.f32.mrf.mxu0
    %5842 = vmatprep.mubr.bf16.mxu0 %v4971
    %5843 = vmatmul.mubr.bf16.gmra.mxu0 %v4970
    %v5844 = vpop.f32.mrf.mxu0
    %v5845 = vadd.f32 %v5128, %v5844
    %v5846 = vpop.f32.mrf.mxu0
    %v5847 = vpop.f32.mrf.mxu0
    %v5848 = vadd.f32 %v5128, %v5847
    %v5849 = vpop.f32.mrf.mxu0
    %5850 = vdwg.mxu0
    %5851 = vmatprep.subr.bf16.mxu0 0
    %5852 = vmatpush1.bf16.msra.mxu0 %v5441
    %5853 = vmatprep.subr.bf16.mxu0 0
    %5854 = vmatpush1.bf16.msra.mxu0 %v5440
    %5855 = vmatprep.subr.bf16.mxu0 0
    %5856 = vmatpush1.bf16.msra.mxu0 %v5439
    %5857 = vmatprep.subr.bf16.mxu0 0
    %5858 = vmatpush1.bf16.msra.mxu0 %v5438
    %5859 = vmatprep.subr.bf16.mxu0 0
    %5860 = vmatpush1.bf16.msra.mxu0 %v5437
    %5861 = vmatprep.subr.bf16.mxu0 0
    %5862 = vmatpush1.bf16.msra.mxu0 %v5436
    %5863 = vmatprep.subr.bf16.mxu0 0
    %5864 = vmatpush1.bf16.msra.mxu0 %v5435
    %5865 = vmatprep.subr.bf16.mxu0 0
    %5866 = vmatpush1.bf16.msra.mxu0 %v5434
    %5867 = vmatprep.subr.bf16.mxu0 0
    %5868 = vmatpush2.bf16.msra.mxu0 %v5449
    %5869 = vmatprep.subr.bf16.mxu0 0
    %5870 = vmatpush2.bf16.msra.mxu0 %v5448
    %5871 = vmatprep.subr.bf16.mxu0 0
    %5872 = vmatpush2.bf16.msra.mxu0 %v5447
    %5873 = vmatprep.subr.bf16.mxu0 0
    %5874 = vmatpush2.bf16.msra.mxu0 %v5446
    %5875 = vmatprep.subr.bf16.mxu0 0
    %5876 = vmatpush2.bf16.msra.mxu0 %v5445
    %5877 = vmatprep.subr.bf16.mxu0 0
    %5878 = vmatpush2.bf16.msra.mxu0 %v5444
    %5879 = vmatprep.subr.bf16.mxu0 0
    %5880 = vmatpush2.bf16.msra.mxu0 %v5443
    %5881 = vmatprep.subr.bf16.mxu0 0
    %5882 = vmatpush2.bf16.msra.mxu0 %v5442
    %5883 = vmatprep.mubr.bf16.mxu0 %v4874
    %5884 = vmatmul.mubr.bf16.gmra.mxu0 %v4873
    %v5885 = vpop.f32.mrf.mxu0
    %v5886 = vadd.f32 %v5597, %v5885
    %v5887 = vpop.f32.mrf.mxu0
    %v5888 = vpop.f32.mrf.mxu0
    %v5889 = vadd.f32 %v5600, %v5888
    %v5890 = vpop.f32.mrf.mxu0
    %5891 = vmatprep.mubr.bf16.mxu0 %v4877
    %5892 = vmatmul.mubr.bf16.gmra.mxu0 %v4876
    %v5893 = vpop.f32.mrf.mxu0
    %v5894 = vadd.f32 %v5605, %v5893
    %v5895 = vpop.f32.mrf.mxu0
    %v5896 = vpop.f32.mrf.mxu0
    %v5897 = vadd.f32 %v5608, %v5896
    %v5898 = vpop.f32.mrf.mxu0
    %5899 = vmatprep.mubr.bf16.mxu0 %v4880
    %5900 = vmatmul.mubr.bf16.gmra.mxu0 %v4879
    %v5901 = vpop.f32.mrf.mxu0
    %v5902 = vadd.f32 %v5613, %v5901
    %v5903 = vpop.f32.mrf.mxu0
    %v5904 = vpop.f32.mrf.mxu0
    %v5905 = vadd.f32 %v5616, %v5904
    %v5906 = vpop.f32.mrf.mxu0
    %5907 = vmatprep.mubr.bf16.mxu0 %v4883
    %5908 = vmatmul.mubr.bf16.gmra.mxu0 %v4882
    %v5909 = vpop.f32.mrf.mxu0
    %v5910 = vadd.f32 %v5621, %v5909
    %v5911 = vpop.f32.mrf.mxu0
    %v5912 = vpop.f32.mrf.mxu0
    %v5913 = vadd.f32 %v5624, %v5912
    %v5914 = vpop.f32.mrf.mxu0
    %5915 = vmatprep.mubr.bf16.mxu0 %v4886
    %5916 = vmatmul.mubr.bf16.gmra.mxu0 %v4885
    %v5917 = vpop.f32.mrf.mxu0
    %v5918 = vadd.f32 %v5629, %v5917
    %v5919 = vpop.f32.mrf.mxu0
    %v5920 = vpop.f32.mrf.mxu0
    %v5921 = vadd.f32 %v5632, %v5920
    %v5922 = vpop.f32.mrf.mxu0
    %5923 = vmatprep.mubr.bf16.mxu0 %v4889
    %5924 = vmatmul.mubr.bf16.gmra.mxu0 %v4888
    %v5925 = vpop.f32.mrf.mxu0
    %v5926 = vadd.f32 %v5637, %v5925
    %v5927 = vpop.f32.mrf.mxu0
    %v5928 = vpop.f32.mrf.mxu0
    %v5929 = vadd.f32 %v5640, %v5928
    %v5930 = vpop.f32.mrf.mxu0
    %5931 = vmatprep.mubr.bf16.mxu0 %v4892
    %5932 = vmatmul.mubr.bf16.gmra.mxu0 %v4891
    %v5933 = vpop.f32.mrf.mxu0
    %v5934 = vadd.f32 %v5645, %v5933
    %v5935 = vpop.f32.mrf.mxu0
    %v5936 = vpop.f32.mrf.mxu0
    %v5937 = vadd.f32 %v5648, %v5936
    %v5938 = vpop.f32.mrf.mxu0
    %5939 = vmatprep.mubr.bf16.mxu0 %v4895
    %5940 = vmatmul.mubr.bf16.gmra.mxu0 %v4894
    %v5941 = vpop.f32.mrf.mxu0
    %v5942 = vadd.f32 %v5653, %v5941
    %v5943 = vpop.f32.mrf.mxu0
    %v5944 = vpop.f32.mrf.mxu0
    %v5945 = vadd.f32 %v5656, %v5944
    %v5946 = vpop.f32.mrf.mxu0
    %5947 = vmatprep.mubr.bf16.mxu0 %v4898
    %5948 = vmatmul.mubr.bf16.gmra.mxu0 %v4897
    %v5949 = vpop.f32.mrf.mxu0
    %v5950 = vadd.f32 %v5661, %v5949
    %v5951 = vpop.f32.mrf.mxu0
    %v5952 = vpop.f32.mrf.mxu0
    %v5953 = vadd.f32 %v5664, %v5952
    %v5954 = vpop.f32.mrf.mxu0
    %5955 = vmatprep.mubr.bf16.mxu0 %v4901
    %5956 = vmatmul.mubr.bf16.gmra.mxu0 %v4900
    %v5957 = vpop.f32.mrf.mxu0
    %v5958 = vadd.f32 %v5669, %v5957
    %v5959 = vpop.f32.mrf.mxu0
    %v5960 = vpop.f32.mrf.mxu0
    %v5961 = vadd.f32 %v5672, %v5960
    %v5962 = vpop.f32.mrf.mxu0
    %5963 = vmatprep.mubr.bf16.mxu0 %v4904
    %5964 = vmatmul.mubr.bf16.gmra.mxu0 %v4903
    %v5965 = vpop.f32.mrf.mxu0
    %v5966 = vadd.f32 %v5677, %v5965
    %v5967 = vpop.f32.mrf.mxu0
    %v5968 = vpop.f32.mrf.mxu0
    %v5969 = vadd.f32 %v5680, %v5968
    %v5970 = vpop.f32.mrf.mxu0
    %5971 = vmatprep.mubr.bf16.mxu0 %v4907
    %5972 = vmatmul.mubr.bf16.gmra.mxu0 %v4906
    %v5973 = vpop.f32.mrf.mxu0
    %v5974 = vadd.f32 %v5685, %v5973
    %v5975 = vpop.f32.mrf.mxu0
    %v5976 = vpop.f32.mrf.mxu0
    %v5977 = vadd.f32 %v5688, %v5976
    %v5978 = vpop.f32.mrf.mxu0
    %5979 = vmatprep.mubr.bf16.mxu0 %v4910
    %5980 = vmatmul.mubr.bf16.gmra.mxu0 %v4909
    %v5981 = vpop.f32.mrf.mxu0
    %v5982 = vadd.f32 %v5693, %v5981
    %v5983 = vpop.f32.mrf.mxu0
    %v5984 = vpop.f32.mrf.mxu0
    %v5985 = vadd.f32 %v5696, %v5984
    %v5986 = vpop.f32.mrf.mxu0
    %5987 = vmatprep.mubr.bf16.mxu0 %v4913
    %5988 = vmatmul.mubr.bf16.gmra.mxu0 %v4912
    %v5989 = vpop.f32.mrf.mxu0
    %v5990 = vadd.f32 %v5701, %v5989
    %v5991 = vpop.f32.mrf.mxu0
    %v5992 = vpop.f32.mrf.mxu0
    %v5993 = vadd.f32 %v5704, %v5992
    %v5994 = vpop.f32.mrf.mxu0
    %5995 = vmatprep.mubr.bf16.mxu0 %v4916
    %5996 = vmatmul.mubr.bf16.gmra.mxu0 %v4915
    %v5997 = vpop.f32.mrf.mxu0
    %v5998 = vadd.f32 %v5709, %v5997
    %v5999 = vpop.f32.mrf.mxu0
    %v6000 = vpop.f32.mrf.mxu0
    %v6001 = vadd.f32 %v5712, %v6000
    %v6002 = vpop.f32.mrf.mxu0
    %6003 = vmatprep.mubr.bf16.mxu0 %v4919
    %6004 = vmatmul.mubr.bf16.gmra.mxu0 %v4918
    %v6005 = vpop.f32.mrf.mxu0
    %v6006 = vadd.f32 %v5717, %v6005
    %v6007 = vpop.f32.mrf.mxu0
    %v6008 = vpop.f32.mrf.mxu0
    %v6009 = vadd.f32 %v5720, %v6008
    %v6010 = vpop.f32.mrf.mxu0
    %6011 = vmatprep.mubr.bf16.mxu0 %v4928
    %6012 = vmatmul.mubr.bf16.gmra.mxu0 %v4927
    %v6013 = vpop.f32.mrf.mxu0
    %v6014 = vadd.f32 %v5725, %v6013
    %v6015 = vpop.f32.mrf.mxu0
    %v6016 = vpop.f32.mrf.mxu0
    %v6017 = vadd.f32 %v5728, %v6016
    %v6018 = vpop.f32.mrf.mxu0
    %6019 = vmatprep.mubr.bf16.mxu0 %v4931
    %6020 = vmatmul.mubr.bf16.gmra.mxu0 %v4930
    %v6021 = vpop.f32.mrf.mxu0
    %v6022 = vadd.f32 %v5733, %v6021
    %v6023 = vpop.f32.mrf.mxu0
    %v6024 = vpop.f32.mrf.mxu0
    %v6025 = vadd.f32 %v5736, %v6024
    %v6026 = vpop.f32.mrf.mxu0
    %6027 = vmatprep.mubr.bf16.mxu0 %v4934
    %6028 = vmatmul.mubr.bf16.gmra.mxu0 %v4933
    %v6029 = vpop.f32.mrf.mxu0
    %v6030 = vadd.f32 %v5741, %v6029
    %v6031 = vpop.f32.mrf.mxu0
    %v6032 = vpop.f32.mrf.mxu0
    %v6033 = vadd.f32 %v5744, %v6032
    %v6034 = vpop.f32.mrf.mxu0
    %6035 = vmatprep.mubr.bf16.mxu0 %v4937
    %6036 = vmatmul.mubr.bf16.gmra.mxu0 %v4936
    %v6037 = vpop.f32.mrf.mxu0
    %v6038 = vadd.f32 %v5749, %v6037
    %v6039 = vpop.f32.mrf.mxu0
    %v6040 = vpop.f32.mrf.mxu0
    %v6041 = vadd.f32 %v5752, %v6040
    %v6042 = vpop.f32.mrf.mxu0
    %6043 = vmatprep.mubr.bf16.mxu0 %v4940
    %6044 = vmatmul.mubr.bf16.gmra.mxu0 %v4939
    %v6045 = vpop.f32.mrf.mxu0
    %v6046 = vadd.f32 %v5757, %v6045
    %v6047 = vpop.f32.mrf.mxu0
    %v6048 = vpop.f32.mrf.mxu0
    %v6049 = vadd.f32 %v5760, %v6048
    %v6050 = vpop.f32.mrf.mxu0
    %6051 = vmatprep.mubr.bf16.mxu0 %v4943
    %6052 = vmatmul.mubr.bf16.gmra.mxu0 %v4942
    %v6053 = vpop.f32.mrf.mxu0
    %v6054 = vadd.f32 %v5765, %v6053
    %v6055 = vpop.f32.mrf.mxu0
    %v6056 = vpop.f32.mrf.mxu0
    %v6057 = vadd.f32 %v5768, %v6056
    %v6058 = vpop.f32.mrf.mxu0
    %6059 = vmatprep.mubr.bf16.mxu0 %v4946
    %6060 = vmatmul.mubr.bf16.gmra.mxu0 %v4945
    %v6061 = vpop.f32.mrf.mxu0
    %v6062 = vadd.f32 %v5773, %v6061
    %v6063 = vpop.f32.mrf.mxu0
    %v6064 = vpop.f32.mrf.mxu0
    %v6065 = vadd.f32 %v5776, %v6064
    %v6066 = vpop.f32.mrf.mxu0
    %6067 = vmatprep.mubr.bf16.mxu0 %v4949
    %6068 = vmatmul.mubr.bf16.gmra.mxu0 %v4948
    %v6069 = vpop.f32.mrf.mxu0
    %v6070 = vadd.f32 %v5781, %v6069
    %v6071 = vpop.f32.mrf.mxu0
    %v6072 = vpop.f32.mrf.mxu0
    %v6073 = vadd.f32 %v5784, %v6072
    %v6074 = vpop.f32.mrf.mxu0
    %6075 = vmatprep.mubr.bf16.mxu0 %v4952
    %6076 = vmatmul.mubr.bf16.gmra.mxu0 %v4951
    %v6077 = vpop.f32.mrf.mxu0
    %v6078 = vadd.f32 %v5789, %v6077
    %v6079 = vpop.f32.mrf.mxu0
    %v6080 = vpop.f32.mrf.mxu0
    %v6081 = vadd.f32 %v5792, %v6080
    %v6082 = vpop.f32.mrf.mxu0
    %6083 = vmatprep.mubr.bf16.mxu0 %v4955
    %6084 = vmatmul.mubr.bf16.gmra.mxu0 %v4954
    %v6085 = vpop.f32.mrf.mxu0
    %v6086 = vadd.f32 %v5797, %v6085
    %v6087 = vpop.f32.mrf.mxu0
    %v6088 = vpop.f32.mrf.mxu0
    %v6089 = vadd.f32 %v5800, %v6088
    %v6090 = vpop.f32.mrf.mxu0
    %6091 = vmatprep.mubr.bf16.mxu0 %v4958
    %6092 = vmatmul.mubr.bf16.gmra.mxu0 %v4957
    %v6093 = vpop.f32.mrf.mxu0
    %v6094 = vadd.f32 %v5805, %v6093
    %v6095 = vpop.f32.mrf.mxu0
    %v6096 = vpop.f32.mrf.mxu0
    %v6097 = vadd.f32 %v5808, %v6096
    %v6098 = vpop.f32.mrf.mxu0
    %6099 = vmatprep.mubr.bf16.mxu0 %v4961
    %6100 = vmatmul.mubr.bf16.gmra.mxu0 %v4960
    %v6101 = vpop.f32.mrf.mxu0
    %v6102 = vadd.f32 %v5813, %v6101
    %v6103 = vpop.f32.mrf.mxu0
    %v6104 = vpop.f32.mrf.mxu0
    %v6105 = vadd.f32 %v5816, %v6104
    %v6106 = vpop.f32.mrf.mxu0
    %6107 = vmatprep.mubr.bf16.mxu0 %v4964
    %6108 = vmatmul.mubr.bf16.gmra.mxu0 %v4963
    %v6109 = vpop.f32.mrf.mxu0
    %v6110 = vadd.f32 %v5821, %v6109
    %v6111 = vpop.f32.mrf.mxu0
    %v6112 = vpop.f32.mrf.mxu0
    %v6113 = vadd.f32 %v5824, %v6112
    %v6114 = vpop.f32.mrf.mxu0
    %6115 = vmatprep.mubr.bf16.mxu0 %v4967
    %6116 = vmatmul.mubr.bf16.gmra.mxu0 %v4966
    %v6117 = vpop.f32.mrf.mxu0
    %v6118 = vadd.f32 %v5829, %v6117
    %v6119 = vpop.f32.mrf.mxu0
    %v6120 = vpop.f32.mrf.mxu0
    %v6121 = vadd.f32 %v5832, %v6120
    %v6122 = vpop.f32.mrf.mxu0
    %6123 = vmatprep.mubr.bf16.mxu0 %v4970
    %6124 = vmatmul.mubr.bf16.gmra.mxu0 %v4969
    %v6125 = vpop.f32.mrf.mxu0
    %v6126 = vadd.f32 %v5837, %v6125
    %v6127 = vpop.f32.mrf.mxu0
    %v6128 = vpop.f32.mrf.mxu0
    %v6129 = vadd.f32 %v5840, %v6128
    %v6130 = vpop.f32.mrf.mxu0
    %6131 = vmatprep.mubr.bf16.mxu0 %v4973
    %6132 = vmatmul.mubr.bf16.gmra.mxu0 %v4972
    %v6133 = vpop.f32.mrf.mxu0
    %v6134 = vadd.f32 %v5845, %v6133
    %v6135 = vpop.f32.mrf.mxu0
    %v6136 = vpop.f32.mrf.mxu0
    %v6137 = vadd.f32 %v5848, %v6136
    %v6138 = vpop.f32.mrf.mxu0
    %6139 = vdwg.mxu0
    %6140 = vmatprep.subr.bf16.mxu0 0
    %6141 = vmatpush1.bf16.msra.mxu0 %v5457
    %6142 = vmatprep.subr.bf16.mxu0 0
    %6143 = vmatpush1.bf16.msra.mxu0 %v5456
    %6144 = vmatprep.subr.bf16.mxu0 0
    %6145 = vmatpush1.bf16.msra.mxu0 %v5455
    %6146 = vmatprep.subr.bf16.mxu0 0
    %6147 = vmatpush1.bf16.msra.mxu0 %v5454
    %6148 = vmatprep.subr.bf16.mxu0 0
    %6149 = vmatpush1.bf16.msra.mxu0 %v5453
    %6150 = vmatprep.subr.bf16.mxu0 0
    %6151 = vmatpush1.bf16.msra.mxu0 %v5452
    %6152 = vmatprep.subr.bf16.mxu0 0
    %6153 = vmatpush1.bf16.msra.mxu0 %v5451
    %6154 = vmatprep.subr.bf16.mxu0 0
    %6155 = vmatpush1.bf16.msra.mxu0 %v5450
    %6156 = vmatprep.subr.bf16.mxu0 0
    %6157 = vmatpush2.bf16.msra.mxu0 %v5465
    %6158 = vmatprep.subr.bf16.mxu0 0
    %6159 = vmatpush2.bf16.msra.mxu0 %v5464
    %6160 = vmatprep.subr.bf16.mxu0 0
    %6161 = vmatpush2.bf16.msra.mxu0 %v5463
    %6162 = vmatprep.subr.bf16.mxu0 0
    %6163 = vmatpush2.bf16.msra.mxu0 %v5462
    %6164 = vmatprep.subr.bf16.mxu0 0
    %6165 = vmatpush2.bf16.msra.mxu0 %v5461
    %6166 = vmatprep.subr.bf16.mxu0 0
    %6167 = vmatpush2.bf16.msra.mxu0 %v5460
    %6168 = vmatprep.subr.bf16.mxu0 0
    %6169 = vmatpush2.bf16.msra.mxu0 %v5459
    %6170 = vmatprep.subr.bf16.mxu0 0
    %6171 = vmatpush2.bf16.msra.mxu0 %v5458
    %6172 = vmatprep.mubr.bf16.mxu0 %v4876
    %6173 = vmatmul.mubr.bf16.gmra.mxu0 %v4875
    %v6174 = vpop.f32.mrf.mxu0
    %v6175 = vadd.f32 %v5886, %v6174
    %v6176 = vpop.f32.mrf.mxu0
    %v6177 = vpop.f32.mrf.mxu0
    %v6178 = vadd.f32 %v5889, %v6177
    %v6179 = vpop.f32.mrf.mxu0
    %6180 = vmatprep.mubr.bf16.mxu0 %v4879
    %6181 = vmatmul.mubr.bf16.gmra.mxu0 %v4878
    %v6182 = vpop.f32.mrf.mxu0
    %v6183 = vadd.f32 %v5894, %v6182
    %v6184 = vpop.f32.mrf.mxu0
    %v6185 = vpop.f32.mrf.mxu0
    %v6186 = vadd.f32 %v5897, %v6185
    %v6187 = vpop.f32.mrf.mxu0
    %6188 = vmatprep.mubr.bf16.mxu0 %v4882
    %6189 = vmatmul.mubr.bf16.gmra.mxu0 %v4881
    %v6190 = vpop.f32.mrf.mxu0
    %v6191 = vadd.f32 %v5902, %v6190
    %v6192 = vpop.f32.mrf.mxu0
    %v6193 = vpop.f32.mrf.mxu0
    %v6194 = vadd.f32 %v5905, %v6193
    %v6195 = vpop.f32.mrf.mxu0
    %6196 = vmatprep.mubr.bf16.mxu0 %v4885
    %6197 = vmatmul.mubr.bf16.gmra.mxu0 %v4884
    %v6198 = vpop.f32.mrf.mxu0
    %v6199 = vadd.f32 %v5910, %v6198
    %v6200 = vpop.f32.mrf.mxu0
    %v6201 = vpop.f32.mrf.mxu0
    %v6202 = vadd.f32 %v5913, %v6201
    %v6203 = vpop.f32.mrf.mxu0
    %6204 = vmatprep.mubr.bf16.mxu0 %v4888
    %6205 = vmatmul.mubr.bf16.gmra.mxu0 %v4887
    %v6206 = vpop.f32.mrf.mxu0
    %v6207 = vadd.f32 %v5918, %v6206
    %v6208 = vpop.f32.mrf.mxu0
    %v6209 = vpop.f32.mrf.mxu0
    %v6210 = vadd.f32 %v5921, %v6209
    %v6211 = vpop.f32.mrf.mxu0
    %6212 = vmatprep.mubr.bf16.mxu0 %v4891
    %6213 = vmatmul.mubr.bf16.gmra.mxu0 %v4890
    %v6214 = vpop.f32.mrf.mxu0
    %v6215 = vadd.f32 %v5926, %v6214
    %v6216 = vpop.f32.mrf.mxu0
    %v6217 = vpop.f32.mrf.mxu0
    %v6218 = vadd.f32 %v5929, %v6217
    %v6219 = vpop.f32.mrf.mxu0
    %6220 = vmatprep.mubr.bf16.mxu0 %v4894
    %6221 = vmatmul.mubr.bf16.gmra.mxu0 %v4893
    %v6222 = vpop.f32.mrf.mxu0
    %v6223 = vadd.f32 %v5934, %v6222
    %v6224 = vpop.f32.mrf.mxu0
    %v6225 = vpop.f32.mrf.mxu0
    %v6226 = vadd.f32 %v5937, %v6225
    %v6227 = vpop.f32.mrf.mxu0
    %6228 = vmatprep.mubr.bf16.mxu0 %v4897
    %6229 = vmatmul.mubr.bf16.gmra.mxu0 %v4896
    %v6230 = vpop.f32.mrf.mxu0
    %v6231 = vadd.f32 %v5942, %v6230
    %v6232 = vpop.f32.mrf.mxu0
    %v6233 = vpop.f32.mrf.mxu0
    %v6234 = vadd.f32 %v5945, %v6233
    %v6235 = vpop.f32.mrf.mxu0
    %6236 = vmatprep.mubr.bf16.mxu0 %v4900
    %6237 = vmatmul.mubr.bf16.gmra.mxu0 %v4899
    %v6238 = vpop.f32.mrf.mxu0
    %v6239 = vadd.f32 %v5950, %v6238
    %v6240 = vpop.f32.mrf.mxu0
    %v6241 = vpop.f32.mrf.mxu0
    %v6242 = vadd.f32 %v5953, %v6241
    %v6243 = vpop.f32.mrf.mxu0
    %6244 = vmatprep.mubr.bf16.mxu0 %v4903
    %6245 = vmatmul.mubr.bf16.gmra.mxu0 %v4902
    %v6246 = vpop.f32.mrf.mxu0
    %v6247 = vadd.f32 %v5958, %v6246
    %v6248 = vpop.f32.mrf.mxu0
    %v6249 = vpop.f32.mrf.mxu0
    %v6250 = vadd.f32 %v5961, %v6249
    %v6251 = vpop.f32.mrf.mxu0
    %6252 = vmatprep.mubr.bf16.mxu0 %v4906
    %6253 = vmatmul.mubr.bf16.gmra.mxu0 %v4905
    %v6254 = vpop.f32.mrf.mxu0
    %v6255 = vadd.f32 %v5966, %v6254
    %v6256 = vpop.f32.mrf.mxu0
    %v6257 = vpop.f32.mrf.mxu0
    %v6258 = vadd.f32 %v5969, %v6257
    %v6259 = vpop.f32.mrf.mxu0
    %6260 = vmatprep.mubr.bf16.mxu0 %v4909
    %6261 = vmatmul.mubr.bf16.gmra.mxu0 %v4908
    %v6262 = vpop.f32.mrf.mxu0
    %v6263 = vadd.f32 %v5974, %v6262
    %v6264 = vpop.f32.mrf.mxu0
    %v6265 = vpop.f32.mrf.mxu0
    %v6266 = vadd.f32 %v5977, %v6265
    %v6267 = vpop.f32.mrf.mxu0
    %6268 = vmatprep.mubr.bf16.mxu0 %v4912
    %6269 = vmatmul.mubr.bf16.gmra.mxu0 %v4911
    %v6270 = vpop.f32.mrf.mxu0
    %v6271 = vadd.f32 %v5982, %v6270
    %v6272 = vpop.f32.mrf.mxu0
    %v6273 = vpop.f32.mrf.mxu0
    %v6274 = vadd.f32 %v5985, %v6273
    %v6275 = vpop.f32.mrf.mxu0
    %6276 = vmatprep.mubr.bf16.mxu0 %v4915
    %6277 = vmatmul.mubr.bf16.gmra.mxu0 %v4914
    %v6278 = vpop.f32.mrf.mxu0
    %v6279 = vadd.f32 %v5990, %v6278
    %v6280 = vpop.f32.mrf.mxu0
    %v6281 = vpop.f32.mrf.mxu0
    %v6282 = vadd.f32 %v5993, %v6281
    %v6283 = vpop.f32.mrf.mxu0
    %6284 = vmatprep.mubr.bf16.mxu0 %v4918
    %6285 = vmatmul.mubr.bf16.gmra.mxu0 %v4917
    %v6286 = vpop.f32.mrf.mxu0
    %v6287 = vadd.f32 %v5998, %v6286
    %v6288 = vpop.f32.mrf.mxu0
    %v6289 = vpop.f32.mrf.mxu0
    %v6290 = vadd.f32 %v6001, %v6289
    %v6291 = vpop.f32.mrf.mxu0
    %6292 = vmatprep.mubr.bf16.mxu0 %v4921
    %6293 = vmatmul.mubr.bf16.gmra.mxu0 %v4920
    %v6294 = vpop.f32.mrf.mxu0
    %v6295 = vadd.f32 %v6006, %v6294
    %v6296 = vpop.f32.mrf.mxu0
    %v6297 = vpop.f32.mrf.mxu0
    %v6298 = vadd.f32 %v6009, %v6297
    %v6299 = vpop.f32.mrf.mxu0
    %6300 = vmatprep.mubr.bf16.mxu0 %v4930
    %6301 = vmatmul.mubr.bf16.gmra.mxu0 %v4929
    %v6302 = vpop.f32.mrf.mxu0
    %v6303 = vadd.f32 %v6014, %v6302
    %v6304 = vpop.f32.mrf.mxu0
    %v6305 = vpop.f32.mrf.mxu0
    %v6306 = vadd.f32 %v6017, %v6305
    %v6307 = vpop.f32.mrf.mxu0
    %6308 = vmatprep.mubr.bf16.mxu0 %v4933
    %6309 = vmatmul.mubr.bf16.gmra.mxu0 %v4932
    %v6310 = vpop.f32.mrf.mxu0
    %v6311 = vadd.f32 %v6022, %v6310
    %v6312 = vpop.f32.mrf.mxu0
    %v6313 = vpop.f32.mrf.mxu0
    %v6314 = vadd.f32 %v6025, %v6313
    %v6315 = vpop.f32.mrf.mxu0
    %6316 = vmatprep.mubr.bf16.mxu0 %v4936
    %6317 = vmatmul.mubr.bf16.gmra.mxu0 %v4935
    %v6318 = vpop.f32.mrf.mxu0
    %v6319 = vadd.f32 %v6030, %v6318
    %v6320 = vpop.f32.mrf.mxu0
    %v6321 = vpop.f32.mrf.mxu0
    %v6322 = vadd.f32 %v6033, %v6321
    %v6323 = vpop.f32.mrf.mxu0
    %6324 = vmatprep.mubr.bf16.mxu0 %v4939
    %6325 = vmatmul.mubr.bf16.gmra.mxu0 %v4938
    %v6326 = vpop.f32.mrf.mxu0
    %v6327 = vadd.f32 %v6038, %v6326
    %v6328 = vpop.f32.mrf.mxu0
    %v6329 = vpop.f32.mrf.mxu0
    %v6330 = vadd.f32 %v6041, %v6329
    %v6331 = vpop.f32.mrf.mxu0
    %6332 = vmatprep.mubr.bf16.mxu0 %v4942
    %6333 = vmatmul.mubr.bf16.gmra.mxu0 %v4941
    %v6334 = vpop.f32.mrf.mxu0
    %v6335 = vadd.f32 %v6046, %v6334
    %v6336 = vpop.f32.mrf.mxu0
    %v6337 = vpop.f32.mrf.mxu0
    %v6338 = vadd.f32 %v6049, %v6337
    %v6339 = vpop.f32.mrf.mxu0
    %6340 = vmatprep.mubr.bf16.mxu0 %v4945
    %6341 = vmatmul.mubr.bf16.gmra.mxu0 %v4944
    %v6342 = vpop.f32.mrf.mxu0
    %v6343 = vadd.f32 %v6054, %v6342
    %v6344 = vpop.f32.mrf.mxu0
    %v6345 = vpop.f32.mrf.mxu0
    %v6346 = vadd.f32 %v6057, %v6345
    %v6347 = vpop.f32.mrf.mxu0
    %6348 = vmatprep.mubr.bf16.mxu0 %v4948
    %6349 = vmatmul.mubr.bf16.gmra.mxu0 %v4947
    %v6350 = vpop.f32.mrf.mxu0
    %v6351 = vadd.f32 %v6062, %v6350
    %v6352 = vpop.f32.mrf.mxu0
    %v6353 = vpop.f32.mrf.mxu0
    %v6354 = vadd.f32 %v6065, %v6353
    %v6355 = vpop.f32.mrf.mxu0
    %6356 = vmatprep.mubr.bf16.mxu0 %v4951
    %6357 = vmatmul.mubr.bf16.gmra.mxu0 %v4950
    %v6358 = vpop.f32.mrf.mxu0
    %v6359 = vadd.f32 %v6070, %v6358
    %v6360 = vpop.f32.mrf.mxu0
    %v6361 = vpop.f32.mrf.mxu0
    %v6362 = vadd.f32 %v6073, %v6361
    %v6363 = vpop.f32.mrf.mxu0
    %6364 = vmatprep.mubr.bf16.mxu0 %v4954
    %6365 = vmatmul.mubr.bf16.gmra.mxu0 %v4953
    %v6366 = vpop.f32.mrf.mxu0
    %v6367 = vadd.f32 %v6078, %v6366
    %v6368 = vpop.f32.mrf.mxu0
    %v6369 = vpop.f32.mrf.mxu0
    %v6370 = vadd.f32 %v6081, %v6369
    %v6371 = vpop.f32.mrf.mxu0
    %6372 = vmatprep.mubr.bf16.mxu0 %v4957
    %6373 = vmatmul.mubr.bf16.gmra.mxu0 %v4956
    %v6374 = vpop.f32.mrf.mxu0
    %v6375 = vadd.f32 %v6086, %v6374
    %v6376 = vpop.f32.mrf.mxu0
    %v6377 = vpop.f32.mrf.mxu0
    %v6378 = vadd.f32 %v6089, %v6377
    %v6379 = vpop.f32.mrf.mxu0
    %6380 = vmatprep.mubr.bf16.mxu0 %v4960
    %6381 = vmatmul.mubr.bf16.gmra.mxu0 %v4959
    %v6382 = vpop.f32.mrf.mxu0
    %v6383 = vadd.f32 %v6094, %v6382
    %v6384 = vpop.f32.mrf.mxu0
    %v6385 = vpop.f32.mrf.mxu0
    %v6386 = vadd.f32 %v6097, %v6385
    %v6387 = vpop.f32.mrf.mxu0
    %6388 = vmatprep.mubr.bf16.mxu0 %v4963
    %6389 = vmatmul.mubr.bf16.gmra.mxu0 %v4962
    %v6390 = vpop.f32.mrf.mxu0
    %v6391 = vadd.f32 %v6102, %v6390
    %v6392 = vpop.f32.mrf.mxu0
    %v6393 = vpop.f32.mrf.mxu0
    %v6394 = vadd.f32 %v6105, %v6393
    %v6395 = vpop.f32.mrf.mxu0
    %6396 = vmatprep.mubr.bf16.mxu0 %v4966
    %6397 = vmatmul.mubr.bf16.gmra.mxu0 %v4965
    %v6398 = vpop.f32.mrf.mxu0
    %v6399 = vadd.f32 %v6110, %v6398
    %v6400 = vpop.f32.mrf.mxu0
    %v6401 = vpop.f32.mrf.mxu0
    %v6402 = vadd.f32 %v6113, %v6401
    %v6403 = vpop.f32.mrf.mxu0
    %6404 = vmatprep.mubr.bf16.mxu0 %v4969
    %6405 = vmatmul.mubr.bf16.gmra.mxu0 %v4968
    %v6406 = vpop.f32.mrf.mxu0
    %v6407 = vadd.f32 %v6118, %v6406
    %v6408 = vpop.f32.mrf.mxu0
    %v6409 = vpop.f32.mrf.mxu0
    %v6410 = vadd.f32 %v6121, %v6409
    %v6411 = vpop.f32.mrf.mxu0
    %6412 = vmatprep.mubr.bf16.mxu0 %v4972
    %6413 = vmatmul.mubr.bf16.gmra.mxu0 %v4971
    %v6414 = vpop.f32.mrf.mxu0
    %v6415 = vadd.f32 %v6126, %v6414
    %v6416 = vpop.f32.mrf.mxu0
    %v6417 = vpop.f32.mrf.mxu0
    %v6418 = vadd.f32 %v6129, %v6417
    %v6419 = vpop.f32.mrf.mxu0
    %6420 = vmatprep.mubr.bf16.mxu0 %v4975
    %6421 = vmatmul.mubr.bf16.gmra.mxu0 %v4974
    %v6422 = vpop.f32.mrf.mxu0
    %v6423 = vadd.f32 %v6134, %v6422
    %v6424 = vpop.f32.mrf.mxu0
    %v6425 = vpop.f32.mrf.mxu0
    %v6426 = vadd.f32 %v6137, %v6425
    %v6427 = vpop.f32.mrf.mxu0
    %6428 = vdwg.mxu0
    %6429 = vmatprep.subr.bf16.mxu0 0
    %6430 = vmatpush1.bf16.msra.mxu0 %v5473
    %6431 = vmatprep.subr.bf16.mxu0 0
    %6432 = vmatpush1.bf16.msra.mxu0 %v5472
    %6433 = vmatprep.subr.bf16.mxu0 0
    %6434 = vmatpush1.bf16.msra.mxu0 %v5471
    %6435 = vmatprep.subr.bf16.mxu0 0
    %6436 = vmatpush1.bf16.msra.mxu0 %v5470
    %6437 = vmatprep.subr.bf16.mxu0 0
    %6438 = vmatpush1.bf16.msra.mxu0 %v5469
    %6439 = vmatprep.subr.bf16.mxu0 0
    %6440 = vmatpush1.bf16.msra.mxu0 %v5468
    %6441 = vmatprep.subr.bf16.mxu0 0
    %6442 = vmatpush1.bf16.msra.mxu0 %v5467
    %6443 = vmatprep.subr.bf16.mxu0 0
    %6444 = vmatpush1.bf16.msra.mxu0 %v5466
    %6445 = vmatprep.subr.bf16.mxu0 0
    %6446 = vmatpush2.bf16.msra.mxu0 %v5481
    %6447 = vmatprep.subr.bf16.mxu0 0
    %6448 = vmatpush2.bf16.msra.mxu0 %v5480
    %6449 = vmatprep.subr.bf16.mxu0 0
    %6450 = vmatpush2.bf16.msra.mxu0 %v5479
    %6451 = vmatprep.subr.bf16.mxu0 0
    %6452 = vmatpush2.bf16.msra.mxu0 %v5478
    %6453 = vmatprep.subr.bf16.mxu0 0
    %6454 = vmatpush2.bf16.msra.mxu0 %v5477
    %6455 = vmatprep.subr.bf16.mxu0 0
    %6456 = vmatpush2.bf16.msra.mxu0 %v5476
    %6457 = vmatprep.subr.bf16.mxu0 0
    %6458 = vmatpush2.bf16.msra.mxu0 %v5475
    %6459 = vmatprep.subr.bf16.mxu0 0
    %6460 = vmatpush2.bf16.msra.mxu0 %v5474
    %6461 = vmatprep.mubr.bf16.mxu0 %v4878
    %6462 = vmatmul.mubr.bf16.gmra.mxu0 %v4877
    %v6463 = vpop.f32.mrf.mxu0
    %v6464 = vadd.f32 %v6175, %v6463
    %v6465 = vpop.f32.mrf.mxu0
    %v6466 = vpop.f32.mrf.mxu0
    %v6467 = vadd.f32 %v6178, %v6466
    %v6468 = vpop.f32.mrf.mxu0
    %6469 = vmatprep.mubr.bf16.mxu0 %v4881
    %6470 = vmatmul.mubr.bf16.gmra.mxu0 %v4880
    %v6471 = vpop.f32.mrf.mxu0
    %v6472 = vadd.f32 %v6183, %v6471
    %v6473 = vpop.f32.mrf.mxu0
    %v6474 = vpop.f32.mrf.mxu0
    %v6475 = vadd.f32 %v6186, %v6474
    %v6476 = vpop.f32.mrf.mxu0
    %6477 = vmatprep.mubr.bf16.mxu0 %v4884
    %6478 = vmatmul.mubr.bf16.gmra.mxu0 %v4883
    %v6479 = vpop.f32.mrf.mxu0
    %v6480 = vadd.f32 %v6191, %v6479
    %v6481 = vpop.f32.mrf.mxu0
    %v6482 = vpop.f32.mrf.mxu0
    %v6483 = vadd.f32 %v6194, %v6482
    %v6484 = vpop.f32.mrf.mxu0
    %6485 = vmatprep.mubr.bf16.mxu0 %v4887
    %6486 = vmatmul.mubr.bf16.gmra.mxu0 %v4886
    %v6487 = vpop.f32.mrf.mxu0
    %v6488 = vadd.f32 %v6199, %v6487
    %v6489 = vpop.f32.mrf.mxu0
    %v6490 = vpop.f32.mrf.mxu0
    %v6491 = vadd.f32 %v6202, %v6490
    %v6492 = vpop.f32.mrf.mxu0
    %6493 = vmatprep.mubr.bf16.mxu0 %v4890
    %6494 = vmatmul.mubr.bf16.gmra.mxu0 %v4889
    %v6495 = vpop.f32.mrf.mxu0
    %v6496 = vadd.f32 %v6207, %v6495
    %v6497 = vpop.f32.mrf.mxu0
    %v6498 = vpop.f32.mrf.mxu0
    %v6499 = vadd.f32 %v6210, %v6498
    %v6500 = vpop.f32.mrf.mxu0
    %6501 = vmatprep.mubr.bf16.mxu0 %v4893
    %6502 = vmatmul.mubr.bf16.gmra.mxu0 %v4892
    %v6503 = vpop.f32.mrf.mxu0
    %v6504 = vadd.f32 %v6215, %v6503
    %v6505 = vpop.f32.mrf.mxu0
    %v6506 = vpop.f32.mrf.mxu0
    %v6507 = vadd.f32 %v6218, %v6506
    %v6508 = vpop.f32.mrf.mxu0
    %6509 = vmatprep.mubr.bf16.mxu0 %v4896
    %6510 = vmatmul.mubr.bf16.gmra.mxu0 %v4895
    %v6511 = vpop.f32.mrf.mxu0
    %v6512 = vadd.f32 %v6223, %v6511
    %v6513 = vpop.f32.mrf.mxu0
    %v6514 = vpop.f32.mrf.mxu0
    %v6515 = vadd.f32 %v6226, %v6514
    %v6516 = vpop.f32.mrf.mxu0
    %6517 = vmatprep.mubr.bf16.mxu0 %v4899
    %6518 = vmatmul.mubr.bf16.gmra.mxu0 %v4898
    %v6519 = vpop.f32.mrf.mxu0
    %v6520 = vadd.f32 %v6231, %v6519
    %v6521 = vpop.f32.mrf.mxu0
    %v6522 = vpop.f32.mrf.mxu0
    %v6523 = vadd.f32 %v6234, %v6522
    %v6524 = vpop.f32.mrf.mxu0
    %6525 = vmatprep.mubr.bf16.mxu0 %v4902
    %6526 = vmatmul.mubr.bf16.gmra.mxu0 %v4901
    %v6527 = vpop.f32.mrf.mxu0
    %v6528 = vadd.f32 %v6239, %v6527
    %v6529 = vpop.f32.mrf.mxu0
    %v6530 = vpop.f32.mrf.mxu0
    %v6531 = vadd.f32 %v6242, %v6530
    %v6532 = vpop.f32.mrf.mxu0
    %6533 = vmatprep.mubr.bf16.mxu0 %v4905
    %6534 = vmatmul.mubr.bf16.gmra.mxu0 %v4904
    %v6535 = vpop.f32.mrf.mxu0
    %v6536 = vadd.f32 %v6247, %v6535
    %v6537 = vpop.f32.mrf.mxu0
    %v6538 = vpop.f32.mrf.mxu0
    %v6539 = vadd.f32 %v6250, %v6538
    %v6540 = vpop.f32.mrf.mxu0
    %6541 = vmatprep.mubr.bf16.mxu0 %v4908
    %6542 = vmatmul.mubr.bf16.gmra.mxu0 %v4907
    %v6543 = vpop.f32.mrf.mxu0
    %v6544 = vadd.f32 %v6255, %v6543
    %v6545 = vpop.f32.mrf.mxu0
    %v6546 = vpop.f32.mrf.mxu0
    %v6547 = vadd.f32 %v6258, %v6546
    %v6548 = vpop.f32.mrf.mxu0
    %6549 = vmatprep.mubr.bf16.mxu0 %v4911
    %6550 = vmatmul.mubr.bf16.gmra.mxu0 %v4910
    %v6551 = vpop.f32.mrf.mxu0
    %v6552 = vadd.f32 %v6263, %v6551
    %v6553 = vpop.f32.mrf.mxu0
    %v6554 = vpop.f32.mrf.mxu0
    %v6555 = vadd.f32 %v6266, %v6554
    %v6556 = vpop.f32.mrf.mxu0
    %6557 = vmatprep.mubr.bf16.mxu0 %v4914
    %6558 = vmatmul.mubr.bf16.gmra.mxu0 %v4913
    %v6559 = vpop.f32.mrf.mxu0
    %v6560 = vadd.f32 %v6271, %v6559
    %v6561 = vpop.f32.mrf.mxu0
    %v6562 = vpop.f32.mrf.mxu0
    %v6563 = vadd.f32 %v6274, %v6562
    %v6564 = vpop.f32.mrf.mxu0
    %6565 = vmatprep.mubr.bf16.mxu0 %v4917
    %6566 = vmatmul.mubr.bf16.gmra.mxu0 %v4916
    %v6567 = vpop.f32.mrf.mxu0
    %v6568 = vadd.f32 %v6279, %v6567
    %v6569 = vpop.f32.mrf.mxu0
    %v6570 = vpop.f32.mrf.mxu0
    %v6571 = vadd.f32 %v6282, %v6570
    %v6572 = vpop.f32.mrf.mxu0
    %6573 = vmatprep.mubr.bf16.mxu0 %v4920
    %6574 = vmatmul.mubr.bf16.gmra.mxu0 %v4919
    %v6575 = vpop.f32.mrf.mxu0
    %v6576 = vadd.f32 %v6287, %v6575
    %v6577 = vpop.f32.mrf.mxu0
    %v6578 = vpop.f32.mrf.mxu0
    %v6579 = vadd.f32 %v6290, %v6578
    %v6580 = vpop.f32.mrf.mxu0
    %6581 = vmatprep.mubr.bf16.mxu0 %v4923
    %6582 = vmatmul.mubr.bf16.gmra.mxu0 %v4922
    %v6583 = vpop.f32.mrf.mxu0
    %v6584 = vadd.f32 %v6295, %v6583
    %v6585 = vpop.f32.mrf.mxu0
    %v6586 = vpop.f32.mrf.mxu0
    %v6587 = vadd.f32 %v6298, %v6586
    %v6588 = vpop.f32.mrf.mxu0
    %6589 = vmatprep.mubr.bf16.mxu0 %v4932
    %6590 = vmatmul.mubr.bf16.gmra.mxu0 %v4931
    %v6591 = vpop.f32.mrf.mxu0
    %v6592 = vadd.f32 %v6303, %v6591
    %v6593 = vpop.f32.mrf.mxu0
    %v6594 = vpop.f32.mrf.mxu0
    %v6595 = vadd.f32 %v6306, %v6594
    %v6596 = vpop.f32.mrf.mxu0
    %6597 = vmatprep.mubr.bf16.mxu0 %v4935
    %6598 = vmatmul.mubr.bf16.gmra.mxu0 %v4934
    %v6599 = vpop.f32.mrf.mxu0
    %v6600 = vadd.f32 %v6311, %v6599
    %v6601 = vpop.f32.mrf.mxu0
    %v6602 = vpop.f32.mrf.mxu0
    %v6603 = vadd.f32 %v6314, %v6602
    %v6604 = vpop.f32.mrf.mxu0
    %6605 = vmatprep.mubr.bf16.mxu0 %v4938
    %6606 = vmatmul.mubr.bf16.gmra.mxu0 %v4937
    %v6607 = vpop.f32.mrf.mxu0
    %v6608 = vadd.f32 %v6319, %v6607
    %v6609 = vpop.f32.mrf.mxu0
    %v6610 = vpop.f32.mrf.mxu0
    %v6611 = vadd.f32 %v6322, %v6610
    %v6612 = vpop.f32.mrf.mxu0
    %6613 = vmatprep.mubr.bf16.mxu0 %v4941
    %6614 = vmatmul.mubr.bf16.gmra.mxu0 %v4940
    %v6615 = vpop.f32.mrf.mxu0
    %v6616 = vadd.f32 %v6327, %v6615
    %v6617 = vpop.f32.mrf.mxu0
    %v6618 = vpop.f32.mrf.mxu0
    %v6619 = vadd.f32 %v6330, %v6618
    %v6620 = vpop.f32.mrf.mxu0
    %6621 = vmatprep.mubr.bf16.mxu0 %v4944
    %6622 = vmatmul.mubr.bf16.gmra.mxu0 %v4943
    %v6623 = vpop.f32.mrf.mxu0
    %v6624 = vadd.f32 %v6335, %v6623
    %v6625 = vpop.f32.mrf.mxu0
    %v6626 = vpop.f32.mrf.mxu0
    %v6627 = vadd.f32 %v6338, %v6626
    %v6628 = vpop.f32.mrf.mxu0
    %6629 = vmatprep.mubr.bf16.mxu0 %v4947
    %6630 = vmatmul.mubr.bf16.gmra.mxu0 %v4946
    %v6631 = vpop.f32.mrf.mxu0
    %v6632 = vadd.f32 %v6343, %v6631
    %v6633 = vpop.f32.mrf.mxu0
    %v6634 = vpop.f32.mrf.mxu0
    %v6635 = vadd.f32 %v6346, %v6634
    %v6636 = vpop.f32.mrf.mxu0
    %6637 = vmatprep.mubr.bf16.mxu0 %v4950
    %6638 = vmatmul.mubr.bf16.gmra.mxu0 %v4949
    %v6639 = vpop.f32.mrf.mxu0
    %v6640 = vadd.f32 %v6351, %v6639
    %v6641 = vpop.f32.mrf.mxu0
    %v6642 = vpop.f32.mrf.mxu0
    %v6643 = vadd.f32 %v6354, %v6642
    %v6644 = vpop.f32.mrf.mxu0
    %6645 = vmatprep.mubr.bf16.mxu0 %v4953
    %6646 = vmatmul.mubr.bf16.gmra.mxu0 %v4952
    %v6647 = vpop.f32.mrf.mxu0
    %v6648 = vadd.f32 %v6359, %v6647
    %v6649 = vpop.f32.mrf.mxu0
    %v6650 = vpop.f32.mrf.mxu0
    %v6651 = vadd.f32 %v6362, %v6650
    %v6652 = vpop.f32.mrf.mxu0
    %6653 = vmatprep.mubr.bf16.mxu0 %v4956
    %6654 = vmatmul.mubr.bf16.gmra.mxu0 %v4955
    %v6655 = vpop.f32.mrf.mxu0
    %v6656 = vadd.f32 %v6367, %v6655
    %v6657 = vpop.f32.mrf.mxu0
    %v6658 = vpop.f32.mrf.mxu0
    %v6659 = vadd.f32 %v6370, %v6658
    %v6660 = vpop.f32.mrf.mxu0
    %6661 = vmatprep.mubr.bf16.mxu0 %v4959
    %6662 = vmatmul.mubr.bf16.gmra.mxu0 %v4958
    %v6663 = vpop.f32.mrf.mxu0
    %v6664 = vadd.f32 %v6375, %v6663
    %v6665 = vpop.f32.mrf.mxu0
    %v6666 = vpop.f32.mrf.mxu0
    %v6667 = vadd.f32 %v6378, %v6666
    %v6668 = vpop.f32.mrf.mxu0
    %6669 = vmatprep.mubr.bf16.mxu0 %v4962
    %6670 = vmatmul.mubr.bf16.gmra.mxu0 %v4961
    %v6671 = vpop.f32.mrf.mxu0
    %v6672 = vadd.f32 %v6383, %v6671
    %v6673 = vpop.f32.mrf.mxu0
    %v6674 = vpop.f32.mrf.mxu0
    %v6675 = vadd.f32 %v6386, %v6674
    %v6676 = vpop.f32.mrf.mxu0
    %6677 = vmatprep.mubr.bf16.mxu0 %v4965
    %6678 = vmatmul.mubr.bf16.gmra.mxu0 %v4964
    %v6679 = vpop.f32.mrf.mxu0
    %v6680 = vadd.f32 %v6391, %v6679
    %v6681 = vpop.f32.mrf.mxu0
    %v6682 = vpop.f32.mrf.mxu0
    %v6683 = vadd.f32 %v6394, %v6682
    %v6684 = vpop.f32.mrf.mxu0
    %6685 = vmatprep.mubr.bf16.mxu0 %v4968
    %6686 = vmatmul.mubr.bf16.gmra.mxu0 %v4967
    %v6687 = vpop.f32.mrf.mxu0
    %v6688 = vadd.f32 %v6399, %v6687
    %v6689 = vpop.f32.mrf.mxu0
    %v6690 = vpop.f32.mrf.mxu0
    %v6691 = vadd.f32 %v6402, %v6690
    %v6692 = vpop.f32.mrf.mxu0
    %6693 = vmatprep.mubr.bf16.mxu0 %v4971
    %6694 = vmatmul.mubr.bf16.gmra.mxu0 %v4970
    %v6695 = vpop.f32.mrf.mxu0
    %v6696 = vadd.f32 %v6407, %v6695
    %v6697 = vpop.f32.mrf.mxu0
    %v6698 = vpop.f32.mrf.mxu0
    %v6699 = vadd.f32 %v6410, %v6698
    %v6700 = vpop.f32.mrf.mxu0
    %6701 = vmatprep.mubr.bf16.mxu0 %v4974
    %6702 = vmatmul.mubr.bf16.gmra.mxu0 %v4973
    %v6703 = vpop.f32.mrf.mxu0
    %v6704 = vadd.f32 %v6415, %v6703
    %v6705 = vpop.f32.mrf.mxu0
    %v6706 = vpop.f32.mrf.mxu0
    %v6707 = vadd.f32 %v6418, %v6706
    %v6708 = vpop.f32.mrf.mxu0
    %6709 = vmatprep.mubr.bf16.mxu0 %v4977
    %6710 = vmatmul.mubr.bf16.gmra.mxu0 %v4976
    %v6711 = vpop.f32.mrf.mxu0
    %v6712 = vadd.f32 %v6423, %v6711
    %v6713 = vpop.f32.mrf.mxu0
    %v6714 = vpop.f32.mrf.mxu0
    %v6715 = vadd.f32 %v6426, %v6714
    %v6716 = vpop.f32.mrf.mxu0
    %6717 = vdwg.mxu0
    %6718 = vmatprep.subr.bf16.mxu0 0
    %6719 = vmatpush1.bf16.msra.mxu0 %v5489
    %6720 = vmatprep.subr.bf16.mxu0 0
    %6721 = vmatpush1.bf16.msra.mxu0 %v5488
    %6722 = vmatprep.subr.bf16.mxu0 0
    %6723 = vmatpush1.bf16.msra.mxu0 %v5487
    %6724 = vmatprep.subr.bf16.mxu0 0
    %6725 = vmatpush1.bf16.msra.mxu0 %v5486
    %6726 = vmatprep.subr.bf16.mxu0 0
    %6727 = vmatpush1.bf16.msra.mxu0 %v5485
    %6728 = vmatprep.subr.bf16.mxu0 0
    %6729 = vmatpush1.bf16.msra.mxu0 %v5484
    %6730 = vmatprep.subr.bf16.mxu0 0
    %6731 = vmatpush1.bf16.msra.mxu0 %v5483
    %6732 = vmatprep.subr.bf16.mxu0 0
    %6733 = vmatpush1.bf16.msra.mxu0 %v5482
    %6734 = vmatprep.subr.bf16.mxu0 0
    %6735 = vmatpush2.bf16.msra.mxu0 0
    %6736 = vmatprep.subr.bf16.mxu0 0
    %6737 = vmatpush2.bf16.msra.mxu0 0
    %6738 = vmatprep.subr.bf16.mxu0 0
    %6739 = vmatpush2.bf16.msra.mxu0 0
    %6740 = vmatprep.subr.bf16.mxu0 0
    %6741 = vmatpush2.bf16.msra.mxu0 0
    %6742 = vmatprep.subr.bf16.mxu0 0
    %6743 = vmatpush2.bf16.msra.mxu0 0
    %6744 = vmatprep.subr.bf16.mxu0 0
    %6745 = vmatpush2.bf16.msra.mxu0 0
    %6746 = vmatprep.subr.bf16.mxu0 0
    %6747 = vmatpush2.bf16.msra.mxu0 0
    %6748 = vmatprep.subr.bf16.mxu0 0
    %6749 = vmatpush2.bf16.msra.mxu0 0
    %6750 = vmatprep.mubr.bf16.mxu0 0
    %6751 = vmatmul.mubr.bf16.gmra.mxu0 %v4879
    %v6752 = vpop.f32.mrf.mxu0
    %v6753 = vadd.f32 %v6464, %v6752
    %v6754 = vpop.f32.mrf.mxu0
    %v6755 = vpop.f32.mrf.mxu0
    %v6756 = vadd.f32 %v6467, %v6755
    %v6757 = vpop.f32.mrf.mxu0
    %6758 = vmatprep.mubr.bf16.mxu0 0
    %6759 = vmatmul.mubr.bf16.gmra.mxu0 %v4882
    %v6760 = vpop.f32.mrf.mxu0
    %v6761 = vadd.f32 %v6472, %v6760
    %v6762 = vpop.f32.mrf.mxu0
    %v6763 = vpop.f32.mrf.mxu0
    %v6764 = vadd.f32 %v6475, %v6763
    %v6765 = vpop.f32.mrf.mxu0
    %6766 = vmatprep.mubr.bf16.mxu0 0
    %6767 = vmatmul.mubr.bf16.gmra.mxu0 %v4885
    %v6768 = vpop.f32.mrf.mxu0
    %v6769 = vadd.f32 %v6480, %v6768
    %v6770 = vpop.f32.mrf.mxu0
    %v6771 = vpop.f32.mrf.mxu0
    %v6772 = vadd.f32 %v6483, %v6771
    %v6773 = vpop.f32.mrf.mxu0
    %6774 = vmatprep.mubr.bf16.mxu0 0
    %6775 = vmatmul.mubr.bf16.gmra.mxu0 %v4888
    %v6776 = vpop.f32.mrf.mxu0
    %v6777 = vadd.f32 %v6488, %v6776
    %v6778 = vpop.f32.mrf.mxu0
    %v6779 = vpop.f32.mrf.mxu0
    %v6780 = vadd.f32 %v6491, %v6779
    %v6781 = vpop.f32.mrf.mxu0
    %6782 = vmatprep.mubr.bf16.mxu0 0
    %6783 = vmatmul.mubr.bf16.gmra.mxu0 %v4891
    %v6784 = vpop.f32.mrf.mxu0
    %v6785 = vadd.f32 %v6496, %v6784
    %v6786 = vpop.f32.mrf.mxu0
    %v6787 = vpop.f32.mrf.mxu0
    %v6788 = vadd.f32 %v6499, %v6787
    %v6789 = vpop.f32.mrf.mxu0
    %6790 = vmatprep.mubr.bf16.mxu0 0
    %6791 = vmatmul.mubr.bf16.gmra.mxu0 %v4894
    %v6792 = vpop.f32.mrf.mxu0
    %v6793 = vadd.f32 %v6504, %v6792
    %v6794 = vpop.f32.mrf.mxu0
    %v6795 = vpop.f32.mrf.mxu0
    %v6796 = vadd.f32 %v6507, %v6795
    %v6797 = vpop.f32.mrf.mxu0
    %6798 = vmatprep.mubr.bf16.mxu0 0
    %6799 = vmatmul.mubr.bf16.gmra.mxu0 %v4897
    %v6800 = vpop.f32.mrf.mxu0
    %v6801 = vadd.f32 %v6512, %v6800
    %v6802 = vpop.f32.mrf.mxu0
    %v6803 = vpop.f32.mrf.mxu0
    %v6804 = vadd.f32 %v6515, %v6803
    %v6805 = vpop.f32.mrf.mxu0
    %6806 = vmatprep.mubr.bf16.mxu0 0
    %6807 = vmatmul.mubr.bf16.gmra.mxu0 %v4900
    %v6808 = vpop.f32.mrf.mxu0
    %v6809 = vadd.f32 %v6520, %v6808
    %v6810 = vpop.f32.mrf.mxu0
    %v6811 = vpop.f32.mrf.mxu0
    %v6812 = vadd.f32 %v6523, %v6811
    %v6813 = vpop.f32.mrf.mxu0
    %6814 = vmatprep.mubr.bf16.mxu0 0
    %6815 = vmatmul.mubr.bf16.gmra.mxu0 %v4903
    %v6816 = vpop.f32.mrf.mxu0
    %v6817 = vadd.f32 %v6528, %v6816
    %v6818 = vpop.f32.mrf.mxu0
    %v6819 = vpop.f32.mrf.mxu0
    %v6820 = vadd.f32 %v6531, %v6819
    %v6821 = vpop.f32.mrf.mxu0
    %6822 = vmatprep.mubr.bf16.mxu0 0
    %6823 = vmatmul.mubr.bf16.gmra.mxu0 %v4906
    %v6824 = vpop.f32.mrf.mxu0
    %v6825 = vadd.f32 %v6536, %v6824
    %v6826 = vpop.f32.mrf.mxu0
    %v6827 = vpop.f32.mrf.mxu0
    %v6828 = vadd.f32 %v6539, %v6827
    %v6829 = vpop.f32.mrf.mxu0
    %6830 = vmatprep.mubr.bf16.mxu0 0
    %6831 = vmatmul.mubr.bf16.gmra.mxu0 %v4909
    %v6832 = vpop.f32.mrf.mxu0
    %v6833 = vadd.f32 %v6544, %v6832
    %v6834 = vpop.f32.mrf.mxu0
    %v6835 = vpop.f32.mrf.mxu0
    %v6836 = vadd.f32 %v6547, %v6835
    %v6837 = vpop.f32.mrf.mxu0
    %6838 = vmatprep.mubr.bf16.mxu0 0
    %6839 = vmatmul.mubr.bf16.gmra.mxu0 %v4912
    %v6840 = vpop.f32.mrf.mxu0
    %v6841 = vadd.f32 %v6552, %v6840
    %v6842 = vpop.f32.mrf.mxu0
    %v6843 = vpop.f32.mrf.mxu0
    %v6844 = vadd.f32 %v6555, %v6843
    %v6845 = vpop.f32.mrf.mxu0
    %6846 = vmatprep.mubr.bf16.mxu0 0
    %6847 = vmatmul.mubr.bf16.gmra.mxu0 %v4915
    %v6848 = vpop.f32.mrf.mxu0
    %v6849 = vadd.f32 %v6560, %v6848
    %v6850 = vpop.f32.mrf.mxu0
    %v6851 = vpop.f32.mrf.mxu0
    %v6852 = vadd.f32 %v6563, %v6851
    %v6853 = vpop.f32.mrf.mxu0
    %6854 = vmatprep.mubr.bf16.mxu0 0
    %6855 = vmatmul.mubr.bf16.gmra.mxu0 %v4918
    %v6856 = vpop.f32.mrf.mxu0
    %v6857 = vadd.f32 %v6568, %v6856
    %v6858 = vpop.f32.mrf.mxu0
    %v6859 = vpop.f32.mrf.mxu0
    %v6860 = vadd.f32 %v6571, %v6859
    %v6861 = vpop.f32.mrf.mxu0
    %6862 = vmatprep.mubr.bf16.mxu0 0
    %6863 = vmatmul.mubr.bf16.gmra.mxu0 %v4921
    %v6864 = vpop.f32.mrf.mxu0
    %v6865 = vadd.f32 %v6576, %v6864
    %v6866 = vpop.f32.mrf.mxu0
    %v6867 = vpop.f32.mrf.mxu0
    %v6868 = vadd.f32 %v6579, %v6867
    %v6869 = vpop.f32.mrf.mxu0
    %6870 = vmatprep.mubr.bf16.mxu0 0
    %6871 = vmatmul.mubr.bf16.gmra.mxu0 %v4924
    %v6872 = vpop.f32.mrf.mxu0
    %v6873 = vadd.f32 %v6584, %v6872
    %v6874 = vpop.f32.mrf.mxu0
    %v6875 = vpop.f32.mrf.mxu0
    %v6876 = vadd.f32 %v6587, %v6875
    %v6877 = vpop.f32.mrf.mxu0
    %6878 = vmatprep.mubr.bf16.mxu0 0
    %6879 = vmatmul.mubr.bf16.gmra.mxu0 %v4933
    %v6880 = vpop.f32.mrf.mxu0
    %v6881 = vadd.f32 %v6592, %v6880
    %v6882 = vpop.f32.mrf.mxu0
    %v6883 = vpop.f32.mrf.mxu0
    %v6884 = vadd.f32 %v6595, %v6883
    %v6885 = vpop.f32.mrf.mxu0
    %6886 = vmatprep.mubr.bf16.mxu0 0
    %6887 = vmatmul.mubr.bf16.gmra.mxu0 %v4936
    %v6888 = vpop.f32.mrf.mxu0
    %v6889 = vadd.f32 %v6600, %v6888
    %v6890 = vpop.f32.mrf.mxu0
    %v6891 = vpop.f32.mrf.mxu0
    %v6892 = vadd.f32 %v6603, %v6891
    %v6893 = vpop.f32.mrf.mxu0
    %6894 = vmatprep.mubr.bf16.mxu0 0
    %6895 = vmatmul.mubr.bf16.gmra.mxu0 %v4939
    %v6896 = vpop.f32.mrf.mxu0
    %v6897 = vadd.f32 %v6608, %v6896
    %v6898 = vpop.f32.mrf.mxu0
    %v6899 = vpop.f32.mrf.mxu0
    %v6900 = vadd.f32 %v6611, %v6899
    %v6901 = vpop.f32.mrf.mxu0
    %6902 = vmatprep.mubr.bf16.mxu0 0
    %6903 = vmatmul.mubr.bf16.gmra.mxu0 %v4942
    %v6904 = vpop.f32.mrf.mxu0
    %v6905 = vadd.f32 %v6616, %v6904
    %v6906 = vpop.f32.mrf.mxu0
    %v6907 = vpop.f32.mrf.mxu0
    %v6908 = vadd.f32 %v6619, %v6907
    %v6909 = vpop.f32.mrf.mxu0
    %6910 = vmatprep.mubr.bf16.mxu0 0
    %6911 = vmatmul.mubr.bf16.gmra.mxu0 %v4945
    %v6912 = vpop.f32.mrf.mxu0
    %v6913 = vadd.f32 %v6624, %v6912
    %v6914 = vpop.f32.mrf.mxu0
    %v6915 = vpop.f32.mrf.mxu0
    %v6916 = vadd.f32 %v6627, %v6915
    %v6917 = vpop.f32.mrf.mxu0
    %6918 = vmatprep.mubr.bf16.mxu0 0
    %6919 = vmatmul.mubr.bf16.gmra.mxu0 %v4948
    %v6920 = vpop.f32.mrf.mxu0
    %v6921 = vadd.f32 %v6632, %v6920
    %v6922 = vpop.f32.mrf.mxu0
    %v6923 = vpop.f32.mrf.mxu0
    %v6924 = vadd.f32 %v6635, %v6923
    %v6925 = vpop.f32.mrf.mxu0
    %6926 = vmatprep.mubr.bf16.mxu0 0
    %6927 = vmatmul.mubr.bf16.gmra.mxu0 %v4951
    %v6928 = vpop.f32.mrf.mxu0
    %v6929 = vadd.f32 %v6640, %v6928
    %v6930 = vpop.f32.mrf.mxu0
    %v6931 = vpop.f32.mrf.mxu0
    %v6932 = vadd.f32 %v6643, %v6931
    %v6933 = vpop.f32.mrf.mxu0
    %6934 = vmatprep.mubr.bf16.mxu0 0
    %6935 = vmatmul.mubr.bf16.gmra.mxu0 %v4954
    %v6936 = vpop.f32.mrf.mxu0
    %v6937 = vadd.f32 %v6648, %v6936
    %v6938 = vpop.f32.mrf.mxu0
    %v6939 = vpop.f32.mrf.mxu0
    %v6940 = vadd.f32 %v6651, %v6939
    %v6941 = vpop.f32.mrf.mxu0
    %6942 = vmatprep.mubr.bf16.mxu0 0
    %6943 = vmatmul.mubr.bf16.gmra.mxu0 %v4957
    %v6944 = vpop.f32.mrf.mxu0
    %v6945 = vadd.f32 %v6656, %v6944
    %v6946 = vpop.f32.mrf.mxu0
    %v6947 = vpop.f32.mrf.mxu0
    %v6948 = vadd.f32 %v6659, %v6947
    %v6949 = vpop.f32.mrf.mxu0
    %6950 = vmatprep.mubr.bf16.mxu0 0
    %6951 = vmatmul.mubr.bf16.gmra.mxu0 %v4960
    %v6952 = vpop.f32.mrf.mxu0
    %v6953 = vadd.f32 %v6664, %v6952
    %v6954 = vpop.f32.mrf.mxu0
    %v6955 = vpop.f32.mrf.mxu0
    %v6956 = vadd.f32 %v6667, %v6955
    %v6957 = vpop.f32.mrf.mxu0
    %6958 = vmatprep.mubr.bf16.mxu0 0
    %6959 = vmatmul.mubr.bf16.gmra.mxu0 %v4963
    %v6960 = vpop.f32.mrf.mxu0
    %v6961 = vadd.f32 %v6672, %v6960
    %v6962 = vpop.f32.mrf.mxu0
    %v6963 = vpop.f32.mrf.mxu0
    %v6964 = vadd.f32 %v6675, %v6963
    %v6965 = vpop.f32.mrf.mxu0
    %6966 = vmatprep.mubr.bf16.mxu0 0
    %6967 = vmatmul.mubr.bf16.gmra.mxu0 %v4966
    %v6968 = vpop.f32.mrf.mxu0
    %v6969 = vadd.f32 %v6680, %v6968
    %v6970 = vpop.f32.mrf.mxu0
    %v6971 = vpop.f32.mrf.mxu0
    %v6972 = vadd.f32 %v6683, %v6971
    %v6973 = vpop.f32.mrf.mxu0
    %6974 = vmatprep.mubr.bf16.mxu0 0
    %6975 = vmatmul.mubr.bf16.gmra.mxu0 %v4969
    %v6976 = vpop.f32.mrf.mxu0
    %v6977 = vadd.f32 %v6688, %v6976
    %v6978 = vpop.f32.mrf.mxu0
    %v6979 = vpop.f32.mrf.mxu0
    %v6980 = vadd.f32 %v6691, %v6979
    %v6981 = vpop.f32.mrf.mxu0
    %6982 = vmatprep.mubr.bf16.mxu0 0
    %6983 = vmatmul.mubr.bf16.gmra.mxu0 %v4972
    %v6984 = vpop.f32.mrf.mxu0
    %v6985 = vadd.f32 %v6696, %v6984
    %v6986 = vpop.f32.mrf.mxu0
    %v6987 = vpop.f32.mrf.mxu0
    %v6988 = vadd.f32 %v6699, %v6987
    %v6989 = vpop.f32.mrf.mxu0
    %6990 = vmatprep.mubr.bf16.mxu0 0
    %6991 = vmatmul.mubr.bf16.gmra.mxu0 %v4975
    %v6992 = vpop.f32.mrf.mxu0
    %v6993 = vadd.f32 %v6704, %v6992
    %v6994 = vpop.f32.mrf.mxu0
    %v6995 = vpop.f32.mrf.mxu0
    %v6996 = vadd.f32 %v6707, %v6995
    %v6997 = vpop.f32.mrf.mxu0
    %6998 = vmatprep.mubr.bf16.mxu0 0
    %6999 = vmatmul.mubr.bf16.gmra.mxu0 %v4978
    %v7000 = vpop.f32.mrf.mxu0
    %v7001 = vadd.f32 %v6712, %v7000
    %v7002 = vpop.f32.mrf.mxu0
    %v7003 = vpop.f32.mrf.mxu0
    %v7004 = vadd.f32 %v6715, %v7003
    %v7005 = vpop.f32.mrf.mxu0
    %7006 = vdwg.mxu0
    %vm7007 = vcmask 523264
    %v7008 = vsel %vm7007, %v6753, 0.0
    %v7009 = vsel %vm7007, %v6756, 0.0
    %v7010 = vadd.f32 %v7008, %v7009
    %v7011 = vsel %vm7007, %v6761, 0.0
    %v7012 = vadd.f32 %v7010, %v7011
    %v7013 = vsel %vm7007, %v6764, 0.0
    %v7014 = vadd.f32 %v7012, %v7013
    %v7015 = vsel %vm7007, %v6769, 0.0
    %v7016 = vadd.f32 %v7014, %v7015
    %v7017 = vsel %vm7007, %v6772, 0.0
    %v7018 = vadd.f32 %v7016, %v7017
    %v7019 = vsel %vm7007, %v6777, 0.0
    %v7020 = vadd.f32 %v7018, %v7019
    %v7021 = vsel %vm7007, %v6780, 0.0
    %v7022 = vadd.f32 %v7020, %v7021
    %v7023 = vsel %vm7007, %v6785, 0.0
    %v7024 = vadd.f32 %v7022, %v7023
    %v7025 = vsel %vm7007, %v6788, 0.0
    %v7026 = vadd.f32 %v7024, %v7025
    %v7027 = vsel %vm7007, %v6793, 0.0
    %v7028 = vadd.f32 %v7026, %v7027
    %v7029 = vsel %vm7007, %v6796, 0.0
    %v7030 = vadd.f32 %v7028, %v7029
    %v7031 = vsel %vm7007, %v6801, 0.0
    %v7032 = vadd.f32 %v7030, %v7031
    %v7033 = vsel %vm7007, %v6804, 0.0
    %v7034 = vadd.f32 %v7032, %v7033
    %v7035 = vsel %vm7007, %v6809, 0.0
    %v7036 = vadd.f32 %v7034, %v7035
    %v7037 = vsel %vm7007, %v6812, 0.0
    %v7038 = vadd.f32 %v7036, %v7037
    %v7039 = vsel %vm7007, %v6817, 0.0
    %v7040 = vadd.f32 %v7038, %v7039
    %v7041 = vsel %vm7007, %v6820, 0.0
    %v7042 = vadd.f32 %v7040, %v7041
    %v7043 = vsel %vm7007, %v6825, 0.0
    %v7044 = vadd.f32 %v7042, %v7043
    %v7045 = vsel %vm7007, %v6828, 0.0
    %v7046 = vadd.f32 %v7044, %v7045
    %v7047 = vsel %vm7007, %v6833, 0.0
    %v7048 = vadd.f32 %v7046, %v7047
    %v7049 = vsel %vm7007, %v6836, 0.0
    %v7050 = vadd.f32 %v7048, %v7049
    %v7051 = vsel %vm7007, %v6841, 0.0
    %v7052 = vadd.f32 %v7050, %v7051
    %v7053 = vsel %vm7007, %v6844, 0.0
    %v7054 = vadd.f32 %v7052, %v7053
    %v7055 = vsel %vm7007, %v6849, 0.0
    %v7056 = vadd.f32 %v7054, %v7055
    %v7057 = vsel %vm7007, %v6852, 0.0
    %v7058 = vadd.f32 %v7056, %v7057
    %v7059 = vsel %vm7007, %v6857, 0.0
    %v7060 = vadd.f32 %v7058, %v7059
    %v7061 = vsel %vm7007, %v6860, 0.0
    %v7062 = vadd.f32 %v7060, %v7061
    %v7063 = vsel %vm7007, %v6865, 0.0
    %v7064 = vadd.f32 %v7062, %v7063
    %v7065 = vsel %vm7007, %v6868, 0.0
    %v7066 = vadd.f32 %v7064, %v7065
    %v7067 = vsel %vm7007, %v6873, 0.0
    %v7068 = vadd.f32 %v7066, %v7067
    %v7069 = vsel %vm7007, %v6876, 0.0
    %v7070 = vadd.f32 %v7068, %v7069
    %v7071 = vsel %vm7007, %v6881, 0.0
    %v7072 = vadd.f32 %v7070, %v7071
    %v7073 = vsel %vm7007, %v6884, 0.0
    %v7074 = vadd.f32 %v7072, %v7073
    %v7075 = vsel %vm7007, %v6889, 0.0
    %v7076 = vadd.f32 %v7074, %v7075
    %v7077 = vsel %vm7007, %v6892, 0.0
    %v7078 = vadd.f32 %v7076, %v7077
    %v7079 = vsel %vm7007, %v6897, 0.0
    %v7080 = vadd.f32 %v7078, %v7079
    %v7081 = vsel %vm7007, %v6900, 0.0
    %v7082 = vadd.f32 %v7080, %v7081
    %v7083 = vsel %vm7007, %v6905, 0.0
    %v7084 = vadd.f32 %v7082, %v7083
    %v7085 = vsel %vm7007, %v6908, 0.0
    %v7086 = vadd.f32 %v7084, %v7085
    %v7087 = vsel %vm7007, %v6913, 0.0
    %v7088 = vadd.f32 %v7086, %v7087
    %v7089 = vsel %vm7007, %v6916, 0.0
    %v7090 = vadd.f32 %v7088, %v7089
    %v7091 = vsel %vm7007, %v6921, 0.0
    %v7092 = vadd.f32 %v7090, %v7091
    %v7093 = vsel %vm7007, %v6924, 0.0
    %v7094 = vadd.f32 %v7092, %v7093
    %v7095 = vsel %vm7007, %v6929, 0.0
    %v7096 = vadd.f32 %v7094, %v7095
    %v7097 = vsel %vm7007, %v6932, 0.0
    %v7098 = vadd.f32 %v7096, %v7097
    %v7099 = vsel %vm7007, %v6937, 0.0
    %v7100 = vadd.f32 %v7098, %v7099
    %v7101 = vsel %vm7007, %v6940, 0.0
    %v7102 = vadd.f32 %v7100, %v7101
    %v7103 = vsel %vm7007, %v6945, 0.0
    %v7104 = vadd.f32 %v7102, %v7103
    %v7105 = vsel %vm7007, %v6948, 0.0
    %v7106 = vadd.f32 %v7104, %v7105
    %v7107 = vsel %vm7007, %v6953, 0.0
    %v7108 = vadd.f32 %v7106, %v7107
    %v7109 = vsel %vm7007, %v6956, 0.0
    %v7110 = vadd.f32 %v7108, %v7109
    %v7111 = vsel %vm7007, %v6961, 0.0
    %v7112 = vadd.f32 %v7110, %v7111
    %v7113 = vsel %vm7007, %v6964, 0.0
    %v7114 = vadd.f32 %v7112, %v7113
    %v7115 = vsel %vm7007, %v6969, 0.0
    %v7116 = vadd.f32 %v7114, %v7115
    %v7117 = vsel %vm7007, %v6972, 0.0
    %v7118 = vadd.f32 %v7116, %v7117
    %v7119 = vsel %vm7007, %v6977, 0.0
    %v7120 = vadd.f32 %v7118, %v7119
    %v7121 = vsel %vm7007, %v6980, 0.0
    %v7122 = vadd.f32 %v7120, %v7121
    %v7123 = vsel %vm7007, %v6985, 0.0
    %v7124 = vadd.f32 %v7122, %v7123
    %v7125 = vsel %vm7007, %v6988, 0.0
    %v7126 = vadd.f32 %v7124, %v7125
    %v7127 = vsel %vm7007, %v6993, 0.0
    %v7128 = vadd.f32 %v7126, %v7127
    %v7129 = vsel %vm7007, %v6996, 0.0
    %v7130 = vadd.f32 %v7128, %v7129
    %v7131 = vsel %vm7007, %v7001, 0.0
    %v7132 = vadd.f32 %v7130, %v7131
    %v7133 = vsel %vm7007, %v7004, 0.0
    %v7134 = vadd.f32 %v7132, %v7133
    %v7135 = vrot.slane %v7134, 4
    %v7136 = vadd.f32 %v7134, %v7135
    %v7137 = vrot.slane %v7136, 2
    %v7138 = vadd.f32 %v7136, %v7137
    %v7139 = vrot.slane %v7138, 1
    %v7140 = vadd.f32 %v7138, %v7139
    %v7141 = vrcp.pop 512.0
    %v7142 = vmul.f32 %v7140, %v7141
    %v7143 = vsub.f32 %v6753, %v7142
    %v7144 = vsub.f32 %v6756, %v7142
    %v7145 = vsub.f32 %v6761, %v7142
    %v7146 = vsub.f32 %v6764, %v7142
    %v7147 = vsub.f32 %v6769, %v7142
    %v7148 = vsub.f32 %v6772, %v7142
    %v7149 = vsub.f32 %v6777, %v7142
    %v7150 = vsub.f32 %v6780, %v7142
    %v7151 = vsub.f32 %v6785, %v7142
    %v7152 = vsub.f32 %v6788, %v7142
    %v7153 = vsub.f32 %v6793, %v7142
    %v7154 = vsub.f32 %v6796, %v7142
    %v7155 = vsub.f32 %v6801, %v7142
    %v7156 = vsub.f32 %v6804, %v7142
    %v7157 = vsub.f32 %v6809, %v7142
    %v7158 = vsub.f32 %v6812, %v7142
    %v7159 = vsub.f32 %v6817, %v7142
    %v7160 = vsub.f32 %v6820, %v7142
    %v7161 = vsub.f32 %v6825, %v7142
    %v7162 = vsub.f32 %v6828, %v7142
    %v7163 = vsub.f32 %v6833, %v7142
    %v7164 = vsub.f32 %v6836, %v7142
    %v7165 = vsub.f32 %v6841, %v7142
    %v7166 = vsub.f32 %v6844, %v7142
    %v7167 = vsub.f32 %v6849, %v7142
    %v7168 = vsub.f32 %v6852, %v7142
    %v7169 = vsub.f32 %v6857, %v7142
    %v7170 = vsub.f32 %v6860, %v7142
    %v7171 = vsub.f32 %v6865, %v7142
    %v7172 = vsub.f32 %v6868, %v7142
    %v7173 = vsub.f32 %v6873, %v7142
    %v7174 = vsub.f32 %v6876, %v7142
    %v7175 = vsub.f32 %v6881, %v7142
    %v7176 = vsub.f32 %v6884, %v7142
    %v7177 = vsub.f32 %v6889, %v7142
    %v7178 = vsub.f32 %v6892, %v7142
    %v7179 = vsub.f32 %v6897, %v7142
    %v7180 = vsub.f32 %v6900, %v7142
    %v7181 = vsub.f32 %v6905, %v7142
    %v7182 = vsub.f32 %v6908, %v7142
    %v7183 = vsub.f32 %v6913, %v7142
    %v7184 = vsub.f32 %v6916, %v7142
    %v7185 = vsub.f32 %v6921, %v7142
    %v7186 = vsub.f32 %v6924, %v7142
    %v7187 = vsub.f32 %v6929, %v7142
    %v7188 = vsub.f32 %v6932, %v7142
    %v7189 = vsub.f32 %v6937, %v7142
    %v7190 = vsub.f32 %v6940, %v7142
    %v7191 = vsub.f32 %v6945, %v7142
    %v7192 = vsub.f32 %v6948, %v7142
    %v7193 = vsub.f32 %v6953, %v7142
    %v7194 = vsub.f32 %v6956, %v7142
    %v7195 = vsub.f32 %v6961, %v7142
    %v7196 = vsub.f32 %v6964, %v7142
    %v7197 = vsub.f32 %v6969, %v7142
    %v7198 = vsub.f32 %v6972, %v7142
    %v7199 = vsub.f32 %v6977, %v7142
    %v7200 = vsub.f32 %v6980, %v7142
    %v7201 = vsub.f32 %v6985, %v7142
    %v7202 = vsub.f32 %v6988, %v7142
    %v7203 = vsub.f32 %v6993, %v7142
    %v7204 = vsub.f32 %v6996, %v7142
    %v7205 = vsub.f32 %v7001, %v7142
    %v7206 = vsub.f32 %v7004, %v7142
    %v7207 = vmul.f32 %v7143, %v7143
    %v7208 = vmul.f32 %v7144, %v7144
    %v7209 = vmul.f32 %v7145, %v7145
    %v7210 = vmul.f32 %v7146, %v7146
    %v7211 = vmul.f32 %v7147, %v7147
    %v7212 = vmul.f32 %v7148, %v7148
    %v7213 = vmul.f32 %v7149, %v7149
    %v7214 = vmul.f32 %v7150, %v7150
    %v7215 = vmul.f32 %v7151, %v7151
    %v7216 = vmul.f32 %v7152, %v7152
    %v7217 = vmul.f32 %v7153, %v7153
    %v7218 = vmul.f32 %v7154, %v7154
    %v7219 = vmul.f32 %v7155, %v7155
    %v7220 = vmul.f32 %v7156, %v7156
    %v7221 = vmul.f32 %v7157, %v7157
    %v7222 = vmul.f32 %v7158, %v7158
    %v7223 = vmul.f32 %v7159, %v7159
    %v7224 = vmul.f32 %v7160, %v7160
    %v7225 = vmul.f32 %v7161, %v7161
    %v7226 = vmul.f32 %v7162, %v7162
    %v7227 = vmul.f32 %v7163, %v7163
    %v7228 = vmul.f32 %v7164, %v7164
    %v7229 = vmul.f32 %v7165, %v7165
    %v7230 = vmul.f32 %v7166, %v7166
    %v7231 = vmul.f32 %v7167, %v7167
    %v7232 = vmul.f32 %v7168, %v7168
    %v7233 = vmul.f32 %v7169, %v7169
    %v7234 = vmul.f32 %v7170, %v7170
    %v7235 = vmul.f32 %v7171, %v7171
    %v7236 = vmul.f32 %v7172, %v7172
    %v7237 = vmul.f32 %v7173, %v7173
    %v7238 = vmul.f32 %v7174, %v7174
    %v7239 = vmul.f32 %v7175, %v7175
    %v7240 = vmul.f32 %v7176, %v7176
    %v7241 = vmul.f32 %v7177, %v7177
    %v7242 = vmul.f32 %v7178, %v7178
    %v7243 = vmul.f32 %v7179, %v7179
    %v7244 = vmul.f32 %v7180, %v7180
    %v7245 = vmul.f32 %v7181, %v7181
    %v7246 = vmul.f32 %v7182, %v7182
    %v7247 = vmul.f32 %v7183, %v7183
    %v7248 = vmul.f32 %v7184, %v7184
    %v7249 = vmul.f32 %v7185, %v7185
    %v7250 = vmul.f32 %v7186, %v7186
    %v7251 = vmul.f32 %v7187, %v7187
    %v7252 = vmul.f32 %v7188, %v7188
    %v7253 = vmul.f32 %v7189, %v7189
    %v7254 = vmul.f32 %v7190, %v7190
    %v7255 = vmul.f32 %v7191, %v7191
    %v7256 = vmul.f32 %v7192, %v7192
    %v7257 = vmul.f32 %v7193, %v7193
    %v7258 = vmul.f32 %v7194, %v7194
    %v7259 = vmul.f32 %v7195, %v7195
    %v7260 = vmul.f32 %v7196, %v7196
    %v7261 = vmul.f32 %v7197, %v7197
    %v7262 = vmul.f32 %v7198, %v7198
    %v7263 = vmul.f32 %v7199, %v7199
    %v7264 = vmul.f32 %v7200, %v7200
    %v7265 = vmul.f32 %v7201, %v7201
    %v7266 = vmul.f32 %v7202, %v7202
    %v7267 = vmul.f32 %v7203, %v7203
    %v7268 = vmul.f32 %v7204, %v7204
    %v7269 = vmul.f32 %v7205, %v7205
    %v7270 = vmul.f32 %v7206, %v7206
    %v7271 = vsel %vm7007, %v7207, 0.0
    %v7272 = vsel %vm7007, %v7208, 0.0
    %v7273 = vadd.f32 %v7271, %v7272
    %v7274 = vsel %vm7007, %v7209, 0.0
    %v7275 = vadd.f32 %v7273, %v7274
    %v7276 = vsel %vm7007, %v7210, 0.0
    %v7277 = vadd.f32 %v7275, %v7276
    %v7278 = vsel %vm7007, %v7211, 0.0
    %v7279 = vadd.f32 %v7277, %v7278
    %v7280 = vsel %vm7007, %v7212, 0.0
    %v7281 = vadd.f32 %v7279, %v7280
    %v7282 = vsel %vm7007, %v7213, 0.0
    %v7283 = vadd.f32 %v7281, %v7282
    %v7284 = vsel %vm7007, %v7214, 0.0
    %v7285 = vadd.f32 %v7283, %v7284
    %v7286 = vsel %vm7007, %v7215, 0.0
    %v7287 = vadd.f32 %v7285, %v7286
    %v7288 = vsel %vm7007, %v7216, 0.0
    %v7289 = vadd.f32 %v7287, %v7288
    %v7290 = vsel %vm7007, %v7217, 0.0
    %v7291 = vadd.f32 %v7289, %v7290
    %v7292 = vsel %vm7007, %v7218, 0.0
    %v7293 = vadd.f32 %v7291, %v7292
    %v7294 = vsel %vm7007, %v7219, 0.0
    %v7295 = vadd.f32 %v7293, %v7294
    %v7296 = vsel %vm7007, %v7220, 0.0
    %v7297 = vadd.f32 %v7295, %v7296
    %v7298 = vsel %vm7007, %v7221, 0.0
    %v7299 = vadd.f32 %v7297, %v7298
    %v7300 = vsel %vm7007, %v7222, 0.0
    %v7301 = vadd.f32 %v7299, %v7300
    %v7302 = vsel %vm7007, %v7223, 0.0
    %v7303 = vadd.f32 %v7301, %v7302
    %v7304 = vsel %vm7007, %v7224, 0.0
    %v7305 = vadd.f32 %v7303, %v7304
    %v7306 = vsel %vm7007, %v7225, 0.0
    %v7307 = vadd.f32 %v7305, %v7306
    %v7308 = vsel %vm7007, %v7226, 0.0
    %v7309 = vadd.f32 %v7307, %v7308
    %v7310 = vsel %vm7007, %v7227, 0.0
    %v7311 = vadd.f32 %v7309, %v7310
    %v7312 = vsel %vm7007, %v7228, 0.0
    %v7313 = vadd.f32 %v7311, %v7312
    %v7314 = vsel %vm7007, %v7229, 0.0
    %v7315 = vadd.f32 %v7313, %v7314
    %v7316 = vsel %vm7007, %v7230, 0.0
    %v7317 = vadd.f32 %v7315, %v7316
    %v7318 = vsel %vm7007, %v7231, 0.0
    %v7319 = vadd.f32 %v7317, %v7318
    %v7320 = vsel %vm7007, %v7232, 0.0
    %v7321 = vadd.f32 %v7319, %v7320
    %v7322 = vsel %vm7007, %v7233, 0.0
    %v7323 = vadd.f32 %v7321, %v7322
    %v7324 = vsel %vm7007, %v7234, 0.0
    %v7325 = vadd.f32 %v7323, %v7324
    %v7326 = vsel %vm7007, %v7235, 0.0
    %v7327 = vadd.f32 %v7325, %v7326
    %v7328 = vsel %vm7007, %v7236, 0.0
    %v7329 = vadd.f32 %v7327, %v7328
    %v7330 = vsel %vm7007, %v7237, 0.0
    %v7331 = vadd.f32 %v7329, %v7330
    %v7332 = vsel %vm7007, %v7238, 0.0
    %v7333 = vadd.f32 %v7331, %v7332
    %v7334 = vsel %vm7007, %v7239, 0.0
    %v7335 = vadd.f32 %v7333, %v7334
    %v7336 = vsel %vm7007, %v7240, 0.0
    %v7337 = vadd.f32 %v7335, %v7336
    %v7338 = vsel %vm7007, %v7241, 0.0
    %v7339 = vadd.f32 %v7337, %v7338
    %v7340 = vsel %vm7007, %v7242, 0.0
    %v7341 = vadd.f32 %v7339, %v7340
    %v7342 = vsel %vm7007, %v7243, 0.0
    %v7343 = vadd.f32 %v7341, %v7342
    %v7344 = vsel %vm7007, %v7244, 0.0
    %v7345 = vadd.f32 %v7343, %v7344
    %v7346 = vsel %vm7007, %v7245, 0.0
    %v7347 = vadd.f32 %v7345, %v7346
    %v7348 = vsel %vm7007, %v7246, 0.0
    %v7349 = vadd.f32 %v7347, %v7348
    %v7350 = vsel %vm7007, %v7247, 0.0
    %v7351 = vadd.f32 %v7349, %v7350
    %v7352 = vsel %vm7007, %v7248, 0.0
    %v7353 = vadd.f32 %v7351, %v7352
    %v7354 = vsel %vm7007, %v7249, 0.0
    %v7355 = vadd.f32 %v7353, %v7354
    %v7356 = vsel %vm7007, %v7250, 0.0
    %v7357 = vadd.f32 %v7355, %v7356
    %v7358 = vsel %vm7007, %v7251, 0.0
    %v7359 = vadd.f32 %v7357, %v7358
    %v7360 = vsel %vm7007, %v7252, 0.0
    %v7361 = vadd.f32 %v7359, %v7360
    %v7362 = vsel %vm7007, %v7253, 0.0
    %v7363 = vadd.f32 %v7361, %v7362
    %v7364 = vsel %vm7007, %v7254, 0.0
    %v7365 = vadd.f32 %v7363, %v7364
    %v7366 = vsel %vm7007, %v7255, 0.0
    %v7367 = vadd.f32 %v7365, %v7366
    %v7368 = vsel %vm7007, %v7256, 0.0
    %v7369 = vadd.f32 %v7367, %v7368
    %v7370 = vsel %vm7007, %v7257, 0.0
    %v7371 = vadd.f32 %v7369, %v7370
    %v7372 = vsel %vm7007, %v7258, 0.0
    %v7373 = vadd.f32 %v7371, %v7372
    %v7374 = vsel %vm7007, %v7259, 0.0
    %v7375 = vadd.f32 %v7373, %v7374
    %v7376 = vsel %vm7007, %v7260, 0.0
    %v7377 = vadd.f32 %v7375, %v7376
    %v7378 = vsel %vm7007, %v7261, 0.0
    %v7379 = vadd.f32 %v7377, %v7378
    %v7380 = vsel %vm7007, %v7262, 0.0
    %v7381 = vadd.f32 %v7379, %v7380
    %v7382 = vsel %vm7007, %v7263, 0.0
    %v7383 = vadd.f32 %v7381, %v7382
    %v7384 = vsel %vm7007, %v7264, 0.0
    %v7385 = vadd.f32 %v7383, %v7384
    %v7386 = vsel %vm7007, %v7265, 0.0
    %v7387 = vadd.f32 %v7385, %v7386
    %v7388 = vsel %vm7007, %v7266, 0.0
    %v7389 = vadd.f32 %v7387, %v7388
    %v7390 = vsel %vm7007, %v7267, 0.0
    %v7391 = vadd.f32 %v7389, %v7390
    %v7392 = vsel %vm7007, %v7268, 0.0
    %v7393 = vadd.f32 %v7391, %v7392
    %v7394 = vsel %vm7007, %v7269, 0.0
    %v7395 = vadd.f32 %v7393, %v7394
    %v7396 = vsel %vm7007, %v7270, 0.0
    %v7397 = vadd.f32 %v7395, %v7396
    %v7398 = vrot.slane %v7397, 4
    %v7399 = vadd.f32 %v7397, %v7398
    %v7400 = vrot.slane %v7399, 2
    %v7401 = vadd.f32 %v7399, %v7400
    %v7402 = vrot.slane %v7401, 1
    %v7403 = vadd.f32 %v7401, %v7402
    %v7404 = vmul.f32 %v7403, %v7141
    %v7405 = vld [vmem:[%s11] sm:$0x1]
    %v7406 = vadd.f32 %v7404, 0.8
    %v7407 = vrsqrt.pop %v7406
    %v7408 = vmul.f32 %v7405, %v7407
    %v7409 = vld [vmem:[%s12] sm:$0x1]
    %v7410 = vmul.f32 %v7142, %v7408
    %v7411 = vsub.f32 %v7409, %v7410
    %v7413 = vlaneseq
    %v7414 = vshrl.u32 %v7413, 7
    %v7415 = vsub.s32 0, %v7414
    %v7416 = vrot.slane %v7408, %v7415
    %v7418 = vmul.f32 %v6753, %v7416
    %v7419 = vmul.f32 %v6756, %v7416
    %v7420 = vmul.f32 %v6761, %v7416
    %v7421 = vmul.f32 %v6764, %v7416
    %v7422 = vmul.f32 %v6769, %v7416
    %v7423 = vmul.f32 %v6772, %v7416
    %v7424 = vmul.f32 %v6777, %v7416
    %v7425 = vmul.f32 %v6780, %v7416
    %v7426 = vmul.f32 %v6785, %v7416
    %v7427 = vmul.f32 %v6788, %v7416
    %v7428 = vmul.f32 %v6793, %v7416
    %v7429 = vmul.f32 %v6796, %v7416
    %v7430 = vmul.f32 %v6801, %v7416
    %v7431 = vmul.f32 %v6804, %v7416
    %v7432 = vmul.f32 %v6809, %v7416
    %v7433 = vmul.f32 %v6812, %v7416
    %v7434 = vmul.f32 %v6817, %v7416
    %v7435 = vmul.f32 %v6820, %v7416
    %v7436 = vmul.f32 %v6825, %v7416
    %v7437 = vmul.f32 %v6828, %v7416
    %v7438 = vmul.f32 %v6833, %v7416
    %v7439 = vmul.f32 %v6836, %v7416
    %v7440 = vmul.f32 %v6841, %v7416
    %v7441 = vmul.f32 %v6844, %v7416
    %v7442 = vmul.f32 %v6849, %v7416
    %v7443 = vmul.f32 %v6852, %v7416
    %v7444 = vmul.f32 %v6857, %v7416
    %v7445 = vmul.f32 %v6860, %v7416
    %v7446 = vmul.f32 %v6865, %v7416
    %v7447 = vmul.f32 %v6868, %v7416
    %v7448 = vmul.f32 %v6873, %v7416
    %v7449 = vmul.f32 %v6876, %v7416
    %v7450 = vmul.f32 %v6881, %v7416
    %v7451 = vmul.f32 %v6884, %v7416
    %v7452 = vmul.f32 %v6889, %v7416
    %v7453 = vmul.f32 %v6892, %v7416
    %v7454 = vmul.f32 %v6897, %v7416
    %v7455 = vmul.f32 %v6900, %v7416
    %v7456 = vmul.f32 %v6905, %v7416
    %v7457 = vmul.f32 %v6908, %v7416
    %v7458 = vmul.f32 %v6913, %v7416
    %v7459 = vmul.f32 %v6916, %v7416
    %v7460 = vmul.f32 %v6921, %v7416
    %v7461 = vmul.f32 %v6924, %v7416
    %v7462 = vmul.f32 %v6929, %v7416
    %v7463 = vmul.f32 %v6932, %v7416
    %v7464 = vmul.f32 %v6937, %v7416
    %v7465 = vmul.f32 %v6940, %v7416
    %v7466 = vmul.f32 %v6945, %v7416
    %v7467 = vmul.f32 %v6948, %v7416
    %v7468 = vmul.f32 %v6953, %v7416
    %v7469 = vmul.f32 %v6956, %v7416
    %v7470 = vmul.f32 %v6961, %v7416
    %v7471 = vmul.f32 %v6964, %v7416
    %v7472 = vmul.f32 %v6969, %v7416
    %v7473 = vmul.f32 %v6972, %v7416
    %v7474 = vmul.f32 %v6977, %v7416
    %v7475 = vmul.f32 %v6980, %v7416
    %v7476 = vmul.f32 %v6985, %v7416
    %v7477 = vmul.f32 %v6988, %v7416
    %v7478 = vmul.f32 %v6993, %v7416
    %v7479 = vmul.f32 %v6996, %v7416
    %v7480 = vmul.f32 %v7001, %v7416
    %v7481 = vmul.f32 %v7004, %v7416
    %v7483 = vlaneseq
    %v7484 = vshrl.u32 %v7483, 7
    %v7485 = vsub.s32 0, %v7484
    %v7486 = vrot.slane %v7411, %v7485
    %v7488 = vadd.f32 %v7418, %v7486
    %v7489 = vadd.f32 %v7419, %v7486
    %v7490 = vadd.f32 %v7420, %v7486
    %v7491 = vadd.f32 %v7421, %v7486
    %v7492 = vadd.f32 %v7422, %v7486
    %v7493 = vadd.f32 %v7423, %v7486
    %v7494 = vadd.f32 %v7424, %v7486
    %v7495 = vadd.f32 %v7425, %v7486
    %v7496 = vadd.f32 %v7426, %v7486
    %v7497 = vadd.f32 %v7427, %v7486
    %v7498 = vadd.f32 %v7428, %v7486
    %v7499 = vadd.f32 %v7429, %v7486
    %v7500 = vadd.f32 %v7430, %v7486
    %v7501 = vadd.f32 %v7431, %v7486
    %v7502 = vadd.f32 %v7432, %v7486
    %v7503 = vadd.f32 %v7433, %v7486
    %v7504 = vadd.f32 %v7434, %v7486
    %v7505 = vadd.f32 %v7435, %v7486
    %v7506 = vadd.f32 %v7436, %v7486
    %v7507 = vadd.f32 %v7437, %v7486
    %v7508 = vadd.f32 %v7438, %v7486
    %v7509 = vadd.f32 %v7439, %v7486
    %v7510 = vadd.f32 %v7440, %v7486
    %v7511 = vadd.f32 %v7441, %v7486
    %v7512 = vadd.f32 %v7442, %v7486
    %v7513 = vadd.f32 %v7443, %v7486
    %v7514 = vadd.f32 %v7444, %v7486
    %v7515 = vadd.f32 %v7445, %v7486
    %v7516 = vadd.f32 %v7446, %v7486
    %v7517 = vadd.f32 %v7447, %v7486
    %v7518 = vadd.f32 %v7448, %v7486
    %v7519 = vadd.f32 %v7449, %v7486
    %v7520 = vadd.f32 %v7450, %v7486
    %v7521 = vadd.f32 %v7451, %v7486
    %v7522 = vadd.f32 %v7452, %v7486
    %v7523 = vadd.f32 %v7453, %v7486
    %v7524 = vadd.f32 %v7454, %v7486
    %v7525 = vadd.f32 %v7455, %v7486
    %v7526 = vadd.f32 %v7456, %v7486
    %v7527 = vadd.f32 %v7457, %v7486
    %v7528 = vadd.f32 %v7458, %v7486
    %v7529 = vadd.f32 %v7459, %v7486
    %v7530 = vadd.f32 %v7460, %v7486
    %v7531 = vadd.f32 %v7461, %v7486
    %v7532 = vadd.f32 %v7462, %v7486
    %v7533 = vadd.f32 %v7463, %v7486
    %v7534 = vadd.f32 %v7464, %v7486
    %v7535 = vadd.f32 %v7465, %v7486
    %v7536 = vadd.f32 %v7466, %v7486
    %v7537 = vadd.f32 %v7467, %v7486
    %v7538 = vadd.f32 %v7468, %v7486
    %v7539 = vadd.f32 %v7469, %v7486
    %v7540 = vadd.f32 %v7470, %v7486
    %v7541 = vadd.f32 %v7471, %v7486
    %v7542 = vadd.f32 %v7472, %v7486
    %v7543 = vadd.f32 %v7473, %v7486
    %v7544 = vadd.f32 %v7474, %v7486
    %v7545 = vadd.f32 %v7475, %v7486
    %v7546 = vadd.f32 %v7476, %v7486
    %v7547 = vadd.f32 %v7477, %v7486
    %v7548 = vadd.f32 %v7478, %v7486
    %v7549 = vadd.f32 %v7479, %v7486
    %v7550 = vadd.f32 %v7480, %v7486
    %v7551 = vadd.f32 %v7481, %v7486
    %v7552 = vmax.f32 %v7488, 0.0
    %v7553 = vmax.f32 %v7489, 0.0
    %v7554 = vmax.f32 %v7490, 0.0
    %v7555 = vmax.f32 %v7491, 0.0
    %v7556 = vmax.f32 %v7492, 0.0
    %v7557 = vmax.f32 %v7493, 0.0
    %v7558 = vmax.f32 %v7494, 0.0
    %v7559 = vmax.f32 %v7495, 0.0
    %v7560 = vmax.f32 %v7496, 0.0
    %v7561 = vmax.f32 %v7497, 0.0
    %v7562 = vmax.f32 %v7498, 0.0
    %v7563 = vmax.f32 %v7499, 0.0
    %v7564 = vmax.f32 %v7500, 0.0
    %v7565 = vmax.f32 %v7501, 0.0
    %v7566 = vmax.f32 %v7502, 0.0
    %v7567 = vmax.f32 %v7503, 0.0
    %v7568 = vmax.f32 %v7504, 0.0
    %v7569 = vmax.f32 %v7505, 0.0
    %v7570 = vmax.f32 %v7506, 0.0
    %v7571 = vmax.f32 %v7507, 0.0
    %v7572 = vmax.f32 %v7508, 0.0
    %v7573 = vmax.f32 %v7509, 0.0
    %v7574 = vmax.f32 %v7510, 0.0
    %v7575 = vmax.f32 %v7511, 0.0
    %v7576 = vmax.f32 %v7512, 0.0
    %v7577 = vmax.f32 %v7513, 0.0
    %v7578 = vmax.f32 %v7514, 0.0
    %v7579 = vmax.f32 %v7515, 0.0
    %v7580 = vmax.f32 %v7516, 0.0
    %v7581 = vmax.f32 %v7517, 0.0
    %v7582 = vmax.f32 %v7518, 0.0
    %v7583 = vmax.f32 %v7519, 0.0
    %v7584 = vmax.f32 %v7520, 0.0
    %v7585 = vmax.f32 %v7521, 0.0
    %v7586 = vmax.f32 %v7522, 0.0
    %v7587 = vmax.f32 %v7523, 0.0
    %v7588 = vmax.f32 %v7524, 0.0
    %v7589 = vmax.f32 %v7525, 0.0
    %v7590 = vmax.f32 %v7526, 0.0
    %v7591 = vmax.f32 %v7527, 0.0
    %v7592 = vmax.f32 %v7528, 0.0
    %v7593 = vmax.f32 %v7529, 0.0
    %v7594 = vmax.f32 %v7530, 0.0
    %v7595 = vmax.f32 %v7531, 0.0
    %v7596 = vmax.f32 %v7532, 0.0
    %v7597 = vmax.f32 %v7533, 0.0
    %v7598 = vmax.f32 %v7534, 0.0
    %v7599 = vmax.f32 %v7535, 0.0
    %v7600 = vmax.f32 %v7536, 0.0
    %v7601 = vmax.f32 %v7537, 0.0
    %v7602 = vmax.f32 %v7538, 0.0
    %v7603 = vmax.f32 %v7539, 0.0
    %v7604 = vmax.f32 %v7540, 0.0
    %v7605 = vmax.f32 %v7541, 0.0
    %v7606 = vmax.f32 %v7542, 0.0
    %v7607 = vmax.f32 %v7543, 0.0
    %v7608 = vmax.f32 %v7544, 0.0
    %v7609 = vmax.f32 %v7545, 0.0
    %v7610 = vmax.f32 %v7546, 0.0
    %v7611 = vmax.f32 %v7547, 0.0
    %v7612 = vmax.f32 %v7548, 0.0
    %v7613 = vmax.f32 %v7549, 0.0
    %v7614 = vmax.f32 %v7550, 0.0
    %v7615 = vmax.f32 %v7551, 0.0
    %7616 = vst.msk [vmem:[#allocation4] sm:$0xff] %vm7007, 0.0
    %7617 = vst.msk [vmem:[#allocation4 + $0x8] sm:$0xff] %vm7007, 0.0
    %vm7618 = vcmask 517120
    %7619 = vst.msk [vmem:[#allocation4 + $0x10] sm:$0x3] %vm7618, 0.0
    %7620 = vst.msk [vmem:[#allocation4 + $0x18] sm:$0xff] %vm7007, 0.0
    %7621 = vst.msk [vmem:[#allocation4 + $0x20] sm:$0xff] %vm7007, 0.0
    %7622 = vst.msk [vmem:[#allocation4 + $0x28] sm:$0x3] %vm7618, 0.0
    %7623 = vst.msk [vmem:[#allocation4 + $0x30] sm:$0xff] %vm7007, 0.0
    %7624 = vst.msk [vmem:[#allocation4 + $0x38] sm:$0xff] %vm7007, 0.0
    %7625 = vst.msk [vmem:[#allocation4 + $0x40] sm:$0x3] %vm7618, 0.0
    %7626 = vst.msk [vmem:[#allocation4 + $0x48] sm:$0xff] %vm7007, 0.0
    %7627 = vst.msk [vmem:[#allocation4 + $0x50] sm:$0xff] %vm7007, 0.0
    %7628 = vst.msk [vmem:[#allocation4 + $0x58] sm:$0x3] %vm7618, 0.0
    %7629 = vst.msk [vmem:[#allocation4 + $0x60] sm:$0xff] %vm7007, 0.0
    %7630 = vst.msk [vmem:[#allocation4 + $0x68] sm:$0xff] %vm7007, 0.0
    %7631 = vst.msk [vmem:[#allocation4 + $0x70] sm:$0x3] %vm7618, 0.0
    %7632 = vst.msk [vmem:[#allocation4 + $0x78] sm:$0xff] %vm7007, 0.0
    %7633 = vst.msk [vmem:[#allocation4 + $0x80] sm:$0xff] %vm7007, 0.0
    %7634 = vst.msk [vmem:[#allocation4 + $0x88] sm:$0x3] %vm7618, 0.0
    %7635 = vst.msk [vmem:[#allocation4 + $0x90] sm:$0xff] %vm7007, 0.0
    %7636 = vst.msk [vmem:[#allocation4 + $0x98] sm:$0xff] %vm7007, 0.0
    %7637 = vst.msk [vmem:[#allocation4 + $0xa0] sm:$0x3] %vm7618, 0.0
    %7638 = vst.msk [vmem:[#allocation4 + $0xa8] sm:$0xff] %vm7007, 0.0
    %7639 = vst.msk [vmem:[#allocation4 + $0xb0] sm:$0xff] %vm7007, 0.0
    %7640 = vst.msk [vmem:[#allocation4 + $0xb8] sm:$0x3] %vm7618, 0.0
    %7641 = vst.msk [vmem:[#allocation4 + $0xc0] sm:$0xff] %vm7007, 0.0
    %7642 = vst.msk [vmem:[#allocation4 + $0xc8] sm:$0xff] %vm7007, 0.0
    %7643 = vst.msk [vmem:[#allocation4 + $0xd0] sm:$0x3] %vm7618, 0.0
    %7644 = vst.msk [vmem:[#allocation4 + $0xd8] sm:$0xff] %vm7007, 0.0
    %7645 = vst.msk [vmem:[#allocation4 + $0xe0] sm:$0xff] %vm7007, 0.0
    %7646 = vst.msk [vmem:[#allocation4 + $0xe8] sm:$0x3] %vm7618, 0.0
    %7647 = vst.msk [vmem:[#allocation4 + $0xf0] sm:$0xff] %vm7007, 0.0
    %7648 = vst.msk [vmem:[#allocation4 + $0xf8] sm:$0xff] %vm7007, 0.0
    %7649 = vst.msk [vmem:[#allocation4 + $0x100] sm:$0x3] %vm7618, 0.0
    %7650 = vst.msk [vmem:[#allocation4 + $0x108] sm:$0xff] %vm7007, 0.0
    %7651 = vst.msk [vmem:[#allocation4 + $0x110] sm:$0xff] %vm7007, 0.0
    %7652 = vst.msk [vmem:[#allocation4 + $0x118] sm:$0x3] %vm7618, 0.0
    %7653 = vst.msk [vmem:[#allocation4 + $0x120] sm:$0xff] %vm7007, 0.0
    %7654 = vst.msk [vmem:[#allocation4 + $0x128] sm:$0xff] %vm7007, 0.0
    %7655 = vst.msk [vmem:[#allocation4 + $0x130] sm:$0x3] %vm7618, 0.0
    %7656 = vst.msk [vmem:[#allocation4 + $0x138] sm:$0xff] %vm7007, 0.0
    %7657 = vst.msk [vmem:[#allocation4 + $0x140] sm:$0xff] %vm7007, 0.0
    %7658 = vst.msk [vmem:[#allocation4 + $0x148] sm:$0x3] %vm7618, 0.0
    %7659 = vst.msk [vmem:[#allocation4 + $0x150] sm:$0xff] %vm7007, 0.0
    %7660 = vst.msk [vmem:[#allocation4 + $0x158] sm:$0xff] %vm7007, 0.0
    %7661 = vst.msk [vmem:[#allocation4 + $0x160] sm:$0x3] %vm7618, 0.0
    %7662 = vst.msk [vmem:[#allocation4 + $0x168] sm:$0xff] %vm7007, 0.0
    %7663 = vst.msk [vmem:[#allocation4 + $0x170] sm:$0xff] %vm7007, 0.0
    %7664 = vst.msk [vmem:[#allocation4 + $0x178] sm:$0x3] %vm7618, 0.0
    %7665 = vst.msk [vmem:[#allocation4 + $0x180] sm:$0xff] %vm7007, 0.0
    %7666 = vst.msk [vmem:[#allocation4 + $0x188] sm:$0xff] %vm7007, 0.0
    %7667 = vst.msk [vmem:[#allocation4 + $0x190] sm:$0x3] %vm7618, 0.0
    %7668 = vst.msk [vmem:[#allocation4 + $0x198] sm:$0xff] %vm7007, 0.0
    %7669 = vst.msk [vmem:[#allocation4 + $0x1a0] sm:$0xff] %vm7007, 0.0
    %7670 = vst.msk [vmem:[#allocation4 + $0x1a8] sm:$0x3] %vm7618, 0.0
    %7671 = vst.msk [vmem:[#allocation4 + $0x1b0] sm:$0xff] %vm7007, 0.0
    %7672 = vst.msk [vmem:[#allocation4 + $0x1b8] sm:$0xff] %vm7007, 0.0
    %7673 = vst.msk [vmem:[#allocation4 + $0x1c0] sm:$0x3] %vm7618, 0.0
    %7674 = vst.msk [vmem:[#allocation4 + $0x1c8] sm:$0xff] %vm7007, 0.0
    %7675 = vst.msk [vmem:[#allocation4 + $0x1d0] sm:$0xff] %vm7007, 0.0
    %7676 = vst.msk [vmem:[#allocation4 + $0x1d8] sm:$0x3] %vm7618, 0.0
    %7677 = vst.msk [vmem:[#allocation4 + $0x1e0] sm:$0xff] %vm7007, 0.0
    %7678 = vst.msk [vmem:[#allocation4 + $0x1e8] sm:$0xff] %vm7007, 0.0
    %7679 = vst.msk [vmem:[#allocation4 + $0x1f0] sm:$0x3] %vm7618, 0.0
    %7680 = vst.msk [vmem:[#allocation4 + $0x1f8] sm:$0xff] %vm7007, 0.0
    %7681 = vst.msk [vmem:[#allocation4 + $0x200] sm:$0xff] %vm7007, 0.0
    %7682 = vst.msk [vmem:[#allocation4 + $0x208] sm:$0x3] %vm7618, 0.0
    %7683 = vst.msk [vmem:[#allocation4 + $0x210] sm:$0xff] %vm7007, 0.0
    %7684 = vst.msk [vmem:[#allocation4 + $0x218] sm:$0xff] %vm7007, 0.0
    %7685 = vst.msk [vmem:[#allocation4 + $0x220] sm:$0x3] %vm7618, 0.0
    %7686 = vst.msk [vmem:[#allocation4 + $0x228] sm:$0xff] %vm7007, 0.0
    %7687 = vst.msk [vmem:[#allocation4 + $0x230] sm:$0xff] %vm7007, 0.0
    %7688 = vst.msk [vmem:[#allocation4 + $0x238] sm:$0x3] %vm7618, 0.0
    %7689 = vst.msk [vmem:[#allocation4 + $0x240] sm:$0xff] %vm7007, 0.0
    %7690 = vst.msk [vmem:[#allocation4 + $0x248] sm:$0xff] %vm7007, 0.0
    %7691 = vst.msk [vmem:[#allocation4 + $0x250] sm:$0x3] %vm7618, 0.0
    %7692 = vst.msk [vmem:[#allocation4 + $0x258] sm:$0xff] %vm7007, 0.0
    %7693 = vst.msk [vmem:[#allocation4 + $0x260] sm:$0xff] %vm7007, 0.0
    %7694 = vst.msk [vmem:[#allocation4 + $0x268] sm:$0x3] %vm7618, 0.0
    %7695 = vst.msk [vmem:[#allocation4 + $0x270] sm:$0xff] %vm7007, 0.0
    %7696 = vst.msk [vmem:[#allocation4 + $0x278] sm:$0xff] %vm7007, 0.0
    %7697 = vst.msk [vmem:[#allocation4 + $0x280] sm:$0x3] %vm7618, 0.0
    %7698 = vst.msk [vmem:[#allocation4 + $0x288] sm:$0xff] %vm7007, 0.0
    %7699 = vst.msk [vmem:[#allocation4 + $0x290] sm:$0xff] %vm7007, 0.0
    %7700 = vst.msk [vmem:[#allocation4 + $0x298] sm:$0x3] %vm7618, 0.0
    %7701 = vst.msk [vmem:[#allocation4 + $0x2a0] sm:$0xff] %vm7007, 0.0
    %7702 = vst.msk [vmem:[#allocation4 + $0x2a8] sm:$0xff] %vm7007, 0.0
    %7703 = vst.msk [vmem:[#allocation4 + $0x2b0] sm:$0x3] %vm7618, 0.0
    %7704 = vst.msk [vmem:[#allocation4 + $0x2b8] sm:$0xff] %vm7007, 0.0
    %7705 = vst.msk [vmem:[#allocation4 + $0x2c0] sm:$0xff] %vm7007, 0.0
    %7706 = vst.msk [vmem:[#allocation4 + $0x2c8] sm:$0x3] %vm7618, 0.0
    %7707 = vst.msk [vmem:[#allocation4 + $0x2d0] sm:$0xff] %vm7007, 0.0
    %7708 = vst.msk [vmem:[#allocation4 + $0x2d8] sm:$0xff] %vm7007, 0.0
    %7709 = vst.msk [vmem:[#allocation4 + $0x2e0] sm:$0x3] %vm7618, 0.0
    %7710 = vst.msk [vmem:[#allocation4 + $0x2e8] sm:$0xff] %vm7007, 0.0
    %7711 = vst.msk [vmem:[#allocation4 + $0x2f0] sm:$0xff] %vm7007, 0.0
    %7712 = vst.msk [vmem:[#allocation4 + $0x2f8] sm:$0x3] %vm7618, 0.0
    %7713 = vst.msk [vmem:[#allocation4 + $0x300] sm:$0xff] %vm7007, 0.0
    %7714 = vst.msk [vmem:[#allocation4 + $0x308] sm:$0xff] %vm7007, 0.0
    %7715 = vst.msk [vmem:[#allocation4 + $0x310] sm:$0x3] %vm7618, 0.0
    %7716 = vst.msk [vmem:[#allocation4 + $0x318] sm:$0xff] %vm7007, 0.0
    %7717 = vst.msk [vmem:[#allocation4 + $0x320] sm:$0xff] %vm7007, 0.0
    %7718 = vst.msk [vmem:[#allocation4 + $0x328] sm:$0x3] %vm7618, 0.0
    %7719 = vst.msk [vmem:[#allocation4 + $0x330] sm:$0xff] %vm7007, 0.0
    %7720 = vst.msk [vmem:[#allocation4 + $0x338] sm:$0xff] %vm7007, 0.0
    %7721 = vst.msk [vmem:[#allocation4 + $0x340] sm:$0x3] %vm7618, 0.0
    %7722 = vst.msk [vmem:[#allocation4 + $0x348] sm:$0xff] %vm7007, 0.0
    %7723 = vst.msk [vmem:[#allocation4 + $0x350] sm:$0xff] %vm7007, 0.0
    %7724 = vst.msk [vmem:[#allocation4 + $0x358] sm:$0x3] %vm7618, 0.0
    %s7725 = scalar_lea.vmem [#allocation4], 24
    %7726 = vst.msk [vmem:[%s7725 + $0x1] sm:$0xff] %vm7007, %v7552
    %7727 = vst.msk [vmem:[%s7725 + $0x9] sm:$0xff] %vm7007, %v7553
    %7728 = vst.msk [vmem:[%s7725 + $0x19] sm:$0xff] %vm7007, %v7554
    %7729 = vst.msk [vmem:[%s7725 + $0x21] sm:$0xff] %vm7007, %v7555
    %7730 = vst.msk [vmem:[%s7725 + $0x31] sm:$0xff] %vm7007, %v7556
    %7731 = vst.msk [vmem:[%s7725 + $0x39] sm:$0xff] %vm7007, %v7557
    %7732 = vst.msk [vmem:[%s7725 + $0x49] sm:$0xff] %vm7007, %v7558
    %7733 = vst.msk [vmem:[%s7725 + $0x51] sm:$0xff] %vm7007, %v7559
    %7734 = vst.msk [vmem:[%s7725 + $0x61] sm:$0xff] %vm7007, %v7560
    %7735 = vst.msk [vmem:[%s7725 + $0x69] sm:$0xff] %vm7007, %v7561
    %7736 = vst.msk [vmem:[%s7725 + $0x79] sm:$0xff] %vm7007, %v7562
    %7737 = vst.msk [vmem:[%s7725 + $0x81] sm:$0xff] %vm7007, %v7563
    %7738 = vst.msk [vmem:[%s7725 + $0x91] sm:$0xff] %vm7007, %v7564
    %7739 = vst.msk [vmem:[%s7725 + $0x99] sm:$0xff] %vm7007, %v7565
    %7740 = vst.msk [vmem:[%s7725 + $0xa9] sm:$0xff] %vm7007, %v7566
    %7741 = vst.msk [vmem:[%s7725 + $0xb1] sm:$0xff] %vm7007, %v7567
    %7742 = vst.msk [vmem:[%s7725 + $0xc1] sm:$0xff] %vm7007, %v7568
    %7743 = vst.msk [vmem:[%s7725 + $0xc9] sm:$0xff] %vm7007, %v7569
    %7744 = vst.msk [vmem:[%s7725 + $0xd9] sm:$0xff] %vm7007, %v7570
    %7745 = vst.msk [vmem:[%s7725 + $0xe1] sm:$0xff] %vm7007, %v7571
    %7746 = vst.msk [vmem:[%s7725 + $0xf1] sm:$0xff] %vm7007, %v7572
    %7747 = vst.msk [vmem:[%s7725 + $0xf9] sm:$0xff] %vm7007, %v7573
    %7748 = vst.msk [vmem:[%s7725 + $0x109] sm:$0xff] %vm7007, %v7574
    %7749 = vst.msk [vmem:[%s7725 + $0x111] sm:$0xff] %vm7007, %v7575
    %7750 = vst.msk [vmem:[%s7725 + $0x121] sm:$0xff] %vm7007, %v7576
    %7751 = vst.msk [vmem:[%s7725 + $0x129] sm:$0xff] %vm7007, %v7577
    %7752 = vst.msk [vmem:[%s7725 + $0x139] sm:$0xff] %vm7007, %v7578
    %7753 = vst.msk [vmem:[%s7725 + $0x141] sm:$0xff] %vm7007, %v7579
    %7754 = vst.msk [vmem:[%s7725 + $0x151] sm:$0xff] %vm7007, %v7580
    %7755 = vst.msk [vmem:[%s7725 + $0x159] sm:$0xff] %vm7007, %v7581
    %7756 = vst.msk [vmem:[%s7725 + $0x169] sm:$0xff] %vm7007, %v7582
    %7757 = vst.msk [vmem:[%s7725 + $0x171] sm:$0xff] %vm7007, %v7583
    %7758 = vst.msk [vmem:[%s7725 + $0x1b1] sm:$0xff] %vm7007, %v7584
    %7759 = vst.msk [vmem:[%s7725 + $0x1b9] sm:$0xff] %vm7007, %v7585
    %7760 = vst.msk [vmem:[%s7725 + $0x1c9] sm:$0xff] %vm7007, %v7586
    %7761 = vst.msk [vmem:[%s7725 + $0x1d1] sm:$0xff] %vm7007, %v7587
    %7762 = vst.msk [vmem:[%s7725 + $0x1e1] sm:$0xff] %vm7007, %v7588
    %7763 = vst.msk [vmem:[%s7725 + $0x1e9] sm:$0xff] %vm7007, %v7589
    %7764 = vst.msk [vmem:[%s7725 + $0x1f9] sm:$0xff] %vm7007, %v7590
    %7765 = vst.msk [vmem:[%s7725 + $0x201] sm:$0xff] %vm7007, %v7591
    %7766 = vst.msk [vmem:[%s7725 + $0x211] sm:$0xff] %vm7007, %v7592
    %7767 = vst.msk [vmem:[%s7725 + $0x219] sm:$0xff] %vm7007, %v7593
    %7768 = vst.msk [vmem:[%s7725 + $0x229] sm:$0xff] %vm7007, %v7594
    %7769 = vst.msk [vmem:[%s7725 + $0x231] sm:$0xff] %vm7007, %v7595
    %7770 = vst.msk [vmem:[%s7725 + $0x241] sm:$0xff] %vm7007, %v7596
    %7771 = vst.msk [vmem:[%s7725 + $0x249] sm:$0xff] %vm7007, %v7597
    %7772 = vst.msk [vmem:[%s7725 + $0x259] sm:$0xff] %vm7007, %v7598
    %7773 = vst.msk [vmem:[%s7725 + $0x261] sm:$0xff] %vm7007, %v7599
    %7774 = vst.msk [vmem:[%s7725 + $0x271] sm:$0xff] %vm7007, %v7600
    %7775 = vst.msk [vmem:[%s7725 + $0x279] sm:$0xff] %vm7007, %v7601
    %7776 = vst.msk [vmem:[%s7725 + $0x289] sm:$0xff] %vm7007, %v7602
    %7777 = vst.msk [vmem:[%s7725 + $0x291] sm:$0xff] %vm7007, %v7603
    %7778 = vst.msk [vmem:[%s7725 + $0x2a1] sm:$0xff] %vm7007, %v7604
    %7779 = vst.msk [vmem:[%s7725 + $0x2a9] sm:$0xff] %vm7007, %v7605
    %7780 = vst.msk [vmem:[%s7725 + $0x2b9] sm:$0xff] %vm7007, %v7606
    %7781 = vst.msk [vmem:[%s7725 + $0x2c1] sm:$0xff] %vm7007, %v7607
    %7782 = vst.msk [vmem:[%s7725 + $0x2d1] sm:$0xff] %vm7007, %v7608
    %7783 = vst.msk [vmem:[%s7725 + $0x2d9] sm:$0xff] %vm7007, %v7609
    %7784 = vst.msk [vmem:[%s7725 + $0x2e9] sm:$0xff] %vm7007, %v7610
    %7785 = vst.msk [vmem:[%s7725 + $0x2f1] sm:$0xff] %vm7007, %v7611
    %7786 = vst.msk [vmem:[%s7725 + $0x301] sm:$0xff] %vm7007, %v7612
    %7787 = vst.msk [vmem:[%s7725 + $0x309] sm:$0xff] %vm7007, %v7613
    %7788 = vst.msk [vmem:[%s7725 + $0x319] sm:$0xff] %vm7007, %v7614
    %7789 = vst.msk [vmem:[%s7725 + $0x321] sm:$0xff] %vm7007, %v7615
    %v7790 = vld [vmem:[#allocation4] sm:$0xff]
    %v7791 = vld [vmem:[#allocation4 + $0x8] sm:$0xff]
    %v7792 = vld [vmem:[#allocation4 + $0x10] sm:$0x3]
    %v7793 = vld [vmem:[#allocation4 + $0x18] sm:$0xff]
    %v7794 = vld [vmem:[#allocation4 + $0x20] sm:$0xff]
    %v7795 = vld [vmem:[#allocation4 + $0x28] sm:$0x3]
    %v7796 = vld [vmem:[#allocation4 + $0x30] sm:$0xff]
    %v7797 = vld [vmem:[#allocation4 + $0x38] sm:$0xff]
    %v7798 = vld [vmem:[#allocation4 + $0x40] sm:$0x3]
    %v7799 = vld [vmem:[#allocation4 + $0x48] sm:$0xff]
    %v7800 = vld [vmem:[#allocation4 + $0x50] sm:$0xff]
    %v7801 = vld [vmem:[#allocation4 + $0x58] sm:$0x3]
    %v7802 = vld [vmem:[#allocation4 + $0x60] sm:$0xff]
    %v7803 = vld [vmem:[#allocation4 + $0x68] sm:$0xff]
    %v7804 = vld [vmem:[#allocation4 + $0x70] sm:$0x3]
    %v7805 = vld [vmem:[#allocation4 + $0x78] sm:$0xff]
    %v7806 = vld [vmem:[#allocation4 + $0x80] sm:$0xff]
    %v7807 = vld [vmem:[#allocation4 + $0x88] sm:$0x3]
    %v7808 = vld [vmem:[#allocation4 + $0x90] sm:$0xff]
    %v7809 = vld [vmem:[#allocation4 + $0x98] sm:$0xff]
    %v7810 = vld [vmem:[#allocation4 + $0xa0] sm:$0x3]
    %v7811 = vld [vmem:[#allocation4 + $0xa8] sm:$0xff]
    %v7812 = vld [vmem:[#allocation4 + $0xb0] sm:$0xff]
    %v7813 = vld [vmem:[#allocation4 + $0xb8] sm:$0x3]
    %v7814 = vld [vmem:[#allocation4 + $0xc0] sm:$0xff]
    %v7815 = vld [vmem:[#allocation4 + $0xc8] sm:$0xff]
    %v7816 = vld [vmem:[#allocation4 + $0xd0] sm:$0x3]
    %v7817 = vld [vmem:[#allocation4 + $0xd8] sm:$0xff]
    %v7818 = vld [vmem:[#allocation4 + $0xe0] sm:$0xff]
    %v7819 = vld [vmem:[#allocation4 + $0xe8] sm:$0x3]
    %v7820 = vld [vmem:[#allocation4 + $0xf0] sm:$0xff]
    %v7821 = vld [vmem:[#allocation4 + $0xf8] sm:$0xff]
    %v7822 = vld [vmem:[#allocation4 + $0x100] sm:$0x3]
    %v7823 = vld [vmem:[#allocation4 + $0x108] sm:$0xff]
    %v7824 = vld [vmem:[#allocation4 + $0x110] sm:$0xff]
    %v7825 = vld [vmem:[#allocation4 + $0x118] sm:$0x3]
    %v7826 = vld [vmem:[#allocation4 + $0x120] sm:$0xff]
    %v7827 = vld [vmem:[#allocation4 + $0x128] sm:$0xff]
    %v7828 = vld [vmem:[#allocation4 + $0x130] sm:$0x3]
    %v7829 = vld [vmem:[#allocation4 + $0x138] sm:$0xff]
    %v7830 = vld [vmem:[#allocation4 + $0x140] sm:$0xff]
    %v7831 = vld [vmem:[#allocation4 + $0x148] sm:$0x3]
    %v7832 = vld [vmem:[#allocation4 + $0x150] sm:$0xff]
    %v7833 = vld [vmem:[#allocation4 + $0x158] sm:$0xff]
    %v7834 = vld [vmem:[#allocation4 + $0x160] sm:$0x3]
    %v7835 = vld [vmem:[#allocation4 + $0x168] sm:$0xff]
    %v7836 = vld [vmem:[#allocation4 + $0x170] sm:$0xff]
    %v7837 = vld [vmem:[#allocation4 + $0x178] sm:$0x3]
    %v7838 = vld [vmem:[#allocation4 + $0x180] sm:$0xff]
    %v7839 = vld [vmem:[#allocation4 + $0x188] sm:$0xff]
    %v7840 = vld [vmem:[#allocation4 + $0x190] sm:$0x3]
    %v7841 = vld [vmem:[#allocation4 + $0x198] sm:$0xff]
    %v7842 = vld [vmem:[#allocation4 + $0x1a0] sm:$0xff]
    %v7843 = vld [vmem:[#allocation4 + $0x1a8] sm:$0x3]
    %v7844 = vld [vmem:[#allocation4 + $0x1b0] sm:$0xff]
    %v7845 = vld [vmem:[#allocation4 + $0x1b8] sm:$0xff]
    %v7846 = vld [vmem:[#allocation4 + $0x1c0] sm:$0x3]
    %v7847 = vld [vmem:[#allocation4 + $0x1c8] sm:$0xff]
    %v7848 = vld [vmem:[#allocation4 + $0x1d0] sm:$0xff]
    %v7849 = vld [vmem:[#allocation4 + $0x1d8] sm:$0x3]
    %v7850 = vld [vmem:[#allocation4 + $0x1e0] sm:$0xff]
    %v7851 = vld [vmem:[#allocation4 + $0x1e8] sm:$0xff]
    %v7852 = vld [vmem:[#allocation4 + $0x1f0] sm:$0x3]
    %v7853 = vld [vmem:[#allocation4 + $0x1f8] sm:$0xff]
    %v7854 = vld [vmem:[#allocation4 + $0x200] sm:$0xff]
    %v7855 = vld [vmem:[#allocation4 + $0x208] sm:$0x3]
    %v7856 = vld [vmem:[#allocation4 + $0x210] sm:$0xff]
    %v7857 = vld [vmem:[#allocation4 + $0x218] sm:$0xff]
    %v7858 = vld [vmem:[#allocation4 + $0x220] sm:$0x3]
    %v7859 = vld [vmem:[#allocation4 + $0x228] sm:$0xff]
    %v7860 = vld [vmem:[#allocation4 + $0x230] sm:$0xff]
    %v7861 = vld [vmem:[#allocation4 + $0x238] sm:$0x3]
    %v7862 = vld [vmem:[#allocation4 + $0x240] sm:$0xff]
    %v7863 = vld [vmem:[#allocation4 + $0x248] sm:$0xff]
    %v7864 = vld [vmem:[#allocation4 + $0x250] sm:$0x3]
    %v7865 = vld [vmem:[#allocation4 + $0x258] sm:$0xff]
    %v7866 = vld [vmem:[#allocation4 + $0x260] sm:$0xff]
    %v7867 = vld [vmem:[#allocation4 + $0x268] sm:$0x3]
    %v7868 = vld [vmem:[#allocation4 + $0x270] sm:$0xff]
    %v7869 = vld [vmem:[#allocation4 + $0x278] sm:$0xff]
    %v7870 = vld [vmem:[#allocation4 + $0x280] sm:$0x3]
    %v7871 = vld [vmem:[#allocation4 + $0x288] sm:$0xff]
    %v7872 = vld [vmem:[#allocation4 + $0x290] sm:$0xff]
    %v7873 = vld [vmem:[#allocation4 + $0x298] sm:$0x3]
    %v7874 = vld [vmem:[#allocation4 + $0x2a0] sm:$0xff]
    %v7875 = vld [vmem:[#allocation4 + $0x2a8] sm:$0xff]
    %v7876 = vld [vmem:[#allocation4 + $0x2b0] sm:$0x3]
    %v7877 = vld [vmem:[#allocation4 + $0x2b8] sm:$0xff]
    %v7878 = vld [vmem:[#allocation4 + $0x2c0] sm:$0xff]
    %v7879 = vld [vmem:[#allocation4 + $0x2c8] sm:$0x3]
    %v7880 = vld [vmem:[#allocation4 + $0x2d0] sm:$0xff]
    %v7881 = vld [vmem:[#allocation4 + $0x2d8] sm:$0xff]
    %v7882 = vld [vmem:[#allocation4 + $0x2e0] sm:$0x3]
    %v7883 = vld [vmem:[#allocation4 + $0x2e8] sm:$0xff]
    %v7884 = vld [vmem:[#allocation4 + $0x2f0] sm:$0xff]
    %v7885 = vld [vmem:[#allocation4 + $0x2f8] sm:$0x3]
    %v7886 = vld [vmem:[#allocation4 + $0x300] sm:$0xff]
    %v7887 = vld [vmem:[#allocation4 + $0x308] sm:$0xff]
    %v7888 = vld [vmem:[#allocation4 + $0x310] sm:$0x3]
    %v7889 = vld [vmem:[#allocation4 + $0x318] sm:$0xff]
    %v7890 = vld [vmem:[#allocation4 + $0x320] sm:$0xff]
    %v7891 = vld [vmem:[#allocation4 + $0x328] sm:$0x3]
    %v7892 = vld [vmem:[#allocation4 + $0x330] sm:$0xff]
    %v7893 = vld [vmem:[#allocation4 + $0x338] sm:$0xff]
    %v7894 = vld [vmem:[#allocation4 + $0x340] sm:$0x3]
    %v7895 = vld [vmem:[#allocation4 + $0x348] sm:$0xff]
    %v7896 = vld [vmem:[#allocation4 + $0x350] sm:$0xff]
    %v7897 = vld [vmem:[#allocation4 + $0x358] sm:$0x3]
    %v8006 = vrot.slane %v7790, 1
    %v8007 = vrot.slane %v7791, 1
    %v8008 = vsel %vm1846, %v8006, %v8007
    %v8009 = vrot.slane %v7792, 1
    %v8010 = vsel %vm1846, %v8007, %v8009
    %v8011 = vrot.slane %v7793, 1
    %v8012 = vrot.slane %v7794, 1
    %v8013 = vsel %vm1846, %v8011, %v8012
    %v8014 = vrot.slane %v7795, 1
    %v8015 = vsel %vm1846, %v8012, %v8014
    %v8016 = vrot.slane %v7796, 1
    %v8017 = vrot.slane %v7797, 1
    %v8018 = vsel %vm1846, %v8016, %v8017
    %v8019 = vrot.slane %v7798, 1
    %v8020 = vsel %vm1846, %v8017, %v8019
    %v8021 = vrot.slane %v7799, 1
    %v8022 = vrot.slane %v7800, 1
    %v8023 = vsel %vm1846, %v8021, %v8022
    %v8024 = vrot.slane %v7801, 1
    %v8025 = vsel %vm1846, %v8022, %v8024
    %v8026 = vrot.slane %v7802, 1
    %v8027 = vrot.slane %v7803, 1
    %v8028 = vsel %vm1846, %v8026, %v8027
    %v8029 = vrot.slane %v7804, 1
    %v8030 = vsel %vm1846, %v8027, %v8029
    %v8031 = vrot.slane %v7805, 1
    %v8032 = vrot.slane %v7806, 1
    %v8033 = vsel %vm1846, %v8031, %v8032
    %v8034 = vrot.slane %v7807, 1
    %v8035 = vsel %vm1846, %v8032, %v8034
    %v8036 = vrot.slane %v7808, 1
    %v8037 = vrot.slane %v7809, 1
    %v8038 = vsel %vm1846, %v8036, %v8037
    %v8039 = vrot.slane %v7810, 1
    %v8040 = vsel %vm1846, %v8037, %v8039
    %v8041 = vrot.slane %v7811, 1
    %v8042 = vrot.slane %v7812, 1
    %v8043 = vsel %vm1846, %v8041, %v8042
    %v8044 = vrot.slane %v7813, 1
    %v8045 = vsel %vm1846, %v8042, %v8044
    %v8046 = vrot.slane %v7814, 1
    %v8047 = vrot.slane %v7815, 1
    %v8048 = vsel %vm1846, %v8046, %v8047
    %v8049 = vrot.slane %v7816, 1
    %v8050 = vsel %vm1846, %v8047, %v8049
    %v8051 = vrot.slane %v7817, 1
    %v8052 = vrot.slane %v7818, 1
    %v8053 = vsel %vm1846, %v8051, %v8052
    %v8054 = vrot.slane %v7819, 1
    %v8055 = vsel %vm1846, %v8052, %v8054
    %v8056 = vrot.slane %v7820, 1
    %v8057 = vrot.slane %v7821, 1
    %v8058 = vsel %vm1846, %v8056, %v8057
    %v8059 = vrot.slane %v7822, 1
    %v8060 = vsel %vm1846, %v8057, %v8059
    %v8061 = vrot.slane %v7823, 1
    %v8062 = vrot.slane %v7824, 1
    %v8063 = vsel %vm1846, %v8061, %v8062
    %v8064 = vrot.slane %v7825, 1
    %v8065 = vsel %vm1846, %v8062, %v8064
    %v8066 = vrot.slane %v7826, 1
    %v8067 = vrot.slane %v7827, 1
    %v8068 = vsel %vm1846, %v8066, %v8067
    %v8069 = vrot.slane %v7828, 1
    %v8070 = vsel %vm1846, %v8067, %v8069
    %v8071 = vrot.slane %v7829, 1
    %v8072 = vrot.slane %v7830, 1
    %v8073 = vsel %vm1846, %v8071, %v8072
    %v8074 = vrot.slane %v7831, 1
    %v8075 = vsel %vm1846, %v8072, %v8074
    %v8076 = vrot.slane %v7832, 1
    %v8077 = vrot.slane %v7833, 1
    %v8078 = vsel %vm1846, %v8076, %v8077
    %v8079 = vrot.slane %v7834, 1
    %v8080 = vsel %vm1846, %v8077, %v8079
    %v8081 = vrot.slane %v7835, 1
    %v8082 = vrot.slane %v7836, 1
    %v8083 = vsel %vm1846, %v8081, %v8082
    %v8084 = vrot.slane %v7837, 1
    %v8085 = vsel %vm1846, %v8082, %v8084
    %v8086 = vrot.slane %v7838, 1
    %v8087 = vrot.slane %v7839, 1
    %v8088 = vsel %vm1846, %v8086, %v8087
    %v8089 = vrot.slane %v7840, 1
    %v8090 = vsel %vm1846, %v8087, %v8089
    %v8091 = vrot.slane %v7841, 1
    %v8092 = vrot.slane %v7842, 1
    %v8093 = vsel %vm1846, %v8091, %v8092
    %v8094 = vrot.slane %v7843, 1
    %v8095 = vsel %vm1846, %v8092, %v8094
    %v8096 = vrot.slane %v7844, 1
    %v8097 = vrot.slane %v7845, 1
    %v8098 = vsel %vm1846, %v8096, %v8097
    %v8099 = vrot.slane %v7846, 1
    %v8100 = vsel %vm1846, %v8097, %v8099
    %v8101 = vrot.slane %v7847, 1
    %v8102 = vrot.slane %v7848, 1
    %v8103 = vsel %vm1846, %v8101, %v8102
    %v8104 = vrot.slane %v7849, 1
    %v8105 = vsel %vm1846, %v8102, %v8104
    %v8106 = vrot.slane %v7850, 1
    %v8107 = vrot.slane %v7851, 1
    %v8108 = vsel %vm1846, %v8106, %v8107
    %v8109 = vrot.slane %v7852, 1
    %v8110 = vsel %vm1846, %v8107, %v8109
    %v8111 = vrot.slane %v7853, 1
    %v8112 = vrot.slane %v7854, 1
    %v8113 = vsel %vm1846, %v8111, %v8112
    %v8114 = vrot.slane %v7855, 1
    %v8115 = vsel %vm1846, %v8112, %v8114
    %v8116 = vrot.slane %v7856, 1
    %v8117 = vrot.slane %v7857, 1
    %v8118 = vsel %vm1846, %v8116, %v8117
    %v8119 = vrot.slane %v7858, 1
    %v8120 = vsel %vm1846, %v8117, %v8119
    %v8121 = vrot.slane %v7859, 1
    %v8122 = vrot.slane %v7860, 1
    %v8123 = vsel %vm1846, %v8121, %v8122
    %v8124 = vrot.slane %v7861, 1
    %v8125 = vsel %vm1846, %v8122, %v8124
    %v8126 = vrot.slane %v7862, 1
    %v8127 = vrot.slane %v7863, 1
    %v8128 = vsel %vm1846, %v8126, %v8127
    %v8129 = vrot.slane %v7864, 1
    %v8130 = vsel %vm1846, %v8127, %v8129
    %v8131 = vrot.slane %v7865, 1
    %v8132 = vrot.slane %v7866, 1
    %v8133 = vsel %vm1846, %v8131, %v8132
    %v8134 = vrot.slane %v7867, 1
    %v8135 = vsel %vm1846, %v8132, %v8134
    %v8136 = vrot.slane %v7868, 1
    %v8137 = vrot.slane %v7869, 1
    %v8138 = vsel %vm1846, %v8136, %v8137
    %v8139 = vrot.slane %v7870, 1
    %v8140 = vsel %vm1846, %v8137, %v8139
    %v8141 = vrot.slane %v7871, 1
    %v8142 = vrot.slane %v7872, 1
    %v8143 = vsel %vm1846, %v8141, %v8142
    %v8144 = vrot.slane %v7873, 1
    %v8145 = vsel %vm1846, %v8142, %v8144
    %v8146 = vrot.slane %v7874, 1
    %v8147 = vrot.slane %v7875, 1
    %v8148 = vsel %vm1846, %v8146, %v8147
    %v8149 = vrot.slane %v7876, 1
    %v8150 = vsel %vm1846, %v8147, %v8149
    %v8151 = vrot.slane %v7877, 1
    %v8152 = vrot.slane %v7878, 1
    %v8153 = vsel %vm1846, %v8151, %v8152
    %v8154 = vrot.slane %v7879, 1
    %v8155 = vsel %vm1846, %v8152, %v8154
    %v8156 = vrot.slane %v7880, 1
    %v8157 = vrot.slane %v7881, 1
    %v8158 = vsel %vm1846, %v8156, %v8157
    %v8159 = vrot.slane %v7882, 1
    %v8160 = vsel %vm1846, %v8157, %v8159
    %v8161 = vrot.slane %v7883, 1
    %v8162 = vrot.slane %v7884, 1
    %v8163 = vsel %vm1846, %v8161, %v8162
    %v8164 = vrot.slane %v7885, 1
    %v8165 = vsel %vm1846, %v8162, %v8164
    %v8166 = vrot.slane %v7886, 1
    %v8167 = vrot.slane %v7887, 1
    %v8168 = vsel %vm1846, %v8166, %v8167
    %v8169 = vrot.slane %v7888, 1
    %v8170 = vsel %vm1846, %v8167, %v8169
    %v8171 = vrot.slane %v7889, 1
    %v8172 = vrot.slane %v7890, 1
    %v8173 = vsel %vm1846, %v8171, %v8172
    %v8174 = vrot.slane %v7891, 1
    %v8175 = vsel %vm1846, %v8172, %v8174
    %v8176 = vrot.slane %v7892, 1
    %v8177 = vrot.slane %v7893, 1
    %v8178 = vsel %vm1846, %v8176, %v8177
    %v8179 = vrot.slane %v7894, 1
    %v8180 = vsel %vm1846, %v8177, %v8179
    %v8181 = vrot.slane %v7895, 1
    %v8182 = vrot.slane %v7896, 1
    %v8183 = vsel %vm1846, %v8181, %v8182
    %v8184 = vrot.slane %v7897, 1
    %v8185 = vsel %vm1846, %v8182, %v8184
    %8186 = vrot.lane.b32.xlu0 %v8008, 64
    %v8187 = vpop.permute.xlu0 %8186
    %8188 = vrot.lane.b32.xlu0 %v8010, 64
    %v8189 = vpop.permute.xlu0 %8188
    %8190 = vrot.lane.b32.xlu0 %v8013, 64
    %v8191 = vpop.permute.xlu0 %8190
    %8192 = vrot.lane.b32.xlu0 %v8015, 64
    %v8193 = vpop.permute.xlu0 %8192
    %8194 = vrot.lane.b32.xlu0 %v8018, 64
    %v8195 = vpop.permute.xlu0 %8194
    %8196 = vrot.lane.b32.xlu0 %v8020, 64
    %v8197 = vpop.permute.xlu0 %8196
    %8198 = vrot.lane.b32.xlu0 %v8023, 64
    %v8199 = vpop.permute.xlu0 %8198
    %8200 = vrot.lane.b32.xlu0 %v8025, 64
    %v8201 = vpop.permute.xlu0 %8200
    %8202 = vrot.lane.b32.xlu0 %v8028, 64
    %v8203 = vpop.permute.xlu0 %8202
    %8204 = vrot.lane.b32.xlu0 %v8030, 64
    %v8205 = vpop.permute.xlu0 %8204
    %8206 = vrot.lane.b32.xlu0 %v8033, 64
    %v8207 = vpop.permute.xlu0 %8206
    %8208 = vrot.lane.b32.xlu0 %v8035, 64
    %v8209 = vpop.permute.xlu0 %8208
    %8210 = vrot.lane.b32.xlu0 %v8038, 64
    %v8211 = vpop.permute.xlu0 %8210
    %8212 = vrot.lane.b32.xlu0 %v8040, 64
    %v8213 = vpop.permute.xlu0 %8212
    %8214 = vrot.lane.b32.xlu0 %v8043, 64
    %v8215 = vpop.permute.xlu0 %8214
    %8216 = vrot.lane.b32.xlu0 %v8045, 64
    %v8217 = vpop.permute.xlu0 %8216
    %8218 = vrot.lane.b32.xlu0 %v8048, 64
    %v8219 = vpop.permute.xlu0 %8218
    %8220 = vrot.lane.b32.xlu0 %v8050, 64
    %v8221 = vpop.permute.xlu0 %8220
    %8222 = vrot.lane.b32.xlu0 %v8053, 64
    %v8223 = vpop.permute.xlu0 %8222
    %8224 = vrot.lane.b32.xlu0 %v8055, 64
    %v8225 = vpop.permute.xlu0 %8224
    %8226 = vrot.lane.b32.xlu0 %v8058, 64
    %v8227 = vpop.permute.xlu0 %8226
    %8228 = vrot.lane.b32.xlu0 %v8060, 64
    %v8229 = vpop.permute.xlu0 %8228
    %8230 = vrot.lane.b32.xlu0 %v8063, 64
    %v8231 = vpop.permute.xlu0 %8230
    %8232 = vrot.lane.b32.xlu0 %v8065, 64
    %v8233 = vpop.permute.xlu0 %8232
    %8234 = vrot.lane.b32.xlu0 %v8068, 64
    %v8235 = vpop.permute.xlu0 %8234
    %8236 = vrot.lane.b32.xlu0 %v8070, 64
    %v8237 = vpop.permute.xlu0 %8236
    %8238 = vrot.lane.b32.xlu0 %v8073, 64
    %v8239 = vpop.permute.xlu0 %8238
    %8240 = vrot.lane.b32.xlu0 %v8075, 64
    %v8241 = vpop.permute.xlu0 %8240
    %8242 = vrot.lane.b32.xlu0 %v8078, 64
    %v8243 = vpop.permute.xlu0 %8242
    %8244 = vrot.lane.b32.xlu0 %v8080, 64
    %v8245 = vpop.permute.xlu0 %8244
    %8246 = vrot.lane.b32.xlu0 %v8083, 64
    %v8247 = vpop.permute.xlu0 %8246
    %8248 = vrot.lane.b32.xlu0 %v8085, 64
    %v8249 = vpop.permute.xlu0 %8248
    %8250 = vrot.lane.b32.xlu0 %v8088, 64
    %v8251 = vpop.permute.xlu0 %8250
    %8252 = vrot.lane.b32.xlu0 %v8090, 64
    %v8253 = vpop.permute.xlu0 %8252
    %8254 = vrot.lane.b32.xlu0 %v8093, 64
    %v8255 = vpop.permute.xlu0 %8254
    %8256 = vrot.lane.b32.xlu0 %v8095, 64
    %v8257 = vpop.permute.xlu0 %8256
    %8258 = vrot.lane.b32.xlu0 %v8098, 64
    %v8259 = vpop.permute.xlu0 %8258
    %8260 = vrot.lane.b32.xlu0 %v8100, 64
    %v8261 = vpop.permute.xlu0 %8260
    %8262 = vrot.lane.b32.xlu0 %v8103, 64
    %v8263 = vpop.permute.xlu0 %8262
    %8264 = vrot.lane.b32.xlu0 %v8105, 64
    %v8265 = vpop.permute.xlu0 %8264
    %8266 = vrot.lane.b32.xlu0 %v8108, 64
    %v8267 = vpop.permute.xlu0 %8266
    %8268 = vrot.lane.b32.xlu0 %v8110, 64
    %v8269 = vpop.permute.xlu0 %8268
    %8270 = vrot.lane.b32.xlu0 %v8113, 64
    %v8271 = vpop.permute.xlu0 %8270
    %8272 = vrot.lane.b32.xlu0 %v8115, 64
    %v8273 = vpop.permute.xlu0 %8272
    %8274 = vrot.lane.b32.xlu0 %v8118, 64
    %v8275 = vpop.permute.xlu0 %8274
    %8276 = vrot.lane.b32.xlu0 %v8120, 64
    %v8277 = vpop.permute.xlu0 %8276
    %8278 = vrot.lane.b32.xlu0 %v8123, 64
    %v8279 = vpop.permute.xlu0 %8278
    %8280 = vrot.lane.b32.xlu0 %v8125, 64
    %v8281 = vpop.permute.xlu0 %8280
    %8282 = vrot.lane.b32.xlu0 %v8128, 64
    %v8283 = vpop.permute.xlu0 %8282
    %8284 = vrot.lane.b32.xlu0 %v8130, 64
    %v8285 = vpop.permute.xlu0 %8284
    %8286 = vrot.lane.b32.xlu0 %v8133, 64
    %v8287 = vpop.permute.xlu0 %8286
    %8288 = vrot.lane.b32.xlu0 %v8135, 64
    %v8289 = vpop.permute.xlu0 %8288
    %8290 = vrot.lane.b32.xlu0 %v8138, 64
    %v8291 = vpop.permute.xlu0 %8290
    %8292 = vrot.lane.b32.xlu0 %v8140, 64
    %v8293 = vpop.permute.xlu0 %8292
    %8294 = vrot.lane.b32.xlu0 %v8143, 64
    %v8295 = vpop.permute.xlu0 %8294
    %8296 = vrot.lane.b32.xlu0 %v8145, 64
    %v8297 = vpop.permute.xlu0 %8296
    %8298 = vrot.lane.b32.xlu0 %v8148, 64
    %v8299 = vpop.permute.xlu0 %8298
    %8300 = vrot.lane.b32.xlu0 %v8150, 64
    %v8301 = vpop.permute.xlu0 %8300
    %8302 = vrot.lane.b32.xlu0 %v8153, 64
    %v8303 = vpop.permute.xlu0 %8302
    %8304 = vrot.lane.b32.xlu0 %v8155, 64
    %v8305 = vpop.permute.xlu0 %8304
    %8306 = vrot.lane.b32.xlu0 %v8158, 64
    %v8307 = vpop.permute.xlu0 %8306
    %8308 = vrot.lane.b32.xlu0 %v8160, 64
    %v8309 = vpop.permute.xlu0 %8308
    %8310 = vrot.lane.b32.xlu0 %v8163, 64
    %v8311 = vpop.permute.xlu0 %8310
    %8312 = vrot.lane.b32.xlu0 %v8165, 64
    %v8313 = vpop.permute.xlu0 %8312
    %8314 = vrot.lane.b32.xlu0 %v8168, 64
    %v8315 = vpop.permute.xlu0 %8314
    %8316 = vrot.lane.b32.xlu0 %v8170, 64
    %v8317 = vpop.permute.xlu0 %8316
    %8318 = vrot.lane.b32.xlu0 %v8173, 64
    %v8319 = vpop.permute.xlu0 %8318
    %8320 = vrot.lane.b32.xlu0 %v8175, 64
    %v8321 = vpop.permute.xlu0 %8320
    %8322 = vrot.lane.b32.xlu0 %v8178, 64
    %v8323 = vpop.permute.xlu0 %8322
    %8324 = vrot.lane.b32.xlu0 %v8180, 64
    %v8325 = vpop.permute.xlu0 %8324
    %8326 = vrot.lane.b32.xlu0 %v8183, 64
    %v8327 = vpop.permute.xlu0 %8326
    %8328 = vrot.lane.b32.xlu0 %v8185, 64
    %v8329 = vpop.permute.xlu0 %8328
    %v8402 = vrot.slane %v7790, 2
    %v8403 = vrot.slane %v7791, 2
    %v8404 = vsel %vm1927, %v8402, %v8403
    %v8405 = vrot.slane %v7792, 2
    %v8406 = vsel %vm1927, %v8403, %v8405
    %v8407 = vrot.slane %v7793, 2
    %v8408 = vrot.slane %v7794, 2
    %v8409 = vsel %vm1927, %v8407, %v8408
    %v8410 = vrot.slane %v7795, 2
    %v8411 = vsel %vm1927, %v8408, %v8410
    %v8412 = vrot.slane %v7796, 2
    %v8413 = vrot.slane %v7797, 2
    %v8414 = vsel %vm1927, %v8412, %v8413
    %v8415 = vrot.slane %v7798, 2
    %v8416 = vsel %vm1927, %v8413, %v8415
    %v8417 = vrot.slane %v7799, 2
    %v8418 = vrot.slane %v7800, 2
    %v8419 = vsel %vm1927, %v8417, %v8418
    %v8420 = vrot.slane %v7801, 2
    %v8421 = vsel %vm1927, %v8418, %v8420
    %v8422 = vrot.slane %v7802, 2
    %v8423 = vrot.slane %v7803, 2
    %v8424 = vsel %vm1927, %v8422, %v8423
    %v8425 = vrot.slane %v7804, 2
    %v8426 = vsel %vm1927, %v8423, %v8425
    %v8427 = vrot.slane %v7805, 2
    %v8428 = vrot.slane %v7806, 2
    %v8429 = vsel %vm1927, %v8427, %v8428
    %v8430 = vrot.slane %v7807, 2
    %v8431 = vsel %vm1927, %v8428, %v8430
    %v8432 = vrot.slane %v7808, 2
    %v8433 = vrot.slane %v7809, 2
    %v8434 = vsel %vm1927, %v8432, %v8433
    %v8435 = vrot.slane %v7810, 2
    %v8436 = vsel %vm1927, %v8433, %v8435
    %v8437 = vrot.slane %v7811, 2
    %v8438 = vrot.slane %v7812, 2
    %v8439 = vsel %vm1927, %v8437, %v8438
    %v8440 = vrot.slane %v7813, 2
    %v8441 = vsel %vm1927, %v8438, %v8440
    %v8442 = vrot.slane %v7814, 2
    %v8443 = vrot.slane %v7815, 2
    %v8444 = vsel %vm1927, %v8442, %v8443
    %v8445 = vrot.slane %v7816, 2
    %v8446 = vsel %vm1927, %v8443, %v8445
    %v8447 = vrot.slane %v7817, 2
    %v8448 = vrot.slane %v7818, 2
    %v8449 = vsel %vm1927, %v8447, %v8448
    %v8450 = vrot.slane %v7819, 2
    %v8451 = vsel %vm1927, %v8448, %v8450
    %v8452 = vrot.slane %v7820, 2
    %v8453 = vrot.slane %v7821, 2
    %v8454 = vsel %vm1927, %v8452, %v8453
    %v8455 = vrot.slane %v7822, 2
    %v8456 = vsel %vm1927, %v8453, %v8455
    %v8457 = vrot.slane %v7823, 2
    %v8458 = vrot.slane %v7824, 2
    %v8459 = vsel %vm1927, %v8457, %v8458
    %v8460 = vrot.slane %v7825, 2
    %v8461 = vsel %vm1927, %v8458, %v8460
    %v8462 = vrot.slane %v7826, 2
    %v8463 = vrot.slane %v7827, 2
    %v8464 = vsel %vm1927, %v8462, %v8463
    %v8465 = vrot.slane %v7828, 2
    %v8466 = vsel %vm1927, %v8463, %v8465
    %v8467 = vrot.slane %v7829, 2
    %v8468 = vrot.slane %v7830, 2
    %v8469 = vsel %vm1927, %v8467, %v8468
    %v8470 = vrot.slane %v7831, 2
    %v8471 = vsel %vm1927, %v8468, %v8470
    %v8472 = vrot.slane %v7832, 2
    %v8473 = vrot.slane %v7833, 2
    %v8474 = vsel %vm1927, %v8472, %v8473
    %v8475 = vrot.slane %v7834, 2
    %v8476 = vsel %vm1927, %v8473, %v8475
    %v8477 = vrot.slane %v7835, 2
    %v8478 = vrot.slane %v7836, 2
    %v8479 = vsel %vm1927, %v8477, %v8478
    %v8480 = vrot.slane %v7837, 2
    %v8481 = vsel %vm1927, %v8478, %v8480
    %v8482 = vrot.slane %v7838, 2
    %v8483 = vrot.slane %v7839, 2
    %v8484 = vsel %vm1927, %v8482, %v8483
    %v8485 = vrot.slane %v7840, 2
    %v8486 = vsel %vm1927, %v8483, %v8485
    %v8487 = vrot.slane %v7841, 2
    %v8488 = vrot.slane %v7842, 2
    %v8489 = vsel %vm1927, %v8487, %v8488
    %v8490 = vrot.slane %v7843, 2
    %v8491 = vsel %vm1927, %v8488, %v8490
    %v8492 = vrot.slane %v7844, 2
    %v8493 = vrot.slane %v7845, 2
    %v8494 = vsel %vm1927, %v8492, %v8493
    %v8495 = vrot.slane %v7846, 2
    %v8496 = vsel %vm1927, %v8493, %v8495
    %v8497 = vrot.slane %v7847, 2
    %v8498 = vrot.slane %v7848, 2
    %v8499 = vsel %vm1927, %v8497, %v8498
    %v8500 = vrot.slane %v7849, 2
    %v8501 = vsel %vm1927, %v8498, %v8500
    %v8502 = vrot.slane %v7850, 2
    %v8503 = vrot.slane %v7851, 2
    %v8504 = vsel %vm1927, %v8502, %v8503
    %v8505 = vrot.slane %v7852, 2
    %v8506 = vsel %vm1927, %v8503, %v8505
    %v8507 = vrot.slane %v7853, 2
    %v8508 = vrot.slane %v7854, 2
    %v8509 = vsel %vm1927, %v8507, %v8508
    %v8510 = vrot.slane %v7855, 2
    %v8511 = vsel %vm1927, %v8508, %v8510
    %v8512 = vrot.slane %v7856, 2
    %v8513 = vrot.slane %v7857, 2
    %v8514 = vsel %vm1927, %v8512, %v8513
    %v8515 = vrot.slane %v7858, 2
    %v8516 = vsel %vm1927, %v8513, %v8515
    %v8517 = vrot.slane %v7859, 2
    %v8518 = vrot.slane %v7860, 2
    %v8519 = vsel %vm1927, %v8517, %v8518
    %v8520 = vrot.slane %v7861, 2
    %v8521 = vsel %vm1927, %v8518, %v8520
    %v8522 = vrot.slane %v7862, 2
    %v8523 = vrot.slane %v7863, 2
    %v8524 = vsel %vm1927, %v8522, %v8523
    %v8525 = vrot.slane %v7864, 2
    %v8526 = vsel %vm1927, %v8523, %v8525
    %v8527 = vrot.slane %v7865, 2
    %v8528 = vrot.slane %v7866, 2
    %v8529 = vsel %vm1927, %v8527, %v8528
    %v8530 = vrot.slane %v7867, 2
    %v8531 = vsel %vm1927, %v8528, %v8530
    %v8532 = vrot.slane %v7868, 2
    %v8533 = vrot.slane %v7869, 2
    %v8534 = vsel %vm1927, %v8532, %v8533
    %v8535 = vrot.slane %v7870, 2
    %v8536 = vsel %vm1927, %v8533, %v8535
    %v8537 = vrot.slane %v7871, 2
    %v8538 = vrot.slane %v7872, 2
    %v8539 = vsel %vm1927, %v8537, %v8538
    %v8540 = vrot.slane %v7873, 2
    %v8541 = vsel %vm1927, %v8538, %v8540
    %v8542 = vrot.slane %v7874, 2
    %v8543 = vrot.slane %v7875, 2
    %v8544 = vsel %vm1927, %v8542, %v8543
    %v8545 = vrot.slane %v7876, 2
    %v8546 = vsel %vm1927, %v8543, %v8545
    %v8547 = vrot.slane %v7877, 2
    %v8548 = vrot.slane %v7878, 2
    %v8549 = vsel %vm1927, %v8547, %v8548
    %v8550 = vrot.slane %v7879, 2
    %v8551 = vsel %vm1927, %v8548, %v8550
    %v8552 = vrot.slane %v7880, 2
    %v8553 = vrot.slane %v7881, 2
    %v8554 = vsel %vm1927, %v8552, %v8553
    %v8555 = vrot.slane %v7882, 2
    %v8556 = vsel %vm1927, %v8553, %v8555
    %v8557 = vrot.slane %v7883, 2
    %v8558 = vrot.slane %v7884, 2
    %v8559 = vsel %vm1927, %v8557, %v8558
    %v8560 = vrot.slane %v7885, 2
    %v8561 = vsel %vm1927, %v8558, %v8560
    %v8562 = vrot.slane %v7886, 2
    %v8563 = vrot.slane %v7887, 2
    %v8564 = vsel %vm1927, %v8562, %v8563
    %v8565 = vrot.slane %v7888, 2
    %v8566 = vsel %vm1927, %v8563, %v8565
    %v8567 = vrot.slane %v7889, 2
    %v8568 = vrot.slane %v7890, 2
    %v8569 = vsel %vm1927, %v8567, %v8568
    %v8570 = vrot.slane %v7891, 2
    %v8571 = vsel %vm1927, %v8568, %v8570
    %v8572 = vrot.slane %v7892, 2
    %v8573 = vrot.slane %v7893, 2
    %v8574 = vsel %vm1927, %v8572, %v8573
    %v8575 = vrot.slane %v7894, 2
    %v8576 = vsel %vm1927, %v8573, %v8575
    %v8577 = vrot.slane %v7895, 2
    %v8578 = vrot.slane %v7896, 2
    %v8579 = vsel %vm1927, %v8577, %v8578
    %v8580 = vrot.slane %v7897, 2
    %v8581 = vsel %vm1927, %v8578, %v8580
    %v8654 = vsel %vm7007, %v7790, %v8187
    %v8655 = vsel %vm7007, %v7791, %v8189
    %v8656 = vsel %vm7007, %v7793, %v8191
    %v8657 = vsel %vm7007, %v7794, %v8193
    %v8658 = vsel %vm7007, %v7796, %v8195
    %v8659 = vsel %vm7007, %v7797, %v8197
    %v8660 = vsel %vm7007, %v7799, %v8199
    %v8661 = vsel %vm7007, %v7800, %v8201
    %v8662 = vsel %vm7007, %v7802, %v8203
    %v8663 = vsel %vm7007, %v7803, %v8205
    %v8664 = vsel %vm7007, %v7805, %v8207
    %v8665 = vsel %vm7007, %v7806, %v8209
    %v8666 = vsel %vm7007, %v7808, %v8211
    %v8667 = vsel %vm7007, %v7809, %v8213
    %v8668 = vsel %vm7007, %v7811, %v8215
    %v8669 = vsel %vm7007, %v7812, %v8217
    %v8670 = vsel %vm7007, %v7814, %v8219
    %v8671 = vsel %vm7007, %v7815, %v8221
    %v8672 = vsel %vm7007, %v7817, %v8223
    %v8673 = vsel %vm7007, %v7818, %v8225
    %v8674 = vsel %vm7007, %v7820, %v8227
    %v8675 = vsel %vm7007, %v7821, %v8229
    %v8676 = vsel %vm7007, %v7823, %v8231
    %v8677 = vsel %vm7007, %v7824, %v8233
    %v8678 = vsel %vm7007, %v7826, %v8235
    %v8679 = vsel %vm7007, %v7827, %v8237
    %v8680 = vsel %vm7007, %v7829, %v8239
    %v8681 = vsel %vm7007, %v7830, %v8241
    %v8682 = vsel %vm7007, %v7832, %v8243
    %v8683 = vsel %vm7007, %v7833, %v8245
    %v8684 = vsel %vm7007, %v7835, %v8247
    %v8685 = vsel %vm7007, %v7836, %v8249
    %v8686 = vsel %vm7007, %v7838, %v8251
    %v8687 = vsel %vm7007, %v7839, %v8253
    %v8688 = vsel %vm7007, %v7841, %v8255
    %v8689 = vsel %vm7007, %v7842, %v8257
    %v8690 = vsel %vm7007, %v7844, %v8259
    %v8691 = vsel %vm7007, %v7845, %v8261
    %v8692 = vsel %vm7007, %v7847, %v8263
    %v8693 = vsel %vm7007, %v7848, %v8265
    %v8694 = vsel %vm7007, %v7850, %v8267
    %v8695 = vsel %vm7007, %v7851, %v8269
    %v8696 = vsel %vm7007, %v7853, %v8271
    %v8697 = vsel %vm7007, %v7854, %v8273
    %v8698 = vsel %vm7007, %v7856, %v8275
    %v8699 = vsel %vm7007, %v7857, %v8277
    %v8700 = vsel %vm7007, %v7859, %v8279
    %v8701 = vsel %vm7007, %v7860, %v8281
    %v8702 = vsel %vm7007, %v7862, %v8283
    %v8703 = vsel %vm7007, %v7863, %v8285
    %v8704 = vsel %vm7007, %v7865, %v8287
    %v8705 = vsel %vm7007, %v7866, %v8289
    %v8706 = vsel %vm7007, %v7868, %v8291
    %v8707 = vsel %vm7007, %v7869, %v8293
    %v8708 = vsel %vm7007, %v7871, %v8295
    %v8709 = vsel %vm7007, %v7872, %v8297
    %v8710 = vsel %vm7007, %v7874, %v8299
    %v8711 = vsel %vm7007, %v7875, %v8301
    %v8712 = vsel %vm7007, %v7877, %v8303
    %v8713 = vsel %vm7007, %v7878, %v8305
    %v8714 = vsel %vm7007, %v7880, %v8307
    %v8715 = vsel %vm7007, %v7881, %v8309
    %v8716 = vsel %vm7007, %v7883, %v8311
    %v8717 = vsel %vm7007, %v7884, %v8313
    %v8718 = vsel %vm7007, %v7886, %v8315
    %v8719 = vsel %vm7007, %v7887, %v8317
    %v8720 = vsel %vm7007, %v7889, %v8319
    %v8721 = vsel %vm7007, %v7890, %v8321
    %v8722 = vsel %vm7007, %v7892, %v8323
    %v8723 = vsel %vm7007, %v7893, %v8325
    %v8724 = vsel %vm7007, %v7895, %v8327
    %v8725 = vsel %vm7007, %v7896, %v8329
    %v8726 = vld [vmem:[%s13] ss:$4 sm:$0x3]
    %v8728 = vlaneseq
    %v8729 = vshrl.u32 %v8728, 7
    %v8730 = vsub.s32 0, %v8729
    %v8731 = vrot.slane %v8726, %v8730
    %v8732 = vlaneseq
    %v8733 = vshrl.u32 %v8732, 7
    %v8734 = vsub.s32 1, %v8733
    %v8735 = vrot.slane %v8726, %v8734
    %v8738 = vmul.f32 %v8654, %v8731
    %v8739 = vmul.f32 %v8404, %v8735
    %v8740 = vmul.f32 %v8655, %v8731
    %v8741 = vmul.f32 %v8406, %v8735
    %v8742 = vmul.f32 %v8656, %v8731
    %v8743 = vmul.f32 %v8409, %v8735
    %v8744 = vmul.f32 %v8657, %v8731
    %v8745 = vmul.f32 %v8411, %v8735
    %v8746 = vmul.f32 %v8658, %v8731
    %v8747 = vmul.f32 %v8414, %v8735
    %v8748 = vmul.f32 %v8659, %v8731
    %v8749 = vmul.f32 %v8416, %v8735
    %v8750 = vmul.f32 %v8660, %v8731
    %v8751 = vmul.f32 %v8419, %v8735
    %v8752 = vmul.f32 %v8661, %v8731
    %v8753 = vmul.f32 %v8421, %v8735
    %v8754 = vmul.f32 %v8662, %v8731
    %v8755 = vmul.f32 %v8424, %v8735
    %v8756 = vmul.f32 %v8663, %v8731
    %v8757 = vmul.f32 %v8426, %v8735
    %v8758 = vmul.f32 %v8664, %v8731
    %v8759 = vmul.f32 %v8429, %v8735
    %v8760 = vmul.f32 %v8665, %v8731
    %v8761 = vmul.f32 %v8431, %v8735
    %v8762 = vmul.f32 %v8666, %v8731
    %v8763 = vmul.f32 %v8434, %v8735
    %v8764 = vmul.f32 %v8667, %v8731
    %v8765 = vmul.f32 %v8436, %v8735
    %v8766 = vmul.f32 %v8668, %v8731
    %v8767 = vmul.f32 %v8439, %v8735
    %v8768 = vmul.f32 %v8669, %v8731
    %v8769 = vmul.f32 %v8441, %v8735
    %v8770 = vmul.f32 %v8670, %v8731
    %v8771 = vmul.f32 %v8444, %v8735
    %v8772 = vmul.f32 %v8671, %v8731
    %v8773 = vmul.f32 %v8446, %v8735
    %v8774 = vmul.f32 %v8672, %v8731
    %v8775 = vmul.f32 %v8449, %v8735
    %v8776 = vmul.f32 %v8673, %v8731
    %v8777 = vmul.f32 %v8451, %v8735
    %v8778 = vmul.f32 %v8674, %v8731
    %v8779 = vmul.f32 %v8454, %v8735
    %v8780 = vmul.f32 %v8675, %v8731
    %v8781 = vmul.f32 %v8456, %v8735
    %v8782 = vmul.f32 %v8676, %v8731
    %v8783 = vmul.f32 %v8459, %v8735
    %v8784 = vmul.f32 %v8677, %v8731
    %v8785 = vmul.f32 %v8461, %v8735
    %v8786 = vmul.f32 %v8678, %v8731
    %v8787 = vmul.f32 %v8464, %v8735
    %v8788 = vmul.f32 %v8679, %v8731
    %v8789 = vmul.f32 %v8466, %v8735
    %v8790 = vmul.f32 %v8680, %v8731
    %v8791 = vmul.f32 %v8469, %v8735
    %v8792 = vmul.f32 %v8681, %v8731
    %v8793 = vmul.f32 %v8471, %v8735
    %v8794 = vmul.f32 %v8682, %v8731
    %v8795 = vmul.f32 %v8474, %v8735
    %v8796 = vmul.f32 %v8683, %v8731
    %v8797 = vmul.f32 %v8476, %v8735
    %v8798 = vmul.f32 %v8684, %v8731
    %v8799 = vmul.f32 %v8479, %v8735
    %v8800 = vmul.f32 %v8685, %v8731
    %v8801 = vmul.f32 %v8481, %v8735
    %v8802 = vmul.f32 %v8690, %v8731
    %v8803 = vmul.f32 %v8494, %v8735
    %v8804 = vmul.f32 %v8691, %v8731
    %v8805 = vmul.f32 %v8496, %v8735
    %v8806 = vmul.f32 %v8692, %v8731
    %v8807 = vmul.f32 %v8499, %v8735
    %v8808 = vmul.f32 %v8693, %v8731
    %v8809 = vmul.f32 %v8501, %v8735
    %v8810 = vmul.f32 %v8694, %v8731
    %v8811 = vmul.f32 %v8504, %v8735
    %v8812 = vmul.f32 %v8695, %v8731
    %v8813 = vmul.f32 %v8506, %v8735
    %v8814 = vmul.f32 %v8696, %v8731
    %v8815 = vmul.f32 %v8509, %v8735
    %v8816 = vmul.f32 %v8697, %v8731
    %v8817 = vmul.f32 %v8511, %v8735
    %v8818 = vmul.f32 %v8698, %v8731
    %v8819 = vmul.f32 %v8514, %v8735
    %v8820 = vmul.f32 %v8699, %v8731
    %v8821 = vmul.f32 %v8516, %v8735
    %v8822 = vmul.f32 %v8700, %v8731
    %v8823 = vmul.f32 %v8519, %v8735
    %v8824 = vmul.f32 %v8701, %v8731
    %v8825 = vmul.f32 %v8521, %v8735
    %v8826 = vmul.f32 %v8702, %v8731
    %v8827 = vmul.f32 %v8524, %v8735
    %v8828 = vmul.f32 %v8703, %v8731
    %v8829 = vmul.f32 %v8526, %v8735
    %v8830 = vmul.f32 %v8704, %v8731
    %v8831 = vmul.f32 %v8529, %v8735
    %v8832 = vmul.f32 %v8705, %v8731
    %v8833 = vmul.f32 %v8531, %v8735
    %v8834 = vmul.f32 %v8706, %v8731
    %v8835 = vmul.f32 %v8534, %v8735
    %v8836 = vmul.f32 %v8707, %v8731
    %v8837 = vmul.f32 %v8536, %v8735
    %v8838 = vmul.f32 %v8708, %v8731
    %v8839 = vmul.f32 %v8539, %v8735
    %v8840 = vmul.f32 %v8709, %v8731
    %v8841 = vmul.f32 %v8541, %v8735
    %v8842 = vmul.f32 %v8710, %v8731
    %v8843 = vmul.f32 %v8544, %v8735
    %v8844 = vmul.f32 %v8711, %v8731
    %v8845 = vmul.f32 %v8546, %v8735
    %v8846 = vmul.f32 %v8712, %v8731
    %v8847 = vmul.f32 %v8549, %v8735
    %v8848 = vmul.f32 %v8713, %v8731
    %v8849 = vmul.f32 %v8551, %v8735
    %v8850 = vmul.f32 %v8714, %v8731
    %v8851 = vmul.f32 %v8554, %v8735
    %v8852 = vmul.f32 %v8715, %v8731
    %v8853 = vmul.f32 %v8556, %v8735
    %v8854 = vmul.f32 %v8716, %v8731
    %v8855 = vmul.f32 %v8559, %v8735
    %v8856 = vmul.f32 %v8717, %v8731
    %v8857 = vmul.f32 %v8561, %v8735
    %v8858 = vmul.f32 %v8718, %v8731
    %v8859 = vmul.f32 %v8564, %v8735
    %v8860 = vmul.f32 %v8719, %v8731
    %v8861 = vmul.f32 %v8566, %v8735
    %v8862 = vmul.f32 %v8720, %v8731
    %v8863 = vmul.f32 %v8569, %v8735
    %v8864 = vmul.f32 %v8721, %v8731
    %v8865 = vmul.f32 %v8571, %v8735
    %s8866 = scalar_lea.vmem %s13, 1
    %v8867 = vld [vmem:[%s8866] ss:$4 sm:$0x3]
    %v8869 = vlaneseq
    %v8870 = vshrl.u32 %v8869, 7
    %v8871 = vsub.s32 0, %v8870
    %v8872 = vrot.slane %v8867, %v8871
    %v8873 = vlaneseq
    %v8874 = vshrl.u32 %v8873, 7
    %v8875 = vsub.s32 1, %v8874
    %v8876 = vrot.slane %v8867, %v8875
    %v8879 = vmul.f32 %v8656, %v8872
    %v8880 = vmul.f32 %v8409, %v8876
    %v8881 = vmul.f32 %v8657, %v8872
    %v8882 = vmul.f32 %v8411, %v8876
    %v8883 = vmul.f32 %v8658, %v8872
    %v8884 = vmul.f32 %v8414, %v8876
    %v8885 = vmul.f32 %v8659, %v8872
    %v8886 = vmul.f32 %v8416, %v8876
    %v8887 = vmul.f32 %v8660, %v8872
    %v8888 = vmul.f32 %v8419, %v8876
    %v8889 = vmul.f32 %v8661, %v8872
    %v8890 = vmul.f32 %v8421, %v8876
    %v8891 = vmul.f32 %v8662, %v8872
    %v8892 = vmul.f32 %v8424, %v8876
    %v8893 = vmul.f32 %v8663, %v8872
    %v8894 = vmul.f32 %v8426, %v8876
    %v8895 = vmul.f32 %v8664, %v8872
    %v8896 = vmul.f32 %v8429, %v8876
    %v8897 = vmul.f32 %v8665, %v8872
    %v8898 = vmul.f32 %v8431, %v8876
    %v8899 = vmul.f32 %v8666, %v8872
    %v8900 = vmul.f32 %v8434, %v8876
    %v8901 = vmul.f32 %v8667, %v8872
    %v8902 = vmul.f32 %v8436, %v8876
    %v8903 = vmul.f32 %v8668, %v8872
    %v8904 = vmul.f32 %v8439, %v8876
    %v8905 = vmul.f32 %v8669, %v8872
    %v8906 = vmul.f32 %v8441, %v8876
    %v8907 = vmul.f32 %v8670, %v8872
    %v8908 = vmul.f32 %v8444, %v8876
    %v8909 = vmul.f32 %v8671, %v8872
    %v8910 = vmul.f32 %v8446, %v8876
    %v8911 = vmul.f32 %v8672, %v8872
    %v8912 = vmul.f32 %v8449, %v8876
    %v8913 = vmul.f32 %v8673, %v8872
    %v8914 = vmul.f32 %v8451, %v8876
    %v8915 = vmul.f32 %v8674, %v8872
    %v8916 = vmul.f32 %v8454, %v8876
    %v8917 = vmul.f32 %v8675, %v8872
    %v8918 = vmul.f32 %v8456, %v8876
    %v8919 = vmul.f32 %v8676, %v8872
    %v8920 = vmul.f32 %v8459, %v8876
    %v8921 = vmul.f32 %v8677, %v8872
    %v8922 = vmul.f32 %v8461, %v8876
    %v8923 = vmul.f32 %v8678, %v8872
    %v8924 = vmul.f32 %v8464, %v8876
    %v8925 = vmul.f32 %v8679, %v8872
    %v8926 = vmul.f32 %v8466, %v8876
    %v8927 = vmul.f32 %v8680, %v8872
    %v8928 = vmul.f32 %v8469, %v8876
    %v8929 = vmul.f32 %v8681, %v8872
    %v8930 = vmul.f32 %v8471, %v8876
    %v8931 = vmul.f32 %v8682, %v8872
    %v8932 = vmul.f32 %v8474, %v8876
    %v8933 = vmul.f32 %v8683, %v8872
    %v8934 = vmul.f32 %v8476, %v8876
    %v8935 = vmul.f32 %v8684, %v8872
    %v8936 = vmul.f32 %v8479, %v8876
    %v8937 = vmul.f32 %v8685, %v8872
    %v8938 = vmul.f32 %v8481, %v8876
    %v8939 = vmul.f32 %v8686, %v8872
    %v8940 = vmul.f32 %v8484, %v8876
    %v8941 = vmul.f32 %v8687, %v8872
    %v8942 = vmul.f32 %v8486, %v8876
    %v8943 = vmul.f32 %v8692, %v8872
    %v8944 = vmul.f32 %v8499, %v8876
    %v8945 = vmul.f32 %v8693, %v8872
    %v8946 = vmul.f32 %v8501, %v8876
    %v8947 = vmul.f32 %v8694, %v8872
    %v8948 = vmul.f32 %v8504, %v8876
    %v8949 = vmul.f32 %v8695, %v8872
    %v8950 = vmul.f32 %v8506, %v8876
    %v8951 = vmul.f32 %v8696, %v8872
    %v8952 = vmul.f32 %v8509, %v8876
    %v8953 = vmul.f32 %v8697, %v8872
    %v8954 = vmul.f32 %v8511, %v8876
    %v8955 = vmul.f32 %v8698, %v8872
    %v8956 = vmul.f32 %v8514, %v8876
    %v8957 = vmul.f32 %v8699, %v8872
    %v8958 = vmul.f32 %v8516, %v8876
    %v8959 = vmul.f32 %v8700, %v8872
    %v8960 = vmul.f32 %v8519, %v8876
    %v8961 = vmul.f32 %v8701, %v8872
    %v8962 = vmul.f32 %v8521, %v8876
    %v8963 = vmul.f32 %v8702, %v8872
    %v8964 = vmul.f32 %v8524, %v8876
    %v8965 = vmul.f32 %v8703, %v8872
    %v8966 = vmul.f32 %v8526, %v8876
    %v8967 = vmul.f32 %v8704, %v8872
    %v8968 = vmul.f32 %v8529, %v8876
    %v8969 = vmul.f32 %v8705, %v8872
    %v8970 = vmul.f32 %v8531, %v8876
    %v8971 = vmul.f32 %v8706, %v8872
    %v8972 = vmul.f32 %v8534, %v8876
    %v8973 = vmul.f32 %v8707, %v8872
    %v8974 = vmul.f32 %v8536, %v8876
    %v8975 = vmul.f32 %v8708, %v8872
    %v8976 = vmul.f32 %v8539, %v8876
    %v8977 = vmul.f32 %v8709, %v8872
    %v8978 = vmul.f32 %v8541, %v8876
    %v8979 = vmul.f32 %v8710, %v8872
    %v8980 = vmul.f32 %v8544, %v8876
    %v8981 = vmul.f32 %v8711, %v8872
    %v8982 = vmul.f32 %v8546, %v8876
    %v8983 = vmul.f32 %v8712, %v8872
    %v8984 = vmul.f32 %v8549, %v8876
    %v8985 = vmul.f32 %v8713, %v8872
    %v8986 = vmul.f32 %v8551, %v8876
    %v8987 = vmul.f32 %v8714, %v8872
    %v8988 = vmul.f32 %v8554, %v8876
    %v8989 = vmul.f32 %v8715, %v8872
    %v8990 = vmul.f32 %v8556, %v8876
    %v8991 = vmul.f32 %v8716, %v8872
    %v8992 = vmul.f32 %v8559, %v8876
    %v8993 = vmul.f32 %v8717, %v8872
    %v8994 = vmul.f32 %v8561, %v8876
    %v8995 = vmul.f32 %v8718, %v8872
    %v8996 = vmul.f32 %v8564, %v8876
    %v8997 = vmul.f32 %v8719, %v8872
    %v8998 = vmul.f32 %v8566, %v8876
    %v8999 = vmul.f32 %v8720, %v8872
    %v9000 = vmul.f32 %v8569, %v8876
    %v9001 = vmul.f32 %v8721, %v8872
    %v9002 = vmul.f32 %v8571, %v8876
    %v9003 = vmul.f32 %v8722, %v8872
    %v9004 = vmul.f32 %v8574, %v8876
    %v9005 = vmul.f32 %v8723, %v8872
    %v9006 = vmul.f32 %v8576, %v8876
    %v9007 = vadd.f32 %v8738, %v8879
    %v9008 = vadd.f32 %v8739, %v8880
    %v9009 = vadd.f32 %v8740, %v8881
    %v9010 = vadd.f32 %v8741, %v8882
    %v9011 = vadd.f32 %v8742, %v8883
    %v9012 = vadd.f32 %v8743, %v8884
    %v9013 = vadd.f32 %v8744, %v8885
    %v9014 = vadd.f32 %v8745, %v8886
    %v9015 = vadd.f32 %v8746, %v8887
    %v9016 = vadd.f32 %v8747, %v8888
    %v9017 = vadd.f32 %v8748, %v8889
    %v9018 = vadd.f32 %v8749, %v8890
    %v9019 = vadd.f32 %v8750, %v8891
    %v9020 = vadd.f32 %v8751, %v8892
    %v9021 = vadd.f32 %v8752, %v8893
    %v9022 = vadd.f32 %v8753, %v8894
    %v9023 = vadd.f32 %v8754, %v8895
    %v9024 = vadd.f32 %v8755, %v8896
    %v9025 = vadd.f32 %v8756, %v8897
    %v9026 = vadd.f32 %v8757, %v8898
    %v9027 = vadd.f32 %v8758, %v8899
    %v9028 = vadd.f32 %v8759, %v8900
    %v9029 = vadd.f32 %v8760, %v8901
    %v9030 = vadd.f32 %v8761, %v8902
    %v9031 = vadd.f32 %v8762, %v8903
    %v9032 = vadd.f32 %v8763, %v8904
    %v9033 = vadd.f32 %v8764, %v8905
    %v9034 = vadd.f32 %v8765, %v8906
    %v9035 = vadd.f32 %v8766, %v8907
    %v9036 = vadd.f32 %v8767, %v8908
    %v9037 = vadd.f32 %v8768, %v8909
    %v9038 = vadd.f32 %v8769, %v8910
    %v9039 = vadd.f32 %v8770, %v8911
    %v9040 = vadd.f32 %v8771, %v8912
    %v9041 = vadd.f32 %v8772, %v8913
    %v9042 = vadd.f32 %v8773, %v8914
    %v9043 = vadd.f32 %v8774, %v8915
    %v9044 = vadd.f32 %v8775, %v8916
    %v9045 = vadd.f32 %v8776, %v8917
    %v9046 = vadd.f32 %v8777, %v8918
    %v9047 = vadd.f32 %v8778, %v8919
    %v9048 = vadd.f32 %v8779, %v8920
    %v9049 = vadd.f32 %v8780, %v8921
    %v9050 = vadd.f32 %v8781, %v8922
    %v9051 = vadd.f32 %v8782, %v8923
    %v9052 = vadd.f32 %v8783, %v8924
    %v9053 = vadd.f32 %v8784, %v8925
    %v9054 = vadd.f32 %v8785, %v8926
    %v9055 = vadd.f32 %v8786, %v8927
    %v9056 = vadd.f32 %v8787, %v8928
    %v9057 = vadd.f32 %v8788, %v8929
    %v9058 = vadd.f32 %v8789, %v8930
    %v9059 = vadd.f32 %v8790, %v8931
    %v9060 = vadd.f32 %v8791, %v8932
    %v9061 = vadd.f32 %v8792, %v8933
    %v9062 = vadd.f32 %v8793, %v8934
    %v9063 = vadd.f32 %v8794, %v8935
    %v9064 = vadd.f32 %v8795, %v8936
    %v9065 = vadd.f32 %v8796, %v8937
    %v9066 = vadd.f32 %v8797, %v8938
    %v9067 = vadd.f32 %v8798, %v8939
    %v9068 = vadd.f32 %v8799, %v8940
    %v9069 = vadd.f32 %v8800, %v8941
    %v9070 = vadd.f32 %v8801, %v8942
    %v9071 = vadd.f32 %v8802, %v8943
    %v9072 = vadd.f32 %v8803, %v8944
    %v9073 = vadd.f32 %v8804, %v8945
    %v9074 = vadd.f32 %v8805, %v8946
    %v9075 = vadd.f32 %v8806, %v8947
    %v9076 = vadd.f32 %v8807, %v8948
    %v9077 = vadd.f32 %v8808, %v8949
    %v9078 = vadd.f32 %v8809, %v8950
    %v9079 = vadd.f32 %v8810, %v8951
    %v9080 = vadd.f32 %v8811, %v8952
    %v9081 = vadd.f32 %v8812, %v8953
    %v9082 = vadd.f32 %v8813, %v8954
    %v9083 = vadd.f32 %v8814, %v8955
    %v9084 = vadd.f32 %v8815, %v8956
    %v9085 = vadd.f32 %v8816, %v8957
    %v9086 = vadd.f32 %v8817, %v8958
    %v9087 = vadd.f32 %v8818, %v8959
    %v9088 = vadd.f32 %v8819, %v8960
    %v9089 = vadd.f32 %v8820, %v8961
    %v9090 = vadd.f32 %v8821, %v8962
    %v9091 = vadd.f32 %v8822, %v8963
    %v9092 = vadd.f32 %v8823, %v8964
    %v9093 = vadd.f32 %v8824, %v8965
    %v9094 = vadd.f32 %v8825, %v8966
    %v9095 = vadd.f32 %v8826, %v8967
    %v9096 = vadd.f32 %v8827, %v8968
    %v9097 = vadd.f32 %v8828, %v8969
    %v9098 = vadd.f32 %v8829, %v8970
    %v9099 = vadd.f32 %v8830, %v8971
    %v9100 = vadd.f32 %v8831, %v8972
    %v9101 = vadd.f32 %v8832, %v8973
    %v9102 = vadd.f32 %v8833, %v8974
    %v9103 = vadd.f32 %v8834, %v8975
    %v9104 = vadd.f32 %v8835, %v8976
    %v9105 = vadd.f32 %v8836, %v8977
    %v9106 = vadd.f32 %v8837, %v8978
    %v9107 = vadd.f32 %v8838, %v8979
    %v9108 = vadd.f32 %v8839, %v8980
    %v9109 = vadd.f32 %v8840, %v8981
    %v9110 = vadd.f32 %v8841, %v8982
    %v9111 = vadd.f32 %v8842, %v8983
    %v9112 = vadd.f32 %v8843, %v8984
    %v9113 = vadd.f32 %v8844, %v8985
    %v9114 = vadd.f32 %v8845, %v8986
    %v9115 = vadd.f32 %v8846, %v8987
    %v9116 = vadd.f32 %v8847, %v8988
    %v9117 = vadd.f32 %v8848, %v8989
    %v9118 = vadd.f32 %v8849, %v8990
    %v9119 = vadd.f32 %v8850, %v8991
    %v9120 = vadd.f32 %v8851, %v8992
    %v9121 = vadd.f32 %v8852, %v8993
    %v9122 = vadd.f32 %v8853, %v8994
    %v9123 = vadd.f32 %v8854, %v8995
    %v9124 = vadd.f32 %v8855, %v8996
    %v9125 = vadd.f32 %v8856, %v8997
    %v9126 = vadd.f32 %v8857, %v8998
    %v9127 = vadd.f32 %v8858, %v8999
    %v9128 = vadd.f32 %v8859, %v9000
    %v9129 = vadd.f32 %v8860, %v9001
    %v9130 = vadd.f32 %v8861, %v9002
    %v9131 = vadd.f32 %v8862, %v9003
    %v9132 = vadd.f32 %v8863, %v9004
    %v9133 = vadd.f32 %v8864, %v9005
    %v9134 = vadd.f32 %v8865, %v9006
    %s9135 = scalar_lea.vmem %s13, 2
    %v9136 = vld [vmem:[%s9135] ss:$4 sm:$0x3]
    %v9138 = vlaneseq
    %v9139 = vshrl.u32 %v9138, 7
    %v9140 = vsub.s32 0, %v9139
    %v9141 = vrot.slane %v9136, %v9140
    %v9142 = vlaneseq
    %v9143 = vshrl.u32 %v9142, 7
    %v9144 = vsub.s32 1, %v9143
    %v9145 = vrot.slane %v9136, %v9144
    %v9148 = vmul.f32 %v8658, %v9141
    %v9149 = vmul.f32 %v8414, %v9145
    %v9150 = vmul.f32 %v8659, %v9141
    %v9151 = vmul.f32 %v8416, %v9145
    %v9152 = vmul.f32 %v8660, %v9141
    %v9153 = vmul.f32 %v8419, %v9145
    %v9154 = vmul.f32 %v8661, %v9141
    %v9155 = vmul.f32 %v8421, %v9145
    %v9156 = vmul.f32 %v8662, %v9141
    %v9157 = vmul.f32 %v8424, %v9145
    %v9158 = vmul.f32 %v8663, %v9141
    %v9159 = vmul.f32 %v8426, %v9145
    %v9160 = vmul.f32 %v8664, %v9141
    %v9161 = vmul.f32 %v8429, %v9145
    %v9162 = vmul.f32 %v8665, %v9141
    %v9163 = vmul.f32 %v8431, %v9145
    %v9164 = vmul.f32 %v8666, %v9141
    %v9165 = vmul.f32 %v8434, %v9145
    %v9166 = vmul.f32 %v8667, %v9141
    %v9167 = vmul.f32 %v8436, %v9145
    %v9168 = vmul.f32 %v8668, %v9141
    %v9169 = vmul.f32 %v8439, %v9145
    %v9170 = vmul.f32 %v8669, %v9141
    %v9171 = vmul.f32 %v8441, %v9145
    %v9172 = vmul.f32 %v8670, %v9141
    %v9173 = vmul.f32 %v8444, %v9145
    %v9174 = vmul.f32 %v8671, %v9141
    %v9175 = vmul.f32 %v8446, %v9145
    %v9176 = vmul.f32 %v8672, %v9141
    %v9177 = vmul.f32 %v8449, %v9145
    %v9178 = vmul.f32 %v8673, %v9141
    %v9179 = vmul.f32 %v8451, %v9145
    %v9180 = vmul.f32 %v8674, %v9141
    %v9181 = vmul.f32 %v8454, %v9145
    %v9182 = vmul.f32 %v8675, %v9141
    %v9183 = vmul.f32 %v8456, %v9145
    %v9184 = vmul.f32 %v8676, %v9141
    %v9185 = vmul.f32 %v8459, %v9145
    %v9186 = vmul.f32 %v8677, %v9141
    %v9187 = vmul.f32 %v8461, %v9145
    %v9188 = vmul.f32 %v8678, %v9141
    %v9189 = vmul.f32 %v8464, %v9145
    %v9190 = vmul.f32 %v8679, %v9141
    %v9191 = vmul.f32 %v8466, %v9145
    %v9192 = vmul.f32 %v8680, %v9141
    %v9193 = vmul.f32 %v8469, %v9145
    %v9194 = vmul.f32 %v8681, %v9141
    %v9195 = vmul.f32 %v8471, %v9145
    %v9196 = vmul.f32 %v8682, %v9141
    %v9197 = vmul.f32 %v8474, %v9145
    %v9198 = vmul.f32 %v8683, %v9141
    %v9199 = vmul.f32 %v8476, %v9145
    %v9200 = vmul.f32 %v8684, %v9141
    %v9201 = vmul.f32 %v8479, %v9145
    %v9202 = vmul.f32 %v8685, %v9141
    %v9203 = vmul.f32 %v8481, %v9145
    %v9204 = vmul.f32 %v8686, %v9141
    %v9205 = vmul.f32 %v8484, %v9145
    %v9206 = vmul.f32 %v8687, %v9141
    %v9207 = vmul.f32 %v8486, %v9145
    %v9208 = vmul.f32 %v8688, %v9141
    %v9209 = vmul.f32 %v8489, %v9145
    %v9210 = vmul.f32 %v8689, %v9141
    %v9211 = vmul.f32 %v8491, %v9145
    %v9212 = vmul.f32 %v8694, %v9141
    %v9213 = vmul.f32 %v8504, %v9145
    %v9214 = vmul.f32 %v8695, %v9141
    %v9215 = vmul.f32 %v8506, %v9145
    %v9216 = vmul.f32 %v8696, %v9141
    %v9217 = vmul.f32 %v8509, %v9145
    %v9218 = vmul.f32 %v8697, %v9141
    %v9219 = vmul.f32 %v8511, %v9145
    %v9220 = vmul.f32 %v8698, %v9141
    %v9221 = vmul.f32 %v8514, %v9145
    %v9222 = vmul.f32 %v8699, %v9141
    %v9223 = vmul.f32 %v8516, %v9145
    %v9224 = vmul.f32 %v8700, %v9141
    %v9225 = vmul.f32 %v8519, %v9145
    %v9226 = vmul.f32 %v8701, %v9141
    %v9227 = vmul.f32 %v8521, %v9145
    %v9228 = vmul.f32 %v8702, %v9141
    %v9229 = vmul.f32 %v8524, %v9145
    %v9230 = vmul.f32 %v8703, %v9141
    %v9231 = vmul.f32 %v8526, %v9145
    %v9232 = vmul.f32 %v8704, %v9141
    %v9233 = vmul.f32 %v8529, %v9145
    %v9234 = vmul.f32 %v8705, %v9141
    %v9235 = vmul.f32 %v8531, %v9145
    %v9236 = vmul.f32 %v8706, %v9141
    %v9237 = vmul.f32 %v8534, %v9145
    %v9238 = vmul.f32 %v8707, %v9141
    %v9239 = vmul.f32 %v8536, %v9145
    %v9240 = vmul.f32 %v8708, %v9141
    %v9241 = vmul.f32 %v8539, %v9145
    %v9242 = vmul.f32 %v8709, %v9141
    %v9243 = vmul.f32 %v8541, %v9145
    %v9244 = vmul.f32 %v8710, %v9141
    %v9245 = vmul.f32 %v8544, %v9145
    %v9246 = vmul.f32 %v8711, %v9141
    %v9247 = vmul.f32 %v8546, %v9145
    %v9248 = vmul.f32 %v8712, %v9141
    %v9249 = vmul.f32 %v8549, %v9145
    %v9250 = vmul.f32 %v8713, %v9141
    %v9251 = vmul.f32 %v8551, %v9145
    %v9252 = vmul.f32 %v8714, %v9141
    %v9253 = vmul.f32 %v8554, %v9145
    %v9254 = vmul.f32 %v8715, %v9141
    %v9255 = vmul.f32 %v8556, %v9145
    %v9256 = vmul.f32 %v8716, %v9141
    %v9257 = vmul.f32 %v8559, %v9145
    %v9258 = vmul.f32 %v8717, %v9141
    %v9259 = vmul.f32 %v8561, %v9145
    %v9260 = vmul.f32 %v8718, %v9141
    %v9261 = vmul.f32 %v8564, %v9145
    %v9262 = vmul.f32 %v8719, %v9141
    %v9263 = vmul.f32 %v8566, %v9145
    %v9264 = vmul.f32 %v8720, %v9141
    %v9265 = vmul.f32 %v8569, %v9145
    %v9266 = vmul.f32 %v8721, %v9141
    %v9267 = vmul.f32 %v8571, %v9145
    %v9268 = vmul.f32 %v8722, %v9141
    %v9269 = vmul.f32 %v8574, %v9145
    %v9270 = vmul.f32 %v8723, %v9141
    %v9271 = vmul.f32 %v8576, %v9145
    %v9272 = vmul.f32 %v8724, %v9141
    %v9273 = vmul.f32 %v8579, %v9145
    %v9274 = vmul.f32 %v8725, %v9141
    %v9275 = vmul.f32 %v8581, %v9145
    %v9276 = vadd.f32 %v9007, %v9148
    %v9277 = vadd.f32 %v9008, %v9149
    %v9278 = vadd.f32 %v9009, %v9150
    %v9279 = vadd.f32 %v9010, %v9151
    %v9280 = vadd.f32 %v9011, %v9152
    %v9281 = vadd.f32 %v9012, %v9153
    %v9282 = vadd.f32 %v9013, %v9154
    %v9283 = vadd.f32 %v9014, %v9155
    %v9284 = vadd.f32 %v9015, %v9156
    %v9285 = vadd.f32 %v9016, %v9157
    %v9286 = vadd.f32 %v9017, %v9158
    %v9287 = vadd.f32 %v9018, %v9159
    %v9288 = vadd.f32 %v9019, %v9160
    %v9289 = vadd.f32 %v9020, %v9161
    %v9290 = vadd.f32 %v9021, %v9162
    %v9291 = vadd.f32 %v9022, %v9163
    %v9292 = vadd.f32 %v9023, %v9164
    %v9293 = vadd.f32 %v9024, %v9165
    %v9294 = vadd.f32 %v9025, %v9166
    %v9295 = vadd.f32 %v9026, %v9167
    %v9296 = vadd.f32 %v9027, %v9168
    %v9297 = vadd.f32 %v9028, %v9169
    %v9298 = vadd.f32 %v9029, %v9170
    %v9299 = vadd.f32 %v9030, %v9171
    %v9300 = vadd.f32 %v9031, %v9172
    %v9301 = vadd.f32 %v9032, %v9173
    %v9302 = vadd.f32 %v9033, %v9174
    %v9303 = vadd.f32 %v9034, %v9175
    %v9304 = vadd.f32 %v9035, %v9176
    %v9305 = vadd.f32 %v9036, %v9177
    %v9306 = vadd.f32 %v9037, %v9178
    %v9307 = vadd.f32 %v9038, %v9179
    %v9308 = vadd.f32 %v9039, %v9180
    %v9309 = vadd.f32 %v9040, %v9181
    %v9310 = vadd.f32 %v9041, %v9182
    %v9311 = vadd.f32 %v9042, %v9183
    %v9312 = vadd.f32 %v9043, %v9184
    %v9313 = vadd.f32 %v9044, %v9185
    %v9314 = vadd.f32 %v9045, %v9186
    %v9315 = vadd.f32 %v9046, %v9187
    %v9316 = vadd.f32 %v9047, %v9188
    %v9317 = vadd.f32 %v9048, %v9189
    %v9318 = vadd.f32 %v9049, %v9190
    %v9319 = vadd.f32 %v9050, %v9191
    %v9320 = vadd.f32 %v9051, %v9192
    %v9321 = vadd.f32 %v9052, %v9193
    %v9322 = vadd.f32 %v9053, %v9194
    %v9323 = vadd.f32 %v9054, %v9195
    %v9324 = vadd.f32 %v9055, %v9196
    %v9325 = vadd.f32 %v9056, %v9197
    %v9326 = vadd.f32 %v9057, %v9198
    %v9327 = vadd.f32 %v9058, %v9199
    %v9328 = vadd.f32 %v9059, %v9200
    %v9329 = vadd.f32 %v9060, %v9201
    %v9330 = vadd.f32 %v9061, %v9202
    %v9331 = vadd.f32 %v9062, %v9203
    %v9332 = vadd.f32 %v9063, %v9204
    %v9333 = vadd.f32 %v9064, %v9205
    %v9334 = vadd.f32 %v9065, %v9206
    %v9335 = vadd.f32 %v9066, %v9207
    %v9336 = vadd.f32 %v9067, %v9208
    %v9337 = vadd.f32 %v9068, %v9209
    %v9338 = vadd.f32 %v9069, %v9210
    %v9339 = vadd.f32 %v9070, %v9211
    %v9340 = vadd.f32 %v9071, %v9212
    %v9341 = vadd.f32 %v9072, %v9213
    %v9342 = vadd.f32 %v9073, %v9214
    %v9343 = vadd.f32 %v9074, %v9215
    %v9344 = vadd.f32 %v9075, %v9216
    %v9345 = vadd.f32 %v9076, %v9217
    %v9346 = vadd.f32 %v9077, %v9218
    %v9347 = vadd.f32 %v9078, %v9219
    %v9348 = vadd.f32 %v9079, %v9220
    %v9349 = vadd.f32 %v9080, %v9221
    %v9350 = vadd.f32 %v9081, %v9222
    %v9351 = vadd.f32 %v9082, %v9223
    %v9352 = vadd.f32 %v9083, %v9224
    %v9353 = vadd.f32 %v9084, %v9225
    %v9354 = vadd.f32 %v9085, %v9226
    %v9355 = vadd.f32 %v9086, %v9227
    %v9356 = vadd.f32 %v9087, %v9228
    %v9357 = vadd.f32 %v9088, %v9229
    %v9358 = vadd.f32 %v9089, %v9230
    %v9359 = vadd.f32 %v9090, %v9231
    %v9360 = vadd.f32 %v9091, %v9232
    %v9361 = vadd.f32 %v9092, %v9233
    %v9362 = vadd.f32 %v9093, %v9234
    %v9363 = vadd.f32 %v9094, %v9235
    %v9364 = vadd.f32 %v9095, %v9236
    %v9365 = vadd.f32 %v9096, %v9237
    %v9366 = vadd.f32 %v9097, %v9238
    %v9367 = vadd.f32 %v9098, %v9239
    %v9368 = vadd.f32 %v9099, %v9240
    %v9369 = vadd.f32 %v9100, %v9241
    %v9370 = vadd.f32 %v9101, %v9242
    %v9371 = vadd.f32 %v9102, %v9243
    %v9372 = vadd.f32 %v9103, %v9244
    %v9373 = vadd.f32 %v9104, %v9245
    %v9374 = vadd.f32 %v9105, %v9246
    %v9375 = vadd.f32 %v9106, %v9247
    %v9376 = vadd.f32 %v9107, %v9248
    %v9377 = vadd.f32 %v9108, %v9249
    %v9378 = vadd.f32 %v9109, %v9250
    %v9379 = vadd.f32 %v9110, %v9251
    %v9380 = vadd.f32 %v9111, %v9252
    %v9381 = vadd.f32 %v9112, %v9253
    %v9382 = vadd.f32 %v9113, %v9254
    %v9383 = vadd.f32 %v9114, %v9255
    %v9384 = vadd.f32 %v9115, %v9256
    %v9385 = vadd.f32 %v9116, %v9257
    %v9386 = vadd.f32 %v9117, %v9258
    %v9387 = vadd.f32 %v9118, %v9259
    %v9388 = vadd.f32 %v9119, %v9260
    %v9389 = vadd.f32 %v9120, %v9261
    %v9390 = vadd.f32 %v9121, %v9262
    %v9391 = vadd.f32 %v9122, %v9263
    %v9392 = vadd.f32 %v9123, %v9264
    %v9393 = vadd.f32 %v9124, %v9265
    %v9394 = vadd.f32 %v9125, %v9266
    %v9395 = vadd.f32 %v9126, %v9267
    %v9396 = vadd.f32 %v9127, %v9268
    %v9397 = vadd.f32 %v9128, %v9269
    %v9398 = vadd.f32 %v9129, %v9270
    %v9399 = vadd.f32 %v9130, %v9271
    %v9400 = vadd.f32 %v9131, %v9272
    %v9401 = vadd.f32 %v9132, %v9273
    %v9402 = vadd.f32 %v9133, %v9274
    %v9403 = vadd.f32 %v9134, %v9275
    %v9404 = vsel %vm7007, %v9277, 0.0
    %v9405 = vadd.f32 %v9276, %v9404
    %9406 = vadd.xlane.f32.xlu0 %v9405
    %v9407 = vpop.xlane.xlu0 %9406
    %v9408 = vsel %vm7007, %v9279, 0.0
    %v9409 = vadd.f32 %v9278, %v9408
    %9410 = vadd.xlane.f32.xlu0 %v9409
    %v9411 = vpop.xlane.xlu0 %9410
    %v9412 = vsel %vm7007, %v9281, 0.0
    %v9413 = vadd.f32 %v9280, %v9412
    %9414 = vadd.xlane.f32.xlu0 %v9413
    %v9415 = vpop.xlane.xlu0 %9414
    %v9416 = vsel %vm7007, %v9283, 0.0
    %v9417 = vadd.f32 %v9282, %v9416
    %9418 = vadd.xlane.f32.xlu0 %v9417
    %v9419 = vpop.xlane.xlu0 %9418
    %v9420 = vsel %vm7007, %v9285, 0.0
    %v9421 = vadd.f32 %v9284, %v9420
    %9422 = vadd.xlane.f32.xlu0 %v9421
    %v9423 = vpop.xlane.xlu0 %9422
    %v9424 = vsel %vm7007, %v9287, 0.0
    %v9425 = vadd.f32 %v9286, %v9424
    %9426 = vadd.xlane.f32.xlu0 %v9425
    %v9427 = vpop.xlane.xlu0 %9426
    %v9428 = vsel %vm7007, %v9289, 0.0
    %v9429 = vadd.f32 %v9288, %v9428
    %9430 = vadd.xlane.f32.xlu0 %v9429
    %v9431 = vpop.xlane.xlu0 %9430
    %v9432 = vsel %vm7007, %v9291, 0.0
    %v9433 = vadd.f32 %v9290, %v9432
    %9434 = vadd.xlane.f32.xlu0 %v9433
    %v9435 = vpop.xlane.xlu0 %9434
    %v9436 = vsel %vm7007, %v9293, 0.0
    %v9437 = vadd.f32 %v9292, %v9436
    %9438 = vadd.xlane.f32.xlu0 %v9437
    %v9439 = vpop.xlane.xlu0 %9438
    %v9440 = vsel %vm7007, %v9295, 0.0
    %v9441 = vadd.f32 %v9294, %v9440
    %9442 = vadd.xlane.f32.xlu0 %v9441
    %v9443 = vpop.xlane.xlu0 %9442
    %v9444 = vsel %vm7007, %v9297, 0.0
    %v9445 = vadd.f32 %v9296, %v9444
    %9446 = vadd.xlane.f32.xlu0 %v9445
    %v9447 = vpop.xlane.xlu0 %9446
    %v9448 = vsel %vm7007, %v9299, 0.0
    %v9449 = vadd.f32 %v9298, %v9448
    %9450 = vadd.xlane.f32.xlu0 %v9449
    %v9451 = vpop.xlane.xlu0 %9450
    %v9452 = vsel %vm7007, %v9301, 0.0
    %v9453 = vadd.f32 %v9300, %v9452
    %9454 = vadd.xlane.f32.xlu0 %v9453
    %v9455 = vpop.xlane.xlu0 %9454
    %v9456 = vsel %vm7007, %v9303, 0.0
    %v9457 = vadd.f32 %v9302, %v9456
    %9458 = vadd.xlane.f32.xlu0 %v9457
    %v9459 = vpop.xlane.xlu0 %9458
    %v9460 = vsel %vm7007, %v9305, 0.0
    %v9461 = vadd.f32 %v9304, %v9460
    %9462 = vadd.xlane.f32.xlu0 %v9461
    %v9463 = vpop.xlane.xlu0 %9462
    %v9464 = vsel %vm7007, %v9307, 0.0
    %v9465 = vadd.f32 %v9306, %v9464
    %9466 = vadd.xlane.f32.xlu0 %v9465
    %v9467 = vpop.xlane.xlu0 %9466
    %v9468 = vsel %vm7007, %v9309, 0.0
    %v9469 = vadd.f32 %v9308, %v9468
    %9470 = vadd.xlane.f32.xlu0 %v9469
    %v9471 = vpop.xlane.xlu0 %9470
    %v9472 = vsel %vm7007, %v9311, 0.0
    %v9473 = vadd.f32 %v9310, %v9472
    %9474 = vadd.xlane.f32.xlu0 %v9473
    %v9475 = vpop.xlane.xlu0 %9474
    %v9476 = vsel %vm7007, %v9313, 0.0
    %v9477 = vadd.f32 %v9312, %v9476
    %9478 = vadd.xlane.f32.xlu0 %v9477
    %v9479 = vpop.xlane.xlu0 %9478
    %v9480 = vsel %vm7007, %v9315, 0.0
    %v9481 = vadd.f32 %v9314, %v9480
    %9482 = vadd.xlane.f32.xlu0 %v9481
    %v9483 = vpop.xlane.xlu0 %9482
    %v9484 = vsel %vm7007, %v9317, 0.0
    %v9485 = vadd.f32 %v9316, %v9484
    %9486 = vadd.xlane.f32.xlu0 %v9485
    %v9487 = vpop.xlane.xlu0 %9486
    %v9488 = vsel %vm7007, %v9319, 0.0
    %v9489 = vadd.f32 %v9318, %v9488
    %9490 = vadd.xlane.f32.xlu0 %v9489
    %v9491 = vpop.xlane.xlu0 %9490
    %v9492 = vsel %vm7007, %v9321, 0.0
    %v9493 = vadd.f32 %v9320, %v9492
    %9494 = vadd.xlane.f32.xlu0 %v9493
    %v9495 = vpop.xlane.xlu0 %9494
    %v9496 = vsel %vm7007, %v9323, 0.0
    %v9497 = vadd.f32 %v9322, %v9496
    %9498 = vadd.xlane.f32.xlu0 %v9497
    %v9499 = vpop.xlane.xlu0 %9498
    %v9500 = vsel %vm7007, %v9325, 0.0
    %v9501 = vadd.f32 %v9324, %v9500
    %9502 = vadd.xlane.f32.xlu0 %v9501
    %v9503 = vpop.xlane.xlu0 %9502
    %v9504 = vsel %vm7007, %v9327, 0.0
    %v9505 = vadd.f32 %v9326, %v9504
    %9506 = vadd.xlane.f32.xlu0 %v9505
    %v9507 = vpop.xlane.xlu0 %9506
    %v9508 = vsel %vm7007, %v9329, 0.0
    %v9509 = vadd.f32 %v9328, %v9508
    %9510 = vadd.xlane.f32.xlu0 %v9509
    %v9511 = vpop.xlane.xlu0 %9510
    %v9512 = vsel %vm7007, %v9331, 0.0
    %v9513 = vadd.f32 %v9330, %v9512
    %9514 = vadd.xlane.f32.xlu0 %v9513
    %v9515 = vpop.xlane.xlu0 %9514
    %v9516 = vsel %vm7007, %v9333, 0.0
    %v9517 = vadd.f32 %v9332, %v9516
    %9518 = vadd.xlane.f32.xlu0 %v9517
    %v9519 = vpop.xlane.xlu0 %9518
    %v9520 = vsel %vm7007, %v9335, 0.0
    %v9521 = vadd.f32 %v9334, %v9520
    %9522 = vadd.xlane.f32.xlu0 %v9521
    %v9523 = vpop.xlane.xlu0 %9522
    %v9524 = vsel %vm7007, %v9337, 0.0
    %v9525 = vadd.f32 %v9336, %v9524
    %9526 = vadd.xlane.f32.xlu0 %v9525
    %v9527 = vpop.xlane.xlu0 %9526
    %v9528 = vsel %vm7007, %v9339, 0.0
    %v9529 = vadd.f32 %v9338, %v9528
    %9530 = vadd.xlane.f32.xlu0 %v9529
    %v9531 = vpop.xlane.xlu0 %9530
    %v9532 = vsel %vm7007, %v9341, 0.0
    %v9533 = vadd.f32 %v9340, %v9532
    %9534 = vadd.xlane.f32.xlu0 %v9533
    %v9535 = vpop.xlane.xlu0 %9534
    %v9536 = vsel %vm7007, %v9343, 0.0
    %v9537 = vadd.f32 %v9342, %v9536
    %9538 = vadd.xlane.f32.xlu0 %v9537
    %v9539 = vpop.xlane.xlu0 %9538
    %v9540 = vsel %vm7007, %v9345, 0.0
    %v9541 = vadd.f32 %v9344, %v9540
    %9542 = vadd.xlane.f32.xlu0 %v9541
    %v9543 = vpop.xlane.xlu0 %9542
    %v9544 = vsel %vm7007, %v9347, 0.0
    %v9545 = vadd.f32 %v9346, %v9544
    %9546 = vadd.xlane.f32.xlu0 %v9545
    %v9547 = vpop.xlane.xlu0 %9546
    %v9548 = vsel %vm7007, %v9349, 0.0
    %v9549 = vadd.f32 %v9348, %v9548
    %9550 = vadd.xlane.f32.xlu0 %v9549
    %v9551 = vpop.xlane.xlu0 %9550
    %v9552 = vsel %vm7007, %v9351, 0.0
    %v9553 = vadd.f32 %v9350, %v9552
    %9554 = vadd.xlane.f32.xlu0 %v9553
    %v9555 = vpop.xlane.xlu0 %9554
    %v9556 = vsel %vm7007, %v9353, 0.0
    %v9557 = vadd.f32 %v9352, %v9556
    %9558 = vadd.xlane.f32.xlu0 %v9557
    %v9559 = vpop.xlane.xlu0 %9558
    %v9560 = vsel %vm7007, %v9355, 0.0
    %v9561 = vadd.f32 %v9354, %v9560
    %9562 = vadd.xlane.f32.xlu0 %v9561
    %v9563 = vpop.xlane.xlu0 %9562
    %v9564 = vsel %vm7007, %v9357, 0.0
    %v9565 = vadd.f32 %v9356, %v9564
    %9566 = vadd.xlane.f32.xlu0 %v9565
    %v9567 = vpop.xlane.xlu0 %9566
    %v9568 = vsel %vm7007, %v9359, 0.0
    %v9569 = vadd.f32 %v9358, %v9568
    %9570 = vadd.xlane.f32.xlu0 %v9569
    %v9571 = vpop.xlane.xlu0 %9570
    %v9572 = vsel %vm7007, %v9361, 0.0
    %v9573 = vadd.f32 %v9360, %v9572
    %9574 = vadd.xlane.f32.xlu0 %v9573
    %v9575 = vpop.xlane.xlu0 %9574
    %v9576 = vsel %vm7007, %v9363, 0.0
    %v9577 = vadd.f32 %v9362, %v9576
    %9578 = vadd.xlane.f32.xlu0 %v9577
    %v9579 = vpop.xlane.xlu0 %9578
    %v9580 = vsel %vm7007, %v9365, 0.0
    %v9581 = vadd.f32 %v9364, %v9580
    %9582 = vadd.xlane.f32.xlu0 %v9581
    %v9583 = vpop.xlane.xlu0 %9582
    %v9584 = vsel %vm7007, %v9367, 0.0
    %v9585 = vadd.f32 %v9366, %v9584
    %9586 = vadd.xlane.f32.xlu0 %v9585
    %v9587 = vpop.xlane.xlu0 %9586
    %v9588 = vsel %vm7007, %v9369, 0.0
    %v9589 = vadd.f32 %v9368, %v9588
    %9590 = vadd.xlane.f32.xlu0 %v9589
    %v9591 = vpop.xlane.xlu0 %9590
    %v9592 = vsel %vm7007, %v9371, 0.0
    %v9593 = vadd.f32 %v9370, %v9592
    %9594 = vadd.xlane.f32.xlu0 %v9593
    %v9595 = vpop.xlane.xlu0 %9594
    %v9596 = vsel %vm7007, %v9373, 0.0
    %v9597 = vadd.f32 %v9372, %v9596
    %9598 = vadd.xlane.f32.xlu0 %v9597
    %v9599 = vpop.xlane.xlu0 %9598
    %v9600 = vsel %vm7007, %v9375, 0.0
    %v9601 = vadd.f32 %v9374, %v9600
    %9602 = vadd.xlane.f32.xlu0 %v9601
    %v9603 = vpop.xlane.xlu0 %9602
    %v9604 = vsel %vm7007, %v9377, 0.0
    %v9605 = vadd.f32 %v9376, %v9604
    %9606 = vadd.xlane.f32.xlu0 %v9605
    %v9607 = vpop.xlane.xlu0 %9606
    %v9608 = vsel %vm7007, %v9379, 0.0
    %v9609 = vadd.f32 %v9378, %v9608
    %9610 = vadd.xlane.f32.xlu0 %v9609
    %v9611 = vpop.xlane.xlu0 %9610
    %v9612 = vsel %vm7007, %v9381, 0.0
    %v9613 = vadd.f32 %v9380, %v9612
    %9614 = vadd.xlane.f32.xlu0 %v9613
    %v9615 = vpop.xlane.xlu0 %9614
    %v9616 = vsel %vm7007, %v9383, 0.0
    %v9617 = vadd.f32 %v9382, %v9616
    %9618 = vadd.xlane.f32.xlu0 %v9617
    %v9619 = vpop.xlane.xlu0 %9618
    %v9620 = vsel %vm7007, %v9385, 0.0
    %v9621 = vadd.f32 %v9384, %v9620
    %9622 = vadd.xlane.f32.xlu0 %v9621
    %v9623 = vpop.xlane.xlu0 %9622
    %v9624 = vsel %vm7007, %v9387, 0.0
    %v9625 = vadd.f32 %v9386, %v9624
    %9626 = vadd.xlane.f32.xlu0 %v9625
    %v9627 = vpop.xlane.xlu0 %9626
    %v9628 = vsel %vm7007, %v9389, 0.0
    %v9629 = vadd.f32 %v9388, %v9628
    %9630 = vadd.xlane.f32.xlu0 %v9629
    %v9631 = vpop.xlane.xlu0 %9630
    %v9632 = vsel %vm7007, %v9391, 0.0
    %v9633 = vadd.f32 %v9390, %v9632
    %9634 = vadd.xlane.f32.xlu0 %v9633
    %v9635 = vpop.xlane.xlu0 %9634
    %v9636 = vsel %vm7007, %v9393, 0.0
    %v9637 = vadd.f32 %v9392, %v9636
    %9638 = vadd.xlane.f32.xlu0 %v9637
    %v9639 = vpop.xlane.xlu0 %9638
    %v9640 = vsel %vm7007, %v9395, 0.0
    %v9641 = vadd.f32 %v9394, %v9640
    %9642 = vadd.xlane.f32.xlu0 %v9641
    %v9643 = vpop.xlane.xlu0 %9642
    %v9644 = vsel %vm7007, %v9397, 0.0
    %v9645 = vadd.f32 %v9396, %v9644
    %9646 = vadd.xlane.f32.xlu0 %v9645
    %v9647 = vpop.xlane.xlu0 %9646
    %v9648 = vsel %vm7007, %v9399, 0.0
    %v9649 = vadd.f32 %v9398, %v9648
    %9650 = vadd.xlane.f32.xlu0 %v9649
    %v9651 = vpop.xlane.xlu0 %9650
    %v9652 = vsel %vm7007, %v9401, 0.0
    %v9653 = vadd.f32 %v9400, %v9652
    %9654 = vadd.xlane.f32.xlu0 %v9653
    %v9655 = vpop.xlane.xlu0 %9654
    %v9656 = vsel %vm7007, %v9403, 0.0
    %v9657 = vadd.f32 %v9402, %v9656
    %9658 = vadd.xlane.f32.xlu0 %v9657
    %v9659 = vpop.xlane.xlu0 %9658
    %v9660 = vld [vmem:[#allocation5] sm:$0x1]
    %v9662 = vlaneseq
    %v9663 = vshrl.u32 %v9662, 7
    %v9664 = vsub.s32 0, %v9663
    %v9665 = vrot.slane %v9660, %v9664
    %v9667 = vadd.f32 %v9407, %v9665
    %v9668 = vadd.f32 %v9411, %v9665
    %v9669 = vadd.f32 %v9415, %v9665
    %v9670 = vadd.f32 %v9419, %v9665
    %v9671 = vadd.f32 %v9423, %v9665
    %v9672 = vadd.f32 %v9427, %v9665
    %v9673 = vadd.f32 %v9431, %v9665
    %v9674 = vadd.f32 %v9435, %v9665
    %v9675 = vadd.f32 %v9439, %v9665
    %v9676 = vadd.f32 %v9443, %v9665
    %v9677 = vadd.f32 %v9447, %v9665
    %v9678 = vadd.f32 %v9451, %v9665
    %v9679 = vadd.f32 %v9455, %v9665
    %v9680 = vadd.f32 %v9459, %v9665
    %v9681 = vadd.f32 %v9463, %v9665
    %v9682 = vadd.f32 %v9467, %v9665
    %v9683 = vadd.f32 %v9471, %v9665
    %v9684 = vadd.f32 %v9475, %v9665
    %v9685 = vadd.f32 %v9479, %v9665
    %v9686 = vadd.f32 %v9483, %v9665
    %v9687 = vadd.f32 %v9487, %v9665
    %v9688 = vadd.f32 %v9491, %v9665
    %v9689 = vadd.f32 %v9495, %v9665
    %v9690 = vadd.f32 %v9499, %v9665
    %v9691 = vadd.f32 %v9503, %v9665
    %v9692 = vadd.f32 %v9507, %v9665
    %v9693 = vadd.f32 %v9511, %v9665
    %v9694 = vadd.f32 %v9515, %v9665
    %v9695 = vadd.f32 %v9519, %v9665
    %v9696 = vadd.f32 %v9523, %v9665
    %v9697 = vadd.f32 %v9527, %v9665
    %v9698 = vadd.f32 %v9531, %v9665
    %v9699 = vadd.f32 %v9535, %v9665
    %v9700 = vadd.f32 %v9539, %v9665
    %v9701 = vadd.f32 %v9543, %v9665
    %v9702 = vadd.f32 %v9547, %v9665
    %v9703 = vadd.f32 %v9551, %v9665
    %v9704 = vadd.f32 %v9555, %v9665
    %v9705 = vadd.f32 %v9559, %v9665
    %v9706 = vadd.f32 %v9563, %v9665
    %v9707 = vadd.f32 %v9567, %v9665
    %v9708 = vadd.f32 %v9571, %v9665
    %v9709 = vadd.f32 %v9575, %v9665
    %v9710 = vadd.f32 %v9579, %v9665
    %v9711 = vadd.f32 %v9583, %v9665
    %v9712 = vadd.f32 %v9587, %v9665
    %v9713 = vadd.f32 %v9591, %v9665
    %v9714 = vadd.f32 %v9595, %v9665
    %v9715 = vadd.f32 %v9599, %v9665
    %v9716 = vadd.f32 %v9603, %v9665
    %v9717 = vadd.f32 %v9607, %v9665
    %v9718 = vadd.f32 %v9611, %v9665
    %v9719 = vadd.f32 %v9615, %v9665
    %v9720 = vadd.f32 %v9619, %v9665
    %v9721 = vadd.f32 %v9623, %v9665
    %v9722 = vadd.f32 %v9627, %v9665
    %v9723 = vadd.f32 %v9631, %v9665
    %v9724 = vadd.f32 %v9635, %v9665
    %v9725 = vadd.f32 %v9639, %v9665
    %v9726 = vadd.f32 %v9643, %v9665
    %v9727 = vadd.f32 %v9647, %v9665
    %v9728 = vadd.f32 %v9651, %v9665
    %v9729 = vadd.f32 %v9655, %v9665
    %v9730 = vadd.f32 %v9659, %v9665
    %v9731 = vtanh.pop %v9667
    %v9732 = vtanh.pop %v9668
    %v9733 = vtanh.pop %v9669
    %v9734 = vtanh.pop %v9670
    %v9735 = vtanh.pop %v9671
    %v9736 = vtanh.pop %v9672
    %v9737 = vtanh.pop %v9673
    %v9738 = vtanh.pop %v9674
    %v9739 = vtanh.pop %v9675
    %v9740 = vtanh.pop %v9676
    %v9741 = vtanh.pop %v9677
    %v9742 = vtanh.pop %v9678
    %v9743 = vtanh.pop %v9679
    %v9744 = vtanh.pop %v9680
    %v9745 = vtanh.pop %v9681
    %v9746 = vtanh.pop %v9682
    %v9747 = vtanh.pop %v9683
    %v9748 = vtanh.pop %v9684
    %v9749 = vtanh.pop %v9685
    %v9750 = vtanh.pop %v9686
    %v9751 = vtanh.pop %v9687
    %v9752 = vtanh.pop %v9688
    %v9753 = vtanh.pop %v9689
    %v9754 = vtanh.pop %v9690
    %v9755 = vtanh.pop %v9691
    %v9756 = vtanh.pop %v9692
    %v9757 = vtanh.pop %v9693
    %v9758 = vtanh.pop %v9694
    %v9759 = vtanh.pop %v9695
    %v9760 = vtanh.pop %v9696
    %v9761 = vtanh.pop %v9697
    %v9762 = vtanh.pop %v9698
    %v9763 = vtanh.pop %v9699
    %v9764 = vtanh.pop %v9700
    %v9765 = vtanh.pop %v9701
    %v9766 = vtanh.pop %v9702
    %v9767 = vtanh.pop %v9703
    %v9768 = vtanh.pop %v9704
    %v9769 = vtanh.pop %v9705
    %v9770 = vtanh.pop %v9706
    %v9771 = vtanh.pop %v9707
    %v9772 = vtanh.pop %v9708
    %v9773 = vtanh.pop %v9709
    %v9774 = vtanh.pop %v9710
    %v9775 = vtanh.pop %v9711
    %v9776 = vtanh.pop %v9712
    %v9777 = vtanh.pop %v9713
    %v9778 = vtanh.pop %v9714
    %v9779 = vtanh.pop %v9715
    %v9780 = vtanh.pop %v9716
    %v9781 = vtanh.pop %v9717
    %v9782 = vtanh.pop %v9718
    %v9783 = vtanh.pop %v9719
    %v9784 = vtanh.pop %v9720
    %v9785 = vtanh.pop %v9721
    %v9786 = vtanh.pop %v9722
    %v9787 = vtanh.pop %v9723
    %v9788 = vtanh.pop %v9724
    %v9789 = vtanh.pop %v9725
    %v9790 = vtanh.pop %v9726
    %v9791 = vtanh.pop %v9727
    %v9792 = vtanh.pop %v9728
    %v9793 = vtanh.pop %v9729
    %v9794 = vtanh.pop %v9730
    %vm9795 = vcmask 7168
    %9796 = vst.msk [vmem:[%s15] sm:$0xff] %vm9795, %v9731
    %9797 = vst.msk [vmem:[%s15 + $0x8] sm:$0xff] %vm9795, %v9732
    %9798 = vst.msk [vmem:[%s15 + $0x10] sm:$0xff] %vm9795, %v9733
    %9799 = vst.msk [vmem:[%s15 + $0x18] sm:$0xff] %vm9795, %v9734
    %9800 = vst.msk [vmem:[%s15 + $0x20] sm:$0xff] %vm9795, %v9735
    %9801 = vst.msk [vmem:[%s15 + $0x28] sm:$0xff] %vm9795, %v9736
    %9802 = vst.msk [vmem:[%s15 + $0x30] sm:$0xff] %vm9795, %v9737
    %9803 = vst.msk [vmem:[%s15 + $0x38] sm:$0xff] %vm9795, %v9738
    %9804 = vst.msk [vmem:[%s15 + $0x40] sm:$0xff] %vm9795, %v9739
    %9805 = vst.msk [vmem:[%s15 + $0x48] sm:$0xff] %vm9795, %v9740
    %9806 = vst.msk [vmem:[%s15 + $0x50] sm:$0xff] %vm9795, %v9741
    %9807 = vst.msk [vmem:[%s15 + $0x58] sm:$0xff] %vm9795, %v9742
    %9808 = vst.msk [vmem:[%s15 + $0x60] sm:$0xff] %vm9795, %v9743
    %9809 = vst.msk [vmem:[%s15 + $0x68] sm:$0xff] %vm9795, %v9744
    %9810 = vst.msk [vmem:[%s15 + $0x70] sm:$0xff] %vm9795, %v9745
    %9811 = vst.msk [vmem:[%s15 + $0x78] sm:$0xff] %vm9795, %v9746
    %9812 = vst.msk [vmem:[%s15 + $0x80] sm:$0xff] %vm9795, %v9747
    %9813 = vst.msk [vmem:[%s15 + $0x88] sm:$0xff] %vm9795, %v9748
    %9814 = vst.msk [vmem:[%s15 + $0x90] sm:$0xff] %vm9795, %v9749
    %9815 = vst.msk [vmem:[%s15 + $0x98] sm:$0xff] %vm9795, %v9750
    %9816 = vst.msk [vmem:[%s15 + $0xa0] sm:$0xff] %vm9795, %v9751
    %9817 = vst.msk [vmem:[%s15 + $0xa8] sm:$0xff] %vm9795, %v9752
    %9818 = vst.msk [vmem:[%s15 + $0xb0] sm:$0xff] %vm9795, %v9753
    %9819 = vst.msk [vmem:[%s15 + $0xb8] sm:$0xff] %vm9795, %v9754
    %9820 = vst.msk [vmem:[%s15 + $0xc0] sm:$0xff] %vm9795, %v9755
    %9821 = vst.msk [vmem:[%s15 + $0xc8] sm:$0xff] %vm9795, %v9756
    %9822 = vst.msk [vmem:[%s15 + $0xd0] sm:$0xff] %vm9795, %v9757
    %9823 = vst.msk [vmem:[%s15 + $0xd8] sm:$0xff] %vm9795, %v9758
    %9824 = vst.msk [vmem:[%s15 + $0xe0] sm:$0xff] %vm9795, %v9759
    %9825 = vst.msk [vmem:[%s15 + $0xe8] sm:$0xff] %vm9795, %v9760
    %9826 = vst.msk [vmem:[%s15 + $0xf0] sm:$0xff] %vm9795, %v9761
    %9827 = vst.msk [vmem:[%s15 + $0xf8] sm:$0xff] %vm9795, %v9762
    %9828 = vst.msk [vmem:[%s15 + $0x100] sm:$0xff] %vm9795, %v9763
    %9829 = vst.msk [vmem:[%s15 + $0x108] sm:$0xff] %vm9795, %v9764
    %9830 = vst.msk [vmem:[%s15 + $0x110] sm:$0xff] %vm9795, %v9765
    %9831 = vst.msk [vmem:[%s15 + $0x118] sm:$0xff] %vm9795, %v9766
    %9832 = vst.msk [vmem:[%s15 + $0x120] sm:$0xff] %vm9795, %v9767
    %9833 = vst.msk [vmem:[%s15 + $0x128] sm:$0xff] %vm9795, %v9768
    %9834 = vst.msk [vmem:[%s15 + $0x130] sm:$0xff] %vm9795, %v9769
    %9835 = vst.msk [vmem:[%s15 + $0x138] sm:$0xff] %vm9795, %v9770
    %9836 = vst.msk [vmem:[%s15 + $0x140] sm:$0xff] %vm9795, %v9771
    %9837 = vst.msk [vmem:[%s15 + $0x148] sm:$0xff] %vm9795, %v9772
    %9838 = vst.msk [vmem:[%s15 + $0x150] sm:$0xff] %vm9795, %v9773
    %9839 = vst.msk [vmem:[%s15 + $0x158] sm:$0xff] %vm9795, %v9774
    %9840 = vst.msk [vmem:[%s15 + $0x160] sm:$0xff] %vm9795, %v9775
    %9841 = vst.msk [vmem:[%s15 + $0x168] sm:$0xff] %vm9795, %v9776
    %9842 = vst.msk [vmem:[%s15 + $0x170] sm:$0xff] %vm9795, %v9777
    %9843 = vst.msk [vmem:[%s15 + $0x178] sm:$0xff] %vm9795, %v9778
    %9844 = vst.msk [vmem:[%s15 + $0x180] sm:$0xff] %vm9795, %v9779
    %9845 = vst.msk [vmem:[%s15 + $0x188] sm:$0xff] %vm9795, %v9780
    %9846 = vst.msk [vmem:[%s15 + $0x190] sm:$0xff] %vm9795, %v9781
    %9847 = vst.msk [vmem:[%s15 + $0x198] sm:$0xff] %vm9795, %v9782
    %9848 = vst.msk [vmem:[%s15 + $0x1a0] sm:$0xff] %vm9795, %v9783
    %9849 = vst.msk [vmem:[%s15 + $0x1a8] sm:$0xff] %vm9795, %v9784
    %9850 = vst.msk [vmem:[%s15 + $0x1b0] sm:$0xff] %vm9795, %v9785
    %9851 = vst.msk [vmem:[%s15 + $0x1b8] sm:$0xff] %vm9795, %v9786
    %9852 = vst.msk [vmem:[%s15 + $0x1c0] sm:$0xff] %vm9795, %v9787
    %9853 = vst.msk [vmem:[%s15 + $0x1c8] sm:$0xff] %vm9795, %v9788
    %9854 = vst.msk [vmem:[%s15 + $0x1d0] sm:$0xff] %vm9795, %v9789
    %9855 = vst.msk [vmem:[%s15 + $0x1d8] sm:$0xff] %vm9795, %v9790
    %9856 = vst.msk [vmem:[%s15 + $0x1e0] sm:$0xff] %vm9795, %v9791
    %9857 = vst.msk [vmem:[%s15 + $0x1e8] sm:$0xff] %vm9795, %v9792
    %9858 = vst.msk [vmem:[%s15 + $0x1f0] sm:$0xff] %vm9795, %v9793
    %9859 = vst.msk [vmem:[%s15 + $0x1f8] sm:$0xff] %vm9795, %v9794
    // Predicated region
    $region66: #{generator_forward.1} parent=1 // pred_check
      _
    $region67: #{generator_forward.1} parent=1 // pred_check_branch
      %9861 = sbr.rel (0) target = $region69
    $region68: #{generator_forward.1} parent=1 // pred_region
      _
    $region69: #{generator_forward.1} parent=1 // pred_fallthru
      _
    // Predicated region
    $region70: #{generator_forward.1} parent=1 // pred_check
      _
    $region71: #{generator_forward.1} parent=1 // pred_check_branch
      %9863 = sbr.rel (0) target = $region73
    $region72: #{generator_forward.1} parent=1 // pred_region
      _
    $region73: #{generator_forward.1} parent=1 // pred_fallthru
      _
    %9864 = vsyncpa [#allocation7], 1

</llo_original>
